<compile_context>
chip_gen: v5e
topology: v5e:2x2
jax: 0.10.0
libtpu: 0.0.40
codegen_flags: <defaults>
</compile_context>

<pallas_src>
import functools

import jax
import jax.numpy as jnp
from jax import lax
from jax.experimental import pallas as pl
from jax.experimental.pallas import tpu as pltpu

BN_EPS = 1e-5
LANE = 128


def _round_up(x, m):
    return (x + m - 1) // m * m


def _row_chunks(H, rc):
    """Static (start_row, num_rows) chunk descriptors covering [0, H)."""
    chunks = []
    h0 = 0
    while h0 < H:
        r = min(rc, H - h0)
        chunks.append((h0, r))
        h0 += r
    return tuple(chunks)


# ---------------------------------------------------------------------------
# Fused bottleneck kernel: one batch image (flattened H*W rows) per grid step.
# ---------------------------------------------------------------------------
def _bottleneck_kernel(x_ref, w1_ref, s1_ref, b1_ref,
                       w2_ref, s2_ref, b2_ref,
                       w3_ref, s3_ref, b3_ref,
                       o_ref,
                       pad_sc, patch_sc, y2c_sc,
                       *, H, W, Wpp, base, c1p, chunks):
    f32 = jnp.float32
    bf16 = jnp.bfloat16

    # Small per-channel BN params (hoisted; broadcast happens in the epilogues).
    s1 = s1_ref[...]; b1 = b1_ref[...]
    s2 = s2_ref[...]; b2 = b2_ref[...]
    s3 = s3_ref[...]; b3 = b3_ref[...]

    # Hoisted zero constants (JAX does not CSE broadcast_in_dim).
    stripe = jnp.zeros((Wpp + 8, c1p), bf16)        # top / bottom halo stripes
    zjunk = jnp.zeros((Wpp - W, c1p), bf16)         # right-halo junk columns

    # ---- halo-only zeroing --------------------------------------------------
    # Interior rows are fully rewritten by the scatter below and junk columns
    # are re-zeroed inside the scatter loop, so only the border stripes need a
    # memset.  Re-done every grid step => correct under megacore grid sharding
    # (scratch persists per core across steps).
    pad_sc[0:base, :] = stripe
    pad_sc[base + H * Wpp:base + (H + 1) * Wpp + 8, :] = stripe

    # ---- pass 1: conv1 (1x1) + bn1 + relu, scattered into the halo scratch --
    # Valid pixel (h, w) lives at flat index base + h*Wpp + w; base and Wpp are
    # multiples of 8 so every per-row store is sublane-aligned.
    for h0, rc in chunks:
        xin = x_ref[h0 * W:(h0 + rc) * W, :]                       # (rc*W, cin) f32
        y1 = jnp.dot(xin.astype(bf16), w1_ref[...],
                     preferred_element_type=f32)                   # (rc*W, c1p)
        y1 = jnp.maximum(y1 * s1 + b1, 0.0).astype(bf16)
        for r in range(rc):
            dst = base + (h0 + r) * Wpp                            # aligned
            pad_sc[dst:dst + W, :] = y1[r * W:(r + 1) * W, :]
            pad_sc[dst + W:dst + Wpp, :] = zjunk                   # keep halo 0

    # ---- pass 2: conv2 (3x3) + bn2 + relu -> conv3 (1x1) + bn3 + residual ---
    for h0, rc in chunks:
        M2 = rc * Wpp
        # im2col: 9 contiguous slabs of the padded scratch, one wide-K matmul.
        for kh in range(3):
            for kw in range(3):
                j = kh * 3 + kw
                off = base + (h0 + kh - 1) * Wpp + (kw - 1)
                patch_sc[0:M2, j * c1p:(j + 1) * c1p] = pad_sc[off:off + M2, :]
        y2 = jnp.dot(patch_sc[0:M2, :], w2_ref[...],
                     preferred_element_type=f32)                   # (M2, c1p)
        y2 = jnp.maximum(y2 * s2 + b2, 0.0).astype(bf16)

        # Fused compaction: keep only the W valid columns of each image row.
        for r in range(rc):
            y2c_sc[r * W:(r + 1) * W, :] = y2[r * Wpp:r * Wpp + W, :]

        Mc = rc * W
        y3 = jnp.dot(y2c_sc[0:Mc, :], w3_ref[...],
                     preferred_element_type=f32)                   # (Mc, cout)
        y3 = y3 * s3 + b3 + x_ref[h0 * W:h0 * W + Mc, :]           # f32 residual
        o_ref[h0 * W:h0 * W + Mc, :] = jnp.maximum(y3, 0.0).astype(o_ref.dtype)


# ---------------------------------------------------------------------------
# Wrappers
# ---------------------------------------------------------------------------
def bottleneck_forward_nhwc(x_nhwc, kp, *, rows_per_chunk=8):
    """Fused bottleneck on NHWC activations (params from prepare_kernel_params).
    Prefer this entry point inside a full NHWC network."""
    N, H, W, cin = x_nhwc.shape
    c1p, cout = kp["c1p"], kp["cout"]
    assert cin == kp["cin"], "input channel count mismatch"
    # TODO(synk): downsample branch not implemented; identity residual only.
    assert cin == cout, "identity residual requires inplanes == planes*4"

    HW = H * W
    Wpp = _round_up(W + 2, 8)            # width-padded flat row stride
    base = Wpp + 8                       # aligned start of valid row 0
    pad_rows = base + (H + 1) * Wpp + 8  # covers the largest im2col slab read
    RC = max(1, min(rows_per_chunk, H))  # image rows per chunk
    chunks = _row_chunks(H, RC)

    x_flat = x_nhwc.reshape(N, HW, cin)  # free reshape in the XLA wrapper

    kernel = functools.partial(_bottleneck_kernel, H=H, W=W, Wpp=Wpp,
                               base=base, c1p=c1p, chunks=chunks)

    def full(n):
        return (0, 0)

    out_flat = pl.pallas_call(
        kernel,
        out_shape=jax.ShapeDtypeStruct((N, HW, cout), jnp.float32),
        grid_spec=pltpu.PrefetchScalarGridSpec(
            num_scalar_prefetch=0,
            grid=(N,),
            in_specs=[
                pl.BlockSpec((None, HW, cin), lambda n: (n, 0, 0)),   # x (flat)
                pl.BlockSpec((cin, c1p), full),                       # w1
                pl.BlockSpec((1, c1p), full),                         # s1
                pl.BlockSpec((1, c1p), full),                         # b1
                pl.BlockSpec((9 * c1p, c1p), full),                   # w2 (im2col)
                pl.BlockSpec((1, c1p), full),                         # s2
                pl.BlockSpec((1, c1p), full),                         # b2
                pl.BlockSpec((c1p, cout), full),                      # w3
                pl.BlockSpec((1, cout), full),                        # s3
                pl.BlockSpec((1, cout), full),                        # b3
            ],
            out_specs=pl.BlockSpec((None, HW, cout), lambda n: (n, 0, 0)),
            scratch_shapes=[
                pltpu.VMEM((pad_rows, c1p), jnp.bfloat16),        # zero-halo out1
                pltpu.VMEM((RC * Wpp, 9 * c1p), jnp.bfloat16),    # per-chunk im2col
                pltpu.VMEM((RC * W, c1p), jnp.bfloat16),          # per-chunk out2
            ],
        ),
        compiler_params=pltpu.CompilerParams(
            dimension_semantics=("parallel",),
            vmem_limit_bytes=64 * 1024 * 1024),
    )(x_flat, kp["w1"], kp["s1"], kp["b1"],
      kp["w2"], kp["s2"], kp["b2"],
      kp["w3"], kp["s3"], kp["b3"])

    return out_flat.reshape(N, H, W, cout)


def prepare_kernel_params(p):
    """Zero-pad intermediate channels to the 128-lane width, reshape the 3x3
    weight to im2col layout (9*c1p, c1p) and cast MXU operands to bf16.
    BN scale/bias stay f32 (padded lanes are exactly zero, numerics unchanged)."""
    cin, c1 = p["w1"].shape
    cout = p["w3"].shape[1]
    c1p = _round_up(c1, LANE)
    pc = c1p - c1

    w1 = jnp.pad(p["w1"], ((0, 0), (0, pc))).astype(jnp.bfloat16)
    w2 = jnp.pad(p["w2"], ((0, 0), (0, 0), (0, pc), (0, pc)))
    w2 = w2.reshape(9 * c1p, c1p).astype(jnp.bfloat16)
    w3 = jnp.pad(p["w3"], ((0, pc), (0, 0))).astype(jnp.bfloat16)

    def padc(a):
        return jnp.pad(a, ((0, 0), (0, pc))).astype(jnp.float32)

    return dict(w1=w1, w2=w2, w3=w3,
                s1=padc(p["s1"]), b1=padc(p["b1"]),
                s2=padc(p["s2"]), b2=padc(p["b2"]),
                s3=p["s3"].astype(jnp.float32), b3=p["b3"].astype(jnp.float32),
                cin=cin, c1p=c1p, cout=cout)


def bottleneck_forward(x_nchw, p):
    """PyTorch-compatible NCHW wrapper.  The boundary transposes are the only
    XLA-level data movement left; use bottleneck_forward_nhwc directly in a
    full NHWC network to avoid them."""
    kp = prepare_kernel_params(p)
    x = jnp.transpose(x_nchw, (0, 2, 3, 1)).astype(jnp.float32)   # NHWC
    y = bottleneck_forward_nhwc(x, kp)
    return jnp.transpose(y, (0, 3, 1, 2))                          # back to NCHW


# ---------------------------------------------------------------------------
# Deterministic parameter construction + pure-JAX reference
# ---------------------------------------------------------------------------
def make_params(key, inplanes, planes):
    ks = jax.random.split(key, 15)

    def bn_fold(kg, kb, km, kv, c):
        gamma = jax.random.uniform(kg, (c,), minval=0.5, maxval=1.5)
        beta = 0.1 * jax.random.normal(kb, (c,))
        mean = 0.1 * jax.random.normal(km, (c,))
        var = jax.random.uniform(kv, (c,), minval=0.5, maxval=1.5)
        scale = gamma / jnp.sqrt(var + BN_EPS)
        bias = beta - mean * scale
        return (scale.reshape(1, c).astype(jnp.float32),
                bias.reshape(1, c).astype(jnp.float32))

    w1 = 0.1 * jax.random.normal(ks[0], (inplanes, planes), jnp.float32)
    w2 = 0.1 * jax.random.normal(ks[1], (3, 3, planes, planes), jnp.float32)
    w3 = 0.1 * jax.random.normal(ks[2], (planes, planes * 4), jnp.float32)
    s1, b1 = bn_fold(ks[3], ks[4], ks[5], ks[6], planes)
    s2, b2 = bn_fold(ks[7], ks[8], ks[9], ks[10], planes)
    s3, b3 = bn_fold(ks[11], ks[12], ks[13], ks[14], planes * 4)
    return dict(w1=w1, w2=w2, w3=w3, s1=s1, b1=b1, s2=s2, b2=b2, s3=s3, b3=b3)


def reference(x_nchw, p):
    """Pure-JAX reference with matching precision: bf16 matmul operands,
    f32 accumulation, f32 BN / residual / ReLU epilogues."""
    x = jnp.transpose(x_nchw, (0, 2, 3, 1)).astype(jnp.float32)
    dn = ("NHWC", "HWIO", "NHWC")

    def conv(inp, w, padding="VALID"):
        return lax.conv_general_dilated(
            inp.astype(jnp.bfloat16), w.astype(jnp.bfloat16), (1, 1), padding,
            dimension_numbers=dn, preferred_element_type=jnp.float32)

    y = conv(x, p["w1"][None, None])
    y = jnp.maximum(y * p["s1"][0] + p["b1"][0], 0.0)
    y = conv(y, p["w2"], "SAME")
    y = jnp.maximum(y * p["s2"][0] + p["b2"][0], 0.0)
    y = conv(y, p["w3"][None, None])
    y = y * p["s3"][0] + p["b3"][0] + x
    y = jnp.maximum(y, 0.0)
    return jnp.transpose(y, (0, 3, 1, 2))


if __name__ == "__main__":
    planes = 4
    inplanes = planes * 4          # 16, so the identity residual is valid
    N, H, W = 2, 16, 16

    key = jax.random.PRNGKey(0)
    k_param, k_x = jax.random.split(key)
    params = make_params(k_param, inplanes, planes)
    x = jax.random.normal(k_x, (N, inplanes, H, W), jnp.float32)   # NCHW like PyTorch

    fwd = jax.jit(bottleneck_forward)
    out = jax.block_until_ready(fwd(x, params))
    ref = jax.block_until_ready(reference(x, params))

    assert out.shape == (N, planes * 4, H, W), out.shape
    if not jnp.allclose(out, ref, atol=3e-3, rtol=3e-3):
        err = float(jnp.max(jnp.abs(out - ref)))
        raise AssertionError(
            f"Pallas Bottleneck output mismatch vs JAX reference (max|err|={err})")
    print("KERNEL_OK")
</pallas_src>

<mosaic_0001>
module attributes {stable_mosaic.version = 11 : i64} {
  func.func @_bottleneck_kernel(%arg0: i32, %arg1: memref<1x256x16xf32, #tpu.memory_space<vmem>>, %arg2: memref<16x128xbf16, #tpu.memory_space<vmem>>, %arg3: memref<1x128xf32, #tpu.memory_space<vmem>>, %arg4: memref<1x128xf32, #tpu.memory_space<vmem>>, %arg5: memref<1152x128xbf16, #tpu.memory_space<vmem>>, %arg6: memref<1x128xf32, #tpu.memory_space<vmem>>, %arg7: memref<1x128xf32, #tpu.memory_space<vmem>>, %arg8: memref<128x16xbf16, #tpu.memory_space<vmem>>, %arg9: memref<1x16xf32, #tpu.memory_space<vmem>>, %arg10: memref<1x16xf32, #tpu.memory_space<vmem>>, %arg11: memref<1x256x16xf32, #tpu.memory_space<vmem>>, %arg12: memref<448x128xbf16, #tpu.memory_space<vmem>>, %arg13: memref<192x1152xbf16, #tpu.memory_space<vmem>>, %arg14: memref<128x128xbf16, #tpu.memory_space<vmem>>) attributes {dimension_semantics = [#tpu.dimension_semantics<parallel>], iteration_bounds = array<i64: 2>, scalar_prefetch = 0 : i64, scratch_operands = 3 : i64, tpu.core_type = #tpu.core_type<tc>, window_params = [{transform_indices = @transform_0, window_bounds = array<i64: 1, 256, 16>}, {pipeline_mode = #tpu.pipeline_mode<synchronous>, transform_indices = @transform_1, window_bounds = array<i64: 16, 128>}, {pipeline_mode = #tpu.pipeline_mode<synchronous>, transform_indices = @transform_2, window_bounds = array<i64: 1, 128>}, {pipeline_mode = #tpu.pipeline_mode<synchronous>, transform_indices = @transform_3, window_bounds = array<i64: 1, 128>}, {pipeline_mode = #tpu.pipeline_mode<synchronous>, transform_indices = @transform_4, window_bounds = array<i64: 1152, 128>}, {pipeline_mode = #tpu.pipeline_mode<synchronous>, transform_indices = @transform_5, window_bounds = array<i64: 1, 128>}, {pipeline_mode = #tpu.pipeline_mode<synchronous>, transform_indices = @transform_6, window_bounds = array<i64: 1, 128>}, {pipeline_mode = #tpu.pipeline_mode<synchronous>, transform_indices = @transform_7, window_bounds = array<i64: 128, 16>}, {pipeline_mode = #tpu.pipeline_mode<synchronous>, transform_indices = @transform_8, window_bounds = array<i64: 1, 16>}, {pipeline_mode = #tpu.pipeline_mode<synchronous>, transform_indices = @transform_9, window_bounds = array<i64: 1, 16>}, {transform_indices = @transform_10, window_bounds = array<i64: 1, 256, 16>}]} {
    %c0 = arith.constant 0 : index
    %c0_0 = arith.constant 0 : index
    %0 = vector.load %arg3[%c0, %c0_0] : memref<1x128xf32, #tpu.memory_space<vmem>>, vector<1x128xf32>
    %c0_1 = arith.constant 0 : index
    %c0_2 = arith.constant 0 : index
    %1 = vector.load %arg4[%c0_1, %c0_2] : memref<1x128xf32, #tpu.memory_space<vmem>>, vector<1x128xf32>
    %c0_3 = arith.constant 0 : index
    %c0_4 = arith.constant 0 : index
    %2 = vector.load %arg6[%c0_3, %c0_4] : memref<1x128xf32, #tpu.memory_space<vmem>>, vector<1x128xf32>
    %c0_5 = arith.constant 0 : index
    %c0_6 = arith.constant 0 : index
    %3 = vector.load %arg7[%c0_5, %c0_6] : memref<1x128xf32, #tpu.memory_space<vmem>>, vector<1x128xf32>
    %c0_7 = arith.constant 0 : index
    %c0_8 = arith.constant 0 : index
    %4 = vector.load %arg9[%c0_7, %c0_8] : memref<1x16xf32, #tpu.memory_space<vmem>>, vector<1x16xf32>
    %c0_9 = arith.constant 0 : index
    %c0_10 = arith.constant 0 : index
    %5 = vector.load %arg10[%c0_9, %c0_10] : memref<1x16xf32, #tpu.memory_space<vmem>>, vector<1x16xf32>
    %cst = arith.constant 0.000000e+00 : bf16
    %6 = vector.broadcast %cst : bf16 to vector<32x128xbf16>
    %cst_11 = arith.constant 0.000000e+00 : bf16
    %7 = vector.broadcast %cst_11 : bf16 to vector<8x128xbf16>
    %c0_12 = arith.constant 0 : index
    %c0_13 = arith.constant 0 : index
    %8 = vector.load %arg12[%c0_12, %c0_13] : memref<448x128xbf16, #tpu.memory_space<vmem>>, vector<32x128xbf16>
    tpu.vector_store %arg12[%c0_12, %c0_13], %6 {strides = array<i32>} : memref<448x128xbf16, #tpu.memory_space<vmem>>, vector<32x128xbf16>,
    %c416 = arith.constant 416 : index
    %c0_14 = arith.constant 0 : index
    %9 = vector.load %arg12[%c416, %c0_14] : memref<448x128xbf16, #tpu.memory_space<vmem>>, vector<32x128xbf16>
    tpu.vector_store %arg12[%c416, %c0_14], %6 {strides = array<i32>} : memref<448x128xbf16, #tpu.memory_space<vmem>>, vector<32x128xbf16>,
    %c0_15 = arith.constant 0 : index
    %c0_16 = arith.constant 0 : index
    %c0_17 = arith.constant 0 : index
    %10 = vector.load %arg1[%c0_15, %c0_16, %c0_17] : memref<1x256x16xf32, #tpu.memory_space<vmem>>, vector<1x128x16xf32>
    %11 = vector.shape_cast %10 : vector<1x128x16xf32> to vector<128x16xf32>
    %12 = arith.truncf %11 : vector<128x16xf32> to vector<128x16xbf16>
    %c0_18 = arith.constant 0 : index
    %c0_19 = arith.constant 0 : index
    %13 = vector.load %arg2[%c0_18, %c0_19] : memref<16x128xbf16, #tpu.memory_space<vmem>>, vector<16x128xbf16>
    %cst_20 = arith.constant dense<0.000000e+00> : vector<128x128xf32>
    %14 = tpu.matmul %12, %13, %cst_20 {dimension_numbers = #tpu.dot_dimension_numbers<[1], [0], [0], [1], [0, 0, 1, 1], [], []>} : vector<128x16xbf16>, vector<16x128xbf16>, vector<128x128xf32> -> vector<128x128xf32>
    %15 = vector.broadcast %0 : vector<1x128xf32> to vector<128x128xf32>
    %16 = arith.mulf %14, %15 : vector<128x128xf32>
    %17 = vector.broadcast %1 : vector<1x128xf32> to vector<128x128xf32>
    %18 = arith.addf %16, %17 : vector<128x128xf32>
    %cst_21 = arith.constant 0.000000e+00 : f32
    %19 = vector.broadcast %cst_21 : f32 to vector<128x128xf32>
    %20 = arith.maximumf %18, %19 : vector<128x128xf32>
    %21 = arith.truncf %20 : vector<128x128xf32> to vector<128x128xbf16>
    %22 = vector.extract_strided_slice %21 {offsets = [0, 0], sizes = [16, 128], strides = [1, 1]} : vector<128x128xbf16> to vector<16x128xbf16>
    %c32 = arith.constant 32 : index
    %c0_22 = arith.constant 0 : index
    %23 = vector.load %arg12[%c32, %c0_22] : memref<448x128xbf16, #tpu.memory_space<vmem>>, vector<16x128xbf16>
    tpu.vector_store %arg12[%c32, %c0_22], %22 {strides = array<i32>} : memref<448x128xbf16, #tpu.memory_space<vmem>>, vector<16x128xbf16>,
    %c48 = arith.constant 48 : index
    %c0_23 = arith.constant 0 : index
    %24 = vector.load %arg12[%c48, %c0_23] : memref<448x128xbf16, #tpu.memory_space<vmem>>, vector<8x128xbf16>
    tpu.vector_store %arg12[%c48, %c0_23], %7 {strides = array<i32>} : memref<448x128xbf16, #tpu.memory_space<vmem>>, vector<8x128xbf16>,
    %25 = vector.extract_strided_slice %21 {offsets = [16, 0], sizes = [16, 128], strides = [1, 1]} : vector<128x128xbf16> to vector<16x128xbf16>
    %c56 = arith.constant 56 : index
    %c0_24 = arith.constant 0 : index
    %26 = vector.load %arg12[%c56, %c0_24] : memref<448x128xbf16, #tpu.memory_space<vmem>>, vector<16x128xbf16>
    tpu.vector_store %arg12[%c56, %c0_24], %25 {strides = array<i32>} : memref<448x128xbf16, #tpu.memory_space<vmem>>, vector<16x128xbf16>,
    %c72 = arith.constant 72 : index
    %c0_25 = arith.constant 0 : index
    %27 = vector.load %arg12[%c72, %c0_25] : memref<448x128xbf16, #tpu.memory_space<vmem>>, vector<8x128xbf16>
    tpu.vector_store %arg12[%c72, %c0_25], %7 {strides = array<i32>} : memref<448x128xbf16, #tpu.memory_space<vmem>>, vector<8x128xbf16>,
    %28 = vector.extract_strided_slice %21 {offsets = [32, 0], sizes = [16, 128], strides = [1, 1]} : vector<128x128xbf16> to vector<16x128xbf16>
    %c80 = arith.constant 80 : index
    %c0_26 = arith.constant 0 : index
    %29 = vector.load %arg12[%c80, %c0_26] : memref<448x128xbf16, #tpu.memory_space<vmem>>, vector<16x128xbf16>
    tpu.vector_store %arg12[%c80, %c0_26], %28 {strides = array<i32>} : memref<448x128xbf16, #tpu.memory_space<vmem>>, vector<16x128xbf16>,
    %c96 = arith.constant 96 : index
    %c0_27 = arith.constant 0 : index
    %30 = vector.load %arg12[%c96, %c0_27] : memref<448x128xbf16, #tpu.memory_space<vmem>>, vector<8x128xbf16>
    tpu.vector_store %arg12[%c96, %c0_27], %7 {strides = array<i32>} : memref<448x128xbf16, #tpu.memory_space<vmem>>, vector<8x128xbf16>,
    %31 = vector.extract_strided_slice %21 {offsets = [48, 0], sizes = [16, 128], strides = [1, 1]} : vector<128x128xbf16> to vector<16x128xbf16>
    %c104 = arith.constant 104 : index
    %c0_28 = arith.constant 0 : index
    %32 = vector.load %arg12[%c104, %c0_28] : memref<448x128xbf16, #tpu.memory_space<vmem>>, vector<16x128xbf16>
    tpu.vector_store %arg12[%c104, %c0_28], %31 {strides = array<i32>} : memref<448x128xbf16, #tpu.memory_space<vmem>>, vector<16x128xbf16>,
    %c120 = arith.constant 120 : index
    %c0_29 = arith.constant 0 : index
    %33 = vector.load %arg12[%c120, %c0_29] : memref<448x128xbf16, #tpu.memory_space<vmem>>, vector<8x128xbf16>
    tpu.vector_store %arg12[%c120, %c0_29], %7 {strides = array<i32>} : memref<448x128xbf16, #tpu.memory_space<vmem>>, vector<8x128xbf16>,
    %34 = vector.extract_strided_slice %21 {offsets = [64, 0], sizes = [16, 128], strides = [1, 1]} : vector<128x128xbf16> to vector<16x128xbf16>
    %c128 = arith.constant 128 : index
    %c0_30 = arith.constant 0 : index
    %35 = vector.load %arg12[%c128, %c0_30] : memref<448x128xbf16, #tpu.memory_space<vmem>>, vector<16x128xbf16>
    tpu.vector_store %arg12[%c128, %c0_30], %34 {strides = array<i32>} : memref<448x128xbf16, #tpu.memory_space<vmem>>, vector<16x128xbf16>,
    %c144 = arith.constant 144 : index
    %c0_31 = arith.constant 0 : index
    %36 = vector.load %arg12[%c144, %c0_31] : memref<448x128xbf16, #tpu.memory_space<vmem>>, vector<8x128xbf16>
    tpu.vector_store %arg12[%c144, %c0_31], %7 {strides = array<i32>} : memref<448x128xbf16, #tpu.memory_space<vmem>>, vector<8x128xbf16>,
    %37 = vector.extract_strided_slice %21 {offsets = [80, 0], sizes = [16, 128], strides = [1, 1]} : vector<128x128xbf16> to vector<16x128xbf16>
    %c152 = arith.constant 152 : index
    %c0_32 = arith.constant 0 : index
    %38 = vector.load %arg12[%c152, %c0_32] : memref<448x128xbf16, #tpu.memory_space<vmem>>, vector<16x128xbf16>
    tpu.vector_store %arg12[%c152, %c0_32], %37 {strides = array<i32>} : memref<448x128xbf16, #tpu.memory_space<vmem>>, vector<16x128xbf16>,
    %c168 = arith.constant 168 : index
    %c0_33 = arith.constant 0 : index
    %39 = vector.load %arg12[%c168, %c0_33] : memref<448x128xbf16, #tpu.memory_space<vmem>>, vector<8x128xbf16>
    tpu.vector_store %arg12[%c168, %c0_33], %7 {strides = array<i32>} : memref<448x128xbf16, #tpu.memory_space<vmem>>, vector<8x128xbf16>,
    %40 = vector.extract_strided_slice %21 {offsets = [96, 0], sizes = [16, 128], strides = [1, 1]} : vector<128x128xbf16> to vector<16x128xbf16>
    %c176 = arith.constant 176 : index
    %c0_34 = arith.constant 0 : index
    %41 = vector.load %arg12[%c176, %c0_34] : memref<448x128xbf16, #tpu.memory_space<vmem>>, vector<16x128xbf16>
    tpu.vector_store %arg12[%c176, %c0_34], %40 {strides = array<i32>} : memref<448x128xbf16, #tpu.memory_space<vmem>>, vector<16x128xbf16>,
    %c192 = arith.constant 192 : index
    %c0_35 = arith.constant 0 : index
    %42 = vector.load %arg12[%c192, %c0_35] : memref<448x128xbf16, #tpu.memory_space<vmem>>, vector<8x128xbf16>
    tpu.vector_store %arg12[%c192, %c0_35], %7 {strides = array<i32>} : memref<448x128xbf16, #tpu.memory_space<vmem>>, vector<8x128xbf16>,
    %43 = vector.extract_strided_slice %21 {offsets = [112, 0], sizes = [16, 128], strides = [1, 1]} : vector<128x128xbf16> to vector<16x128xbf16>
    %c200 = arith.constant 200 : index
    %c0_36 = arith.constant 0 : index
    %44 = vector.load %arg12[%c200, %c0_36] : memref<448x128xbf16, #tpu.memory_space<vmem>>, vector<16x128xbf16>
    tpu.vector_store %arg12[%c200, %c0_36], %43 {strides = array<i32>} : memref<448x128xbf16, #tpu.memory_space<vmem>>, vector<16x128xbf16>,
    %c216 = arith.constant 216 : index
    %c0_37 = arith.constant 0 : index
    %45 = vector.load %arg12[%c216, %c0_37] : memref<448x128xbf16, #tpu.memory_space<vmem>>, vector<8x128xbf16>
    tpu.vector_store %arg12[%c216, %c0_37], %7 {strides = array<i32>} : memref<448x128xbf16, #tpu.memory_space<vmem>>, vector<8x128xbf16>,
    %c0_38 = arith.constant 0 : index
    %c128_39 = arith.constant 128 : index
    %c0_40 = arith.constant 0 : index
    %46 = vector.load %arg1[%c0_38, %c128_39, %c0_40] : memref<1x256x16xf32, #tpu.memory_space<vmem>>, vector<1x128x16xf32>
    %47 = vector.shape_cast %46 : vector<1x128x16xf32> to vector<128x16xf32>
    %48 = arith.truncf %47 : vector<128x16xf32> to vector<128x16xbf16>
    %c0_41 = arith.constant 0 : index
    %c0_42 = arith.constant 0 : index
    %49 = vector.load %arg2[%c0_41, %c0_42] : memref<16x128xbf16, #tpu.memory_space<vmem>>, vector<16x128xbf16>
    %cst_43 = arith.constant dense<0.000000e+00> : vector<128x128xf32>
    %50 = tpu.matmul %48, %49, %cst_43 {dimension_numbers = #tpu.dot_dimension_numbers<[1], [0], [0], [1], [0, 0, 1, 1], [], []>} : vector<128x16xbf16>, vector<16x128xbf16>, vector<128x128xf32> -> vector<128x128xf32>
    %51 = vector.broadcast %0 : vector<1x128xf32> to vector<128x128xf32>
    %52 = arith.mulf %50, %51 : vector<128x128xf32>
    %53 = vector.broadcast %1 : vector<1x128xf32> to vector<128x128xf32>
    %54 = arith.addf %52, %53 : vector<128x128xf32>
    %cst_44 = arith.constant 0.000000e+00 : f32
    %55 = vector.broadcast %cst_44 : f32 to vector<128x128xf32>
    %56 = arith.maximumf %54, %55 : vector<128x128xf32>
    %57 = arith.truncf %56 : vector<128x128xf32> to vector<128x128xbf16>
    %58 = vector.extract_strided_slice %57 {offsets = [0, 0], sizes = [16, 128], strides = [1, 1]} : vector<128x128xbf16> to vector<16x128xbf16>
    %c224 = arith.constant 224 : index
    %c0_45 = arith.constant 0 : index
    %59 = vector.load %arg12[%c224, %c0_45] : memref<448x128xbf16, #tpu.memory_space<vmem>>, vector<16x128xbf16>
    tpu.vector_store %arg12[%c224, %c0_45], %58 {strides = array<i32>} : memref<448x128xbf16, #tpu.memory_space<vmem>>, vector<16x128xbf16>,
    %c240 = arith.constant 240 : index
    %c0_46 = arith.constant 0 : index
    %60 = vector.load %arg12[%c240, %c0_46] : memref<448x128xbf16, #tpu.memory_space<vmem>>, vector<8x128xbf16>
    tpu.vector_store %arg12[%c240, %c0_46], %7 {strides = array<i32>} : memref<448x128xbf16, #tpu.memory_space<vmem>>, vector<8x128xbf16>,
    %61 = vector.extract_strided_slice %57 {offsets = [16, 0], sizes = [16, 128], strides = [1, 1]} : vector<128x128xbf16> to vector<16x128xbf16>
    %c248 = arith.constant 248 : index
    %c0_47 = arith.constant 0 : index
    %62 = vector.load %arg12[%c248, %c0_47] : memref<448x128xbf16, #tpu.memory_space<vmem>>, vector<16x128xbf16>
    tpu.vector_store %arg12[%c248, %c0_47], %61 {strides = array<i32>} : memref<448x128xbf16, #tpu.memory_space<vmem>>, vector<16x128xbf16>,
    %c264 = arith.constant 264 : index
    %c0_48 = arith.constant 0 : index
    %63 = vector.load %arg12[%c264, %c0_48] : memref<448x128xbf16, #tpu.memory_space<vmem>>, vector<8x128xbf16>
    tpu.vector_store %arg12[%c264, %c0_48], %7 {strides = array<i32>} : memref<448x128xbf16, #tpu.memory_space<vmem>>, vector<8x128xbf16>,
    %64 = vector.extract_strided_slice %57 {offsets = [32, 0], sizes = [16, 128], strides = [1, 1]} : vector<128x128xbf16> to vector<16x128xbf16>
    %c272 = arith.constant 272 : index
    %c0_49 = arith.constant 0 : index
    %65 = vector.load %arg12[%c272, %c0_49] : memref<448x128xbf16, #tpu.memory_space<vmem>>, vector<16x128xbf16>
    tpu.vector_store %arg12[%c272, %c0_49], %64 {strides = array<i32>} : memref<448x128xbf16, #tpu.memory_space<vmem>>, vector<16x128xbf16>,
    %c288 = arith.constant 288 : index
    %c0_50 = arith.constant 0 : index
    %66 = vector.load %arg12[%c288, %c0_50] : memref<448x128xbf16, #tpu.memory_space<vmem>>, vector<8x128xbf16>
    tpu.vector_store %arg12[%c288, %c0_50], %7 {strides = array<i32>} : memref<448x128xbf16, #tpu.memory_space<vmem>>, vector<8x128xbf16>,
    %67 = vector.extract_strided_slice %57 {offsets = [48, 0], sizes = [16, 128], strides = [1, 1]} : vector<128x128xbf16> to vector<16x128xbf16>
    %c296 = arith.constant 296 : index
    %c0_51 = arith.constant 0 : index
    %68 = vector.load %arg12[%c296, %c0_51] : memref<448x128xbf16, #tpu.memory_space<vmem>>, vector<16x128xbf16>
    tpu.vector_store %arg12[%c296, %c0_51], %67 {strides = array<i32>} : memref<448x128xbf16, #tpu.memory_space<vmem>>, vector<16x128xbf16>,
    %c312 = arith.constant 312 : index
    %c0_52 = arith.constant 0 : index
    %69 = vector.load %arg12[%c312, %c0_52] : memref<448x128xbf16, #tpu.memory_space<vmem>>, vector<8x128xbf16>
    tpu.vector_store %arg12[%c312, %c0_52], %7 {strides = array<i32>} : memref<448x128xbf16, #tpu.memory_space<vmem>>, vector<8x128xbf16>,
    %70 = vector.extract_strided_slice %57 {offsets = [64, 0], sizes = [16, 128], strides = [1, 1]} : vector<128x128xbf16> to vector<16x128xbf16>
    %c320 = arith.constant 320 : index
    %c0_53 = arith.constant 0 : index
    %71 = vector.load %arg12[%c320, %c0_53] : memref<448x128xbf16, #tpu.memory_space<vmem>>, vector<16x128xbf16>
    tpu.vector_store %arg12[%c320, %c0_53], %70 {strides = array<i32>} : memref<448x128xbf16, #tpu.memory_space<vmem>>, vector<16x128xbf16>,
    %c336 = arith.constant 336 : index
    %c0_54 = arith.constant 0 : index
    %72 = vector.load %arg12[%c336, %c0_54] : memref<448x128xbf16, #tpu.memory_space<vmem>>, vector<8x128xbf16>
    tpu.vector_store %arg12[%c336, %c0_54], %7 {strides = array<i32>} : memref<448x128xbf16, #tpu.memory_space<vmem>>, vector<8x128xbf16>,
    %73 = vector.extract_strided_slice %57 {offsets = [80, 0], sizes = [16, 128], strides = [1, 1]} : vector<128x128xbf16> to vector<16x128xbf16>
    %c344 = arith.constant 344 : index
    %c0_55 = arith.constant 0 : index
    %74 = vector.load %arg12[%c344, %c0_55] : memref<448x128xbf16, #tpu.memory_space<vmem>>, vector<16x128xbf16>
    tpu.vector_store %arg12[%c344, %c0_55], %73 {strides = array<i32>} : memref<448x128xbf16, #tpu.memory_space<vmem>>, vector<16x128xbf16>,
    %c360 = arith.constant 360 : index
    %c0_56 = arith.constant 0 : index
    %75 = vector.load %arg12[%c360, %c0_56] : memref<448x128xbf16, #tpu.memory_space<vmem>>, vector<8x128xbf16>
    tpu.vector_store %arg12[%c360, %c0_56], %7 {strides = array<i32>} : memref<448x128xbf16, #tpu.memory_space<vmem>>, vector<8x128xbf16>,
    %76 = vector.extract_strided_slice %57 {offsets = [96, 0], sizes = [16, 128], strides = [1, 1]} : vector<128x128xbf16> to vector<16x128xbf16>
    %c368 = arith.constant 368 : index
    %c0_57 = arith.constant 0 : index
    %77 = vector.load %arg12[%c368, %c0_57] : memref<448x128xbf16, #tpu.memory_space<vmem>>, vector<16x128xbf16>
    tpu.vector_store %arg12[%c368, %c0_57], %76 {strides = array<i32>} : memref<448x128xbf16, #tpu.memory_space<vmem>>, vector<16x128xbf16>,
    %c384 = arith.constant 384 : index
    %c0_58 = arith.constant 0 : index
    %78 = vector.load %arg12[%c384, %c0_58] : memref<448x128xbf16, #tpu.memory_space<vmem>>, vector<8x128xbf16>
    tpu.vector_store %arg12[%c384, %c0_58], %7 {strides = array<i32>} : memref<448x128xbf16, #tpu.memory_space<vmem>>, vector<8x128xbf16>,
    %79 = vector.extract_strided_slice %57 {offsets = [112, 0], sizes = [16, 128], strides = [1, 1]} : vector<128x128xbf16> to vector<16x128xbf16>
    %c392 = arith.constant 392 : index
    %c0_59 = arith.constant 0 : index
    %80 = vector.load %arg12[%c392, %c0_59] : memref<448x128xbf16, #tpu.memory_space<vmem>>, vector<16x128xbf16>
    tpu.vector_store %arg12[%c392, %c0_59], %79 {strides = array<i32>} : memref<448x128xbf16, #tpu.memory_space<vmem>>, vector<16x128xbf16>,
    %c408 = arith.constant 408 : index
    %c0_60 = arith.constant 0 : index
    %81 = vector.load %arg12[%c408, %c0_60] : memref<448x128xbf16, #tpu.memory_space<vmem>>, vector<8x128xbf16>
    tpu.vector_store %arg12[%c408, %c0_60], %7 {strides = array<i32>} : memref<448x128xbf16, #tpu.memory_space<vmem>>, vector<8x128xbf16>,
    %c7 = arith.constant 7 : index
    %c0_61 = arith.constant 0 : index
    %82 = vector.load %arg12[%c7, %c0_61] : memref<448x128xbf16, #tpu.memory_space<vmem>>, vector<192x128xbf16>
    %c0_62 = arith.constant 0 : index
    %c0_63 = arith.constant 0 : index
    %83 = vector.load %arg13[%c0_62, %c0_63] : memref<192x1152xbf16, #tpu.memory_space<vmem>>, vector<192x128xbf16>
    tpu.vector_store %arg13[%c0_62, %c0_63], %82 {strides = array<i32>} : memref<192x1152xbf16, #tpu.memory_space<vmem>>, vector<192x128xbf16>,
    %c8 = arith.constant 8 : index
    %c0_64 = arith.constant 0 : index
    %84 = vector.load %arg12[%c8, %c0_64] : memref<448x128xbf16, #tpu.memory_space<vmem>>, vector<192x128xbf16>
    %c0_65 = arith.constant 0 : index
    %c128_66 = arith.constant 128 : index
    %85 = vector.load %arg13[%c0_65, %c128_66] : memref<192x1152xbf16, #tpu.memory_space<vmem>>, vector<192x128xbf16>
    tpu.vector_store %arg13[%c0_65, %c128_66], %84 {strides = array<i32>} : memref<192x1152xbf16, #tpu.memory_space<vmem>>, vector<192x128xbf16>,
    %c9 = arith.constant 9 : index
    %c0_67 = arith.constant 0 : index
    %86 = vector.load %arg12[%c9, %c0_67] : memref<448x128xbf16, #tpu.memory_space<vmem>>, vector<192x128xbf16>
    %c0_68 = arith.constant 0 : index
    %c256 = arith.constant 256 : index
    %87 = vector.load %arg13[%c0_68, %c256] : memref<192x1152xbf16, #tpu.memory_space<vmem>>, vector<192x128xbf16>
    tpu.vector_store %arg13[%c0_68, %c256], %86 {strides = array<i32>} : memref<192x1152xbf16, #tpu.memory_space<vmem>>, vector<192x128xbf16>,
    %c31 = arith.constant 31 : index
    %c0_69 = arith.constant 0 : index
    %88 = vector.load %arg12[%c31, %c0_69] : memref<448x128xbf16, #tpu.memory_space<vmem>>, vector<192x128xbf16>
    %c0_70 = arith.constant 0 : index
    %c384_71 = arith.constant 384 : index
    %89 = vector.load %arg13[%c0_70, %c384_71] : memref<192x1152xbf16, #tpu.memory_space<vmem>>, vector<192x128xbf16>
    tpu.vector_store %arg13[%c0_70, %c384_71], %88 {strides = array<i32>} : memref<192x1152xbf16, #tpu.memory_space<vmem>>, vector<192x128xbf16>,
    %c32_72 = arith.constant 32 : index
    %c0_73 = arith.constant 0 : index
    %90 = vector.load %arg12[%c32_72, %c0_73] : memref<448x128xbf16, #tpu.memory_space<vmem>>, vector<192x128xbf16>
    %c0_74 = arith.constant 0 : index
    %c512 = arith.constant 512 : index
    %91 = vector.load %arg13[%c0_74, %c512] : memref<192x1152xbf16, #tpu.memory_space<vmem>>, vector<192x128xbf16>
    tpu.vector_store %arg13[%c0_74, %c512], %90 {strides = array<i32>} : memref<192x1152xbf16, #tpu.memory_space<vmem>>, vector<192x128xbf16>,
    %c33 = arith.constant 33 : index
    %c0_75 = arith.constant 0 : index
    %92 = vector.load %arg12[%c33, %c0_75] : memref<448x128xbf16, #tpu.memory_space<vmem>>, vector<192x128xbf16>
    %c0_76 = arith.constant 0 : index
    %c640 = arith.constant 640 : index
    %93 = vector.load %arg13[%c0_76, %c640] : memref<192x1152xbf16, #tpu.memory_space<vmem>>, vector<192x128xbf16>
    tpu.vector_store %arg13[%c0_76, %c640], %92 {strides = array<i32>} : memref<192x1152xbf16, #tpu.memory_space<vmem>>, vector<192x128xbf16>,
    %c55 = arith.constant 55 : index
    %c0_77 = arith.constant 0 : index
    %94 = vector.load %arg12[%c55, %c0_77] : memref<448x128xbf16, #tpu.memory_space<vmem>>, vector<192x128xbf16>
    %c0_78 = arith.constant 0 : index
    %c768 = arith.constant 768 : index
    %95 = vector.load %arg13[%c0_78, %c768] : memref<192x1152xbf16, #tpu.memory_space<vmem>>, vector<192x128xbf16>
    tpu.vector_store %arg13[%c0_78, %c768], %94 {strides = array<i32>} : memref<192x1152xbf16, #tpu.memory_space<vmem>>, vector<192x128xbf16>,
    %c56_79 = arith.constant 56 : index
    %c0_80 = arith.constant 0 : index
    %96 = vector.load %arg12[%c56_79, %c0_80] : memref<448x128xbf16, #tpu.memory_space<vmem>>, vector<192x128xbf16>
    %c0_81 = arith.constant 0 : index
    %c896 = arith.constant 896 : index
    %97 = vector.load %arg13[%c0_81, %c896] : memref<192x1152xbf16, #tpu.memory_space<vmem>>, vector<192x128xbf16>
    tpu.vector_store %arg13[%c0_81, %c896], %96 {strides = array<i32>} : memref<192x1152xbf16, #tpu.memory_space<vmem>>, vector<192x128xbf16>,
    %c57 = arith.constant 57 : index
    %c0_82 = arith.constant 0 : index
    %98 = vector.load %arg12[%c57, %c0_82] : memref<448x128xbf16, #tpu.memory_space<vmem>>, vector<192x128xbf16>
    %c0_83 = arith.constant 0 : index
    %c1024 = arith.constant 1024 : index
    %99 = vector.load %arg13[%c0_83, %c1024] : memref<192x1152xbf16, #tpu.memory_space<vmem>>, vector<192x128xbf16>
    tpu.vector_store %arg13[%c0_83, %c1024], %98 {strides = array<i32>} : memref<192x1152xbf16, #tpu.memory_space<vmem>>, vector<192x128xbf16>,
    %c0_84 = arith.constant 0 : index
    %c0_85 = arith.constant 0 : index
    %100 = vector.load %arg13[%c0_84, %c0_85] : memref<192x1152xbf16, #tpu.memory_space<vmem>>, vector<192x1152xbf16>
    %c0_86 = arith.constant 0 : index
    %c0_87 = arith.constant 0 : index
    %101 = vector.load %arg5[%c0_86, %c0_87] : memref<1152x128xbf16, #tpu.memory_space<vmem>>, vector<1152x128xbf16>
    %cst_88 = arith.constant dense<0.000000e+00> : vector<192x128xf32>
    %102 = tpu.matmul %100, %101, %cst_88 {dimension_numbers = #tpu.dot_dimension_numbers<[1], [0], [0], [1], [0, 0, 1, 1], [], []>} : vector<192x1152xbf16>, vector<1152x128xbf16>, vector<192x128xf32> -> vector<192x128xf32>
    %103 = vector.broadcast %2 : vector<1x128xf32> to vector<192x128xf32>
    %104 = arith.mulf %102, %103 : vector<192x128xf32>
    %105 = vector.broadcast %3 : vector<1x128xf32> to vector<192x128xf32>
    %106 = arith.addf %104, %105 : vector<192x128xf32>
    %cst_89 = arith.constant 0.000000e+00 : f32
    %107 = vector.broadcast %cst_89 : f32 to vector<192x128xf32>
    %108 = arith.maximumf %106, %107 : vector<192x128xf32>
    %109 = arith.truncf %108 : vector<192x128xf32> to vector<192x128xbf16>
    %110 = vector.extract_strided_slice %109 {offsets = [0, 0], sizes = [16, 128], strides = [1, 1]} : vector<192x128xbf16> to vector<16x128xbf16>
    %c0_90 = arith.constant 0 : index
    %c0_91 = arith.constant 0 : index
    %111 = vector.load %arg14[%c0_90, %c0_91] : memref<128x128xbf16, #tpu.memory_space<vmem>>, vector<16x128xbf16>
    tpu.vector_store %arg14[%c0_90, %c0_91], %110 {strides = array<i32>} : memref<128x128xbf16, #tpu.memory_space<vmem>>, vector<16x128xbf16>,
    %112 = vector.extract_strided_slice %109 {offsets = [24, 0], sizes = [16, 128], strides = [1, 1]} : vector<192x128xbf16> to vector<16x128xbf16>
    %c16 = arith.constant 16 : index
    %c0_92 = arith.constant 0 : index
    %113 = vector.load %arg14[%c16, %c0_92] : memref<128x128xbf16, #tpu.memory_space<vmem>>, vector<16x128xbf16>
    tpu.vector_store %arg14[%c16, %c0_92], %112 {strides = array<i32>} : memref<128x128xbf16, #tpu.memory_space<vmem>>, vector<16x128xbf16>,
    %114 = vector.extract_strided_slice %109 {offsets = [48, 0], sizes = [16, 128], strides = [1, 1]} : vector<192x128xbf16> to vector<16x128xbf16>
    %c32_93 = arith.constant 32 : index
    %c0_94 = arith.constant 0 : index
    %115 = vector.load %arg14[%c32_93, %c0_94] : memref<128x128xbf16, #tpu.memory_space<vmem>>, vector<16x128xbf16>
    tpu.vector_store %arg14[%c32_93, %c0_94], %114 {strides = array<i32>} : memref<128x128xbf16, #tpu.memory_space<vmem>>, vector<16x128xbf16>,
    %116 = vector.extract_strided_slice %109 {offsets = [72, 0], sizes = [16, 128], strides = [1, 1]} : vector<192x128xbf16> to vector<16x128xbf16>
    %c48_95 = arith.constant 48 : index
    %c0_96 = arith.constant 0 : index
    %117 = vector.load %arg14[%c48_95, %c0_96] : memref<128x128xbf16, #tpu.memory_space<vmem>>, vector<16x128xbf16>
    tpu.vector_store %arg14[%c48_95, %c0_96], %116 {strides = array<i32>} : memref<128x128xbf16, #tpu.memory_space<vmem>>, vector<16x128xbf16>,
    %118 = vector.extract_strided_slice %109 {offsets = [96, 0], sizes = [16, 128], strides = [1, 1]} : vector<192x128xbf16> to vector<16x128xbf16>
    %c64 = arith.constant 64 : index
    %c0_97 = arith.constant 0 : index
    %119 = vector.load %arg14[%c64, %c0_97] : memref<128x128xbf16, #tpu.memory_space<vmem>>, vector<16x128xbf16>
    tpu.vector_store %arg14[%c64, %c0_97], %118 {strides = array<i32>} : memref<128x128xbf16, #tpu.memory_space<vmem>>, vector<16x128xbf16>,
    %120 = vector.extract_strided_slice %109 {offsets = [120, 0], sizes = [16, 128], strides = [1, 1]} : vector<192x128xbf16> to vector<16x128xbf16>
    %c80_98 = arith.constant 80 : index
    %c0_99 = arith.constant 0 : index
    %121 = vector.load %arg14[%c80_98, %c0_99] : memref<128x128xbf16, #tpu.memory_space<vmem>>, vector<16x128xbf16>
    tpu.vector_store %arg14[%c80_98, %c0_99], %120 {strides = array<i32>} : memref<128x128xbf16, #tpu.memory_space<vmem>>, vector<16x128xbf16>,
    %122 = vector.extract_strided_slice %109 {offsets = [144, 0], sizes = [16, 128], strides = [1, 1]} : vector<192x128xbf16> to vector<16x128xbf16>
    %c96_100 = arith.constant 96 : index
    %c0_101 = arith.constant 0 : index
    %123 = vector.load %arg14[%c96_100, %c0_101] : memref<128x128xbf16, #tpu.memory_space<vmem>>, vector<16x128xbf16>
    tpu.vector_store %arg14[%c96_100, %c0_101], %122 {strides = array<i32>} : memref<128x128xbf16, #tpu.memory_space<vmem>>, vector<16x128xbf16>,
    %124 = vector.extract_strided_slice %109 {offsets = [168, 0], sizes = [16, 128], strides = [1, 1]} : vector<192x128xbf16> to vector<16x128xbf16>
    %c112 = arith.constant 112 : index
    %c0_102 = arith.constant 0 : index
    %125 = vector.load %arg14[%c112, %c0_102] : memref<128x128xbf16, #tpu.memory_space<vmem>>, vector<16x128xbf16>
    tpu.vector_store %arg14[%c112, %c0_102], %124 {strides = array<i32>} : memref<128x128xbf16, #tpu.memory_space<vmem>>, vector<16x128xbf16>,
    %c0_103 = arith.constant 0 : index
    %c0_104 = arith.constant 0 : index
    %126 = vector.load %arg14[%c0_103, %c0_104] : memref<128x128xbf16, #tpu.memory_space<vmem>>, vector<128x128xbf16>
    %c0_105 = arith.constant 0 : index
    %c0_106 = arith.constant 0 : index
    %127 = vector.load %arg8[%c0_105, %c0_106] : memref<128x16xbf16, #tpu.memory_space<vmem>>, vector<128x16xbf16>
    %cst_107 = arith.constant dense<0.000000e+00> : vector<128x16xf32>
    %128 = tpu.matmul %126, %127, %cst_107 {dimension_numbers = #tpu.dot_dimension_numbers<[1], [0], [0], [1], [0, 0, 1, 1], [], []>} : vector<128x128xbf16>, vector<128x16xbf16>, vector<128x16xf32> -> vector<128x16xf32>
    %129 = vector.broadcast %4 : vector<1x16xf32> to vector<128x16xf32>
    %130 = arith.mulf %128, %129 : vector<128x16xf32>
    %131 = vector.broadcast %5 : vector<1x16xf32> to vector<128x16xf32>
    %132 = arith.addf %130, %131 : vector<128x16xf32>
    %c0_108 = arith.constant 0 : index
    %c0_109 = arith.constant 0 : index
    %c0_110 = arith.constant 0 : index
    %133 = vector.load %arg1[%c0_108, %c0_109, %c0_110] : memref<1x256x16xf32, #tpu.memory_space<vmem>>, vector<1x128x16xf32>
    %134 = vector.shape_cast %133 : vector<1x128x16xf32> to vector<128x16xf32>
    %135 = arith.addf %132, %134 : vector<128x16xf32>
    %cst_111 = arith.constant 0.000000e+00 : f32
    %136 = vector.broadcast %cst_111 : f32 to vector<128x16xf32>
    %137 = arith.maximumf %135, %136 : vector<128x16xf32>
    %c0_112 = arith.constant 0 : index
    %c0_113 = arith.constant 0 : index
    %c0_114 = arith.constant 0 : index
    %138 = vector.load %arg11[%c0_112, %c0_113, %c0_114] : memref<1x256x16xf32, #tpu.memory_space<vmem>>, vector<1x128x16xf32>
    %139 = vector.shape_cast %138 : vector<1x128x16xf32> to vector<128x16xf32>
    %140 = vector.shape_cast %137 : vector<128x16xf32> to vector<1x128x16xf32>
    tpu.vector_store %arg11[%c0_112, %c0_113, %c0_114], %140 {strides = array<i32>} : memref<1x256x16xf32, #tpu.memory_space<vmem>>, vector<1x128x16xf32>,
    %c199 = arith.constant 199 : index
    %c0_115 = arith.constant 0 : index
    %141 = vector.load %arg12[%c199, %c0_115] : memref<448x128xbf16, #tpu.memory_space<vmem>>, vector<192x128xbf16>
    %c0_116 = arith.constant 0 : index
    %c0_117 = arith.constant 0 : index
    %142 = vector.load %arg13[%c0_116, %c0_117] : memref<192x1152xbf16, #tpu.memory_space<vmem>>, vector<192x128xbf16>
    tpu.vector_store %arg13[%c0_116, %c0_117], %141 {strides = array<i32>} : memref<192x1152xbf16, #tpu.memory_space<vmem>>, vector<192x128xbf16>,
    %c200_118 = arith.constant 200 : index
    %c0_119 = arith.constant 0 : index
    %143 = vector.load %arg12[%c200_118, %c0_119] : memref<448x128xbf16, #tpu.memory_space<vmem>>, vector<192x128xbf16>
    %c0_120 = arith.constant 0 : index
    %c128_121 = arith.constant 128 : index
    %144 = vector.load %arg13[%c0_120, %c128_121] : memref<192x1152xbf16, #tpu.memory_space<vmem>>, vector<192x128xbf16>
    tpu.vector_store %arg13[%c0_120, %c128_121], %143 {strides = array<i32>} : memref<192x1152xbf16, #tpu.memory_space<vmem>>, vector<192x128xbf16>,
    %c201 = arith.constant 201 : index
    %c0_122 = arith.constant 0 : index
    %145 = vector.load %arg12[%c201, %c0_122] : memref<448x128xbf16, #tpu.memory_space<vmem>>, vector<192x128xbf16>
    %c0_123 = arith.constant 0 : index
    %c256_124 = arith.constant 256 : index
    %146 = vector.load %arg13[%c0_123, %c256_124] : memref<192x1152xbf16, #tpu.memory_space<vmem>>, vector<192x128xbf16>
    tpu.vector_store %arg13[%c0_123, %c256_124], %145 {strides = array<i32>} : memref<192x1152xbf16, #tpu.memory_space<vmem>>, vector<192x128xbf16>,
    %c223 = arith.constant 223 : index
    %c0_125 = arith.constant 0 : index
    %147 = vector.load %arg12[%c223, %c0_125] : memref<448x128xbf16, #tpu.memory_space<vmem>>, vector<192x128xbf16>
    %c0_126 = arith.constant 0 : index
    %c384_127 = arith.constant 384 : index
    %148 = vector.load %arg13[%c0_126, %c384_127] : memref<192x1152xbf16, #tpu.memory_space<vmem>>, vector<192x128xbf16>
    tpu.vector_store %arg13[%c0_126, %c384_127], %147 {strides = array<i32>} : memref<192x1152xbf16, #tpu.memory_space<vmem>>, vector<192x128xbf16>,
    %c224_128 = arith.constant 224 : index
    %c0_129 = arith.constant 0 : index
    %149 = vector.load %arg12[%c224_128, %c0_129] : memref<448x128xbf16, #tpu.memory_space<vmem>>, vector<192x128xbf16>
    %c0_130 = arith.constant 0 : index
    %c512_131 = arith.constant 512 : index
    %150 = vector.load %arg13[%c0_130, %c512_131] : memref<192x1152xbf16, #tpu.memory_space<vmem>>, vector<192x128xbf16>
    tpu.vector_store %arg13[%c0_130, %c512_131], %149 {strides = array<i32>} : memref<192x1152xbf16, #tpu.memory_space<vmem>>, vector<192x128xbf16>,
    %c225 = arith.constant 225 : index
    %c0_132 = arith.constant 0 : index
    %151 = vector.load %arg12[%c225, %c0_132] : memref<448x128xbf16, #tpu.memory_space<vmem>>, vector<192x128xbf16>
    %c0_133 = arith.constant 0 : index
    %c640_134 = arith.constant 640 : index
    %152 = vector.load %arg13[%c0_133, %c640_134] : memref<192x1152xbf16, #tpu.memory_space<vmem>>, vector<192x128xbf16>
    tpu.vector_store %arg13[%c0_133, %c640_134], %151 {strides = array<i32>} : memref<192x1152xbf16, #tpu.memory_space<vmem>>, vector<192x128xbf16>,
    %c247 = arith.constant 247 : index
    %c0_135 = arith.constant 0 : index
    %153 = vector.load %arg12[%c247, %c0_135] : memref<448x128xbf16, #tpu.memory_space<vmem>>, vector<192x128xbf16>
    %c0_136 = arith.constant 0 : index
    %c768_137 = arith.constant 768 : index
    %154 = vector.load %arg13[%c0_136, %c768_137] : memref<192x1152xbf16, #tpu.memory_space<vmem>>, vector<192x128xbf16>
    tpu.vector_store %arg13[%c0_136, %c768_137], %153 {strides = array<i32>} : memref<192x1152xbf16, #tpu.memory_space<vmem>>, vector<192x128xbf16>,
    %c248_138 = arith.constant 248 : index
    %c0_139 = arith.constant 0 : index
    %155 = vector.load %arg12[%c248_138, %c0_139] : memref<448x128xbf16, #tpu.memory_space<vmem>>, vector<192x128xbf16>
    %c0_140 = arith.constant 0 : index
    %c896_141 = arith.constant 896 : index
    %156 = vector.load %arg13[%c0_140, %c896_141] : memref<192x1152xbf16, #tpu.memory_space<vmem>>, vector<192x128xbf16>
    tpu.vector_store %arg13[%c0_140, %c896_141], %155 {strides = array<i32>} : memref<192x1152xbf16, #tpu.memory_space<vmem>>, vector<192x128xbf16>,
    %c249 = arith.constant 249 : index
    %c0_142 = arith.constant 0 : index
    %157 = vector.load %arg12[%c249, %c0_142] : memref<448x128xbf16, #tpu.memory_space<vmem>>, vector<192x128xbf16>
    %c0_143 = arith.constant 0 : index
    %c1024_144 = arith.constant 1024 : index
    %158 = vector.load %arg13[%c0_143, %c1024_144] : memref<192x1152xbf16, #tpu.memory_space<vmem>>, vector<192x128xbf16>
    tpu.vector_store %arg13[%c0_143, %c1024_144], %157 {strides = array<i32>} : memref<192x1152xbf16, #tpu.memory_space<vmem>>, vector<192x128xbf16>,
    %c0_145 = arith.constant 0 : index
    %c0_146 = arith.constant 0 : index
    %159 = vector.load %arg13[%c0_145, %c0_146] : memref<192x1152xbf16, #tpu.memory_space<vmem>>, vector<192x1152xbf16>
    %c0_147 = arith.constant 0 : index
    %c0_148 = arith.constant 0 : index
    %160 = vector.load %arg5[%c0_147, %c0_148] : memref<1152x128xbf16, #tpu.memory_space<vmem>>, vector<1152x128xbf16>
    %cst_149 = arith.constant dense<0.000000e+00> : vector<192x128xf32>
    %161 = tpu.matmul %159, %160, %cst_149 {dimension_numbers = #tpu.dot_dimension_numbers<[1], [0], [0], [1], [0, 0, 1, 1], [], []>} : vector<192x1152xbf16>, vector<1152x128xbf16>, vector<192x128xf32> -> vector<192x128xf32>
    %162 = vector.broadcast %2 : vector<1x128xf32> to vector<192x128xf32>
    %163 = arith.mulf %161, %162 : vector<192x128xf32>
    %164 = vector.broadcast %3 : vector<1x128xf32> to vector<192x128xf32>
    %165 = arith.addf %163, %164 : vector<192x128xf32>
    %cst_150 = arith.constant 0.000000e+00 : f32
    %166 = vector.broadcast %cst_150 : f32 to vector<192x128xf32>
    %167 = arith.maximumf %165, %166 : vector<192x128xf32>
    %168 = arith.truncf %167 : vector<192x128xf32> to vector<192x128xbf16>
    %169 = vector.extract_strided_slice %168 {offsets = [0, 0], sizes = [16, 128], strides = [1, 1]} : vector<192x128xbf16> to vector<16x128xbf16>
    %c0_151 = arith.constant 0 : index
    %c0_152 = arith.constant 0 : index
    %170 = vector.load %arg14[%c0_151, %c0_152] : memref<128x128xbf16, #tpu.memory_space<vmem>>, vector<16x128xbf16>
    tpu.vector_store %arg14[%c0_151, %c0_152], %169 {strides = array<i32>} : memref<128x128xbf16, #tpu.memory_space<vmem>>, vector<16x128xbf16>,
    %171 = vector.extract_strided_slice %168 {offsets = [24, 0], sizes = [16, 128], strides = [1, 1]} : vector<192x128xbf16> to vector<16x128xbf16>
    %c16_153 = arith.constant 16 : index
    %c0_154 = arith.constant 0 : index
    %172 = vector.load %arg14[%c16_153, %c0_154] : memref<128x128xbf16, #tpu.memory_space<vmem>>, vector<16x128xbf16>
    tpu.vector_store %arg14[%c16_153, %c0_154], %171 {strides = array<i32>} : memref<128x128xbf16, #tpu.memory_space<vmem>>, vector<16x128xbf16>,
    %173 = vector.extract_strided_slice %168 {offsets = [48, 0], sizes = [16, 128], strides = [1, 1]} : vector<192x128xbf16> to vector<16x128xbf16>
    %c32_155 = arith.constant 32 : index
    %c0_156 = arith.constant 0 : index
    %174 = vector.load %arg14[%c32_155, %c0_156] : memref<128x128xbf16, #tpu.memory_space<vmem>>, vector<16x128xbf16>
    tpu.vector_store %arg14[%c32_155, %c0_156], %173 {strides = array<i32>} : memref<128x128xbf16, #tpu.memory_space<vmem>>, vector<16x128xbf16>,
    %175 = vector.extract_strided_slice %168 {offsets = [72, 0], sizes = [16, 128], strides = [1, 1]} : vector<192x128xbf16> to vector<16x128xbf16>
    %c48_157 = arith.constant 48 : index
    %c0_158 = arith.constant 0 : index
    %176 = vector.load %arg14[%c48_157, %c0_158] : memref<128x128xbf16, #tpu.memory_space<vmem>>, vector<16x128xbf16>
    tpu.vector_store %arg14[%c48_157, %c0_158], %175 {strides = array<i32>} : memref<128x128xbf16, #tpu.memory_space<vmem>>, vector<16x128xbf16>,
    %177 = vector.extract_strided_slice %168 {offsets = [96, 0], sizes = [16, 128], strides = [1, 1]} : vector<192x128xbf16> to vector<16x128xbf16>
    %c64_159 = arith.constant 64 : index
    %c0_160 = arith.constant 0 : index
    %178 = vector.load %arg14[%c64_159, %c0_160] : memref<128x128xbf16, #tpu.memory_space<vmem>>, vector<16x128xbf16>
    tpu.vector_store %arg14[%c64_159, %c0_160], %177 {strides = array<i32>} : memref<128x128xbf16, #tpu.memory_space<vmem>>, vector<16x128xbf16>,
    %179 = vector.extract_strided_slice %168 {offsets = [120, 0], sizes = [16, 128], strides = [1, 1]} : vector<192x128xbf16> to vector<16x128xbf16>
    %c80_161 = arith.constant 80 : index
    %c0_162 = arith.constant 0 : index
    %180 = vector.load %arg14[%c80_161, %c0_162] : memref<128x128xbf16, #tpu.memory_space<vmem>>, vector<16x128xbf16>
    tpu.vector_store %arg14[%c80_161, %c0_162], %179 {strides = array<i32>} : memref<128x128xbf16, #tpu.memory_space<vmem>>, vector<16x128xbf16>,
    %181 = vector.extract_strided_slice %168 {offsets = [144, 0], sizes = [16, 128], strides = [1, 1]} : vector<192x128xbf16> to vector<16x128xbf16>
    %c96_163 = arith.constant 96 : index
    %c0_164 = arith.constant 0 : index
    %182 = vector.load %arg14[%c96_163, %c0_164] : memref<128x128xbf16, #tpu.memory_space<vmem>>, vector<16x128xbf16>
    tpu.vector_store %arg14[%c96_163, %c0_164], %181 {strides = array<i32>} : memref<128x128xbf16, #tpu.memory_space<vmem>>, vector<16x128xbf16>,
    %183 = vector.extract_strided_slice %168 {offsets = [168, 0], sizes = [16, 128], strides = [1, 1]} : vector<192x128xbf16> to vector<16x128xbf16>
    %c112_165 = arith.constant 112 : index
    %c0_166 = arith.constant 0 : index
    %184 = vector.load %arg14[%c112_165, %c0_166] : memref<128x128xbf16, #tpu.memory_space<vmem>>, vector<16x128xbf16>
    tpu.vector_store %arg14[%c112_165, %c0_166], %183 {strides = array<i32>} : memref<128x128xbf16, #tpu.memory_space<vmem>>, vector<16x128xbf16>,
    %c0_167 = arith.constant 0 : index
    %c0_168 = arith.constant 0 : index
    %185 = vector.load %arg14[%c0_167, %c0_168] : memref<128x128xbf16, #tpu.memory_space<vmem>>, vector<128x128xbf16>
    %c0_169 = arith.constant 0 : index
    %c0_170 = arith.constant 0 : index
    %186 = vector.load %arg8[%c0_169, %c0_170] : memref<128x16xbf16, #tpu.memory_space<vmem>>, vector<128x16xbf16>
    %cst_171 = arith.constant dense<0.000000e+00> : vector<128x16xf32>
    %187 = tpu.matmul %185, %186, %cst_171 {dimension_numbers = #tpu.dot_dimension_numbers<[1], [0], [0], [1], [0, 0, 1, 1], [], []>} : vector<128x128xbf16>, vector<128x16xbf16>, vector<128x16xf32> -> vector<128x16xf32>
    %188 = vector.broadcast %4 : vector<1x16xf32> to vector<128x16xf32>
    %189 = arith.mulf %187, %188 : vector<128x16xf32>
    %190 = vector.broadcast %5 : vector<1x16xf32> to vector<128x16xf32>
    %191 = arith.addf %189, %190 : vector<128x16xf32>
    %c0_172 = arith.constant 0 : index
    %c128_173 = arith.constant 128 : index
    %c0_174 = arith.constant 0 : index
    %192 = vector.load %arg1[%c0_172, %c128_173, %c0_174] : memref<1x256x16xf32, #tpu.memory_space<vmem>>, vector<1x128x16xf32>
    %193 = vector.shape_cast %192 : vector<1x128x16xf32> to vector<128x16xf32>
    %194 = arith.addf %191, %193 : vector<128x16xf32>
    %cst_175 = arith.constant 0.000000e+00 : f32
    %195 = vector.broadcast %cst_175 : f32 to vector<128x16xf32>
    %196 = arith.maximumf %194, %195 : vector<128x16xf32>
    %c0_176 = arith.constant 0 : index
    %c128_177 = arith.constant 128 : index
    %c0_178 = arith.constant 0 : index
    %197 = vector.load %arg11[%c0_176, %c128_177, %c0_178] : memref<1x256x16xf32, #tpu.memory_space<vmem>>, vector<1x128x16xf32>
    %198 = vector.shape_cast %197 : vector<1x128x16xf32> to vector<128x16xf32>
    %199 = vector.shape_cast %196 : vector<128x16xf32> to vector<1x128x16xf32>
    tpu.vector_store %arg11[%c0_176, %c128_177, %c0_178], %199 {strides = array<i32>} : memref<1x256x16xf32, #tpu.memory_space<vmem>>, vector<1x128x16xf32>,
    return
  }
  func.func @transform_0(%arg0: i32) -> (i32, i32, i32) {
    %c0_i32 = arith.constant 0 : i32
    %c0_i32_0 = arith.constant 0 : i32
    %c0_i32_1 = arith.constant 0 : i32
    return %arg0, %c0_i32, %c0_i32_0 : i32, i32, i32
  }
  func.func @transform_1(%arg0: i32) -> (i32, i32) {
    %c0_i32 = arith.constant 0 : i32
    %c0_i32_0 = arith.constant 0 : i32
    %c0_i32_1 = arith.constant 0 : i32
    return %c0_i32, %c0_i32_0 : i32, i32
  }
  func.func @transform_2(%arg0: i32) -> (i32, i32) {
    %c0_i32 = arith.constant 0 : i32
    %c0_i32_0 = arith.constant 0 : i32
    %c0_i32_1 = arith.constant 0 : i32
    return %c0_i32, %c0_i32_0 : i32, i32
  }
  func.func @transform_3(%arg0: i32) -> (i32, i32) {
    %c0_i32 = arith.constant 0 : i32
    %c0_i32_0 = arith.constant 0 : i32
    %c0_i32_1 = arith.constant 0 : i32
    return %c0_i32, %c0_i32_0 : i32, i32
  }
  func.func @transform_4(%arg0: i32) -> (i32, i32) {
    %c0_i32 = arith.constant 0 : i32
    %c0_i32_0 = arith.constant 0 : i32
    %c0_i32_1 = arith.constant 0 : i32
    return %c0_i32, %c0_i32_0 : i32, i32
  }
  func.func @transform_5(%arg0: i32) -> (i32, i32) {
    %c0_i32 = arith.constant 0 : i32
    %c0_i32_0 = arith.constant 0 : i32
    %c0_i32_1 = arith.constant 0 : i32
    return %c0_i32, %c0_i32_0 : i32, i32
  }
  func.func @transform_6(%arg0: i32) -> (i32, i32) {
    %c0_i32 = arith.constant 0 : i32
    %c0_i32_0 = arith.constant 0 : i32
    %c0_i32_1 = arith.constant 0 : i32
    return %c0_i32, %c0_i32_0 : i32, i32
  }
  func.func @transform_7(%arg0: i32) -> (i32, i32) {
    %c0_i32 = arith.constant 0 : i32
    %c0_i32_0 = arith.constant 0 : i32
    %c0_i32_1 = arith.constant 0 : i32
    return %c0_i32, %c0_i32_0 : i32, i32
  }
  func.func @transform_8(%arg0: i32) -> (i32, i32) {
    %c0_i32 = arith.constant 0 : i32
    %c0_i32_0 = arith.constant 0 : i32
    %c0_i32_1 = arith.constant 0 : i32
    return %c0_i32, %c0_i32_0 : i32, i32
  }
  func.func @transform_9(%arg0: i32) -> (i32, i32) {
    %c0_i32 = arith.constant 0 : i32
    %c0_i32_0 = arith.constant 0 : i32
    %c0_i32_1 = arith.constant 0 : i32
    return %c0_i32, %c0_i32_0 : i32, i32
  }
  func.func @transform_10(%arg0: i32) -> (i32, i32, i32) {
    %c0_i32 = arith.constant 0 : i32
    %c0_i32_0 = arith.constant 0 : i32
    %c0_i32_1 = arith.constant 0 : i32
    return %arg0, %c0_i32, %c0_i32_0 : i32, i32, i32
  }
}

</mosaic_0001>

<llo_original>
// kernel: bottleneck_forward.1
$region0: #{bottleneck_forward.1}
  #allocation0 [shape = 'u32[]', space=smem, size = 0x4, offset = 0x4, fixed_abs, tag = 'smem constant byte address 0x4 - core index']
  #allocation1 [shape = 'u32[72,128]{1,0:T(1,128)}', space=vmem, size = 0x9000, scoped, tag = 'internal scratch']
  #allocation2 [shape = 'bf16[448,128]{1,0:T(8,128)(2,1)}', space=vmem, size = 0x1c000, scoped, tag = 'scratch operand']
  #allocation3 [shape = 'bf16[192,1152]{1,0:T(8,128)(2,1)}', space=vmem, size = 0x6c000, scoped, tag = 'scratch operand']
  #allocation4 [shape = 'bf16[128,128]{1,0:T(8,128)(2,1)}', space=vmem, size = 0x8000, scoped, tag = 'scratch operand']
  %s0 = inlined_call_operand.vmem [shape: f32[2,256,16], index: 0, kind: input, shape index: {}]
  %s1 = inlined_call_operand.vmem [shape: bf16[16,128], index: 1, kind: input, shape index: {}]
  %s2 = inlined_call_operand.vmem [shape: f32[1,128], index: 2, kind: input, shape index: {}]
  %s3 = inlined_call_operand.vmem [shape: f32[1,128], index: 3, kind: input, shape index: {}]
  %s4 = inlined_call_operand.vmem [shape: bf16[1152,128], index: 4, kind: input, shape index: {}]
  %s5 = inlined_call_operand.vmem [shape: f32[1,128], index: 5, kind: input, shape index: {}]
  %s6 = inlined_call_operand.vmem [shape: f32[1,128], index: 6, kind: input, shape index: {}]
  %s7 = inlined_call_operand.vmem [shape: bf16[128,16], index: 7, kind: input, shape index: {}]
  %s8 = inlined_call_operand.vmem [shape: f32[1,16], index: 8, kind: input, shape index: {}]
  %s9 = inlined_call_operand.vmem [shape: f32[1,16], index: 9, kind: input, shape index: {}]
  %s10 = inlined_call_operand.vmem [shape: f32[2,256,16], index: 10, kind: output, shape index: {}]
  %s11 = sld [smem:[#allocation0]]
  $region73: #{bottleneck_forward.1} parent=0
    _
  %s13 = ssub.s32 1, %s11
  %s14 = scalar_select 0, %s13, %s11
  loop: start=0, step=1, limit=4
  $region2: #{bottleneck_forward.1} parent=0 // loop_pre_header
    _
  $region3: #{bottleneck_forward.1} parent=0 // loop_header
    %s16 = sphi 0, %s20
    %p17 = scmp.ge.s32.totalorder %s16, 4
    %s26 = sphi 0, %s28
    %s29 = sphi 0, %s26
    %s30 = sphi 0, %s29
    %s46 = sphi 0, %s30
    %s50 = sphi 0, %s50
    %s52 = sphi 0, %s50
    %s53 = sphi 0, %s52
    %s67 = sphi 0, %s53
    %s71 = sphi 0, %s71
    %s73 = sphi 0, %s71
    %s74 = sphi 0, %s73
    %s88 = sphi 0, %s74
    %s92 = sphi 0, %s92
    %s94 = sphi 0, %s92
    %s95 = sphi 0, %s94
    %s109 = sphi 0, %s95
    %s113 = sphi 0, %s113
    %s115 = sphi 0, %s113
    %s116 = sphi 0, %s115
    %s130 = sphi 0, %s116
    %s134 = sphi 0, %s134
    %s136 = sphi 0, %s134
    %s137 = sphi 0, %s136
    %s151 = sphi 0, %s137
    %s155 = sphi 0, %s155
    %s157 = sphi 0, %s155
    %s158 = sphi 0, %s157
    %s172 = sphi 0, %s158
    %s176 = sphi 0, %s176
    %s178 = sphi 0, %s176
    %s179 = sphi 0, %s178
    %s193 = sphi 0, %s179
    %s197 = sphi 0, %s197
    %s199 = sphi 0, %s197
    %s200 = sphi 0, %s199
    %s214 = sphi 0, %s200
    %s218 = sphi 0, %s218
    %s220 = sphi 0, %s218
    %s221 = sphi 0, %s220
    %s235 = sphi 0, %s221
    %s241 = sphi 0, %s243
    %s244 = sphi 0, %s241
    %s245 = sphi 0, %s244
    %s261 = sphi 0, %s245
  $region4: #{bottleneck_forward.1} parent=0 // loop_header_branch
    %19 = sbr.rel (%p17) target = $region8
  $region5: #{bottleneck_forward.1} parent=0 // loop_body
    %s21 = ssub.s32 %s16, 1
    %s22 = ssub.s32 %s16, 2
    %s23 = sadd.s32 %s16, 1
    %s24 = ssub.s32 %s16, %s23
    %p25 = scmp.eq.s32.totalorder %s24, 0
    %s27 = sadd.s32 %s26, 1
    %s28 = scalar_select %p25, %s26, %s27
    %p31 = pneg %p25
    %p32 = scmp.eq.s32.totalorder %s16, 1
    %p33 = por %p31, %p32
    %p34 = scmp.ne.s32.totalorder %s26, %s29
    %p35 = scmp.eq.s32.totalorder %s16, 0
    %p36 = por %p34, %p35
    %p37 = scmp.ne.s32.totalorder %s26, %s29
    %p38 = scmp.eq.s32.totalorder %s21, 1
    %p39 = por %p37, %p38
    %p40 = scmp.ne.s32.totalorder %s29, %s30
    %p41 = scmp.eq.s32.totalorder %s21, 0
    %p42 = por %p40, %p41
    %p43 = scmp.ne.s32.totalorder %s29, %s30
    %p44 = scmp.eq.s32.totalorder %s22, 1
    %p45 = por %p43, %p44
    %p47 = scmp.ne.s32.totalorder %s30, %s46
    %p48 = scmp.eq.s32.totalorder %s22, 0
    %p49 = por %p47, %p48
    %s51 = sadd.s32 %s50, 1
    %p54 = scmp.eq.s32.totalorder %s16, 1
    %p55 = scmp.ne.s32.totalorder %s50, %s52
    %p56 = scmp.eq.s32.totalorder %s16, 0
    %p57 = por %p55, %p56
    %p58 = scmp.ne.s32.totalorder %s50, %s52
    %p59 = scmp.eq.s32.totalorder %s21, 1
    %p60 = por %p58, %p59
    %p61 = scmp.ne.s32.totalorder %s52, %s53
    %p62 = scmp.eq.s32.totalorder %s21, 0
    %p63 = por %p61, %p62
    %p64 = scmp.ne.s32.totalorder %s52, %s53
    %p65 = scmp.eq.s32.totalorder %s22, 1
    %p66 = por %p64, %p65
    %p68 = scmp.ne.s32.totalorder %s53, %s67
    %p69 = scmp.eq.s32.totalorder %s22, 0
    %p70 = por %p68, %p69
    %s72 = sadd.s32 %s71, 1
    %p75 = scmp.eq.s32.totalorder %s16, 1
    %p76 = scmp.ne.s32.totalorder %s71, %s73
    %p77 = scmp.eq.s32.totalorder %s16, 0
    %p78 = por %p76, %p77
    %p79 = scmp.ne.s32.totalorder %s71, %s73
    %p80 = scmp.eq.s32.totalorder %s21, 1
    %p81 = por %p79, %p80
    %p82 = scmp.ne.s32.totalorder %s73, %s74
    %p83 = scmp.eq.s32.totalorder %s21, 0
    %p84 = por %p82, %p83
    %p85 = scmp.ne.s32.totalorder %s73, %s74
    %p86 = scmp.eq.s32.totalorder %s22, 1
    %p87 = por %p85, %p86
    %p89 = scmp.ne.s32.totalorder %s74, %s88
    %p90 = scmp.eq.s32.totalorder %s22, 0
    %p91 = por %p89, %p90
    %s93 = sadd.s32 %s92, 1
    %p96 = scmp.eq.s32.totalorder %s16, 1
    %p97 = scmp.ne.s32.totalorder %s92, %s94
    %p98 = scmp.eq.s32.totalorder %s16, 0
    %p99 = por %p97, %p98
    %p100 = scmp.ne.s32.totalorder %s92, %s94
    %p101 = scmp.eq.s32.totalorder %s21, 1
    %p102 = por %p100, %p101
    %p103 = scmp.ne.s32.totalorder %s94, %s95
    %p104 = scmp.eq.s32.totalorder %s21, 0
    %p105 = por %p103, %p104
    %p106 = scmp.ne.s32.totalorder %s94, %s95
    %p107 = scmp.eq.s32.totalorder %s22, 1
    %p108 = por %p106, %p107
    %p110 = scmp.ne.s32.totalorder %s95, %s109
    %p111 = scmp.eq.s32.totalorder %s22, 0
    %p112 = por %p110, %p111
    %s114 = sadd.s32 %s113, 1
    %p117 = scmp.eq.s32.totalorder %s16, 1
    %p118 = scmp.ne.s32.totalorder %s113, %s115
    %p119 = scmp.eq.s32.totalorder %s16, 0
    %p120 = por %p118, %p119
    %p121 = scmp.ne.s32.totalorder %s113, %s115
    %p122 = scmp.eq.s32.totalorder %s21, 1
    %p123 = por %p121, %p122
    %p124 = scmp.ne.s32.totalorder %s115, %s116
    %p125 = scmp.eq.s32.totalorder %s21, 0
    %p126 = por %p124, %p125
    %p127 = scmp.ne.s32.totalorder %s115, %s116
    %p128 = scmp.eq.s32.totalorder %s22, 1
    %p129 = por %p127, %p128
    %p131 = scmp.ne.s32.totalorder %s116, %s130
    %p132 = scmp.eq.s32.totalorder %s22, 0
    %p133 = por %p131, %p132
    %s135 = sadd.s32 %s134, 1
    %p138 = scmp.eq.s32.totalorder %s16, 1
    %p139 = scmp.ne.s32.totalorder %s134, %s136
    %p140 = scmp.eq.s32.totalorder %s16, 0
    %p141 = por %p139, %p140
    %p142 = scmp.ne.s32.totalorder %s134, %s136
    %p143 = scmp.eq.s32.totalorder %s21, 1
    %p144 = por %p142, %p143
    %p145 = scmp.ne.s32.totalorder %s136, %s137
    %p146 = scmp.eq.s32.totalorder %s21, 0
    %p147 = por %p145, %p146
    %p148 = scmp.ne.s32.totalorder %s136, %s137
    %p149 = scmp.eq.s32.totalorder %s22, 1
    %p150 = por %p148, %p149
    %p152 = scmp.ne.s32.totalorder %s137, %s151
    %p153 = scmp.eq.s32.totalorder %s22, 0
    %p154 = por %p152, %p153
    %s156 = sadd.s32 %s155, 1
    %p159 = scmp.eq.s32.totalorder %s16, 1
    %p160 = scmp.ne.s32.totalorder %s155, %s157
    %p161 = scmp.eq.s32.totalorder %s16, 0
    %p162 = por %p160, %p161
    %p163 = scmp.ne.s32.totalorder %s155, %s157
    %p164 = scmp.eq.s32.totalorder %s21, 1
    %p165 = por %p163, %p164
    %p166 = scmp.ne.s32.totalorder %s157, %s158
    %p167 = scmp.eq.s32.totalorder %s21, 0
    %p168 = por %p166, %p167
    %p169 = scmp.ne.s32.totalorder %s157, %s158
    %p170 = scmp.eq.s32.totalorder %s22, 1
    %p171 = por %p169, %p170
    %p173 = scmp.ne.s32.totalorder %s158, %s172
    %p174 = scmp.eq.s32.totalorder %s22, 0
    %p175 = por %p173, %p174
    %s177 = sadd.s32 %s176, 1
    %p180 = scmp.eq.s32.totalorder %s16, 1
    %p181 = scmp.ne.s32.totalorder %s176, %s178
    %p182 = scmp.eq.s32.totalorder %s16, 0
    %p183 = por %p181, %p182
    %p184 = scmp.ne.s32.totalorder %s176, %s178
    %p185 = scmp.eq.s32.totalorder %s21, 1
    %p186 = por %p184, %p185
    %p187 = scmp.ne.s32.totalorder %s178, %s179
    %p188 = scmp.eq.s32.totalorder %s21, 0
    %p189 = por %p187, %p188
    %p190 = scmp.ne.s32.totalorder %s178, %s179
    %p191 = scmp.eq.s32.totalorder %s22, 1
    %p192 = por %p190, %p191
    %p194 = scmp.ne.s32.totalorder %s179, %s193
    %p195 = scmp.eq.s32.totalorder %s22, 0
    %p196 = por %p194, %p195
    %s198 = sadd.s32 %s197, 1
    %p201 = scmp.eq.s32.totalorder %s16, 1
    %p202 = scmp.ne.s32.totalorder %s197, %s199
    %p203 = scmp.eq.s32.totalorder %s16, 0
    %p204 = por %p202, %p203
    %p205 = scmp.ne.s32.totalorder %s197, %s199
    %p206 = scmp.eq.s32.totalorder %s21, 1
    %p207 = por %p205, %p206
    %p208 = scmp.ne.s32.totalorder %s199, %s200
    %p209 = scmp.eq.s32.totalorder %s21, 0
    %p210 = por %p208, %p209
    %p211 = scmp.ne.s32.totalorder %s199, %s200
    %p212 = scmp.eq.s32.totalorder %s22, 1
    %p213 = por %p211, %p212
    %p215 = scmp.ne.s32.totalorder %s200, %s214
    %p216 = scmp.eq.s32.totalorder %s22, 0
    %p217 = por %p215, %p216
    %s219 = sadd.s32 %s218, 1
    %p222 = scmp.eq.s32.totalorder %s16, 1
    %p223 = scmp.ne.s32.totalorder %s218, %s220
    %p224 = scmp.eq.s32.totalorder %s16, 0
    %p225 = por %p223, %p224
    %p226 = scmp.ne.s32.totalorder %s218, %s220
    %p227 = scmp.eq.s32.totalorder %s21, 1
    %p228 = por %p226, %p227
    %p229 = scmp.ne.s32.totalorder %s220, %s221
    %p230 = scmp.eq.s32.totalorder %s21, 0
    %p231 = por %p229, %p230
    %p232 = scmp.ne.s32.totalorder %s220, %s221
    %p233 = scmp.eq.s32.totalorder %s22, 1
    %p234 = por %p232, %p233
    %p236 = scmp.ne.s32.totalorder %s221, %s235
    %p237 = scmp.eq.s32.totalorder %s22, 0
    %p238 = por %p236, %p237
    %s239 = ssub.s32 %s16, %s23
    %p240 = scmp.eq.s32.totalorder %s239, 0
    %s242 = sadd.s32 %s241, 1
    %s243 = scalar_select %p240, %s241, %s242
    %p246 = pneg %p240
    %p247 = scmp.eq.s32.totalorder %s16, 1
    %p248 = por %p246, %p247
    %p249 = scmp.ne.s32.totalorder %s241, %s244
    %p250 = scmp.eq.s32.totalorder %s16, 0
    %p251 = por %p249, %p250
    %p252 = scmp.ne.s32.totalorder %s241, %s244
    %p253 = scmp.eq.s32.totalorder %s21, 1
    %p254 = por %p252, %p253
    %p255 = scmp.ne.s32.totalorder %s244, %s245
    %p256 = scmp.eq.s32.totalorder %s21, 0
    %p257 = por %p255, %p256
    %p258 = scmp.ne.s32.totalorder %s244, %s245
    %p259 = scmp.eq.s32.totalorder %s22, 1
    %p260 = por %p258, %p259
    %p262 = scmp.ne.s32.totalorder %s245, %s261
    %p263 = scmp.eq.s32.totalorder %s22, 0
    %p264 = por %p262, %p263
    %p265 = scmp.le.s32.totalorder 1, %s16
    %p266 = scmp.lt.s32.totalorder %s16, 3
    %p267 = pnand %p265, %p266
    %p268 = pneg %p267
    // Predicated region
    $region9: #{bottleneck_forward.1} parent=5 // pred_check
      _
    $region10: #{bottleneck_forward.1} parent=5 // pred_check_branch
      %270 = sbr.rel (%p267) target = $region12
    $region11: #{bottleneck_forward.1} parent=5 // pred_region
      %s271 = ssub.s32 %s16, 1
      // Predicated region
      $region13: #{bottleneck_forward.1} parent=11 // pred_check
        %p272 = pneg %p63
      $region14: #{bottleneck_forward.1} parent=11 // pred_check_branch
        %274 = sbr.rel (%p272) target = $region16
      $region15: #{bottleneck_forward.1} parent=11 // pred_region
        _
      $region16: #{bottleneck_forward.1} parent=11 // pred_fallthru
        _
      // Predicated region
      $region17: #{bottleneck_forward.1} parent=11 // pred_check
        %p275 = pneg %p84
      $region18: #{bottleneck_forward.1} parent=11 // pred_check_branch
        %277 = sbr.rel (%p275) target = $region20
      $region19: #{bottleneck_forward.1} parent=11 // pred_region
        _
      $region20: #{bottleneck_forward.1} parent=11 // pred_fallthru
        _
      // Predicated region
      $region21: #{bottleneck_forward.1} parent=11 // pred_check
        %p278 = pneg %p105
      $region22: #{bottleneck_forward.1} parent=11 // pred_check_branch
        %280 = sbr.rel (%p278) target = $region24
      $region23: #{bottleneck_forward.1} parent=11 // pred_region
        _
      $region24: #{bottleneck_forward.1} parent=11 // pred_fallthru
        _
      // Predicated region
      $region25: #{bottleneck_forward.1} parent=11 // pred_check
        %p281 = pneg %p126
      $region26: #{bottleneck_forward.1} parent=11 // pred_check_branch
        %283 = sbr.rel (%p281) target = $region28
      $region27: #{bottleneck_forward.1} parent=11 // pred_region
        _
      $region28: #{bottleneck_forward.1} parent=11 // pred_fallthru
        _
      // Predicated region
      $region29: #{bottleneck_forward.1} parent=11 // pred_check
        %p284 = pneg %p147
      $region30: #{bottleneck_forward.1} parent=11 // pred_check_branch
        %286 = sbr.rel (%p284) target = $region32
      $region31: #{bottleneck_forward.1} parent=11 // pred_region
        _
      $region32: #{bottleneck_forward.1} parent=11 // pred_fallthru
        _
      // Predicated region
      $region33: #{bottleneck_forward.1} parent=11 // pred_check
        %p287 = pneg %p168
      $region34: #{bottleneck_forward.1} parent=11 // pred_check_branch
        %289 = sbr.rel (%p287) target = $region36
      $region35: #{bottleneck_forward.1} parent=11 // pred_region
        _
      $region36: #{bottleneck_forward.1} parent=11 // pred_fallthru
        _
      // Predicated region
      $region37: #{bottleneck_forward.1} parent=11 // pred_check
        %p290 = pneg %p189
      $region38: #{bottleneck_forward.1} parent=11 // pred_check_branch
        %292 = sbr.rel (%p290) target = $region40
      $region39: #{bottleneck_forward.1} parent=11 // pred_region
        _
      $region40: #{bottleneck_forward.1} parent=11 // pred_fallthru
        _
      // Predicated region
      $region41: #{bottleneck_forward.1} parent=11 // pred_check
        %p293 = pneg %p210
      $region42: #{bottleneck_forward.1} parent=11 // pred_check_branch
        %295 = sbr.rel (%p293) target = $region44
      $region43: #{bottleneck_forward.1} parent=11 // pred_region
        _
      $region44: #{bottleneck_forward.1} parent=11 // pred_fallthru
        _
      // Predicated region
      $region45: #{bottleneck_forward.1} parent=11 // pred_check
        %p296 = pneg %p231
      $region46: #{bottleneck_forward.1} parent=11 // pred_check_branch
        %298 = sbr.rel (%p296) target = $region48
      $region47: #{bottleneck_forward.1} parent=11 // pred_region
        _
      $region48: #{bottleneck_forward.1} parent=11 // pred_fallthru
        _
    $region12: #{bottleneck_forward.1} parent=5 // pred_fallthru
      _
    %p299 = scmp.lt.s32.totalorder %s16, 2
    // Predicated region
    $region49: #{bottleneck_forward.1} parent=5 // pred_check
      %p300 = pneg %p299
    $region50: #{bottleneck_forward.1} parent=5 // pred_check_branch
      %302 = sbr.rel (%p300) target = $region52
    $region51: #{bottleneck_forward.1} parent=5 // pred_region
      // Predicated region
      $region53: #{bottleneck_forward.1} parent=51 // pred_check
        %p303 = pneg %p36
      $region54: #{bottleneck_forward.1} parent=51 // pred_check_branch
        %305 = sbr.rel (%p303) target = $region56
      $region55: #{bottleneck_forward.1} parent=51 // pred_region
        %p306 = scmp.lt.s32.totalorder %s16, 1
        %s307 = scalar_select %p306, %s16, 1
        %s308 = smul.addr %s307, 32
        %s309 = smul.addr %s308, 8
        %s310 = scalar_lea.vmem %s0, %s309
      $region56: #{bottleneck_forward.1} parent=51 // pred_fallthru
        _
    $region52: #{bottleneck_forward.1} parent=5 // pred_fallthru
      _
    %p311 = scmp.le.s32.totalorder 1, %s16
    %p312 = scmp.lt.s32.totalorder %s16, 3
    %p313 = pnand %p311, %p312
    %p314 = pneg %p313
    // Predicated region
    $region57: #{bottleneck_forward.1} parent=5 // pred_check
      _
    $region58: #{bottleneck_forward.1} parent=5 // pred_check_branch
      %316 = sbr.rel (%p313) target = $region60
    $region59: #{bottleneck_forward.1} parent=5 // pred_region
      %s317 = ssub.s32 %s16, 1
      %p318 = scmp.lt.s32.totalorder %s21, 1
      %s319 = scalar_select %p318, %s21, 1
      %s320 = smul.addr %s319, 32
      %s321 = smul.addr %s320, 8
      %s322 = scalar_lea.vmem %s0, %s321
      %p323 = pneg %p42
      %p324 = pneg %p39
      %p325 = pneg %p63
      %p326 = pneg %p60
      %p327 = pneg %p84
      %p328 = pneg %p81
      %p329 = pneg %p105
      %p330 = pneg %p102
      %p331 = pneg %p126
      %p332 = pneg %p123
      %p333 = pneg %p147
      %p334 = pneg %p144
      %p335 = pneg %p168
      %p336 = pneg %p165
      %p337 = pneg %p189
      %p338 = pneg %p186
      %p339 = pneg %p210
      %p340 = pneg %p207
      %p341 = pneg %p231
      %p342 = pneg %p228
      %p343 = pneg %p257
      %p344 = pneg %p254
      %p345 = scmp.lt.s32.totalorder %s21, 1
      %s346 = scalar_select %p345, %s21, 1
      %s347 = smul.addr %s346, 32
      %s348 = smul.addr %s347, 8
      %s349 = scalar_lea.vmem %s10, %s348
      %p350 = scmp.lt.s32.totalorder %s21, 1
      %s351 = scalar_select %p350, %s21, 1
      %s352 = smul.addr %s351, 32
      %s353 = smul.addr %s352, 8
      %s354 = scalar_lea.vmem %s0, %s353
      %p355 = scmp.lt.s32.totalorder %s21, 1
      %s356 = scalar_select %p355, %s21, 1
      %s357 = smul.addr %s356, 32
      %s358 = smul.addr %s357, 8
      %s359 = scalar_lea.vmem %s10, %s358
      %v361 = vld [vmem:[%s2] sm:$0x1]
      %v362 = vld [vmem:[%s3] sm:$0x1]
      %v363 = vld [vmem:[%s5] sm:$0x1]
      %v364 = vld [vmem:[%s6] sm:$0x1]
      %v365 = vld [vmem:[%s8] sm:$0x1]
      %v366 = vld [vmem:[%s9] sm:$0x1]
      %367 = vst [vmem:[#allocation2] sm:$0xf] 0
      %368 = vst [vmem:[#allocation2 + $0x4] sm:$0xf] 0
      %369 = vst [vmem:[#allocation2 + $0x8] sm:$0xf] 0
      %370 = vst [vmem:[#allocation2 + $0xc] sm:$0xf] 0
      %371 = vst [vmem:[#allocation2 + $0xd0] sm:$0xf] 0
      %372 = vst [vmem:[#allocation2 + $0xd4] sm:$0xf] 0
      %373 = vst [vmem:[#allocation2 + $0xd8] sm:$0xf] 0
      %374 = vst [vmem:[#allocation2 + $0xdc] sm:$0xf] 0
      %v375 = vld [vmem:[%s354] sm:$0xff]
      %v376 = vld [vmem:[%s354 + $0x8] sm:$0xff]
      %v377 = vld [vmem:[%s354 + $0x10] sm:$0xff]
      %v378 = vld [vmem:[%s354 + $0x18] sm:$0xff]
      %v379 = vld [vmem:[%s354 + $0x20] sm:$0xff]
      %v380 = vld [vmem:[%s354 + $0x28] sm:$0xff]
      %v381 = vld [vmem:[%s354 + $0x30] sm:$0xff]
      %v382 = vld [vmem:[%s354 + $0x38] sm:$0xff]
      %v383 = vld [vmem:[%s354 + $0x40] sm:$0xff]
      %v384 = vld [vmem:[%s354 + $0x48] sm:$0xff]
      %v385 = vld [vmem:[%s354 + $0x50] sm:$0xff]
      %v386 = vld [vmem:[%s354 + $0x58] sm:$0xff]
      %v387 = vld [vmem:[%s354 + $0x60] sm:$0xff]
      %v388 = vld [vmem:[%s354 + $0x68] sm:$0xff]
      %v389 = vld [vmem:[%s354 + $0x70] sm:$0xff]
      %v390 = vld [vmem:[%s354 + $0x78] sm:$0xff]
      %v391 = vpack.c.bf16 %v376, %v375
      %v392 = vpack.c.bf16 %v378, %v377
      %v393 = vpack.c.bf16 %v380, %v379
      %v394 = vpack.c.bf16 %v382, %v381
      %v395 = vpack.c.bf16 %v384, %v383
      %v396 = vpack.c.bf16 %v386, %v385
      %v397 = vpack.c.bf16 %v388, %v387
      %v398 = vpack.c.bf16 %v390, %v389
      %v399 = vld [vmem:[%s1] sm:$0xf]
      %v400 = vld [vmem:[%s1 + $0x4] sm:$0xf]
      %v403 = vunpack.c.l.b16 %v399
      %v404 = vunpack.c.l.b16 %v400
      %v405 = vpack.c.b16 %v404, %v403
      %vm407 = vcmask 130048
      %v409 = vsel %vm407, %v391, 0
      %v412 = vsel %vm407, %v392, 0
      %v415 = vsel %vm407, %v393, 0
      %v418 = vsel %vm407, %v394, 0
      %v421 = vsel %vm407, %v395, 0
      %v424 = vsel %vm407, %v396, 0
      %v427 = vsel %vm407, %v397, 0
      %v430 = vsel %vm407, %v398, 0
      %432 = vmatpush.bf16.msra.mxu0 0
      %433 = vmatpush.bf16.msra.mxu0 0
      %434 = vmatpush.bf16.msra.mxu0 0
      %435 = vmatpush.bf16.msra.mxu0 0
      %436 = vmatpush.bf16.msra.mxu0 0
      %437 = vmatpush.bf16.msra.mxu0 0
      %438 = vmatpush.bf16.msra.mxu0 0
      %439 = vmatpush.bf16.msra.mxu0 %v405
      %440 = vmatmul.bf16.gmra.mxu0 %v409
      %v441 = vpop.f32.mrf.mxu0
      %v442 = vadd.f32 0.0, %v441
      %v443 = vpop.f32.mrf.mxu0
      %v444 = vadd.f32 0.0, %v443
      %445 = vmatmul.bf16.gmra.mxu0 %v412
      %v446 = vpop.f32.mrf.mxu0
      %v447 = vadd.f32 0.0, %v446
      %v448 = vpop.f32.mrf.mxu0
      %v449 = vadd.f32 0.0, %v448
      %450 = vmatmul.bf16.gmra.mxu0 %v415
      %v451 = vpop.f32.mrf.mxu0
      %v452 = vadd.f32 0.0, %v451
      %v453 = vpop.f32.mrf.mxu0
      %v454 = vadd.f32 0.0, %v453
      %455 = vmatmul.bf16.gmra.mxu0 %v418
      %v456 = vpop.f32.mrf.mxu0
      %v457 = vadd.f32 0.0, %v456
      %v458 = vpop.f32.mrf.mxu0
      %v459 = vadd.f32 0.0, %v458
      %460 = vmatmul.bf16.gmra.mxu0 %v421
      %v461 = vpop.f32.mrf.mxu0
      %v462 = vadd.f32 0.0, %v461
      %v463 = vpop.f32.mrf.mxu0
      %v464 = vadd.f32 0.0, %v463
      %465 = vmatmul.bf16.gmra.mxu0 %v424
      %v466 = vpop.f32.mrf.mxu0
      %v467 = vadd.f32 0.0, %v466
      %v468 = vpop.f32.mrf.mxu0
      %v469 = vadd.f32 0.0, %v468
      %470 = vmatmul.bf16.gmra.mxu0 %v427
      %v471 = vpop.f32.mrf.mxu0
      %v472 = vadd.f32 0.0, %v471
      %v473 = vpop.f32.mrf.mxu0
      %v474 = vadd.f32 0.0, %v473
      %475 = vmatmul.bf16.gmra.mxu0 %v430
      %v476 = vpop.f32.mrf.mxu0
      %v477 = vadd.f32 0.0, %v476
      %v478 = vpop.f32.mrf.mxu0
      %v479 = vadd.f32 0.0, %v478
      %480 = vdwg.mxu0
      %v482 = vperm.slane %v361, 0
      %v484 = vmul.f32 %v442, %v482
      %v485 = vmul.f32 %v444, %v482
      %v486 = vmul.f32 %v447, %v482
      %v487 = vmul.f32 %v449, %v482
      %v488 = vmul.f32 %v452, %v482
      %v489 = vmul.f32 %v454, %v482
      %v490 = vmul.f32 %v457, %v482
      %v491 = vmul.f32 %v459, %v482
      %v492 = vmul.f32 %v462, %v482
      %v493 = vmul.f32 %v464, %v482
      %v494 = vmul.f32 %v467, %v482
      %v495 = vmul.f32 %v469, %v482
      %v496 = vmul.f32 %v472, %v482
      %v497 = vmul.f32 %v474, %v482
      %v498 = vmul.f32 %v477, %v482
      %v499 = vmul.f32 %v479, %v482
      %v501 = vperm.slane %v362, 0
      %v503 = vadd.f32 %v484, %v501
      %v504 = vadd.f32 %v485, %v501
      %v505 = vadd.f32 %v486, %v501
      %v506 = vadd.f32 %v487, %v501
      %v507 = vadd.f32 %v488, %v501
      %v508 = vadd.f32 %v489, %v501
      %v509 = vadd.f32 %v490, %v501
      %v510 = vadd.f32 %v491, %v501
      %v511 = vadd.f32 %v492, %v501
      %v512 = vadd.f32 %v493, %v501
      %v513 = vadd.f32 %v494, %v501
      %v514 = vadd.f32 %v495, %v501
      %v515 = vadd.f32 %v496, %v501
      %v516 = vadd.f32 %v497, %v501
      %v517 = vadd.f32 %v498, %v501
      %v518 = vadd.f32 %v499, %v501
      %v519 = vmax.f32 %v503, 0.0
      %v520 = vmax.f32 %v504, 0.0
      %v521 = vmax.f32 %v505, 0.0
      %v522 = vmax.f32 %v506, 0.0
      %v523 = vmax.f32 %v507, 0.0
      %v524 = vmax.f32 %v508, 0.0
      %v525 = vmax.f32 %v509, 0.0
      %v526 = vmax.f32 %v510, 0.0
      %v527 = vmax.f32 %v511, 0.0
      %v528 = vmax.f32 %v512, 0.0
      %v529 = vmax.f32 %v513, 0.0
      %v530 = vmax.f32 %v514, 0.0
      %v531 = vmax.f32 %v515, 0.0
      %v532 = vmax.f32 %v516, 0.0
      %v533 = vmax.f32 %v517, 0.0
      %v534 = vmax.f32 %v518, 0.0
      %v535 = vpack.c.bf16 %v519, %v519
      %v536 = vpack.c.bf16 %v520, %v520
      %v537 = vpack.c.bf16 %v521, %v521
      %v538 = vpack.c.bf16 %v522, %v522
      %v539 = vpack.c.bf16 %v523, %v523
      %v540 = vpack.c.bf16 %v524, %v524
      %v541 = vpack.c.bf16 %v525, %v525
      %v542 = vpack.c.bf16 %v526, %v526
      %v543 = vpack.c.bf16 %v527, %v527
      %v544 = vpack.c.bf16 %v528, %v528
      %v545 = vpack.c.bf16 %v529, %v529
      %v546 = vpack.c.bf16 %v530, %v530
      %v547 = vpack.c.bf16 %v531, %v531
      %v548 = vpack.c.bf16 %v532, %v532
      %v549 = vpack.c.bf16 %v533, %v533
      %v550 = vpack.c.bf16 %v534, %v534
      %551 = vst [vmem:[#allocation2 + $0x10] sm:$0xf] %v535
      %552 = vst [vmem:[#allocation2 + $0x14] sm:$0xf] %v536
      %553 = vst [vmem:[#allocation2 + $0x18] sm:$0xf] 0
      %554 = vst [vmem:[#allocation2 + $0x1c] sm:$0xf] %v537
      %555 = vst [vmem:[#allocation2 + $0x20] sm:$0xf] %v538
      %556 = vst [vmem:[#allocation2 + $0x24] sm:$0xf] 0
      %557 = vst [vmem:[#allocation2 + $0x28] sm:$0xf] %v539
      %558 = vst [vmem:[#allocation2 + $0x2c] sm:$0xf] %v540
      %559 = vst [vmem:[#allocation2 + $0x30] sm:$0xf] 0
      %560 = vst [vmem:[#allocation2 + $0x34] sm:$0xf] %v541
      %561 = vst [vmem:[#allocation2 + $0x38] sm:$0xf] %v542
      %562 = vst [vmem:[#allocation2 + $0x3c] sm:$0xf] 0
      %563 = vst [vmem:[#allocation2 + $0x40] sm:$0xf] %v543
      %564 = vst [vmem:[#allocation2 + $0x44] sm:$0xf] %v544
      %565 = vst [vmem:[#allocation2 + $0x48] sm:$0xf] 0
      %566 = vst [vmem:[#allocation2 + $0x4c] sm:$0xf] %v545
      %567 = vst [vmem:[#allocation2 + $0x50] sm:$0xf] %v546
      %568 = vst [vmem:[#allocation2 + $0x54] sm:$0xf] 0
      %569 = vst [vmem:[#allocation2 + $0x58] sm:$0xf] %v547
      %570 = vst [vmem:[#allocation2 + $0x5c] sm:$0xf] %v548
      %571 = vst [vmem:[#allocation2 + $0x60] sm:$0xf] 0
      %572 = vst [vmem:[#allocation2 + $0x64] sm:$0xf] %v549
      %573 = vst [vmem:[#allocation2 + $0x68] sm:$0xf] %v550
      %574 = vst [vmem:[#allocation2 + $0x6c] sm:$0xf] 0
      %v575 = vld [vmem:[%s354 + $0x80] sm:$0xff]
      %v576 = vld [vmem:[%s354 + $0x88] sm:$0xff]
      %v577 = vld [vmem:[%s354 + $0x90] sm:$0xff]
      %v578 = vld [vmem:[%s354 + $0x98] sm:$0xff]
      %v579 = vld [vmem:[%s354 + $0xa0] sm:$0xff]
      %v580 = vld [vmem:[%s354 + $0xa8] sm:$0xff]
      %v581 = vld [vmem:[%s354 + $0xb0] sm:$0xff]
      %v582 = vld [vmem:[%s354 + $0xb8] sm:$0xff]
      %v583 = vld [vmem:[%s354 + $0xc0] sm:$0xff]
      %v584 = vld [vmem:[%s354 + $0xc8] sm:$0xff]
      %v585 = vld [vmem:[%s354 + $0xd0] sm:$0xff]
      %v586 = vld [vmem:[%s354 + $0xd8] sm:$0xff]
      %v587 = vld [vmem:[%s354 + $0xe0] sm:$0xff]
      %v588 = vld [vmem:[%s354 + $0xe8] sm:$0xff]
      %v589 = vld [vmem:[%s354 + $0xf0] sm:$0xff]
      %v590 = vld [vmem:[%s354 + $0xf8] sm:$0xff]
      %v591 = vpack.c.bf16 %v576, %v575
      %v592 = vpack.c.bf16 %v578, %v577
      %v593 = vpack.c.bf16 %v580, %v579
      %v594 = vpack.c.bf16 %v582, %v581
      %v595 = vpack.c.bf16 %v584, %v583
      %v596 = vpack.c.bf16 %v586, %v585
      %v597 = vpack.c.bf16 %v588, %v587
      %v598 = vpack.c.bf16 %v590, %v589
      %v599 = vld [vmem:[%s1] sm:$0xf]
      %v600 = vld [vmem:[%s1 + $0x4] sm:$0xf]
      %v603 = vunpack.c.l.b16 %v599
      %v604 = vunpack.c.l.b16 %v600
      %v605 = vpack.c.b16 %v604, %v603
      %v608 = vsel %vm407, %v591, 0
      %v611 = vsel %vm407, %v592, 0
      %v614 = vsel %vm407, %v593, 0
      %v617 = vsel %vm407, %v594, 0
      %v620 = vsel %vm407, %v595, 0
      %v623 = vsel %vm407, %v596, 0
      %v626 = vsel %vm407, %v597, 0
      %v629 = vsel %vm407, %v598, 0
      %631 = vmatpush.bf16.msra.mxu0 0
      %632 = vmatpush.bf16.msra.mxu0 0
      %633 = vmatpush.bf16.msra.mxu0 0
      %634 = vmatpush.bf16.msra.mxu0 0
      %635 = vmatpush.bf16.msra.mxu0 0
      %636 = vmatpush.bf16.msra.mxu0 0
      %637 = vmatpush.bf16.msra.mxu0 0
      %638 = vmatpush.bf16.msra.mxu0 %v605
      %639 = vmatmul.bf16.gmra.mxu0 %v608
      %v640 = vpop.f32.mrf.mxu0
      %v641 = vadd.f32 0.0, %v640
      %v642 = vpop.f32.mrf.mxu0
      %v643 = vadd.f32 0.0, %v642
      %644 = vmatmul.bf16.gmra.mxu0 %v611
      %v645 = vpop.f32.mrf.mxu0
      %v646 = vadd.f32 0.0, %v645
      %v647 = vpop.f32.mrf.mxu0
      %v648 = vadd.f32 0.0, %v647
      %649 = vmatmul.bf16.gmra.mxu0 %v614
      %v650 = vpop.f32.mrf.mxu0
      %v651 = vadd.f32 0.0, %v650
      %v652 = vpop.f32.mrf.mxu0
      %v653 = vadd.f32 0.0, %v652
      %654 = vmatmul.bf16.gmra.mxu0 %v617
      %v655 = vpop.f32.mrf.mxu0
      %v656 = vadd.f32 0.0, %v655
      %v657 = vpop.f32.mrf.mxu0
      %v658 = vadd.f32 0.0, %v657
      %659 = vmatmul.bf16.gmra.mxu0 %v620
      %v660 = vpop.f32.mrf.mxu0
      %v661 = vadd.f32 0.0, %v660
      %v662 = vpop.f32.mrf.mxu0
      %v663 = vadd.f32 0.0, %v662
      %664 = vmatmul.bf16.gmra.mxu0 %v623
      %v665 = vpop.f32.mrf.mxu0
      %v666 = vadd.f32 0.0, %v665
      %v667 = vpop.f32.mrf.mxu0
      %v668 = vadd.f32 0.0, %v667
      %669 = vmatmul.bf16.gmra.mxu0 %v626
      %v670 = vpop.f32.mrf.mxu0
      %v671 = vadd.f32 0.0, %v670
      %v672 = vpop.f32.mrf.mxu0
      %v673 = vadd.f32 0.0, %v672
      %674 = vmatmul.bf16.gmra.mxu0 %v629
      %v675 = vpop.f32.mrf.mxu0
      %v676 = vadd.f32 0.0, %v675
      %v677 = vpop.f32.mrf.mxu0
      %v678 = vadd.f32 0.0, %v677
      %679 = vdwg.mxu0
      %v680 = vmul.f32 %v641, %v482
      %v681 = vmul.f32 %v643, %v482
      %v682 = vmul.f32 %v646, %v482
      %v683 = vmul.f32 %v648, %v482
      %v684 = vmul.f32 %v651, %v482
      %v685 = vmul.f32 %v653, %v482
      %v686 = vmul.f32 %v656, %v482
      %v687 = vmul.f32 %v658, %v482
      %v688 = vmul.f32 %v661, %v482
      %v689 = vmul.f32 %v663, %v482
      %v690 = vmul.f32 %v666, %v482
      %v691 = vmul.f32 %v668, %v482
      %v692 = vmul.f32 %v671, %v482
      %v693 = vmul.f32 %v673, %v482
      %v694 = vmul.f32 %v676, %v482
      %v695 = vmul.f32 %v678, %v482
      %v696 = vadd.f32 %v680, %v501
      %v697 = vadd.f32 %v681, %v501
      %v698 = vadd.f32 %v682, %v501
      %v699 = vadd.f32 %v683, %v501
      %v700 = vadd.f32 %v684, %v501
      %v701 = vadd.f32 %v685, %v501
      %v702 = vadd.f32 %v686, %v501
      %v703 = vadd.f32 %v687, %v501
      %v704 = vadd.f32 %v688, %v501
      %v705 = vadd.f32 %v689, %v501
      %v706 = vadd.f32 %v690, %v501
      %v707 = vadd.f32 %v691, %v501
      %v708 = vadd.f32 %v692, %v501
      %v709 = vadd.f32 %v693, %v501
      %v710 = vadd.f32 %v694, %v501
      %v711 = vadd.f32 %v695, %v501
      %v712 = vmax.f32 %v696, 0.0
      %v713 = vmax.f32 %v697, 0.0
      %v714 = vmax.f32 %v698, 0.0
      %v715 = vmax.f32 %v699, 0.0
      %v716 = vmax.f32 %v700, 0.0
      %v717 = vmax.f32 %v701, 0.0
      %v718 = vmax.f32 %v702, 0.0
      %v719 = vmax.f32 %v703, 0.0
      %v720 = vmax.f32 %v704, 0.0
      %v721 = vmax.f32 %v705, 0.0
      %v722 = vmax.f32 %v706, 0.0
      %v723 = vmax.f32 %v707, 0.0
      %v724 = vmax.f32 %v708, 0.0
      %v725 = vmax.f32 %v709, 0.0
      %v726 = vmax.f32 %v710, 0.0
      %v727 = vmax.f32 %v711, 0.0
      %v728 = vpack.c.bf16 %v712, %v712
      %v729 = vpack.c.bf16 %v713, %v713
      %v730 = vpack.c.bf16 %v714, %v714
      %v731 = vpack.c.bf16 %v715, %v715
      %v732 = vpack.c.bf16 %v716, %v716
      %v733 = vpack.c.bf16 %v717, %v717
      %v734 = vpack.c.bf16 %v718, %v718
      %v735 = vpack.c.bf16 %v719, %v719
      %v736 = vpack.c.bf16 %v720, %v720
      %v737 = vpack.c.bf16 %v721, %v721
      %v738 = vpack.c.bf16 %v722, %v722
      %v739 = vpack.c.bf16 %v723, %v723
      %v740 = vpack.c.bf16 %v724, %v724
      %v741 = vpack.c.bf16 %v725, %v725
      %v742 = vpack.c.bf16 %v726, %v726
      %v743 = vpack.c.bf16 %v727, %v727
      %744 = vst [vmem:[#allocation2 + $0x70] sm:$0xf] %v728
      %745 = vst [vmem:[#allocation2 + $0x74] sm:$0xf] %v729
      %746 = vst [vmem:[#allocation2 + $0x78] sm:$0xf] 0
      %747 = vst [vmem:[#allocation2 + $0x7c] sm:$0xf] %v730
      %748 = vst [vmem:[#allocation2 + $0x80] sm:$0xf] %v731
      %749 = vst [vmem:[#allocation2 + $0x84] sm:$0xf] 0
      %750 = vst [vmem:[#allocation2 + $0x88] sm:$0xf] %v732
      %751 = vst [vmem:[#allocation2 + $0x8c] sm:$0xf] %v733
      %752 = vst [vmem:[#allocation2 + $0x90] sm:$0xf] 0
      %753 = vst [vmem:[#allocation2 + $0x94] sm:$0xf] %v734
      %754 = vst [vmem:[#allocation2 + $0x98] sm:$0xf] %v735
      %755 = vst [vmem:[#allocation2 + $0x9c] sm:$0xf] 0
      %756 = vst [vmem:[#allocation2 + $0xa0] sm:$0xf] %v736
      %757 = vst [vmem:[#allocation2 + $0xa4] sm:$0xf] %v737
      %758 = vst [vmem:[#allocation2 + $0xa8] sm:$0xf] 0
      %759 = vst [vmem:[#allocation2 + $0xac] sm:$0xf] %v738
      %760 = vst [vmem:[#allocation2 + $0xb0] sm:$0xf] %v739
      %761 = vst [vmem:[#allocation2 + $0xb4] sm:$0xf] 0
      %762 = vst [vmem:[#allocation2 + $0xb8] sm:$0xf] %v740
      %763 = vst [vmem:[#allocation2 + $0xbc] sm:$0xf] %v741
      %764 = vst [vmem:[#allocation2 + $0xc0] sm:$0xf] 0
      %765 = vst [vmem:[#allocation2 + $0xc4] sm:$0xf] %v742
      %766 = vst [vmem:[#allocation2 + $0xc8] sm:$0xf] %v743
      %767 = vst [vmem:[#allocation2 + $0xcc] sm:$0xf] 0
      %v768 = vld [vmem:[#allocation2] sm:$0x8]
      %v769 = vld [vmem:[#allocation2 + $0x4] sm:$0xf]
      %v770 = vld [vmem:[#allocation2 + $0x8] sm:$0xf]
      %v771 = vld [vmem:[#allocation2 + $0xc] sm:$0xf]
      %v772 = vld [vmem:[#allocation2 + $0x10] sm:$0xf]
      %v773 = vld [vmem:[#allocation2 + $0x14] sm:$0xf]
      %v774 = vld [vmem:[#allocation2 + $0x18] sm:$0xf]
      %v775 = vld [vmem:[#allocation2 + $0x1c] sm:$0xf]
      %v776 = vld [vmem:[#allocation2 + $0x20] sm:$0xf]
      %v777 = vld [vmem:[#allocation2 + $0x24] sm:$0xf]
      %v778 = vld [vmem:[#allocation2 + $0x28] sm:$0xf]
      %v779 = vld [vmem:[#allocation2 + $0x2c] sm:$0xf]
      %v780 = vld [vmem:[#allocation2 + $0x30] sm:$0xf]
      %v781 = vld [vmem:[#allocation2 + $0x34] sm:$0xf]
      %v782 = vld [vmem:[#allocation2 + $0x38] sm:$0xf]
      %v783 = vld [vmem:[#allocation2 + $0x3c] sm:$0xf]
      %v784 = vld [vmem:[#allocation2 + $0x40] sm:$0xf]
      %v785 = vld [vmem:[#allocation2 + $0x44] sm:$0xf]
      %v786 = vld [vmem:[#allocation2 + $0x48] sm:$0xf]
      %v787 = vld [vmem:[#allocation2 + $0x4c] sm:$0xf]
      %v788 = vld [vmem:[#allocation2 + $0x50] sm:$0xf]
      %v789 = vld [vmem:[#allocation2 + $0x54] sm:$0xf]
      %v790 = vld [vmem:[#allocation2 + $0x58] sm:$0xf]
      %v791 = vld [vmem:[#allocation2 + $0x5c] sm:$0xf]
      %v792 = vld [vmem:[#allocation2 + $0x60] sm:$0xf]
      %vm793 = vsmask.f32 256
      %vm794 = vsmask.f32 4368
      %vm795 = vmor %vm793, %vm794
      %v797 = vshrl.u32 %v768, 16
      %v799 = vrot.slane %v797, 7
      %v800 = vrot.slane %v799, 4
      %v802 = vshrl.u32 %v769, 16
      %v804 = vrot.slane %v802, 7
      %v805 = vshll.u32 %v769, 16
      %v807 = vor.u32 %v804, %v805
      %v808 = vsel %vm795, %v800, %v807
      %v809 = vrot.slane %v804, 4
      %v811 = vshrl.u32 %v770, 16
      %v813 = vrot.slane %v811, 7
      %v814 = vshll.u32 %v770, 16
      %v816 = vor.u32 %v813, %v814
      %v817 = vsel %vm795, %v809, %v816
      %v818 = vrot.slane %v813, 4
      %v820 = vshrl.u32 %v771, 16
      %v822 = vrot.slane %v820, 7
      %v823 = vshll.u32 %v771, 16
      %v825 = vor.u32 %v822, %v823
      %v826 = vsel %vm795, %v818, %v825
      %v827 = vrot.slane %v822, 4
      %v829 = vshrl.u32 %v772, 16
      %v831 = vrot.slane %v829, 7
      %v832 = vshll.u32 %v772, 16
      %v834 = vor.u32 %v831, %v832
      %v835 = vsel %vm795, %v827, %v834
      %v836 = vrot.slane %v831, 4
      %v838 = vshrl.u32 %v773, 16
      %v840 = vrot.slane %v838, 7
      %v841 = vshll.u32 %v773, 16
      %v843 = vor.u32 %v840, %v841
      %v844 = vsel %vm795, %v836, %v843
      %v845 = vrot.slane %v840, 4
      %v847 = vshrl.u32 %v774, 16
      %v849 = vrot.slane %v847, 7
      %v850 = vshll.u32 %v774, 16
      %v852 = vor.u32 %v849, %v850
      %v853 = vsel %vm795, %v845, %v852
      %v854 = vrot.slane %v849, 4
      %v856 = vshrl.u32 %v775, 16
      %v858 = vrot.slane %v856, 7
      %v859 = vshll.u32 %v775, 16
      %v861 = vor.u32 %v858, %v859
      %v862 = vsel %vm795, %v854, %v861
      %v863 = vrot.slane %v858, 4
      %v865 = vshrl.u32 %v776, 16
      %v867 = vrot.slane %v865, 7
      %v868 = vshll.u32 %v776, 16
      %v870 = vor.u32 %v867, %v868
      %v871 = vsel %vm795, %v863, %v870
      %v872 = vrot.slane %v867, 4
      %v874 = vshrl.u32 %v777, 16
      %v876 = vrot.slane %v874, 7
      %v877 = vshll.u32 %v777, 16
      %v879 = vor.u32 %v876, %v877
      %v880 = vsel %vm795, %v872, %v879
      %v881 = vrot.slane %v876, 4
      %v883 = vshrl.u32 %v778, 16
      %v885 = vrot.slane %v883, 7
      %v886 = vshll.u32 %v778, 16
      %v888 = vor.u32 %v885, %v886
      %v889 = vsel %vm795, %v881, %v888
      %v890 = vrot.slane %v885, 4
      %v892 = vshrl.u32 %v779, 16
      %v894 = vrot.slane %v892, 7
      %v895 = vshll.u32 %v779, 16
      %v897 = vor.u32 %v894, %v895
      %v898 = vsel %vm795, %v890, %v897
      %v899 = vrot.slane %v894, 4
      %v901 = vshrl.u32 %v780, 16
      %v903 = vrot.slane %v901, 7
      %v904 = vshll.u32 %v780, 16
      %v906 = vor.u32 %v903, %v904
      %v907 = vsel %vm795, %v899, %v906
      %v908 = vrot.slane %v903, 4
      %v910 = vshrl.u32 %v781, 16
      %v912 = vrot.slane %v910, 7
      %v913 = vshll.u32 %v781, 16
      %v915 = vor.u32 %v912, %v913
      %v916 = vsel %vm795, %v908, %v915
      %v917 = vrot.slane %v912, 4
      %v919 = vshrl.u32 %v782, 16
      %v921 = vrot.slane %v919, 7
      %v922 = vshll.u32 %v782, 16
      %v924 = vor.u32 %v921, %v922
      %v925 = vsel %vm795, %v917, %v924
      %v926 = vrot.slane %v921, 4
      %v928 = vshrl.u32 %v783, 16
      %v930 = vrot.slane %v928, 7
      %v931 = vshll.u32 %v783, 16
      %v933 = vor.u32 %v930, %v931
      %v934 = vsel %vm795, %v926, %v933
      %v935 = vrot.slane %v930, 4
      %v937 = vshrl.u32 %v784, 16
      %v939 = vrot.slane %v937, 7
      %v940 = vshll.u32 %v784, 16
      %v942 = vor.u32 %v939, %v940
      %v943 = vsel %vm795, %v935, %v942
      %v944 = vrot.slane %v939, 4
      %v946 = vshrl.u32 %v785, 16
      %v948 = vrot.slane %v946, 7
      %v949 = vshll.u32 %v785, 16
      %v951 = vor.u32 %v948, %v949
      %v952 = vsel %vm795, %v944, %v951
      %v953 = vrot.slane %v948, 4
      %v955 = vshrl.u32 %v786, 16
      %v957 = vrot.slane %v955, 7
      %v958 = vshll.u32 %v786, 16
      %v960 = vor.u32 %v957, %v958
      %v961 = vsel %vm795, %v953, %v960
      %v962 = vrot.slane %v957, 4
      %v964 = vshrl.u32 %v787, 16
      %v966 = vrot.slane %v964, 7
      %v967 = vshll.u32 %v787, 16
      %v969 = vor.u32 %v966, %v967
      %v970 = vsel %vm795, %v962, %v969
      %v971 = vrot.slane %v966, 4
      %v973 = vshrl.u32 %v788, 16
      %v975 = vrot.slane %v973, 7
      %v976 = vshll.u32 %v788, 16
      %v978 = vor.u32 %v975, %v976
      %v979 = vsel %vm795, %v971, %v978
      %v980 = vrot.slane %v975, 4
      %v982 = vshrl.u32 %v789, 16
      %v984 = vrot.slane %v982, 7
      %v985 = vshll.u32 %v789, 16
      %v987 = vor.u32 %v984, %v985
      %v988 = vsel %vm795, %v980, %v987
      %v989 = vrot.slane %v984, 4
      %v991 = vshrl.u32 %v790, 16
      %v993 = vrot.slane %v991, 7
      %v994 = vshll.u32 %v790, 16
      %v996 = vor.u32 %v993, %v994
      %v997 = vsel %vm795, %v989, %v996
      %v998 = vrot.slane %v993, 4
      %v1000 = vshrl.u32 %v791, 16
      %v1002 = vrot.slane %v1000, 7
      %v1003 = vshll.u32 %v791, 16
      %v1005 = vor.u32 %v1002, %v1003
      %v1006 = vsel %vm795, %v998, %v1005
      %v1007 = vrot.slane %v1002, 4
      %v1009 = vshrl.u32 %v792, 16
      %v1011 = vrot.slane %v1009, 7
      %v1012 = vshll.u32 %v792, 16
      %v1014 = vor.u32 %v1011, %v1012
      %v1015 = vsel %vm795, %v1007, %v1014
      %1040 = vst [vmem:[#allocation3] sm:$0xf] %v808
      %1041 = vst [vmem:[#allocation3 + $0x24] sm:$0xf] %v817
      %1042 = vst [vmem:[#allocation3 + $0x48] sm:$0xf] %v826
      %1043 = vst [vmem:[#allocation3 + $0x6c] sm:$0xf] %v835
      %1044 = vst [vmem:[#allocation3 + $0x90] sm:$0xf] %v844
      %1045 = vst [vmem:[#allocation3 + $0xb4] sm:$0xf] %v853
      %1046 = vst [vmem:[#allocation3 + $0xd8] sm:$0xf] %v862
      %1047 = vst [vmem:[#allocation3 + $0xfc] sm:$0xf] %v871
      %1048 = vst [vmem:[#allocation3 + $0x120] sm:$0xf] %v880
      %1049 = vst [vmem:[#allocation3 + $0x144] sm:$0xf] %v889
      %1050 = vst [vmem:[#allocation3 + $0x168] sm:$0xf] %v898
      %1051 = vst [vmem:[#allocation3 + $0x18c] sm:$0xf] %v907
      %1052 = vst [vmem:[#allocation3 + $0x1b0] sm:$0xf] %v916
      %1053 = vst [vmem:[#allocation3 + $0x1d4] sm:$0xf] %v925
      %1054 = vst [vmem:[#allocation3 + $0x1f8] sm:$0xf] %v934
      %1055 = vst [vmem:[#allocation3 + $0x21c] sm:$0xf] %v943
      %1056 = vst [vmem:[#allocation3 + $0x240] sm:$0xf] %v952
      %1057 = vst [vmem:[#allocation3 + $0x264] sm:$0xf] %v961
      %1058 = vst [vmem:[#allocation3 + $0x288] sm:$0xf] %v970
      %1059 = vst [vmem:[#allocation3 + $0x2ac] sm:$0xf] %v979
      %1060 = vst [vmem:[#allocation3 + $0x2d0] sm:$0xf] %v988
      %1061 = vst [vmem:[#allocation3 + $0x2f4] sm:$0xf] %v997
      %1062 = vst [vmem:[#allocation3 + $0x318] sm:$0xf] %v1006
      %1063 = vst [vmem:[#allocation3 + $0x33c] sm:$0xf] %v1015
      %v1064 = vld [vmem:[#allocation2 + $0x4] sm:$0xf]
      %v1065 = vld [vmem:[#allocation2 + $0x8] sm:$0xf]
      %v1066 = vld [vmem:[#allocation2 + $0xc] sm:$0xf]
      %v1067 = vld [vmem:[#allocation2 + $0x10] sm:$0xf]
      %v1068 = vld [vmem:[#allocation2 + $0x14] sm:$0xf]
      %v1069 = vld [vmem:[#allocation2 + $0x18] sm:$0xf]
      %v1070 = vld [vmem:[#allocation2 + $0x1c] sm:$0xf]
      %v1071 = vld [vmem:[#allocation2 + $0x20] sm:$0xf]
      %v1072 = vld [vmem:[#allocation2 + $0x24] sm:$0xf]
      %v1073 = vld [vmem:[#allocation2 + $0x28] sm:$0xf]
      %v1074 = vld [vmem:[#allocation2 + $0x2c] sm:$0xf]
      %v1075 = vld [vmem:[#allocation2 + $0x30] sm:$0xf]
      %v1076 = vld [vmem:[#allocation2 + $0x34] sm:$0xf]
      %v1077 = vld [vmem:[#allocation2 + $0x38] sm:$0xf]
      %v1078 = vld [vmem:[#allocation2 + $0x3c] sm:$0xf]
      %v1079 = vld [vmem:[#allocation2 + $0x40] sm:$0xf]
      %v1080 = vld [vmem:[#allocation2 + $0x44] sm:$0xf]
      %v1081 = vld [vmem:[#allocation2 + $0x48] sm:$0xf]
      %v1082 = vld [vmem:[#allocation2 + $0x4c] sm:$0xf]
      %v1083 = vld [vmem:[#allocation2 + $0x50] sm:$0xf]
      %v1084 = vld [vmem:[#allocation2 + $0x54] sm:$0xf]
      %v1085 = vld [vmem:[#allocation2 + $0x58] sm:$0xf]
      %v1086 = vld [vmem:[#allocation2 + $0x5c] sm:$0xf]
      %v1087 = vld [vmem:[#allocation2 + $0x60] sm:$0xf]
      %1088 = vst [vmem:[#allocation3 + $0x4] sm:$0xf] %v1064
      %1089 = vst [vmem:[#allocation3 + $0x28] sm:$0xf] %v1065
      %1090 = vst [vmem:[#allocation3 + $0x4c] sm:$0xf] %v1066
      %1091 = vst [vmem:[#allocation3 + $0x70] sm:$0xf] %v1067
      %1092 = vst [vmem:[#allocation3 + $0x94] sm:$0xf] %v1068
      %1093 = vst [vmem:[#allocation3 + $0xb8] sm:$0xf] %v1069
      %1094 = vst [vmem:[#allocation3 + $0xdc] sm:$0xf] %v1070
      %1095 = vst [vmem:[#allocation3 + $0x100] sm:$0xf] %v1071
      %1096 = vst [vmem:[#allocation3 + $0x124] sm:$0xf] %v1072
      %1097 = vst [vmem:[#allocation3 + $0x148] sm:$0xf] %v1073
      %1098 = vst [vmem:[#allocation3 + $0x16c] sm:$0xf] %v1074
      %1099 = vst [vmem:[#allocation3 + $0x190] sm:$0xf] %v1075
      %1100 = vst [vmem:[#allocation3 + $0x1b4] sm:$0xf] %v1076
      %1101 = vst [vmem:[#allocation3 + $0x1d8] sm:$0xf] %v1077
      %1102 = vst [vmem:[#allocation3 + $0x1fc] sm:$0xf] %v1078
      %1103 = vst [vmem:[#allocation3 + $0x220] sm:$0xf] %v1079
      %1104 = vst [vmem:[#allocation3 + $0x244] sm:$0xf] %v1080
      %1105 = vst [vmem:[#allocation3 + $0x268] sm:$0xf] %v1081
      %1106 = vst [vmem:[#allocation3 + $0x28c] sm:$0xf] %v1082
      %1107 = vst [vmem:[#allocation3 + $0x2b0] sm:$0xf] %v1083
      %1108 = vst [vmem:[#allocation3 + $0x2d4] sm:$0xf] %v1084
      %1109 = vst [vmem:[#allocation3 + $0x2f8] sm:$0xf] %v1085
      %1110 = vst [vmem:[#allocation3 + $0x31c] sm:$0xf] %v1086
      %1111 = vst [vmem:[#allocation3 + $0x340] sm:$0xf] %v1087
      %v1112 = vld [vmem:[#allocation2 + $0x4] sm:$0xf]
      %v1113 = vld [vmem:[#allocation2 + $0x8] sm:$0xf]
      %v1114 = vld [vmem:[#allocation2 + $0xc] sm:$0xf]
      %v1115 = vld [vmem:[#allocation2 + $0x10] sm:$0xf]
      %v1116 = vld [vmem:[#allocation2 + $0x14] sm:$0xf]
      %v1117 = vld [vmem:[#allocation2 + $0x18] sm:$0xf]
      %v1118 = vld [vmem:[#allocation2 + $0x1c] sm:$0xf]
      %v1119 = vld [vmem:[#allocation2 + $0x20] sm:$0xf]
      %v1120 = vld [vmem:[#allocation2 + $0x24] sm:$0xf]
      %v1121 = vld [vmem:[#allocation2 + $0x28] sm:$0xf]
      %v1122 = vld [vmem:[#allocation2 + $0x2c] sm:$0xf]
      %v1123 = vld [vmem:[#allocation2 + $0x30] sm:$0xf]
      %v1124 = vld [vmem:[#allocation2 + $0x34] sm:$0xf]
      %v1125 = vld [vmem:[#allocation2 + $0x38] sm:$0xf]
      %v1126 = vld [vmem:[#allocation2 + $0x3c] sm:$0xf]
      %v1127 = vld [vmem:[#allocation2 + $0x40] sm:$0xf]
      %v1128 = vld [vmem:[#allocation2 + $0x44] sm:$0xf]
      %v1129 = vld [vmem:[#allocation2 + $0x48] sm:$0xf]
      %v1130 = vld [vmem:[#allocation2 + $0x4c] sm:$0xf]
      %v1131 = vld [vmem:[#allocation2 + $0x50] sm:$0xf]
      %v1132 = vld [vmem:[#allocation2 + $0x54] sm:$0xf]
      %v1133 = vld [vmem:[#allocation2 + $0x58] sm:$0xf]
      %v1134 = vld [vmem:[#allocation2 + $0x5c] sm:$0xf]
      %v1135 = vld [vmem:[#allocation2 + $0x60] sm:$0xf]
      %v1136 = vld [vmem:[#allocation2 + $0x64] sm:$0x1]
      %vm1137 = vsmask.f32 3328
      %vm1138 = vsmask.f32 7440
      %vm1139 = vmor %vm1137, %vm1138
      %v1141 = vshrl.u32 %v1112, 16
      %v1143 = vrot.slane %v1141, 4
      %v1144 = vshll.u32 %v1112, 16
      %v1146 = vrot.slane %v1144, 5
      %v1147 = vor.u32 %v1143, %v1146
      %v1148 = vrot.slane %v1147, 4
      %v1150 = vshll.u32 %v1113, 16
      %v1152 = vrot.slane %v1150, 5
      %v1153 = vsel %vm1139, %v1148, %v1152
      %v1154 = vshrl.u32 %v1113, 16
      %v1156 = vrot.slane %v1154, 4
      %v1157 = vor.u32 %v1156, %v1152
      %v1158 = vrot.slane %v1157, 4
      %v1160 = vshll.u32 %v1114, 16
      %v1162 = vrot.slane %v1160, 5
      %v1163 = vsel %vm1139, %v1158, %v1162
      %v1164 = vshrl.u32 %v1114, 16
      %v1166 = vrot.slane %v1164, 4
      %v1167 = vor.u32 %v1166, %v1162
      %v1168 = vrot.slane %v1167, 4
      %v1170 = vshll.u32 %v1115, 16
      %v1172 = vrot.slane %v1170, 5
      %v1173 = vsel %vm1139, %v1168, %v1172
      %v1174 = vshrl.u32 %v1115, 16
      %v1176 = vrot.slane %v1174, 4
      %v1177 = vor.u32 %v1176, %v1172
      %v1178 = vrot.slane %v1177, 4
      %v1180 = vshll.u32 %v1116, 16
      %v1182 = vrot.slane %v1180, 5
      %v1183 = vsel %vm1139, %v1178, %v1182
      %v1184 = vshrl.u32 %v1116, 16
      %v1186 = vrot.slane %v1184, 4
      %v1187 = vor.u32 %v1186, %v1182
      %v1188 = vrot.slane %v1187, 4
      %v1190 = vshll.u32 %v1117, 16
      %v1192 = vrot.slane %v1190, 5
      %v1193 = vsel %vm1139, %v1188, %v1192
      %v1194 = vshrl.u32 %v1117, 16
      %v1196 = vrot.slane %v1194, 4
      %v1197 = vor.u32 %v1196, %v1192
      %v1198 = vrot.slane %v1197, 4
      %v1200 = vshll.u32 %v1118, 16
      %v1202 = vrot.slane %v1200, 5
      %v1203 = vsel %vm1139, %v1198, %v1202
      %v1204 = vshrl.u32 %v1118, 16
      %v1206 = vrot.slane %v1204, 4
      %v1207 = vor.u32 %v1206, %v1202
      %v1208 = vrot.slane %v1207, 4
      %v1210 = vshll.u32 %v1119, 16
      %v1212 = vrot.slane %v1210, 5
      %v1213 = vsel %vm1139, %v1208, %v1212
      %v1214 = vshrl.u32 %v1119, 16
      %v1216 = vrot.slane %v1214, 4
      %v1217 = vor.u32 %v1216, %v1212
      %v1218 = vrot.slane %v1217, 4
      %v1220 = vshll.u32 %v1120, 16
      %v1222 = vrot.slane %v1220, 5
      %v1223 = vsel %vm1139, %v1218, %v1222
      %v1224 = vshrl.u32 %v1120, 16
      %v1226 = vrot.slane %v1224, 4
      %v1227 = vor.u32 %v1226, %v1222
      %v1228 = vrot.slane %v1227, 4
      %v1230 = vshll.u32 %v1121, 16
      %v1232 = vrot.slane %v1230, 5
      %v1233 = vsel %vm1139, %v1228, %v1232
      %v1234 = vshrl.u32 %v1121, 16
      %v1236 = vrot.slane %v1234, 4
      %v1237 = vor.u32 %v1236, %v1232
      %v1238 = vrot.slane %v1237, 4
      %v1240 = vshll.u32 %v1122, 16
      %v1242 = vrot.slane %v1240, 5
      %v1243 = vsel %vm1139, %v1238, %v1242
      %v1244 = vshrl.u32 %v1122, 16
      %v1246 = vrot.slane %v1244, 4
      %v1247 = vor.u32 %v1246, %v1242
      %v1248 = vrot.slane %v1247, 4
      %v1250 = vshll.u32 %v1123, 16
      %v1252 = vrot.slane %v1250, 5
      %v1253 = vsel %vm1139, %v1248, %v1252
      %v1254 = vshrl.u32 %v1123, 16
      %v1256 = vrot.slane %v1254, 4
      %v1257 = vor.u32 %v1256, %v1252
      %v1258 = vrot.slane %v1257, 4
      %v1260 = vshll.u32 %v1124, 16
      %v1262 = vrot.slane %v1260, 5
      %v1263 = vsel %vm1139, %v1258, %v1262
      %v1264 = vshrl.u32 %v1124, 16
      %v1266 = vrot.slane %v1264, 4
      %v1267 = vor.u32 %v1266, %v1262
      %v1268 = vrot.slane %v1267, 4
      %v1270 = vshll.u32 %v1125, 16
      %v1272 = vrot.slane %v1270, 5
      %v1273 = vsel %vm1139, %v1268, %v1272
      %v1274 = vshrl.u32 %v1125, 16
      %v1276 = vrot.slane %v1274, 4
      %v1277 = vor.u32 %v1276, %v1272
      %v1278 = vrot.slane %v1277, 4
      %v1280 = vshll.u32 %v1126, 16
      %v1282 = vrot.slane %v1280, 5
      %v1283 = vsel %vm1139, %v1278, %v1282
      %v1284 = vshrl.u32 %v1126, 16
      %v1286 = vrot.slane %v1284, 4
      %v1287 = vor.u32 %v1286, %v1282
      %v1288 = vrot.slane %v1287, 4
      %v1290 = vshll.u32 %v1127, 16
      %v1292 = vrot.slane %v1290, 5
      %v1293 = vsel %vm1139, %v1288, %v1292
      %v1294 = vshrl.u32 %v1127, 16
      %v1296 = vrot.slane %v1294, 4
      %v1297 = vor.u32 %v1296, %v1292
      %v1298 = vrot.slane %v1297, 4
      %v1300 = vshll.u32 %v1128, 16
      %v1302 = vrot.slane %v1300, 5
      %v1303 = vsel %vm1139, %v1298, %v1302
      %v1304 = vshrl.u32 %v1128, 16
      %v1306 = vrot.slane %v1304, 4
      %v1307 = vor.u32 %v1306, %v1302
      %v1308 = vrot.slane %v1307, 4
      %v1310 = vshll.u32 %v1129, 16
      %v1312 = vrot.slane %v1310, 5
      %v1313 = vsel %vm1139, %v1308, %v1312
      %v1314 = vshrl.u32 %v1129, 16
      %v1316 = vrot.slane %v1314, 4
      %v1317 = vor.u32 %v1316, %v1312
      %v1318 = vrot.slane %v1317, 4
      %v1320 = vshll.u32 %v1130, 16
      %v1322 = vrot.slane %v1320, 5
      %v1323 = vsel %vm1139, %v1318, %v1322
      %v1324 = vshrl.u32 %v1130, 16
      %v1326 = vrot.slane %v1324, 4
      %v1327 = vor.u32 %v1326, %v1322
      %v1328 = vrot.slane %v1327, 4
      %v1330 = vshll.u32 %v1131, 16
      %v1332 = vrot.slane %v1330, 5
      %v1333 = vsel %vm1139, %v1328, %v1332
      %v1334 = vshrl.u32 %v1131, 16
      %v1336 = vrot.slane %v1334, 4
      %v1337 = vor.u32 %v1336, %v1332
      %v1338 = vrot.slane %v1337, 4
      %v1340 = vshll.u32 %v1132, 16
      %v1342 = vrot.slane %v1340, 5
      %v1343 = vsel %vm1139, %v1338, %v1342
      %v1344 = vshrl.u32 %v1132, 16
      %v1346 = vrot.slane %v1344, 4
      %v1347 = vor.u32 %v1346, %v1342
      %v1348 = vrot.slane %v1347, 4
      %v1350 = vshll.u32 %v1133, 16
      %v1352 = vrot.slane %v1350, 5
      %v1353 = vsel %vm1139, %v1348, %v1352
      %v1354 = vshrl.u32 %v1133, 16
      %v1356 = vrot.slane %v1354, 4
      %v1357 = vor.u32 %v1356, %v1352
      %v1358 = vrot.slane %v1357, 4
      %v1360 = vshll.u32 %v1134, 16
      %v1362 = vrot.slane %v1360, 5
      %v1363 = vsel %vm1139, %v1358, %v1362
      %v1364 = vshrl.u32 %v1134, 16
      %v1366 = vrot.slane %v1364, 4
      %v1367 = vor.u32 %v1366, %v1362
      %v1368 = vrot.slane %v1367, 4
      %v1370 = vshll.u32 %v1135, 16
      %v1372 = vrot.slane %v1370, 5
      %v1373 = vsel %vm1139, %v1368, %v1372
      %v1374 = vshrl.u32 %v1135, 16
      %v1376 = vrot.slane %v1374, 4
      %v1377 = vor.u32 %v1376, %v1372
      %v1378 = vrot.slane %v1377, 4
      %v1380 = vshll.u32 %v1136, 16
      %v1382 = vrot.slane %v1380, 5
      %v1383 = vsel %vm1139, %v1378, %v1382
      %1408 = vst [vmem:[#allocation3 + $0x8] sm:$0xf] %v1153
      %1409 = vst [vmem:[#allocation3 + $0x2c] sm:$0xf] %v1163
      %1410 = vst [vmem:[#allocation3 + $0x50] sm:$0xf] %v1173
      %1411 = vst [vmem:[#allocation3 + $0x74] sm:$0xf] %v1183
      %1412 = vst [vmem:[#allocation3 + $0x98] sm:$0xf] %v1193
      %1413 = vst [vmem:[#allocation3 + $0xbc] sm:$0xf] %v1203
      %1414 = vst [vmem:[#allocation3 + $0xe0] sm:$0xf] %v1213
      %1415 = vst [vmem:[#allocation3 + $0x104] sm:$0xf] %v1223
      %1416 = vst [vmem:[#allocation3 + $0x128] sm:$0xf] %v1233
      %1417 = vst [vmem:[#allocation3 + $0x14c] sm:$0xf] %v1243
      %1418 = vst [vmem:[#allocation3 + $0x170] sm:$0xf] %v1253
      %1419 = vst [vmem:[#allocation3 + $0x194] sm:$0xf] %v1263
      %1420 = vst [vmem:[#allocation3 + $0x1b8] sm:$0xf] %v1273
      %1421 = vst [vmem:[#allocation3 + $0x1dc] sm:$0xf] %v1283
      %1422 = vst [vmem:[#allocation3 + $0x200] sm:$0xf] %v1293
      %1423 = vst [vmem:[#allocation3 + $0x224] sm:$0xf] %v1303
      %1424 = vst [vmem:[#allocation3 + $0x248] sm:$0xf] %v1313
      %1425 = vst [vmem:[#allocation3 + $0x26c] sm:$0xf] %v1323
      %1426 = vst [vmem:[#allocation3 + $0x290] sm:$0xf] %v1333
      %1427 = vst [vmem:[#allocation3 + $0x2b4] sm:$0xf] %v1343
      %1428 = vst [vmem:[#allocation3 + $0x2d8] sm:$0xf] %v1353
      %1429 = vst [vmem:[#allocation3 + $0x2fc] sm:$0xf] %v1363
      %1430 = vst [vmem:[#allocation3 + $0x320] sm:$0xf] %v1373
      %1431 = vst [vmem:[#allocation3 + $0x344] sm:$0xf] %v1383
      %v1432 = vld [vmem:[#allocation2 + $0xc] sm:$0x8]
      %v1433 = vld [vmem:[#allocation2 + $0x10] sm:$0xf]
      %v1434 = vld [vmem:[#allocation2 + $0x14] sm:$0xf]
      %v1435 = vld [vmem:[#allocation2 + $0x18] sm:$0xf]
      %v1436 = vld [vmem:[#allocation2 + $0x1c] sm:$0xf]
      %v1437 = vld [vmem:[#allocation2 + $0x20] sm:$0xf]
      %v1438 = vld [vmem:[#allocation2 + $0x24] sm:$0xf]
      %v1439 = vld [vmem:[#allocation2 + $0x28] sm:$0xf]
      %v1440 = vld [vmem:[#allocation2 + $0x2c] sm:$0xf]
      %v1441 = vld [vmem:[#allocation2 + $0x30] sm:$0xf]
      %v1442 = vld [vmem:[#allocation2 + $0x34] sm:$0xf]
      %v1443 = vld [vmem:[#allocation2 + $0x38] sm:$0xf]
      %v1444 = vld [vmem:[#allocation2 + $0x3c] sm:$0xf]
      %v1445 = vld [vmem:[#allocation2 + $0x40] sm:$0xf]
      %v1446 = vld [vmem:[#allocation2 + $0x44] sm:$0xf]
      %v1447 = vld [vmem:[#allocation2 + $0x48] sm:$0xf]
      %v1448 = vld [vmem:[#allocation2 + $0x4c] sm:$0xf]
      %v1449 = vld [vmem:[#allocation2 + $0x50] sm:$0xf]
      %v1450 = vld [vmem:[#allocation2 + $0x54] sm:$0xf]
      %v1451 = vld [vmem:[#allocation2 + $0x58] sm:$0xf]
      %v1452 = vld [vmem:[#allocation2 + $0x5c] sm:$0xf]
      %v1453 = vld [vmem:[#allocation2 + $0x60] sm:$0xf]
      %v1454 = vld [vmem:[#allocation2 + $0x64] sm:$0xf]
      %v1455 = vld [vmem:[#allocation2 + $0x68] sm:$0xf]
      %v1456 = vld [vmem:[#allocation2 + $0x6c] sm:$0xf]
      %v1458 = vshrl.u32 %v1432, 16
      %v1460 = vrot.slane %v1458, 7
      %v1461 = vrot.slane %v1460, 4
      %v1463 = vshrl.u32 %v1433, 16
      %v1465 = vrot.slane %v1463, 7
      %v1466 = vshll.u32 %v1433, 16
      %v1468 = vor.u32 %v1465, %v1466
      %v1469 = vsel %vm795, %v1461, %v1468
      %v1470 = vrot.slane %v1465, 4
      %v1472 = vshrl.u32 %v1434, 16
      %v1474 = vrot.slane %v1472, 7
      %v1475 = vshll.u32 %v1434, 16
      %v1477 = vor.u32 %v1474, %v1475
      %v1478 = vsel %vm795, %v1470, %v1477
      %v1479 = vrot.slane %v1474, 4
      %v1481 = vshrl.u32 %v1435, 16
      %v1483 = vrot.slane %v1481, 7
      %v1484 = vshll.u32 %v1435, 16
      %v1486 = vor.u32 %v1483, %v1484
      %v1487 = vsel %vm795, %v1479, %v1486
      %v1488 = vrot.slane %v1483, 4
      %v1490 = vshrl.u32 %v1436, 16
      %v1492 = vrot.slane %v1490, 7
      %v1493 = vshll.u32 %v1436, 16
      %v1495 = vor.u32 %v1492, %v1493
      %v1496 = vsel %vm795, %v1488, %v1495
      %v1497 = vrot.slane %v1492, 4
      %v1499 = vshrl.u32 %v1437, 16
      %v1501 = vrot.slane %v1499, 7
      %v1502 = vshll.u32 %v1437, 16
      %v1504 = vor.u32 %v1501, %v1502
      %v1505 = vsel %vm795, %v1497, %v1504
      %v1506 = vrot.slane %v1501, 4
      %v1508 = vshrl.u32 %v1438, 16
      %v1510 = vrot.slane %v1508, 7
      %v1511 = vshll.u32 %v1438, 16
      %v1513 = vor.u32 %v1510, %v1511
      %v1514 = vsel %vm795, %v1506, %v1513
      %v1515 = vrot.slane %v1510, 4
      %v1517 = vshrl.u32 %v1439, 16
      %v1519 = vrot.slane %v1517, 7
      %v1520 = vshll.u32 %v1439, 16
      %v1522 = vor.u32 %v1519, %v1520
      %v1523 = vsel %vm795, %v1515, %v1522
      %v1524 = vrot.slane %v1519, 4
      %v1526 = vshrl.u32 %v1440, 16
      %v1528 = vrot.slane %v1526, 7
      %v1529 = vshll.u32 %v1440, 16
      %v1531 = vor.u32 %v1528, %v1529
      %v1532 = vsel %vm795, %v1524, %v1531
      %v1533 = vrot.slane %v1528, 4
      %v1535 = vshrl.u32 %v1441, 16
      %v1537 = vrot.slane %v1535, 7
      %v1538 = vshll.u32 %v1441, 16
      %v1540 = vor.u32 %v1537, %v1538
      %v1541 = vsel %vm795, %v1533, %v1540
      %v1542 = vrot.slane %v1537, 4
      %v1544 = vshrl.u32 %v1442, 16
      %v1546 = vrot.slane %v1544, 7
      %v1547 = vshll.u32 %v1442, 16
      %v1549 = vor.u32 %v1546, %v1547
      %v1550 = vsel %vm795, %v1542, %v1549
      %v1551 = vrot.slane %v1546, 4
      %v1553 = vshrl.u32 %v1443, 16
      %v1555 = vrot.slane %v1553, 7
      %v1556 = vshll.u32 %v1443, 16
      %v1558 = vor.u32 %v1555, %v1556
      %v1559 = vsel %vm795, %v1551, %v1558
      %v1560 = vrot.slane %v1555, 4
      %v1562 = vshrl.u32 %v1444, 16
      %v1564 = vrot.slane %v1562, 7
      %v1565 = vshll.u32 %v1444, 16
      %v1567 = vor.u32 %v1564, %v1565
      %v1568 = vsel %vm795, %v1560, %v1567
      %v1569 = vrot.slane %v1564, 4
      %v1571 = vshrl.u32 %v1445, 16
      %v1573 = vrot.slane %v1571, 7
      %v1574 = vshll.u32 %v1445, 16
      %v1576 = vor.u32 %v1573, %v1574
      %v1577 = vsel %vm795, %v1569, %v1576
      %v1578 = vrot.slane %v1573, 4
      %v1580 = vshrl.u32 %v1446, 16
      %v1582 = vrot.slane %v1580, 7
      %v1583 = vshll.u32 %v1446, 16
      %v1585 = vor.u32 %v1582, %v1583
      %v1586 = vsel %vm795, %v1578, %v1585
      %v1587 = vrot.slane %v1582, 4
      %v1589 = vshrl.u32 %v1447, 16
      %v1591 = vrot.slane %v1589, 7
      %v1592 = vshll.u32 %v1447, 16
      %v1594 = vor.u32 %v1591, %v1592
      %v1595 = vsel %vm795, %v1587, %v1594
      %v1596 = vrot.slane %v1591, 4
      %v1598 = vshrl.u32 %v1448, 16
      %v1600 = vrot.slane %v1598, 7
      %v1601 = vshll.u32 %v1448, 16
      %v1603 = vor.u32 %v1600, %v1601
      %v1604 = vsel %vm795, %v1596, %v1603
      %v1605 = vrot.slane %v1600, 4
      %v1607 = vshrl.u32 %v1449, 16
      %v1609 = vrot.slane %v1607, 7
      %v1610 = vshll.u32 %v1449, 16
      %v1612 = vor.u32 %v1609, %v1610
      %v1613 = vsel %vm795, %v1605, %v1612
      %v1614 = vrot.slane %v1609, 4
      %v1616 = vshrl.u32 %v1450, 16
      %v1618 = vrot.slane %v1616, 7
      %v1619 = vshll.u32 %v1450, 16
      %v1621 = vor.u32 %v1618, %v1619
      %v1622 = vsel %vm795, %v1614, %v1621
      %v1623 = vrot.slane %v1618, 4
      %v1625 = vshrl.u32 %v1451, 16
      %v1627 = vrot.slane %v1625, 7
      %v1628 = vshll.u32 %v1451, 16
      %v1630 = vor.u32 %v1627, %v1628
      %v1631 = vsel %vm795, %v1623, %v1630
      %v1632 = vrot.slane %v1627, 4
      %v1634 = vshrl.u32 %v1452, 16
      %v1636 = vrot.slane %v1634, 7
      %v1637 = vshll.u32 %v1452, 16
      %v1639 = vor.u32 %v1636, %v1637
      %v1640 = vsel %vm795, %v1632, %v1639
      %v1641 = vrot.slane %v1636, 4
      %v1643 = vshrl.u32 %v1453, 16
      %v1645 = vrot.slane %v1643, 7
      %v1646 = vshll.u32 %v1453, 16
      %v1648 = vor.u32 %v1645, %v1646
      %v1649 = vsel %vm795, %v1641, %v1648
      %v1650 = vrot.slane %v1645, 4
      %v1652 = vshrl.u32 %v1454, 16
      %v1654 = vrot.slane %v1652, 7
      %v1655 = vshll.u32 %v1454, 16
      %v1657 = vor.u32 %v1654, %v1655
      %v1658 = vsel %vm795, %v1650, %v1657
      %v1659 = vrot.slane %v1654, 4
      %v1661 = vshrl.u32 %v1455, 16
      %v1663 = vrot.slane %v1661, 7
      %v1664 = vshll.u32 %v1455, 16
      %v1666 = vor.u32 %v1663, %v1664
      %v1667 = vsel %vm795, %v1659, %v1666
      %v1668 = vrot.slane %v1663, 4
      %v1670 = vshrl.u32 %v1456, 16
      %v1672 = vrot.slane %v1670, 7
      %v1673 = vshll.u32 %v1456, 16
      %v1675 = vor.u32 %v1672, %v1673
      %v1676 = vsel %vm795, %v1668, %v1675
      %1701 = vst [vmem:[#allocation3 + $0xc] sm:$0xf] %v1469
      %1702 = vst [vmem:[#allocation3 + $0x30] sm:$0xf] %v1478
      %1703 = vst [vmem:[#allocation3 + $0x54] sm:$0xf] %v1487
      %1704 = vst [vmem:[#allocation3 + $0x78] sm:$0xf] %v1496
      %1705 = vst [vmem:[#allocation3 + $0x9c] sm:$0xf] %v1505
      %1706 = vst [vmem:[#allocation3 + $0xc0] sm:$0xf] %v1514
      %1707 = vst [vmem:[#allocation3 + $0xe4] sm:$0xf] %v1523
      %1708 = vst [vmem:[#allocation3 + $0x108] sm:$0xf] %v1532
      %1709 = vst [vmem:[#allocation3 + $0x12c] sm:$0xf] %v1541
      %1710 = vst [vmem:[#allocation3 + $0x150] sm:$0xf] %v1550
      %1711 = vst [vmem:[#allocation3 + $0x174] sm:$0xf] %v1559
      %1712 = vst [vmem:[#allocation3 + $0x198] sm:$0xf] %v1568
      %1713 = vst [vmem:[#allocation3 + $0x1bc] sm:$0xf] %v1577
      %1714 = vst [vmem:[#allocation3 + $0x1e0] sm:$0xf] %v1586
      %1715 = vst [vmem:[#allocation3 + $0x204] sm:$0xf] %v1595
      %1716 = vst [vmem:[#allocation3 + $0x228] sm:$0xf] %v1604
      %1717 = vst [vmem:[#allocation3 + $0x24c] sm:$0xf] %v1613
      %1718 = vst [vmem:[#allocation3 + $0x270] sm:$0xf] %v1622
      %1719 = vst [vmem:[#allocation3 + $0x294] sm:$0xf] %v1631
      %1720 = vst [vmem:[#allocation3 + $0x2b8] sm:$0xf] %v1640
      %1721 = vst [vmem:[#allocation3 + $0x2dc] sm:$0xf] %v1649
      %1722 = vst [vmem:[#allocation3 + $0x300] sm:$0xf] %v1658
      %1723 = vst [vmem:[#allocation3 + $0x324] sm:$0xf] %v1667
      %1724 = vst [vmem:[#allocation3 + $0x348] sm:$0xf] %v1676
      %v1725 = vld [vmem:[#allocation2 + $0x10] sm:$0xf]
      %v1726 = vld [vmem:[#allocation2 + $0x14] sm:$0xf]
      %v1727 = vld [vmem:[#allocation2 + $0x18] sm:$0xf]
      %v1728 = vld [vmem:[#allocation2 + $0x1c] sm:$0xf]
      %v1729 = vld [vmem:[#allocation2 + $0x20] sm:$0xf]
      %v1730 = vld [vmem:[#allocation2 + $0x24] sm:$0xf]
      %v1731 = vld [vmem:[#allocation2 + $0x28] sm:$0xf]
      %v1732 = vld [vmem:[#allocation2 + $0x2c] sm:$0xf]
      %v1733 = vld [vmem:[#allocation2 + $0x30] sm:$0xf]
      %v1734 = vld [vmem:[#allocation2 + $0x34] sm:$0xf]
      %v1735 = vld [vmem:[#allocation2 + $0x38] sm:$0xf]
      %v1736 = vld [vmem:[#allocation2 + $0x3c] sm:$0xf]
      %v1737 = vld [vmem:[#allocation2 + $0x40] sm:$0xf]
      %v1738 = vld [vmem:[#allocation2 + $0x44] sm:$0xf]
      %v1739 = vld [vmem:[#allocation2 + $0x48] sm:$0xf]
      %v1740 = vld [vmem:[#allocation2 + $0x4c] sm:$0xf]
      %v1741 = vld [vmem:[#allocation2 + $0x50] sm:$0xf]
      %v1742 = vld [vmem:[#allocation2 + $0x54] sm:$0xf]
      %v1743 = vld [vmem:[#allocation2 + $0x58] sm:$0xf]
      %v1744 = vld [vmem:[#allocation2 + $0x5c] sm:$0xf]
      %v1745 = vld [vmem:[#allocation2 + $0x60] sm:$0xf]
      %v1746 = vld [vmem:[#allocation2 + $0x64] sm:$0xf]
      %v1747 = vld [vmem:[#allocation2 + $0x68] sm:$0xf]
      %v1748 = vld [vmem:[#allocation2 + $0x6c] sm:$0xf]
      %1749 = vst [vmem:[#allocation3 + $0x10] sm:$0xf] %v1725
      %1750 = vst [vmem:[#allocation3 + $0x34] sm:$0xf] %v1726
      %1751 = vst [vmem:[#allocation3 + $0x58] sm:$0xf] %v1727
      %1752 = vst [vmem:[#allocation3 + $0x7c] sm:$0xf] %v1728
      %1753 = vst [vmem:[#allocation3 + $0xa0] sm:$0xf] %v1729
      %1754 = vst [vmem:[#allocation3 + $0xc4] sm:$0xf] %v1730
      %1755 = vst [vmem:[#allocation3 + $0xe8] sm:$0xf] %v1731
      %1756 = vst [vmem:[#allocation3 + $0x10c] sm:$0xf] %v1732
      %1757 = vst [vmem:[#allocation3 + $0x130] sm:$0xf] %v1733
      %1758 = vst [vmem:[#allocation3 + $0x154] sm:$0xf] %v1734
      %1759 = vst [vmem:[#allocation3 + $0x178] sm:$0xf] %v1735
      %1760 = vst [vmem:[#allocation3 + $0x19c] sm:$0xf] %v1736
      %1761 = vst [vmem:[#allocation3 + $0x1c0] sm:$0xf] %v1737
      %1762 = vst [vmem:[#allocation3 + $0x1e4] sm:$0xf] %v1738
      %1763 = vst [vmem:[#allocation3 + $0x208] sm:$0xf] %v1739
      %1764 = vst [vmem:[#allocation3 + $0x22c] sm:$0xf] %v1740
      %1765 = vst [vmem:[#allocation3 + $0x250] sm:$0xf] %v1741
      %1766 = vst [vmem:[#allocation3 + $0x274] sm:$0xf] %v1742
      %1767 = vst [vmem:[#allocation3 + $0x298] sm:$0xf] %v1743
      %1768 = vst [vmem:[#allocation3 + $0x2bc] sm:$0xf] %v1744
      %1769 = vst [vmem:[#allocation3 + $0x2e0] sm:$0xf] %v1745
      %1770 = vst [vmem:[#allocation3 + $0x304] sm:$0xf] %v1746
      %1771 = vst [vmem:[#allocation3 + $0x328] sm:$0xf] %v1747
      %1772 = vst [vmem:[#allocation3 + $0x34c] sm:$0xf] %v1748
      %v1773 = vld [vmem:[#allocation2 + $0x10] sm:$0xf]
      %v1774 = vld [vmem:[#allocation2 + $0x14] sm:$0xf]
      %v1775 = vld [vmem:[#allocation2 + $0x18] sm:$0xf]
      %v1776 = vld [vmem:[#allocation2 + $0x1c] sm:$0xf]
      %v1777 = vld [vmem:[#allocation2 + $0x20] sm:$0xf]
      %v1778 = vld [vmem:[#allocation2 + $0x24] sm:$0xf]
      %v1779 = vld [vmem:[#allocation2 + $0x28] sm:$0xf]
      %v1780 = vld [vmem:[#allocation2 + $0x2c] sm:$0xf]
      %v1781 = vld [vmem:[#allocation2 + $0x30] sm:$0xf]
      %v1782 = vld [vmem:[#allocation2 + $0x34] sm:$0xf]
      %v1783 = vld [vmem:[#allocation2 + $0x38] sm:$0xf]
      %v1784 = vld [vmem:[#allocation2 + $0x3c] sm:$0xf]
      %v1785 = vld [vmem:[#allocation2 + $0x40] sm:$0xf]
      %v1786 = vld [vmem:[#allocation2 + $0x44] sm:$0xf]
      %v1787 = vld [vmem:[#allocation2 + $0x48] sm:$0xf]
      %v1788 = vld [vmem:[#allocation2 + $0x4c] sm:$0xf]
      %v1789 = vld [vmem:[#allocation2 + $0x50] sm:$0xf]
      %v1790 = vld [vmem:[#allocation2 + $0x54] sm:$0xf]
      %v1791 = vld [vmem:[#allocation2 + $0x58] sm:$0xf]
      %v1792 = vld [vmem:[#allocation2 + $0x5c] sm:$0xf]
      %v1793 = vld [vmem:[#allocation2 + $0x60] sm:$0xf]
      %v1794 = vld [vmem:[#allocation2 + $0x64] sm:$0xf]
      %v1795 = vld [vmem:[#allocation2 + $0x68] sm:$0xf]
      %v1796 = vld [vmem:[#allocation2 + $0x6c] sm:$0xf]
      %v1797 = vld [vmem:[#allocation2 + $0x70] sm:$0x1]
      %v1799 = vshrl.u32 %v1773, 16
      %v1801 = vrot.slane %v1799, 4
      %v1802 = vshll.u32 %v1773, 16
      %v1804 = vrot.slane %v1802, 5
      %v1805 = vor.u32 %v1801, %v1804
      %v1806 = vrot.slane %v1805, 4
      %v1808 = vshll.u32 %v1774, 16
      %v1810 = vrot.slane %v1808, 5
      %v1811 = vsel %vm1139, %v1806, %v1810
      %v1812 = vshrl.u32 %v1774, 16
      %v1814 = vrot.slane %v1812, 4
      %v1815 = vor.u32 %v1814, %v1810
      %v1816 = vrot.slane %v1815, 4
      %v1818 = vshll.u32 %v1775, 16
      %v1820 = vrot.slane %v1818, 5
      %v1821 = vsel %vm1139, %v1816, %v1820
      %v1822 = vshrl.u32 %v1775, 16
      %v1824 = vrot.slane %v1822, 4
      %v1825 = vor.u32 %v1824, %v1820
      %v1826 = vrot.slane %v1825, 4
      %v1828 = vshll.u32 %v1776, 16
      %v1830 = vrot.slane %v1828, 5
      %v1831 = vsel %vm1139, %v1826, %v1830
      %v1832 = vshrl.u32 %v1776, 16
      %v1834 = vrot.slane %v1832, 4
      %v1835 = vor.u32 %v1834, %v1830
      %v1836 = vrot.slane %v1835, 4
      %v1838 = vshll.u32 %v1777, 16
      %v1840 = vrot.slane %v1838, 5
      %v1841 = vsel %vm1139, %v1836, %v1840
      %v1842 = vshrl.u32 %v1777, 16
      %v1844 = vrot.slane %v1842, 4
      %v1845 = vor.u32 %v1844, %v1840
      %v1846 = vrot.slane %v1845, 4
      %v1848 = vshll.u32 %v1778, 16
      %v1850 = vrot.slane %v1848, 5
      %v1851 = vsel %vm1139, %v1846, %v1850
      %v1852 = vshrl.u32 %v1778, 16
      %v1854 = vrot.slane %v1852, 4
      %v1855 = vor.u32 %v1854, %v1850
      %v1856 = vrot.slane %v1855, 4
      %v1858 = vshll.u32 %v1779, 16
      %v1860 = vrot.slane %v1858, 5
      %v1861 = vsel %vm1139, %v1856, %v1860
      %v1862 = vshrl.u32 %v1779, 16
      %v1864 = vrot.slane %v1862, 4
      %v1865 = vor.u32 %v1864, %v1860
      %v1866 = vrot.slane %v1865, 4
      %v1868 = vshll.u32 %v1780, 16
      %v1870 = vrot.slane %v1868, 5
      %v1871 = vsel %vm1139, %v1866, %v1870
      %v1872 = vshrl.u32 %v1780, 16
      %v1874 = vrot.slane %v1872, 4
      %v1875 = vor.u32 %v1874, %v1870
      %v1876 = vrot.slane %v1875, 4
      %v1878 = vshll.u32 %v1781, 16
      %v1880 = vrot.slane %v1878, 5
      %v1881 = vsel %vm1139, %v1876, %v1880
      %v1882 = vshrl.u32 %v1781, 16
      %v1884 = vrot.slane %v1882, 4
      %v1885 = vor.u32 %v1884, %v1880
      %v1886 = vrot.slane %v1885, 4
      %v1888 = vshll.u32 %v1782, 16
      %v1890 = vrot.slane %v1888, 5
      %v1891 = vsel %vm1139, %v1886, %v1890
      %v1892 = vshrl.u32 %v1782, 16
      %v1894 = vrot.slane %v1892, 4
      %v1895 = vor.u32 %v1894, %v1890
      %v1896 = vrot.slane %v1895, 4
      %v1898 = vshll.u32 %v1783, 16
      %v1900 = vrot.slane %v1898, 5
      %v1901 = vsel %vm1139, %v1896, %v1900
      %v1902 = vshrl.u32 %v1783, 16
      %v1904 = vrot.slane %v1902, 4
      %v1905 = vor.u32 %v1904, %v1900
      %v1906 = vrot.slane %v1905, 4
      %v1908 = vshll.u32 %v1784, 16
      %v1910 = vrot.slane %v1908, 5
      %v1911 = vsel %vm1139, %v1906, %v1910
      %v1912 = vshrl.u32 %v1784, 16
      %v1914 = vrot.slane %v1912, 4
      %v1915 = vor.u32 %v1914, %v1910
      %v1916 = vrot.slane %v1915, 4
      %v1918 = vshll.u32 %v1785, 16
      %v1920 = vrot.slane %v1918, 5
      %v1921 = vsel %vm1139, %v1916, %v1920
      %v1922 = vshrl.u32 %v1785, 16
      %v1924 = vrot.slane %v1922, 4
      %v1925 = vor.u32 %v1924, %v1920
      %v1926 = vrot.slane %v1925, 4
      %v1928 = vshll.u32 %v1786, 16
      %v1930 = vrot.slane %v1928, 5
      %v1931 = vsel %vm1139, %v1926, %v1930
      %v1932 = vshrl.u32 %v1786, 16
      %v1934 = vrot.slane %v1932, 4
      %v1935 = vor.u32 %v1934, %v1930
      %v1936 = vrot.slane %v1935, 4
      %v1938 = vshll.u32 %v1787, 16
      %v1940 = vrot.slane %v1938, 5
      %v1941 = vsel %vm1139, %v1936, %v1940
      %v1942 = vshrl.u32 %v1787, 16
      %v1944 = vrot.slane %v1942, 4
      %v1945 = vor.u32 %v1944, %v1940
      %v1946 = vrot.slane %v1945, 4
      %v1948 = vshll.u32 %v1788, 16
      %v1950 = vrot.slane %v1948, 5
      %v1951 = vsel %vm1139, %v1946, %v1950
      %v1952 = vshrl.u32 %v1788, 16
      %v1954 = vrot.slane %v1952, 4
      %v1955 = vor.u32 %v1954, %v1950
      %v1956 = vrot.slane %v1955, 4
      %v1958 = vshll.u32 %v1789, 16
      %v1960 = vrot.slane %v1958, 5
      %v1961 = vsel %vm1139, %v1956, %v1960
      %v1962 = vshrl.u32 %v1789, 16
      %v1964 = vrot.slane %v1962, 4
      %v1965 = vor.u32 %v1964, %v1960
      %v1966 = vrot.slane %v1965, 4
      %v1968 = vshll.u32 %v1790, 16
      %v1970 = vrot.slane %v1968, 5
      %v1971 = vsel %vm1139, %v1966, %v1970
      %v1972 = vshrl.u32 %v1790, 16
      %v1974 = vrot.slane %v1972, 4
      %v1975 = vor.u32 %v1974, %v1970
      %v1976 = vrot.slane %v1975, 4
      %v1978 = vshll.u32 %v1791, 16
      %v1980 = vrot.slane %v1978, 5
      %v1981 = vsel %vm1139, %v1976, %v1980
      %v1982 = vshrl.u32 %v1791, 16
      %v1984 = vrot.slane %v1982, 4
      %v1985 = vor.u32 %v1984, %v1980
      %v1986 = vrot.slane %v1985, 4
      %v1988 = vshll.u32 %v1792, 16
      %v1990 = vrot.slane %v1988, 5
      %v1991 = vsel %vm1139, %v1986, %v1990
      %v1992 = vshrl.u32 %v1792, 16
      %v1994 = vrot.slane %v1992, 4
      %v1995 = vor.u32 %v1994, %v1990
      %v1996 = vrot.slane %v1995, 4
      %v1998 = vshll.u32 %v1793, 16
      %v2000 = vrot.slane %v1998, 5
      %v2001 = vsel %vm1139, %v1996, %v2000
      %v2002 = vshrl.u32 %v1793, 16
      %v2004 = vrot.slane %v2002, 4
      %v2005 = vor.u32 %v2004, %v2000
      %v2006 = vrot.slane %v2005, 4
      %v2008 = vshll.u32 %v1794, 16
      %v2010 = vrot.slane %v2008, 5
      %v2011 = vsel %vm1139, %v2006, %v2010
      %v2012 = vshrl.u32 %v1794, 16
      %v2014 = vrot.slane %v2012, 4
      %v2015 = vor.u32 %v2014, %v2010
      %v2016 = vrot.slane %v2015, 4
      %v2018 = vshll.u32 %v1795, 16
      %v2020 = vrot.slane %v2018, 5
      %v2021 = vsel %vm1139, %v2016, %v2020
      %v2022 = vshrl.u32 %v1795, 16
      %v2024 = vrot.slane %v2022, 4
      %v2025 = vor.u32 %v2024, %v2020
      %v2026 = vrot.slane %v2025, 4
      %v2028 = vshll.u32 %v1796, 16
      %v2030 = vrot.slane %v2028, 5
      %v2031 = vsel %vm1139, %v2026, %v2030
      %v2032 = vshrl.u32 %v1796, 16
      %v2034 = vrot.slane %v2032, 4
      %v2035 = vor.u32 %v2034, %v2030
      %v2036 = vrot.slane %v2035, 4
      %v2038 = vshll.u32 %v1797, 16
      %v2040 = vrot.slane %v2038, 5
      %v2041 = vsel %vm1139, %v2036, %v2040
      %2066 = vst [vmem:[#allocation3 + $0x14] sm:$0xf] %v1811
      %2067 = vst [vmem:[#allocation3 + $0x38] sm:$0xf] %v1821
      %2068 = vst [vmem:[#allocation3 + $0x5c] sm:$0xf] %v1831
      %2069 = vst [vmem:[#allocation3 + $0x80] sm:$0xf] %v1841
      %2070 = vst [vmem:[#allocation3 + $0xa4] sm:$0xf] %v1851
      %2071 = vst [vmem:[#allocation3 + $0xc8] sm:$0xf] %v1861
      %2072 = vst [vmem:[#allocation3 + $0xec] sm:$0xf] %v1871
      %2073 = vst [vmem:[#allocation3 + $0x110] sm:$0xf] %v1881
      %2074 = vst [vmem:[#allocation3 + $0x134] sm:$0xf] %v1891
      %2075 = vst [vmem:[#allocation3 + $0x158] sm:$0xf] %v1901
      %2076 = vst [vmem:[#allocation3 + $0x17c] sm:$0xf] %v1911
      %2077 = vst [vmem:[#allocation3 + $0x1a0] sm:$0xf] %v1921
      %2078 = vst [vmem:[#allocation3 + $0x1c4] sm:$0xf] %v1931
      %2079 = vst [vmem:[#allocation3 + $0x1e8] sm:$0xf] %v1941
      %2080 = vst [vmem:[#allocation3 + $0x20c] sm:$0xf] %v1951
      %2081 = vst [vmem:[#allocation3 + $0x230] sm:$0xf] %v1961
      %2082 = vst [vmem:[#allocation3 + $0x254] sm:$0xf] %v1971
      %2083 = vst [vmem:[#allocation3 + $0x278] sm:$0xf] %v1981
      %2084 = vst [vmem:[#allocation3 + $0x29c] sm:$0xf] %v1991
      %2085 = vst [vmem:[#allocation3 + $0x2c0] sm:$0xf] %v2001
      %2086 = vst [vmem:[#allocation3 + $0x2e4] sm:$0xf] %v2011
      %2087 = vst [vmem:[#allocation3 + $0x308] sm:$0xf] %v2021
      %2088 = vst [vmem:[#allocation3 + $0x32c] sm:$0xf] %v2031
      %2089 = vst [vmem:[#allocation3 + $0x350] sm:$0xf] %v2041
      %v2090 = vld [vmem:[#allocation2 + $0x18] sm:$0x8]
      %v2091 = vld [vmem:[#allocation2 + $0x1c] sm:$0xf]
      %v2092 = vld [vmem:[#allocation2 + $0x20] sm:$0xf]
      %v2093 = vld [vmem:[#allocation2 + $0x24] sm:$0xf]
      %v2094 = vld [vmem:[#allocation2 + $0x28] sm:$0xf]
      %v2095 = vld [vmem:[#allocation2 + $0x2c] sm:$0xf]
      %v2096 = vld [vmem:[#allocation2 + $0x30] sm:$0xf]
      %v2097 = vld [vmem:[#allocation2 + $0x34] sm:$0xf]
      %v2098 = vld [vmem:[#allocation2 + $0x38] sm:$0xf]
      %v2099 = vld [vmem:[#allocation2 + $0x3c] sm:$0xf]
      %v2100 = vld [vmem:[#allocation2 + $0x40] sm:$0xf]
      %v2101 = vld [vmem:[#allocation2 + $0x44] sm:$0xf]
      %v2102 = vld [vmem:[#allocation2 + $0x48] sm:$0xf]
      %v2103 = vld [vmem:[#allocation2 + $0x4c] sm:$0xf]
      %v2104 = vld [vmem:[#allocation2 + $0x50] sm:$0xf]
      %v2105 = vld [vmem:[#allocation2 + $0x54] sm:$0xf]
      %v2106 = vld [vmem:[#allocation2 + $0x58] sm:$0xf]
      %v2107 = vld [vmem:[#allocation2 + $0x5c] sm:$0xf]
      %v2108 = vld [vmem:[#allocation2 + $0x60] sm:$0xf]
      %v2109 = vld [vmem:[#allocation2 + $0x64] sm:$0xf]
      %v2110 = vld [vmem:[#allocation2 + $0x68] sm:$0xf]
      %v2111 = vld [vmem:[#allocation2 + $0x6c] sm:$0xf]
      %v2112 = vld [vmem:[#allocation2 + $0x70] sm:$0xf]
      %v2113 = vld [vmem:[#allocation2 + $0x74] sm:$0xf]
      %v2114 = vld [vmem:[#allocation2 + $0x78] sm:$0xf]
      %v2116 = vshrl.u32 %v2090, 16
      %v2118 = vrot.slane %v2116, 7
      %v2119 = vrot.slane %v2118, 4
      %v2121 = vshrl.u32 %v2091, 16
      %v2123 = vrot.slane %v2121, 7
      %v2124 = vshll.u32 %v2091, 16
      %v2126 = vor.u32 %v2123, %v2124
      %v2127 = vsel %vm795, %v2119, %v2126
      %v2128 = vrot.slane %v2123, 4
      %v2130 = vshrl.u32 %v2092, 16
      %v2132 = vrot.slane %v2130, 7
      %v2133 = vshll.u32 %v2092, 16
      %v2135 = vor.u32 %v2132, %v2133
      %v2136 = vsel %vm795, %v2128, %v2135
      %v2137 = vrot.slane %v2132, 4
      %v2139 = vshrl.u32 %v2093, 16
      %v2141 = vrot.slane %v2139, 7
      %v2142 = vshll.u32 %v2093, 16
      %v2144 = vor.u32 %v2141, %v2142
      %v2145 = vsel %vm795, %v2137, %v2144
      %v2146 = vrot.slane %v2141, 4
      %v2148 = vshrl.u32 %v2094, 16
      %v2150 = vrot.slane %v2148, 7
      %v2151 = vshll.u32 %v2094, 16
      %v2153 = vor.u32 %v2150, %v2151
      %v2154 = vsel %vm795, %v2146, %v2153
      %v2155 = vrot.slane %v2150, 4
      %v2157 = vshrl.u32 %v2095, 16
      %v2159 = vrot.slane %v2157, 7
      %v2160 = vshll.u32 %v2095, 16
      %v2162 = vor.u32 %v2159, %v2160
      %v2163 = vsel %vm795, %v2155, %v2162
      %v2164 = vrot.slane %v2159, 4
      %v2166 = vshrl.u32 %v2096, 16
      %v2168 = vrot.slane %v2166, 7
      %v2169 = vshll.u32 %v2096, 16
      %v2171 = vor.u32 %v2168, %v2169
      %v2172 = vsel %vm795, %v2164, %v2171
      %v2173 = vrot.slane %v2168, 4
      %v2175 = vshrl.u32 %v2097, 16
      %v2177 = vrot.slane %v2175, 7
      %v2178 = vshll.u32 %v2097, 16
      %v2180 = vor.u32 %v2177, %v2178
      %v2181 = vsel %vm795, %v2173, %v2180
      %v2182 = vrot.slane %v2177, 4
      %v2184 = vshrl.u32 %v2098, 16
      %v2186 = vrot.slane %v2184, 7
      %v2187 = vshll.u32 %v2098, 16
      %v2189 = vor.u32 %v2186, %v2187
      %v2190 = vsel %vm795, %v2182, %v2189
      %v2191 = vrot.slane %v2186, 4
      %v2193 = vshrl.u32 %v2099, 16
      %v2195 = vrot.slane %v2193, 7
      %v2196 = vshll.u32 %v2099, 16
      %v2198 = vor.u32 %v2195, %v2196
      %v2199 = vsel %vm795, %v2191, %v2198
      %v2200 = vrot.slane %v2195, 4
      %v2202 = vshrl.u32 %v2100, 16
      %v2204 = vrot.slane %v2202, 7
      %v2205 = vshll.u32 %v2100, 16
      %v2207 = vor.u32 %v2204, %v2205
      %v2208 = vsel %vm795, %v2200, %v2207
      %v2209 = vrot.slane %v2204, 4
      %v2211 = vshrl.u32 %v2101, 16
      %v2213 = vrot.slane %v2211, 7
      %v2214 = vshll.u32 %v2101, 16
      %v2216 = vor.u32 %v2213, %v2214
      %v2217 = vsel %vm795, %v2209, %v2216
      %v2218 = vrot.slane %v2213, 4
      %v2220 = vshrl.u32 %v2102, 16
      %v2222 = vrot.slane %v2220, 7
      %v2223 = vshll.u32 %v2102, 16
      %v2225 = vor.u32 %v2222, %v2223
      %v2226 = vsel %vm795, %v2218, %v2225
      %v2227 = vrot.slane %v2222, 4
      %v2229 = vshrl.u32 %v2103, 16
      %v2231 = vrot.slane %v2229, 7
      %v2232 = vshll.u32 %v2103, 16
      %v2234 = vor.u32 %v2231, %v2232
      %v2235 = vsel %vm795, %v2227, %v2234
      %v2236 = vrot.slane %v2231, 4
      %v2238 = vshrl.u32 %v2104, 16
      %v2240 = vrot.slane %v2238, 7
      %v2241 = vshll.u32 %v2104, 16
      %v2243 = vor.u32 %v2240, %v2241
      %v2244 = vsel %vm795, %v2236, %v2243
      %v2245 = vrot.slane %v2240, 4
      %v2247 = vshrl.u32 %v2105, 16
      %v2249 = vrot.slane %v2247, 7
      %v2250 = vshll.u32 %v2105, 16
      %v2252 = vor.u32 %v2249, %v2250
      %v2253 = vsel %vm795, %v2245, %v2252
      %v2254 = vrot.slane %v2249, 4
      %v2256 = vshrl.u32 %v2106, 16
      %v2258 = vrot.slane %v2256, 7
      %v2259 = vshll.u32 %v2106, 16
      %v2261 = vor.u32 %v2258, %v2259
      %v2262 = vsel %vm795, %v2254, %v2261
      %v2263 = vrot.slane %v2258, 4
      %v2265 = vshrl.u32 %v2107, 16
      %v2267 = vrot.slane %v2265, 7
      %v2268 = vshll.u32 %v2107, 16
      %v2270 = vor.u32 %v2267, %v2268
      %v2271 = vsel %vm795, %v2263, %v2270
      %v2272 = vrot.slane %v2267, 4
      %v2274 = vshrl.u32 %v2108, 16
      %v2276 = vrot.slane %v2274, 7
      %v2277 = vshll.u32 %v2108, 16
      %v2279 = vor.u32 %v2276, %v2277
      %v2280 = vsel %vm795, %v2272, %v2279
      %v2281 = vrot.slane %v2276, 4
      %v2283 = vshrl.u32 %v2109, 16
      %v2285 = vrot.slane %v2283, 7
      %v2286 = vshll.u32 %v2109, 16
      %v2288 = vor.u32 %v2285, %v2286
      %v2289 = vsel %vm795, %v2281, %v2288
      %v2290 = vrot.slane %v2285, 4
      %v2292 = vshrl.u32 %v2110, 16
      %v2294 = vrot.slane %v2292, 7
      %v2295 = vshll.u32 %v2110, 16
      %v2297 = vor.u32 %v2294, %v2295
      %v2298 = vsel %vm795, %v2290, %v2297
      %v2299 = vrot.slane %v2294, 4
      %v2301 = vshrl.u32 %v2111, 16
      %v2303 = vrot.slane %v2301, 7
      %v2304 = vshll.u32 %v2111, 16
      %v2306 = vor.u32 %v2303, %v2304
      %v2307 = vsel %vm795, %v2299, %v2306
      %v2308 = vrot.slane %v2303, 4
      %v2310 = vshrl.u32 %v2112, 16
      %v2312 = vrot.slane %v2310, 7
      %v2313 = vshll.u32 %v2112, 16
      %v2315 = vor.u32 %v2312, %v2313
      %v2316 = vsel %vm795, %v2308, %v2315
      %v2317 = vrot.slane %v2312, 4
      %v2319 = vshrl.u32 %v2113, 16
      %v2321 = vrot.slane %v2319, 7
      %v2322 = vshll.u32 %v2113, 16
      %v2324 = vor.u32 %v2321, %v2322
      %v2325 = vsel %vm795, %v2317, %v2324
      %v2326 = vrot.slane %v2321, 4
      %v2328 = vshrl.u32 %v2114, 16
      %v2330 = vrot.slane %v2328, 7
      %v2331 = vshll.u32 %v2114, 16
      %v2333 = vor.u32 %v2330, %v2331
      %v2334 = vsel %vm795, %v2326, %v2333
      %2359 = vst [vmem:[#allocation3 + $0x18] sm:$0xf] %v2127
      %2360 = vst [vmem:[#allocation3 + $0x3c] sm:$0xf] %v2136
      %2361 = vst [vmem:[#allocation3 + $0x60] sm:$0xf] %v2145
      %2362 = vst [vmem:[#allocation3 + $0x84] sm:$0xf] %v2154
      %2363 = vst [vmem:[#allocation3 + $0xa8] sm:$0xf] %v2163
      %2364 = vst [vmem:[#allocation3 + $0xcc] sm:$0xf] %v2172
      %2365 = vst [vmem:[#allocation3 + $0xf0] sm:$0xf] %v2181
      %2366 = vst [vmem:[#allocation3 + $0x114] sm:$0xf] %v2190
      %2367 = vst [vmem:[#allocation3 + $0x138] sm:$0xf] %v2199
      %2368 = vst [vmem:[#allocation3 + $0x15c] sm:$0xf] %v2208
      %2369 = vst [vmem:[#allocation3 + $0x180] sm:$0xf] %v2217
      %2370 = vst [vmem:[#allocation3 + $0x1a4] sm:$0xf] %v2226
      %2371 = vst [vmem:[#allocation3 + $0x1c8] sm:$0xf] %v2235
      %2372 = vst [vmem:[#allocation3 + $0x1ec] sm:$0xf] %v2244
      %2373 = vst [vmem:[#allocation3 + $0x210] sm:$0xf] %v2253
      %2374 = vst [vmem:[#allocation3 + $0x234] sm:$0xf] %v2262
      %2375 = vst [vmem:[#allocation3 + $0x258] sm:$0xf] %v2271
      %2376 = vst [vmem:[#allocation3 + $0x27c] sm:$0xf] %v2280
      %2377 = vst [vmem:[#allocation3 + $0x2a0] sm:$0xf] %v2289
      %2378 = vst [vmem:[#allocation3 + $0x2c4] sm:$0xf] %v2298
      %2379 = vst [vmem:[#allocation3 + $0x2e8] sm:$0xf] %v2307
      %2380 = vst [vmem:[#allocation3 + $0x30c] sm:$0xf] %v2316
      %2381 = vst [vmem:[#allocation3 + $0x330] sm:$0xf] %v2325
      %2382 = vst [vmem:[#allocation3 + $0x354] sm:$0xf] %v2334
      %v2383 = vld [vmem:[#allocation2 + $0x1c] sm:$0xf]
      %v2384 = vld [vmem:[#allocation2 + $0x20] sm:$0xf]
      %v2385 = vld [vmem:[#allocation2 + $0x24] sm:$0xf]
      %v2386 = vld [vmem:[#allocation2 + $0x28] sm:$0xf]
      %v2387 = vld [vmem:[#allocation2 + $0x2c] sm:$0xf]
      %v2388 = vld [vmem:[#allocation2 + $0x30] sm:$0xf]
      %v2389 = vld [vmem:[#allocation2 + $0x34] sm:$0xf]
      %v2390 = vld [vmem:[#allocation2 + $0x38] sm:$0xf]
      %v2391 = vld [vmem:[#allocation2 + $0x3c] sm:$0xf]
      %v2392 = vld [vmem:[#allocation2 + $0x40] sm:$0xf]
      %v2393 = vld [vmem:[#allocation2 + $0x44] sm:$0xf]
      %v2394 = vld [vmem:[#allocation2 + $0x48] sm:$0xf]
      %v2395 = vld [vmem:[#allocation2 + $0x4c] sm:$0xf]
      %v2396 = vld [vmem:[#allocation2 + $0x50] sm:$0xf]
      %v2397 = vld [vmem:[#allocation2 + $0x54] sm:$0xf]
      %v2398 = vld [vmem:[#allocation2 + $0x58] sm:$0xf]
      %v2399 = vld [vmem:[#allocation2 + $0x5c] sm:$0xf]
      %v2400 = vld [vmem:[#allocation2 + $0x60] sm:$0xf]
      %v2401 = vld [vmem:[#allocation2 + $0x64] sm:$0xf]
      %v2402 = vld [vmem:[#allocation2 + $0x68] sm:$0xf]
      %v2403 = vld [vmem:[#allocation2 + $0x6c] sm:$0xf]
      %v2404 = vld [vmem:[#allocation2 + $0x70] sm:$0xf]
      %v2405 = vld [vmem:[#allocation2 + $0x74] sm:$0xf]
      %v2406 = vld [vmem:[#allocation2 + $0x78] sm:$0xf]
      %2407 = vst [vmem:[#allocation3 + $0x1c] sm:$0xf] %v2383
      %2408 = vst [vmem:[#allocation3 + $0x40] sm:$0xf] %v2384
      %2409 = vst [vmem:[#allocation3 + $0x64] sm:$0xf] %v2385
      %2410 = vst [vmem:[#allocation3 + $0x88] sm:$0xf] %v2386
      %2411 = vst [vmem:[#allocation3 + $0xac] sm:$0xf] %v2387
      %2412 = vst [vmem:[#allocation3 + $0xd0] sm:$0xf] %v2388
      %2413 = vst [vmem:[#allocation3 + $0xf4] sm:$0xf] %v2389
      %2414 = vst [vmem:[#allocation3 + $0x118] sm:$0xf] %v2390
      %2415 = vst [vmem:[#allocation3 + $0x13c] sm:$0xf] %v2391
      %2416 = vst [vmem:[#allocation3 + $0x160] sm:$0xf] %v2392
      %2417 = vst [vmem:[#allocation3 + $0x184] sm:$0xf] %v2393
      %2418 = vst [vmem:[#allocation3 + $0x1a8] sm:$0xf] %v2394
      %2419 = vst [vmem:[#allocation3 + $0x1cc] sm:$0xf] %v2395
      %2420 = vst [vmem:[#allocation3 + $0x1f0] sm:$0xf] %v2396
      %2421 = vst [vmem:[#allocation3 + $0x214] sm:$0xf] %v2397
      %2422 = vst [vmem:[#allocation3 + $0x238] sm:$0xf] %v2398
      %2423 = vst [vmem:[#allocation3 + $0x25c] sm:$0xf] %v2399
      %2424 = vst [vmem:[#allocation3 + $0x280] sm:$0xf] %v2400
      %2425 = vst [vmem:[#allocation3 + $0x2a4] sm:$0xf] %v2401
      %2426 = vst [vmem:[#allocation3 + $0x2c8] sm:$0xf] %v2402
      %2427 = vst [vmem:[#allocation3 + $0x2ec] sm:$0xf] %v2403
      %2428 = vst [vmem:[#allocation3 + $0x310] sm:$0xf] %v2404
      %2429 = vst [vmem:[#allocation3 + $0x334] sm:$0xf] %v2405
      %2430 = vst [vmem:[#allocation3 + $0x358] sm:$0xf] %v2406
      %v2431 = vld [vmem:[#allocation2 + $0x1c] sm:$0xf]
      %v2432 = vld [vmem:[#allocation2 + $0x20] sm:$0xf]
      %v2433 = vld [vmem:[#allocation2 + $0x24] sm:$0xf]
      %v2434 = vld [vmem:[#allocation2 + $0x28] sm:$0xf]
      %v2435 = vld [vmem:[#allocation2 + $0x2c] sm:$0xf]
      %v2436 = vld [vmem:[#allocation2 + $0x30] sm:$0xf]
      %v2437 = vld [vmem:[#allocation2 + $0x34] sm:$0xf]
      %v2438 = vld [vmem:[#allocation2 + $0x38] sm:$0xf]
      %v2439 = vld [vmem:[#allocation2 + $0x3c] sm:$0xf]
      %v2440 = vld [vmem:[#allocation2 + $0x40] sm:$0xf]
      %v2441 = vld [vmem:[#allocation2 + $0x44] sm:$0xf]
      %v2442 = vld [vmem:[#allocation2 + $0x48] sm:$0xf]
      %v2443 = vld [vmem:[#allocation2 + $0x4c] sm:$0xf]
      %v2444 = vld [vmem:[#allocation2 + $0x50] sm:$0xf]
      %v2445 = vld [vmem:[#allocation2 + $0x54] sm:$0xf]
      %v2446 = vld [vmem:[#allocation2 + $0x58] sm:$0xf]
      %v2447 = vld [vmem:[#allocation2 + $0x5c] sm:$0xf]
      %v2448 = vld [vmem:[#allocation2 + $0x60] sm:$0xf]
      %v2449 = vld [vmem:[#allocation2 + $0x64] sm:$0xf]
      %v2450 = vld [vmem:[#allocation2 + $0x68] sm:$0xf]
      %v2451 = vld [vmem:[#allocation2 + $0x6c] sm:$0xf]
      %v2452 = vld [vmem:[#allocation2 + $0x70] sm:$0xf]
      %v2453 = vld [vmem:[#allocation2 + $0x74] sm:$0xf]
      %v2454 = vld [vmem:[#allocation2 + $0x78] sm:$0xf]
      %v2455 = vld [vmem:[#allocation2 + $0x7c] sm:$0x1]
      %v2457 = vshrl.u32 %v2431, 16
      %v2459 = vrot.slane %v2457, 4
      %v2460 = vshll.u32 %v2431, 16
      %v2462 = vrot.slane %v2460, 5
      %v2463 = vor.u32 %v2459, %v2462
      %v2464 = vrot.slane %v2463, 4
      %v2466 = vshll.u32 %v2432, 16
      %v2468 = vrot.slane %v2466, 5
      %v2469 = vsel %vm1139, %v2464, %v2468
      %v2470 = vshrl.u32 %v2432, 16
      %v2472 = vrot.slane %v2470, 4
      %v2473 = vor.u32 %v2472, %v2468
      %v2474 = vrot.slane %v2473, 4
      %v2476 = vshll.u32 %v2433, 16
      %v2478 = vrot.slane %v2476, 5
      %v2479 = vsel %vm1139, %v2474, %v2478
      %v2480 = vshrl.u32 %v2433, 16
      %v2482 = vrot.slane %v2480, 4
      %v2483 = vor.u32 %v2482, %v2478
      %v2484 = vrot.slane %v2483, 4
      %v2486 = vshll.u32 %v2434, 16
      %v2488 = vrot.slane %v2486, 5
      %v2489 = vsel %vm1139, %v2484, %v2488
      %v2490 = vshrl.u32 %v2434, 16
      %v2492 = vrot.slane %v2490, 4
      %v2493 = vor.u32 %v2492, %v2488
      %v2494 = vrot.slane %v2493, 4
      %v2496 = vshll.u32 %v2435, 16
      %v2498 = vrot.slane %v2496, 5
      %v2499 = vsel %vm1139, %v2494, %v2498
      %v2500 = vshrl.u32 %v2435, 16
      %v2502 = vrot.slane %v2500, 4
      %v2503 = vor.u32 %v2502, %v2498
      %v2504 = vrot.slane %v2503, 4
      %v2506 = vshll.u32 %v2436, 16
      %v2508 = vrot.slane %v2506, 5
      %v2509 = vsel %vm1139, %v2504, %v2508
      %v2510 = vshrl.u32 %v2436, 16
      %v2512 = vrot.slane %v2510, 4
      %v2513 = vor.u32 %v2512, %v2508
      %v2514 = vrot.slane %v2513, 4
      %v2516 = vshll.u32 %v2437, 16
      %v2518 = vrot.slane %v2516, 5
      %v2519 = vsel %vm1139, %v2514, %v2518
      %v2520 = vshrl.u32 %v2437, 16
      %v2522 = vrot.slane %v2520, 4
      %v2523 = vor.u32 %v2522, %v2518
      %v2524 = vrot.slane %v2523, 4
      %v2526 = vshll.u32 %v2438, 16
      %v2528 = vrot.slane %v2526, 5
      %v2529 = vsel %vm1139, %v2524, %v2528
      %v2530 = vshrl.u32 %v2438, 16
      %v2532 = vrot.slane %v2530, 4
      %v2533 = vor.u32 %v2532, %v2528
      %v2534 = vrot.slane %v2533, 4
      %v2536 = vshll.u32 %v2439, 16
      %v2538 = vrot.slane %v2536, 5
      %v2539 = vsel %vm1139, %v2534, %v2538
      %v2540 = vshrl.u32 %v2439, 16
      %v2542 = vrot.slane %v2540, 4
      %v2543 = vor.u32 %v2542, %v2538
      %v2544 = vrot.slane %v2543, 4
      %v2546 = vshll.u32 %v2440, 16
      %v2548 = vrot.slane %v2546, 5
      %v2549 = vsel %vm1139, %v2544, %v2548
      %v2550 = vshrl.u32 %v2440, 16
      %v2552 = vrot.slane %v2550, 4
      %v2553 = vor.u32 %v2552, %v2548
      %v2554 = vrot.slane %v2553, 4
      %v2556 = vshll.u32 %v2441, 16
      %v2558 = vrot.slane %v2556, 5
      %v2559 = vsel %vm1139, %v2554, %v2558
      %v2560 = vshrl.u32 %v2441, 16
      %v2562 = vrot.slane %v2560, 4
      %v2563 = vor.u32 %v2562, %v2558
      %v2564 = vrot.slane %v2563, 4
      %v2566 = vshll.u32 %v2442, 16
      %v2568 = vrot.slane %v2566, 5
      %v2569 = vsel %vm1139, %v2564, %v2568
      %v2570 = vshrl.u32 %v2442, 16
      %v2572 = vrot.slane %v2570, 4
      %v2573 = vor.u32 %v2572, %v2568
      %v2574 = vrot.slane %v2573, 4
      %v2576 = vshll.u32 %v2443, 16
      %v2578 = vrot.slane %v2576, 5
      %v2579 = vsel %vm1139, %v2574, %v2578
      %v2580 = vshrl.u32 %v2443, 16
      %v2582 = vrot.slane %v2580, 4
      %v2583 = vor.u32 %v2582, %v2578
      %v2584 = vrot.slane %v2583, 4
      %v2586 = vshll.u32 %v2444, 16
      %v2588 = vrot.slane %v2586, 5
      %v2589 = vsel %vm1139, %v2584, %v2588
      %v2590 = vshrl.u32 %v2444, 16
      %v2592 = vrot.slane %v2590, 4
      %v2593 = vor.u32 %v2592, %v2588
      %v2594 = vrot.slane %v2593, 4
      %v2596 = vshll.u32 %v2445, 16
      %v2598 = vrot.slane %v2596, 5
      %v2599 = vsel %vm1139, %v2594, %v2598
      %v2600 = vshrl.u32 %v2445, 16
      %v2602 = vrot.slane %v2600, 4
      %v2603 = vor.u32 %v2602, %v2598
      %v2604 = vrot.slane %v2603, 4
      %v2606 = vshll.u32 %v2446, 16
      %v2608 = vrot.slane %v2606, 5
      %v2609 = vsel %vm1139, %v2604, %v2608
      %v2610 = vshrl.u32 %v2446, 16
      %v2612 = vrot.slane %v2610, 4
      %v2613 = vor.u32 %v2612, %v2608
      %v2614 = vrot.slane %v2613, 4
      %v2616 = vshll.u32 %v2447, 16
      %v2618 = vrot.slane %v2616, 5
      %v2619 = vsel %vm1139, %v2614, %v2618
      %v2620 = vshrl.u32 %v2447, 16
      %v2622 = vrot.slane %v2620, 4
      %v2623 = vor.u32 %v2622, %v2618
      %v2624 = vrot.slane %v2623, 4
      %v2626 = vshll.u32 %v2448, 16
      %v2628 = vrot.slane %v2626, 5
      %v2629 = vsel %vm1139, %v2624, %v2628
      %v2630 = vshrl.u32 %v2448, 16
      %v2632 = vrot.slane %v2630, 4
      %v2633 = vor.u32 %v2632, %v2628
      %v2634 = vrot.slane %v2633, 4
      %v2636 = vshll.u32 %v2449, 16
      %v2638 = vrot.slane %v2636, 5
      %v2639 = vsel %vm1139, %v2634, %v2638
      %v2640 = vshrl.u32 %v2449, 16
      %v2642 = vrot.slane %v2640, 4
      %v2643 = vor.u32 %v2642, %v2638
      %v2644 = vrot.slane %v2643, 4
      %v2646 = vshll.u32 %v2450, 16
      %v2648 = vrot.slane %v2646, 5
      %v2649 = vsel %vm1139, %v2644, %v2648
      %v2650 = vshrl.u32 %v2450, 16
      %v2652 = vrot.slane %v2650, 4
      %v2653 = vor.u32 %v2652, %v2648
      %v2654 = vrot.slane %v2653, 4
      %v2656 = vshll.u32 %v2451, 16
      %v2658 = vrot.slane %v2656, 5
      %v2659 = vsel %vm1139, %v2654, %v2658
      %v2660 = vshrl.u32 %v2451, 16
      %v2662 = vrot.slane %v2660, 4
      %v2663 = vor.u32 %v2662, %v2658
      %v2664 = vrot.slane %v2663, 4
      %v2666 = vshll.u32 %v2452, 16
      %v2668 = vrot.slane %v2666, 5
      %v2669 = vsel %vm1139, %v2664, %v2668
      %v2670 = vshrl.u32 %v2452, 16
      %v2672 = vrot.slane %v2670, 4
      %v2673 = vor.u32 %v2672, %v2668
      %v2674 = vrot.slane %v2673, 4
      %v2676 = vshll.u32 %v2453, 16
      %v2678 = vrot.slane %v2676, 5
      %v2679 = vsel %vm1139, %v2674, %v2678
      %v2680 = vshrl.u32 %v2453, 16
      %v2682 = vrot.slane %v2680, 4
      %v2683 = vor.u32 %v2682, %v2678
      %v2684 = vrot.slane %v2683, 4
      %v2686 = vshll.u32 %v2454, 16
      %v2688 = vrot.slane %v2686, 5
      %v2689 = vsel %vm1139, %v2684, %v2688
      %v2690 = vshrl.u32 %v2454, 16
      %v2692 = vrot.slane %v2690, 4
      %v2693 = vor.u32 %v2692, %v2688
      %v2694 = vrot.slane %v2693, 4
      %v2696 = vshll.u32 %v2455, 16
      %v2698 = vrot.slane %v2696, 5
      %v2699 = vsel %vm1139, %v2694, %v2698
      %2724 = vst [vmem:[#allocation3 + $0x20] sm:$0xf] %v2469
      %2725 = vst [vmem:[#allocation3 + $0x44] sm:$0xf] %v2479
      %2726 = vst [vmem:[#allocation3 + $0x68] sm:$0xf] %v2489
      %2727 = vst [vmem:[#allocation3 + $0x8c] sm:$0xf] %v2499
      %2728 = vst [vmem:[#allocation3 + $0xb0] sm:$0xf] %v2509
      %2729 = vst [vmem:[#allocation3 + $0xd4] sm:$0xf] %v2519
      %2730 = vst [vmem:[#allocation3 + $0xf8] sm:$0xf] %v2529
      %2731 = vst [vmem:[#allocation3 + $0x11c] sm:$0xf] %v2539
      %2732 = vst [vmem:[#allocation3 + $0x140] sm:$0xf] %v2549
      %2733 = vst [vmem:[#allocation3 + $0x164] sm:$0xf] %v2559
      %2734 = vst [vmem:[#allocation3 + $0x188] sm:$0xf] %v2569
      %2735 = vst [vmem:[#allocation3 + $0x1ac] sm:$0xf] %v2579
      %2736 = vst [vmem:[#allocation3 + $0x1d0] sm:$0xf] %v2589
      %2737 = vst [vmem:[#allocation3 + $0x1f4] sm:$0xf] %v2599
      %2738 = vst [vmem:[#allocation3 + $0x218] sm:$0xf] %v2609
      %2739 = vst [vmem:[#allocation3 + $0x23c] sm:$0xf] %v2619
      %2740 = vst [vmem:[#allocation3 + $0x260] sm:$0xf] %v2629
      %2741 = vst [vmem:[#allocation3 + $0x284] sm:$0xf] %v2639
      %2742 = vst [vmem:[#allocation3 + $0x2a8] sm:$0xf] %v2649
      %2743 = vst [vmem:[#allocation3 + $0x2cc] sm:$0xf] %v2659
      %2744 = vst [vmem:[#allocation3 + $0x2f0] sm:$0xf] %v2669
      %2745 = vst [vmem:[#allocation3 + $0x314] sm:$0xf] %v2679
      %2746 = vst [vmem:[#allocation3 + $0x338] sm:$0xf] %v2689
      %2747 = vst [vmem:[#allocation3 + $0x35c] sm:$0xf] %v2699
      %v2748 = vld [vmem:[#allocation3] sm:$0xff]
      %v2749 = vld [vmem:[#allocation3 + $0x8] sm:$0xff]
      %v2750 = vld [vmem:[#allocation3 + $0x10] sm:$0xff]
      %v2751 = vld [vmem:[#allocation3 + $0x18] sm:$0xff]
      %v2752 = vld [vmem:[#allocation3 + $0x20] sm:$0xf]
      %v2753 = vld [vmem:[#allocation3 + $0x24] sm:$0xff]
      %v2754 = vld [vmem:[#allocation3 + $0x2c] sm:$0xff]
      %v2755 = vld [vmem:[#allocation3 + $0x34] sm:$0xff]
      %v2756 = vld [vmem:[#allocation3 + $0x3c] sm:$0xff]
      %v2757 = vld [vmem:[#allocation3 + $0x44] sm:$0xf]
      %v2758 = vld [vmem:[#allocation3 + $0x48] sm:$0xff]
      %v2759 = vld [vmem:[#allocation3 + $0x50] sm:$0xff]
      %v2760 = vld [vmem:[#allocation3 + $0x58] sm:$0xff]
      %v2761 = vld [vmem:[#allocation3 + $0x60] sm:$0xff]
      %v2762 = vld [vmem:[#allocation3 + $0x68] sm:$0xf]
      %v2763 = vld [vmem:[#allocation3 + $0x6c] sm:$0xff]
      %v2764 = vld [vmem:[#allocation3 + $0x74] sm:$0xff]
      %v2765 = vld [vmem:[#allocation3 + $0x7c] sm:$0xff]
      %v2766 = vld [vmem:[#allocation3 + $0x84] sm:$0xff]
      %v2767 = vld [vmem:[#allocation3 + $0x8c] sm:$0xf]
      %v2768 = vld [vmem:[#allocation3 + $0x90] sm:$0xff]
      %v2769 = vld [vmem:[#allocation3 + $0x98] sm:$0xff]
      %v2770 = vld [vmem:[#allocation3 + $0xa0] sm:$0xff]
      %v2771 = vld [vmem:[#allocation3 + $0xa8] sm:$0xff]
      %v2772 = vld [vmem:[#allocation3 + $0xb0] sm:$0xf]
      %v2773 = vld [vmem:[#allocation3 + $0xb4] sm:$0xff]
      %v2774 = vld [vmem:[#allocation3 + $0xbc] sm:$0xff]
      %v2775 = vld [vmem:[#allocation3 + $0xc4] sm:$0xff]
      %v2776 = vld [vmem:[#allocation3 + $0xcc] sm:$0xff]
      %v2777 = vld [vmem:[#allocation3 + $0xd4] sm:$0xf]
      %v2778 = vld [vmem:[#allocation3 + $0xd8] sm:$0xff]
      %v2779 = vld [vmem:[#allocation3 + $0xe0] sm:$0xff]
      %v2780 = vld [vmem:[#allocation3 + $0xe8] sm:$0xff]
      %v2781 = vld [vmem:[#allocation3 + $0xf0] sm:$0xff]
      %v2782 = vld [vmem:[#allocation3 + $0xf8] sm:$0xf]
      %v2783 = vld [vmem:[#allocation3 + $0xfc] sm:$0xff]
      %v2784 = vld [vmem:[#allocation3 + $0x104] sm:$0xff]
      %v2785 = vld [vmem:[#allocation3 + $0x10c] sm:$0xff]
      %v2786 = vld [vmem:[#allocation3 + $0x114] sm:$0xff]
      %v2787 = vld [vmem:[#allocation3 + $0x11c] sm:$0xf]
      %v2788 = vld [vmem:[#allocation3 + $0x120] sm:$0xff]
      %v2789 = vld [vmem:[#allocation3 + $0x128] sm:$0xff]
      %v2790 = vld [vmem:[#allocation3 + $0x130] sm:$0xff]
      %v2791 = vld [vmem:[#allocation3 + $0x138] sm:$0xff]
      %v2792 = vld [vmem:[#allocation3 + $0x140] sm:$0xf]
      %v2793 = vld [vmem:[#allocation3 + $0x144] sm:$0xff]
      %v2794 = vld [vmem:[#allocation3 + $0x14c] sm:$0xff]
      %v2795 = vld [vmem:[#allocation3 + $0x154] sm:$0xff]
      %v2796 = vld [vmem:[#allocation3 + $0x15c] sm:$0xff]
      %v2797 = vld [vmem:[#allocation3 + $0x164] sm:$0xf]
      %v2798 = vld [vmem:[#allocation3 + $0x168] sm:$0xff]
      %v2799 = vld [vmem:[#allocation3 + $0x170] sm:$0xff]
      %v2800 = vld [vmem:[#allocation3 + $0x178] sm:$0xff]
      %v2801 = vld [vmem:[#allocation3 + $0x180] sm:$0xff]
      %v2802 = vld [vmem:[#allocation3 + $0x188] sm:$0xf]
      %v2803 = vld [vmem:[#allocation3 + $0x18c] sm:$0xff]
      %v2804 = vld [vmem:[#allocation3 + $0x194] sm:$0xff]
      %v2805 = vld [vmem:[#allocation3 + $0x19c] sm:$0xff]
      %v2806 = vld [vmem:[#allocation3 + $0x1a4] sm:$0xff]
      %v2807 = vld [vmem:[#allocation3 + $0x1ac] sm:$0xf]
      %v2808 = vld [vmem:[#allocation3 + $0x1b0] sm:$0xff]
      %v2809 = vld [vmem:[#allocation3 + $0x1b8] sm:$0xff]
      %v2810 = vld [vmem:[#allocation3 + $0x1c0] sm:$0xff]
      %v2811 = vld [vmem:[#allocation3 + $0x1c8] sm:$0xff]
      %v2812 = vld [vmem:[#allocation3 + $0x1d0] sm:$0xf]
      %v2813 = vld [vmem:[#allocation3 + $0x1d4] sm:$0xff]
      %v2814 = vld [vmem:[#allocation3 + $0x1dc] sm:$0xff]
      %v2815 = vld [vmem:[#allocation3 + $0x1e4] sm:$0xff]
      %v2816 = vld [vmem:[#allocation3 + $0x1ec] sm:$0xff]
      %v2817 = vld [vmem:[#allocation3 + $0x1f4] sm:$0xf]
      %v2818 = vld [vmem:[#allocation3 + $0x1f8] sm:$0xff]
      %v2819 = vld [vmem:[#allocation3 + $0x200] sm:$0xff]
      %v2820 = vld [vmem:[#allocation3 + $0x208] sm:$0xff]
      %v2821 = vld [vmem:[#allocation3 + $0x210] sm:$0xff]
      %v2822 = vld [vmem:[#allocation3 + $0x218] sm:$0xf]
      %v2823 = vld [vmem:[#allocation3 + $0x21c] sm:$0xff]
      %v2824 = vld [vmem:[#allocation3 + $0x224] sm:$0xff]
      %v2825 = vld [vmem:[#allocation3 + $0x22c] sm:$0xff]
      %v2826 = vld [vmem:[#allocation3 + $0x234] sm:$0xff]
      %v2827 = vld [vmem:[#allocation3 + $0x23c] sm:$0xf]
      %v2828 = vld [vmem:[#allocation3 + $0x240] sm:$0xff]
      %v2829 = vld [vmem:[#allocation3 + $0x248] sm:$0xff]
      %v2830 = vld [vmem:[#allocation3 + $0x250] sm:$0xff]
      %v2831 = vld [vmem:[#allocation3 + $0x258] sm:$0xff]
      %v2832 = vld [vmem:[#allocation3 + $0x260] sm:$0xf]
      %v2833 = vld [vmem:[#allocation3 + $0x264] sm:$0xff]
      %v2834 = vld [vmem:[#allocation3 + $0x26c] sm:$0xff]
      %v2835 = vld [vmem:[#allocation3 + $0x274] sm:$0xff]
      %v2836 = vld [vmem:[#allocation3 + $0x27c] sm:$0xff]
      %v2837 = vld [vmem:[#allocation3 + $0x284] sm:$0xf]
      %v2838 = vld [vmem:[#allocation3 + $0x288] sm:$0xff]
      %v2839 = vld [vmem:[#allocation3 + $0x290] sm:$0xff]
      %v2840 = vld [vmem:[#allocation3 + $0x298] sm:$0xff]
      %v2841 = vld [vmem:[#allocation3 + $0x2a0] sm:$0xff]
      %v2842 = vld [vmem:[#allocation3 + $0x2a8] sm:$0xf]
      %v2843 = vld [vmem:[#allocation3 + $0x2ac] sm:$0xff]
      %v2844 = vld [vmem:[#allocation3 + $0x2b4] sm:$0xff]
      %v2845 = vld [vmem:[#allocation3 + $0x2bc] sm:$0xff]
      %v2846 = vld [vmem:[#allocation3 + $0x2c4] sm:$0xff]
      %v2847 = vld [vmem:[#allocation3 + $0x2cc] sm:$0xf]
      %v2848 = vld [vmem:[#allocation3 + $0x2d0] sm:$0xff]
      %v2849 = vld [vmem:[#allocation3 + $0x2d8] sm:$0xff]
      %v2850 = vld [vmem:[#allocation3 + $0x2e0] sm:$0xff]
      %v2851 = vld [vmem:[#allocation3 + $0x2e8] sm:$0xff]
      %v2852 = vld [vmem:[#allocation3 + $0x2f0] sm:$0xf]
      %v2853 = vld [vmem:[#allocation3 + $0x2f4] sm:$0xff]
      %v2854 = vld [vmem:[#allocation3 + $0x2fc] sm:$0xff]
      %v2855 = vld [vmem:[#allocation3 + $0x304] sm:$0xff]
      %v2856 = vld [vmem:[#allocation3 + $0x30c] sm:$0xff]
      %v2857 = vld [vmem:[#allocation3 + $0x314] sm:$0xf]
      %v2858 = vld [vmem:[#allocation3 + $0x318] sm:$0xff]
      %v2859 = vld [vmem:[#allocation3 + $0x320] sm:$0xff]
      %v2860 = vld [vmem:[#allocation3 + $0x328] sm:$0xff]
      %v2861 = vld [vmem:[#allocation3 + $0x330] sm:$0xff]
      %v2862 = vld [vmem:[#allocation3 + $0x338] sm:$0xf]
      %v2863 = vld [vmem:[#allocation3 + $0x33c] sm:$0xff]
      %v2864 = vld [vmem:[#allocation3 + $0x344] sm:$0xff]
      %v2865 = vld [vmem:[#allocation3 + $0x34c] sm:$0xff]
      %v2866 = vld [vmem:[#allocation3 + $0x354] sm:$0xff]
      %v2867 = vld [vmem:[#allocation3 + $0x35c] sm:$0xf]
      %v2868 = vld [vmem:[%s4] sm:$0xf]
      %v2869 = vld [vmem:[%s4 + $0x4] sm:$0xf]
      %v2870 = vld [vmem:[%s4 + $0x8] sm:$0xf]
      %v2871 = vld [vmem:[%s4 + $0xc] sm:$0xf]
      %v2872 = vld [vmem:[%s4 + $0x10] sm:$0xf]
      %v2873 = vld [vmem:[%s4 + $0x14] sm:$0xf]
      %v2874 = vld [vmem:[%s4 + $0x18] sm:$0xf]
      %v2875 = vld [vmem:[%s4 + $0x1c] sm:$0xf]
      %v2876 = vld [vmem:[%s4 + $0x20] sm:$0xf]
      %v2877 = vld [vmem:[%s4 + $0x24] sm:$0xf]
      %v2878 = vld [vmem:[%s4 + $0x28] sm:$0xf]
      %v2879 = vld [vmem:[%s4 + $0x2c] sm:$0xf]
      %v2880 = vld [vmem:[%s4 + $0x30] sm:$0xf]
      %v2881 = vld [vmem:[%s4 + $0x34] sm:$0xf]
      %v2882 = vld [vmem:[%s4 + $0x38] sm:$0xf]
      %v2883 = vld [vmem:[%s4 + $0x3c] sm:$0xf]
      %v2884 = vld [vmem:[%s4 + $0x40] sm:$0xf]
      %v2885 = vld [vmem:[%s4 + $0x44] sm:$0xf]
      %v2886 = vld [vmem:[%s4 + $0x48] sm:$0xf]
      %v2887 = vld [vmem:[%s4 + $0x4c] sm:$0xf]
      %v2888 = vld [vmem:[%s4 + $0x50] sm:$0xf]
      %v2889 = vld [vmem:[%s4 + $0x54] sm:$0xf]
      %v2890 = vld [vmem:[%s4 + $0x58] sm:$0xf]
      %v2891 = vld [vmem:[%s4 + $0x5c] sm:$0xf]
      %v2892 = vld [vmem:[%s4 + $0x60] sm:$0xf]
      %v2893 = vld [vmem:[%s4 + $0x64] sm:$0xf]
      %v2894 = vld [vmem:[%s4 + $0x68] sm:$0xf]
      %v2895 = vld [vmem:[%s4 + $0x6c] sm:$0xf]
      %v2896 = vld [vmem:[%s4 + $0x70] sm:$0xf]
      %v2897 = vld [vmem:[%s4 + $0x74] sm:$0xf]
      %v2898 = vld [vmem:[%s4 + $0x78] sm:$0xf]
      %v2899 = vld [vmem:[%s4 + $0x7c] sm:$0xf]
      %v2900 = vld [vmem:[%s4 + $0x80] sm:$0xf]
      %v2901 = vld [vmem:[%s4 + $0x84] sm:$0xf]
      %v2902 = vld [vmem:[%s4 + $0x88] sm:$0xf]
      %v2903 = vld [vmem:[%s4 + $0x8c] sm:$0xf]
      %v2904 = vld [vmem:[%s4 + $0x90] sm:$0xf]
      %v2905 = vld [vmem:[%s4 + $0x94] sm:$0xf]
      %v2906 = vld [vmem:[%s4 + $0x98] sm:$0xf]
      %v2907 = vld [vmem:[%s4 + $0x9c] sm:$0xf]
      %v2908 = vld [vmem:[%s4 + $0xa0] sm:$0xf]
      %v2909 = vld [vmem:[%s4 + $0xa4] sm:$0xf]
      %v2910 = vld [vmem:[%s4 + $0xa8] sm:$0xf]
      %v2911 = vld [vmem:[%s4 + $0xac] sm:$0xf]
      %v2912 = vld [vmem:[%s4 + $0xb0] sm:$0xf]
      %v2913 = vld [vmem:[%s4 + $0xb4] sm:$0xf]
      %v2914 = vld [vmem:[%s4 + $0xb8] sm:$0xf]
      %v2915 = vld [vmem:[%s4 + $0xbc] sm:$0xf]
      %v2916 = vld [vmem:[%s4 + $0xc0] sm:$0xf]
      %v2917 = vld [vmem:[%s4 + $0xc4] sm:$0xf]
      %v2918 = vld [vmem:[%s4 + $0xc8] sm:$0xf]
      %v2919 = vld [vmem:[%s4 + $0xcc] sm:$0xf]
      %v2920 = vld [vmem:[%s4 + $0xd0] sm:$0xf]
      %v2921 = vld [vmem:[%s4 + $0xd4] sm:$0xf]
      %v2922 = vld [vmem:[%s4 + $0xd8] sm:$0xf]
      %v2923 = vld [vmem:[%s4 + $0xdc] sm:$0xf]
      %v2924 = vld [vmem:[%s4 + $0xe0] sm:$0xf]
      %v2925 = vld [vmem:[%s4 + $0xe4] sm:$0xf]
      %v2926 = vld [vmem:[%s4 + $0xe8] sm:$0xf]
      %v2927 = vld [vmem:[%s4 + $0xec] sm:$0xf]
      %v2928 = vld [vmem:[%s4 + $0xf0] sm:$0xf]
      %v2929 = vld [vmem:[%s4 + $0xf4] sm:$0xf]
      %v2930 = vld [vmem:[%s4 + $0xf8] sm:$0xf]
      %v2931 = vld [vmem:[%s4 + $0xfc] sm:$0xf]
      %v2932 = vld [vmem:[%s4 + $0x100] sm:$0xf]
      %v2933 = vld [vmem:[%s4 + $0x104] sm:$0xf]
      %v2934 = vld [vmem:[%s4 + $0x108] sm:$0xf]
      %v2935 = vld [vmem:[%s4 + $0x10c] sm:$0xf]
      %v2936 = vld [vmem:[%s4 + $0x110] sm:$0xf]
      %v2937 = vld [vmem:[%s4 + $0x114] sm:$0xf]
      %v2938 = vld [vmem:[%s4 + $0x118] sm:$0xf]
      %v2939 = vld [vmem:[%s4 + $0x11c] sm:$0xf]
      %v2940 = vld [vmem:[%s4 + $0x120] sm:$0xf]
      %v2941 = vld [vmem:[%s4 + $0x124] sm:$0xf]
      %v2942 = vld [vmem:[%s4 + $0x128] sm:$0xf]
      %v2943 = vld [vmem:[%s4 + $0x12c] sm:$0xf]
      %v2944 = vld [vmem:[%s4 + $0x130] sm:$0xf]
      %v2945 = vld [vmem:[%s4 + $0x134] sm:$0xf]
      %v2946 = vld [vmem:[%s4 + $0x138] sm:$0xf]
      %v2947 = vld [vmem:[%s4 + $0x13c] sm:$0xf]
      %v2948 = vld [vmem:[%s4 + $0x140] sm:$0xf]
      %v2949 = vld [vmem:[%s4 + $0x144] sm:$0xf]
      %v2950 = vld [vmem:[%s4 + $0x148] sm:$0xf]
      %v2951 = vld [vmem:[%s4 + $0x14c] sm:$0xf]
      %v2952 = vld [vmem:[%s4 + $0x150] sm:$0xf]
      %v2953 = vld [vmem:[%s4 + $0x154] sm:$0xf]
      %v2954 = vld [vmem:[%s4 + $0x158] sm:$0xf]
      %v2955 = vld [vmem:[%s4 + $0x15c] sm:$0xf]
      %v2956 = vld [vmem:[%s4 + $0x160] sm:$0xf]
      %v2957 = vld [vmem:[%s4 + $0x164] sm:$0xf]
      %v2958 = vld [vmem:[%s4 + $0x168] sm:$0xf]
      %v2959 = vld [vmem:[%s4 + $0x16c] sm:$0xf]
      %v2960 = vld [vmem:[%s4 + $0x170] sm:$0xf]
      %v2961 = vld [vmem:[%s4 + $0x174] sm:$0xf]
      %v2962 = vld [vmem:[%s4 + $0x178] sm:$0xf]
      %v2963 = vld [vmem:[%s4 + $0x17c] sm:$0xf]
      %v2964 = vld [vmem:[%s4 + $0x180] sm:$0xf]
      %v2965 = vld [vmem:[%s4 + $0x184] sm:$0xf]
      %v2966 = vld [vmem:[%s4 + $0x188] sm:$0xf]
      %v2967 = vld [vmem:[%s4 + $0x18c] sm:$0xf]
      %v2968 = vld [vmem:[%s4 + $0x190] sm:$0xf]
      %v2969 = vld [vmem:[%s4 + $0x194] sm:$0xf]
      %v2970 = vld [vmem:[%s4 + $0x198] sm:$0xf]
      %v2971 = vld [vmem:[%s4 + $0x19c] sm:$0xf]
      %v2972 = vld [vmem:[%s4 + $0x1a0] sm:$0xf]
      %v2973 = vld [vmem:[%s4 + $0x1a4] sm:$0xf]
      %v2974 = vld [vmem:[%s4 + $0x1a8] sm:$0xf]
      %v2975 = vld [vmem:[%s4 + $0x1ac] sm:$0xf]
      %v2976 = vld [vmem:[%s4 + $0x1b0] sm:$0xf]
      %v2977 = vld [vmem:[%s4 + $0x1b4] sm:$0xf]
      %v2978 = vld [vmem:[%s4 + $0x1b8] sm:$0xf]
      %v2979 = vld [vmem:[%s4 + $0x1bc] sm:$0xf]
      %v2980 = vld [vmem:[%s4 + $0x1c0] sm:$0xf]
      %v2981 = vld [vmem:[%s4 + $0x1c4] sm:$0xf]
      %v2982 = vld [vmem:[%s4 + $0x1c8] sm:$0xf]
      %v2983 = vld [vmem:[%s4 + $0x1cc] sm:$0xf]
      %v2984 = vld [vmem:[%s4 + $0x1d0] sm:$0xf]
      %v2985 = vld [vmem:[%s4 + $0x1d4] sm:$0xf]
      %v2986 = vld [vmem:[%s4 + $0x1d8] sm:$0xf]
      %v2987 = vld [vmem:[%s4 + $0x1dc] sm:$0xf]
      %v2988 = vld [vmem:[%s4 + $0x1e0] sm:$0xf]
      %v2989 = vld [vmem:[%s4 + $0x1e4] sm:$0xf]
      %v2990 = vld [vmem:[%s4 + $0x1e8] sm:$0xf]
      %v2991 = vld [vmem:[%s4 + $0x1ec] sm:$0xf]
      %v2992 = vld [vmem:[%s4 + $0x1f0] sm:$0xf]
      %v2993 = vld [vmem:[%s4 + $0x1f4] sm:$0xf]
      %v2994 = vld [vmem:[%s4 + $0x1f8] sm:$0xf]
      %v2995 = vld [vmem:[%s4 + $0x1fc] sm:$0xf]
      %v2996 = vld [vmem:[%s4 + $0x200] sm:$0xf]
      %v2997 = vld [vmem:[%s4 + $0x204] sm:$0xf]
      %v2998 = vld [vmem:[%s4 + $0x208] sm:$0xf]
      %v2999 = vld [vmem:[%s4 + $0x20c] sm:$0xf]
      %v3000 = vld [vmem:[%s4 + $0x210] sm:$0xf]
      %v3001 = vld [vmem:[%s4 + $0x214] sm:$0xf]
      %v3002 = vld [vmem:[%s4 + $0x218] sm:$0xf]
      %v3003 = vld [vmem:[%s4 + $0x21c] sm:$0xf]
      %v3004 = vld [vmem:[%s4 + $0x220] sm:$0xf]
      %v3005 = vld [vmem:[%s4 + $0x224] sm:$0xf]
      %v3006 = vld [vmem:[%s4 + $0x228] sm:$0xf]
      %v3007 = vld [vmem:[%s4 + $0x22c] sm:$0xf]
      %v3008 = vld [vmem:[%s4 + $0x230] sm:$0xf]
      %v3009 = vld [vmem:[%s4 + $0x234] sm:$0xf]
      %v3010 = vld [vmem:[%s4 + $0x238] sm:$0xf]
      %v3011 = vld [vmem:[%s4 + $0x23c] sm:$0xf]
      %v3132 = vunpack.c.l.b16 %v2748
      %v3133 = vunpack.c.h.b16 %v2748
      %v3134 = vunpack.c.l.b16 %v2749
      %v3135 = vunpack.c.h.b16 %v2749
      %v3136 = vunpack.c.l.b16 %v2750
      %v3137 = vunpack.c.h.b16 %v2750
      %v3138 = vunpack.c.l.b16 %v2751
      %v3139 = vunpack.c.h.b16 %v2751
      %v3140 = vunpack.c.l.b16 %v2752
      %v3141 = vunpack.c.l.b16 %v2753
      %v3142 = vunpack.c.h.b16 %v2753
      %v3143 = vunpack.c.l.b16 %v2754
      %v3144 = vunpack.c.h.b16 %v2754
      %v3145 = vunpack.c.l.b16 %v2755
      %v3146 = vunpack.c.h.b16 %v2755
      %v3147 = vunpack.c.l.b16 %v2756
      %v3148 = vunpack.c.h.b16 %v2756
      %v3149 = vunpack.c.l.b16 %v2757
      %v3150 = vunpack.c.l.b16 %v2758
      %v3151 = vunpack.c.h.b16 %v2758
      %v3152 = vunpack.c.l.b16 %v2759
      %v3153 = vunpack.c.h.b16 %v2759
      %v3154 = vunpack.c.l.b16 %v2760
      %v3155 = vunpack.c.h.b16 %v2760
      %v3156 = vunpack.c.l.b16 %v2761
      %v3157 = vunpack.c.h.b16 %v2761
      %v3158 = vunpack.c.l.b16 %v2762
      %v3159 = vunpack.c.l.b16 %v2763
      %v3160 = vunpack.c.h.b16 %v2763
      %v3161 = vunpack.c.l.b16 %v2764
      %v3162 = vunpack.c.h.b16 %v2764
      %v3163 = vunpack.c.l.b16 %v2765
      %v3164 = vunpack.c.h.b16 %v2765
      %v3165 = vunpack.c.l.b16 %v2766
      %v3166 = vunpack.c.h.b16 %v2766
      %v3167 = vunpack.c.l.b16 %v2767
      %v3168 = vunpack.c.l.b16 %v2768
      %v3169 = vunpack.c.h.b16 %v2768
      %v3170 = vunpack.c.l.b16 %v2769
      %v3171 = vunpack.c.h.b16 %v2769
      %v3172 = vunpack.c.l.b16 %v2770
      %v3173 = vunpack.c.h.b16 %v2770
      %v3174 = vunpack.c.l.b16 %v2771
      %v3175 = vunpack.c.h.b16 %v2771
      %v3176 = vunpack.c.l.b16 %v2772
      %v3177 = vunpack.c.l.b16 %v2773
      %v3178 = vunpack.c.h.b16 %v2773
      %v3179 = vunpack.c.l.b16 %v2774
      %v3180 = vunpack.c.h.b16 %v2774
      %v3181 = vunpack.c.l.b16 %v2775
      %v3182 = vunpack.c.h.b16 %v2775
      %v3183 = vunpack.c.l.b16 %v2776
      %v3184 = vunpack.c.h.b16 %v2776
      %v3185 = vunpack.c.l.b16 %v2777
      %v3186 = vunpack.c.l.b16 %v2778
      %v3187 = vunpack.c.h.b16 %v2778
      %v3188 = vunpack.c.l.b16 %v2779
      %v3189 = vunpack.c.h.b16 %v2779
      %v3190 = vunpack.c.l.b16 %v2780
      %v3191 = vunpack.c.h.b16 %v2780
      %v3192 = vunpack.c.l.b16 %v2781
      %v3193 = vunpack.c.h.b16 %v2781
      %v3194 = vunpack.c.l.b16 %v2782
      %v3195 = vunpack.c.l.b16 %v2783
      %v3196 = vunpack.c.h.b16 %v2783
      %v3197 = vunpack.c.l.b16 %v2784
      %v3198 = vunpack.c.h.b16 %v2784
      %v3199 = vunpack.c.l.b16 %v2785
      %v3200 = vunpack.c.h.b16 %v2785
      %v3201 = vunpack.c.l.b16 %v2786
      %v3202 = vunpack.c.h.b16 %v2786
      %v3203 = vunpack.c.l.b16 %v2787
      %v3204 = vunpack.c.l.b16 %v2788
      %v3205 = vunpack.c.h.b16 %v2788
      %v3206 = vunpack.c.l.b16 %v2789
      %v3207 = vunpack.c.h.b16 %v2789
      %v3208 = vunpack.c.l.b16 %v2790
      %v3209 = vunpack.c.h.b16 %v2790
      %v3210 = vunpack.c.l.b16 %v2791
      %v3211 = vunpack.c.h.b16 %v2791
      %v3212 = vunpack.c.l.b16 %v2792
      %v3213 = vunpack.c.l.b16 %v2793
      %v3214 = vunpack.c.h.b16 %v2793
      %v3215 = vunpack.c.l.b16 %v2794
      %v3216 = vunpack.c.h.b16 %v2794
      %v3217 = vunpack.c.l.b16 %v2795
      %v3218 = vunpack.c.h.b16 %v2795
      %v3219 = vunpack.c.l.b16 %v2796
      %v3220 = vunpack.c.h.b16 %v2796
      %v3221 = vunpack.c.l.b16 %v2797
      %v3222 = vunpack.c.l.b16 %v2798
      %v3223 = vunpack.c.h.b16 %v2798
      %v3224 = vunpack.c.l.b16 %v2799
      %v3225 = vunpack.c.h.b16 %v2799
      %v3226 = vunpack.c.l.b16 %v2800
      %v3227 = vunpack.c.h.b16 %v2800
      %v3228 = vunpack.c.l.b16 %v2801
      %v3229 = vunpack.c.h.b16 %v2801
      %v3230 = vunpack.c.l.b16 %v2802
      %v3231 = vunpack.c.l.b16 %v2803
      %v3232 = vunpack.c.h.b16 %v2803
      %v3233 = vunpack.c.l.b16 %v2804
      %v3234 = vunpack.c.h.b16 %v2804
      %v3235 = vunpack.c.l.b16 %v2805
      %v3236 = vunpack.c.h.b16 %v2805
      %v3237 = vunpack.c.l.b16 %v2806
      %v3238 = vunpack.c.h.b16 %v2806
      %v3239 = vunpack.c.l.b16 %v2807
      %v3240 = vunpack.c.l.b16 %v2808
      %v3241 = vunpack.c.h.b16 %v2808
      %v3242 = vunpack.c.l.b16 %v2809
      %v3243 = vunpack.c.h.b16 %v2809
      %v3244 = vunpack.c.l.b16 %v2810
      %v3245 = vunpack.c.h.b16 %v2810
      %v3246 = vunpack.c.l.b16 %v2811
      %v3247 = vunpack.c.h.b16 %v2811
      %v3248 = vunpack.c.l.b16 %v2812
      %v3249 = vunpack.c.l.b16 %v2813
      %v3250 = vunpack.c.h.b16 %v2813
      %v3251 = vunpack.c.l.b16 %v2814
      %v3252 = vunpack.c.h.b16 %v2814
      %v3253 = vunpack.c.l.b16 %v2815
      %v3254 = vunpack.c.h.b16 %v2815
      %v3255 = vunpack.c.l.b16 %v2816
      %v3256 = vunpack.c.h.b16 %v2816
      %v3257 = vunpack.c.l.b16 %v2817
      %v3258 = vunpack.c.l.b16 %v2818
      %v3259 = vunpack.c.h.b16 %v2818
      %v3260 = vunpack.c.l.b16 %v2819
      %v3261 = vunpack.c.h.b16 %v2819
      %v3262 = vunpack.c.l.b16 %v2820
      %v3263 = vunpack.c.h.b16 %v2820
      %v3264 = vunpack.c.l.b16 %v2821
      %v3265 = vunpack.c.h.b16 %v2821
      %v3266 = vunpack.c.l.b16 %v2822
      %v3267 = vunpack.c.l.b16 %v2823
      %v3268 = vunpack.c.h.b16 %v2823
      %v3269 = vunpack.c.l.b16 %v2824
      %v3270 = vunpack.c.h.b16 %v2824
      %v3271 = vunpack.c.l.b16 %v2825
      %v3272 = vunpack.c.h.b16 %v2825
      %v3273 = vunpack.c.l.b16 %v2826
      %v3274 = vunpack.c.h.b16 %v2826
      %v3275 = vunpack.c.l.b16 %v2827
      %v3276 = vunpack.c.l.b16 %v2828
      %v3277 = vunpack.c.h.b16 %v2828
      %v3278 = vunpack.c.l.b16 %v2829
      %v3279 = vunpack.c.h.b16 %v2829
      %v3280 = vunpack.c.l.b16 %v2830
      %v3281 = vunpack.c.h.b16 %v2830
      %v3282 = vunpack.c.l.b16 %v2831
      %v3283 = vunpack.c.h.b16 %v2831
      %v3284 = vunpack.c.l.b16 %v2832
      %v3285 = vunpack.c.l.b16 %v2833
      %v3286 = vunpack.c.h.b16 %v2833
      %v3287 = vunpack.c.l.b16 %v2834
      %v3288 = vunpack.c.h.b16 %v2834
      %v3289 = vunpack.c.l.b16 %v2835
      %v3290 = vunpack.c.h.b16 %v2835
      %v3291 = vunpack.c.l.b16 %v2836
      %v3292 = vunpack.c.h.b16 %v2836
      %v3293 = vunpack.c.l.b16 %v2837
      %v3294 = vunpack.c.l.b16 %v2838
      %v3295 = vunpack.c.h.b16 %v2838
      %v3296 = vunpack.c.l.b16 %v2839
      %v3297 = vunpack.c.h.b16 %v2839
      %v3298 = vunpack.c.l.b16 %v2840
      %v3299 = vunpack.c.h.b16 %v2840
      %v3300 = vunpack.c.l.b16 %v2841
      %v3301 = vunpack.c.h.b16 %v2841
      %v3302 = vunpack.c.l.b16 %v2842
      %v3303 = vunpack.c.l.b16 %v2843
      %v3304 = vunpack.c.h.b16 %v2843
      %v3305 = vunpack.c.l.b16 %v2844
      %v3306 = vunpack.c.h.b16 %v2844
      %v3307 = vunpack.c.l.b16 %v2845
      %v3308 = vunpack.c.h.b16 %v2845
      %v3309 = vunpack.c.l.b16 %v2846
      %v3310 = vunpack.c.h.b16 %v2846
      %v3311 = vunpack.c.l.b16 %v2847
      %v3312 = vunpack.c.l.b16 %v2848
      %v3313 = vunpack.c.h.b16 %v2848
      %v3314 = vunpack.c.l.b16 %v2849
      %v3315 = vunpack.c.h.b16 %v2849
      %v3316 = vunpack.c.l.b16 %v2850
      %v3317 = vunpack.c.h.b16 %v2850
      %v3318 = vunpack.c.l.b16 %v2851
      %v3319 = vunpack.c.h.b16 %v2851
      %v3320 = vunpack.c.l.b16 %v2852
      %v3321 = vunpack.c.l.b16 %v2853
      %v3322 = vunpack.c.h.b16 %v2853
      %v3323 = vunpack.c.l.b16 %v2854
      %v3324 = vunpack.c.h.b16 %v2854
      %v3325 = vunpack.c.l.b16 %v2855
      %v3326 = vunpack.c.h.b16 %v2855
      %v3327 = vunpack.c.l.b16 %v2856
      %v3328 = vunpack.c.h.b16 %v2856
      %v3329 = vunpack.c.l.b16 %v2857
      %v3330 = vunpack.c.l.b16 %v2858
      %v3331 = vunpack.c.h.b16 %v2858
      %v3332 = vunpack.c.l.b16 %v2859
      %v3333 = vunpack.c.h.b16 %v2859
      %v3334 = vunpack.c.l.b16 %v2860
      %v3335 = vunpack.c.h.b16 %v2860
      %v3336 = vunpack.c.l.b16 %v2861
      %v3337 = vunpack.c.h.b16 %v2861
      %v3338 = vunpack.c.l.b16 %v2862
      %v3339 = vunpack.c.l.b16 %v2863
      %v3340 = vunpack.c.h.b16 %v2863
      %v3341 = vunpack.c.l.b16 %v2864
      %v3342 = vunpack.c.h.b16 %v2864
      %v3343 = vunpack.c.l.b16 %v2865
      %v3344 = vunpack.c.h.b16 %v2865
      %v3345 = vunpack.c.l.b16 %v2866
      %v3346 = vunpack.c.h.b16 %v2866
      %v3347 = vunpack.c.l.b16 %v2867
      %v3348 = vpack.c.b16 %v3141, %v3132
      %v3349 = vpack.c.b16 %v3142, %v3133
      %v3350 = vpack.c.b16 %v3143, %v3134
      %v3351 = vpack.c.b16 %v3144, %v3135
      %v3352 = vpack.c.b16 %v3145, %v3136
      %v3353 = vpack.c.b16 %v3146, %v3137
      %v3354 = vpack.c.b16 %v3147, %v3138
      %v3355 = vpack.c.b16 %v3148, %v3139
      %v3356 = vpack.c.b16 %v3149, %v3140
      %v3357 = vpack.c.b16 %v3159, %v3150
      %v3358 = vpack.c.b16 %v3160, %v3151
      %v3359 = vpack.c.b16 %v3161, %v3152
      %v3360 = vpack.c.b16 %v3162, %v3153
      %v3361 = vpack.c.b16 %v3163, %v3154
      %v3362 = vpack.c.b16 %v3164, %v3155
      %v3363 = vpack.c.b16 %v3165, %v3156
      %v3364 = vpack.c.b16 %v3166, %v3157
      %v3365 = vpack.c.b16 %v3167, %v3158
      %v3366 = vpack.c.b16 %v3177, %v3168
      %v3367 = vpack.c.b16 %v3178, %v3169
      %v3368 = vpack.c.b16 %v3179, %v3170
      %v3369 = vpack.c.b16 %v3180, %v3171
      %v3370 = vpack.c.b16 %v3181, %v3172
      %v3371 = vpack.c.b16 %v3182, %v3173
      %v3372 = vpack.c.b16 %v3183, %v3174
      %v3373 = vpack.c.b16 %v3184, %v3175
      %v3374 = vpack.c.b16 %v3185, %v3176
      %v3375 = vpack.c.b16 %v3195, %v3186
      %v3376 = vpack.c.b16 %v3196, %v3187
      %v3377 = vpack.c.b16 %v3197, %v3188
      %v3378 = vpack.c.b16 %v3198, %v3189
      %v3379 = vpack.c.b16 %v3199, %v3190
      %v3380 = vpack.c.b16 %v3200, %v3191
      %v3381 = vpack.c.b16 %v3201, %v3192
      %v3382 = vpack.c.b16 %v3202, %v3193
      %v3383 = vpack.c.b16 %v3203, %v3194
      %v3384 = vpack.c.b16 %v3213, %v3204
      %v3385 = vpack.c.b16 %v3214, %v3205
      %v3386 = vpack.c.b16 %v3215, %v3206
      %v3387 = vpack.c.b16 %v3216, %v3207
      %v3388 = vpack.c.b16 %v3217, %v3208
      %v3389 = vpack.c.b16 %v3218, %v3209
      %v3390 = vpack.c.b16 %v3219, %v3210
      %v3391 = vpack.c.b16 %v3220, %v3211
      %v3392 = vpack.c.b16 %v3221, %v3212
      %v3393 = vpack.c.b16 %v3231, %v3222
      %v3394 = vpack.c.b16 %v3232, %v3223
      %v3395 = vpack.c.b16 %v3233, %v3224
      %v3396 = vpack.c.b16 %v3234, %v3225
      %v3397 = vpack.c.b16 %v3235, %v3226
      %v3398 = vpack.c.b16 %v3236, %v3227
      %v3399 = vpack.c.b16 %v3237, %v3228
      %v3400 = vpack.c.b16 %v3238, %v3229
      %v3401 = vpack.c.b16 %v3239, %v3230
      %v3402 = vpack.c.b16 %v3249, %v3240
      %v3403 = vpack.c.b16 %v3250, %v3241
      %v3404 = vpack.c.b16 %v3251, %v3242
      %v3405 = vpack.c.b16 %v3252, %v3243
      %v3406 = vpack.c.b16 %v3253, %v3244
      %v3407 = vpack.c.b16 %v3254, %v3245
      %v3408 = vpack.c.b16 %v3255, %v3246
      %v3409 = vpack.c.b16 %v3256, %v3247
      %v3410 = vpack.c.b16 %v3257, %v3248
      %v3411 = vpack.c.b16 %v3267, %v3258
      %v3412 = vpack.c.b16 %v3268, %v3259
      %v3413 = vpack.c.b16 %v3269, %v3260
      %v3414 = vpack.c.b16 %v3270, %v3261
      %v3415 = vpack.c.b16 %v3271, %v3262
      %v3416 = vpack.c.b16 %v3272, %v3263
      %v3417 = vpack.c.b16 %v3273, %v3264
      %v3418 = vpack.c.b16 %v3274, %v3265
      %v3419 = vpack.c.b16 %v3275, %v3266
      %v3420 = vpack.c.b16 %v3285, %v3276
      %v3421 = vpack.c.b16 %v3286, %v3277
      %v3422 = vpack.c.b16 %v3287, %v3278
      %v3423 = vpack.c.b16 %v3288, %v3279
      %v3424 = vpack.c.b16 %v3289, %v3280
      %v3425 = vpack.c.b16 %v3290, %v3281
      %v3426 = vpack.c.b16 %v3291, %v3282
      %v3427 = vpack.c.b16 %v3292, %v3283
      %v3428 = vpack.c.b16 %v3293, %v3284
      %v3429 = vpack.c.b16 %v3303, %v3294
      %v3430 = vpack.c.b16 %v3304, %v3295
      %v3431 = vpack.c.b16 %v3305, %v3296
      %v3432 = vpack.c.b16 %v3306, %v3297
      %v3433 = vpack.c.b16 %v3307, %v3298
      %v3434 = vpack.c.b16 %v3308, %v3299
      %v3435 = vpack.c.b16 %v3309, %v3300
      %v3436 = vpack.c.b16 %v3310, %v3301
      %v3437 = vpack.c.b16 %v3311, %v3302
      %v3438 = vpack.c.b16 %v3321, %v3312
      %v3439 = vpack.c.b16 %v3322, %v3313
      %v3440 = vpack.c.b16 %v3323, %v3314
      %v3441 = vpack.c.b16 %v3324, %v3315
      %v3442 = vpack.c.b16 %v3325, %v3316
      %v3443 = vpack.c.b16 %v3326, %v3317
      %v3444 = vpack.c.b16 %v3327, %v3318
      %v3445 = vpack.c.b16 %v3328, %v3319
      %v3446 = vpack.c.b16 %v3329, %v3320
      %v3447 = vpack.c.b16 %v3339, %v3330
      %v3448 = vpack.c.b16 %v3340, %v3331
      %v3449 = vpack.c.b16 %v3341, %v3332
      %v3450 = vpack.c.b16 %v3342, %v3333
      %v3451 = vpack.c.b16 %v3343, %v3334
      %v3452 = vpack.c.b16 %v3344, %v3335
      %v3453 = vpack.c.b16 %v3345, %v3336
      %v3454 = vpack.c.b16 %v3346, %v3337
      %v3455 = vpack.c.b16 %v3347, %v3338
      %v3708 = vunpack.c.l.b16 %v2868
      %v3709 = vunpack.c.l.b16 %v2869
      %v3710 = vunpack.c.l.b16 %v2870
      %v3711 = vunpack.c.l.b16 %v2871
      %v3712 = vunpack.c.l.b16 %v2872
      %v3713 = vunpack.c.l.b16 %v2873
      %v3714 = vunpack.c.l.b16 %v2874
      %v3715 = vunpack.c.l.b16 %v2875
      %v3716 = vunpack.c.l.b16 %v2876
      %v3717 = vunpack.c.l.b16 %v2877
      %v3718 = vunpack.c.l.b16 %v2878
      %v3719 = vunpack.c.l.b16 %v2879
      %v3720 = vunpack.c.l.b16 %v2880
      %v3721 = vunpack.c.l.b16 %v2881
      %v3722 = vunpack.c.l.b16 %v2882
      %v3723 = vunpack.c.l.b16 %v2883
      %v3724 = vunpack.c.l.b16 %v2884
      %v3725 = vunpack.c.l.b16 %v2885
      %v3726 = vunpack.c.l.b16 %v2886
      %v3727 = vunpack.c.l.b16 %v2887
      %v3728 = vunpack.c.l.b16 %v2888
      %v3729 = vunpack.c.l.b16 %v2889
      %v3730 = vunpack.c.l.b16 %v2890
      %v3731 = vunpack.c.l.b16 %v2891
      %v3732 = vunpack.c.l.b16 %v2892
      %v3733 = vunpack.c.l.b16 %v2893
      %v3734 = vunpack.c.l.b16 %v2894
      %v3735 = vunpack.c.l.b16 %v2895
      %v3736 = vunpack.c.l.b16 %v2896
      %v3737 = vunpack.c.l.b16 %v2897
      %v3738 = vunpack.c.l.b16 %v2898
      %v3739 = vunpack.c.l.b16 %v2899
      %v3740 = vunpack.c.l.b16 %v2900
      %v3741 = vunpack.c.l.b16 %v2901
      %v3742 = vunpack.c.l.b16 %v2902
      %v3743 = vunpack.c.l.b16 %v2903
      %v3744 = vunpack.c.l.b16 %v2904
      %v3745 = vunpack.c.l.b16 %v2905
      %v3746 = vunpack.c.l.b16 %v2906
      %v3747 = vunpack.c.l.b16 %v2907
      %v3748 = vunpack.c.l.b16 %v2908
      %v3749 = vunpack.c.l.b16 %v2909
      %v3750 = vunpack.c.l.b16 %v2910
      %v3751 = vunpack.c.l.b16 %v2911
      %v3752 = vunpack.c.l.b16 %v2912
      %v3753 = vunpack.c.l.b16 %v2913
      %v3754 = vunpack.c.l.b16 %v2914
      %v3755 = vunpack.c.l.b16 %v2915
      %v3756 = vunpack.c.l.b16 %v2916
      %v3757 = vunpack.c.l.b16 %v2917
      %v3758 = vunpack.c.l.b16 %v2918
      %v3759 = vunpack.c.l.b16 %v2919
      %v3760 = vunpack.c.l.b16 %v2920
      %v3761 = vunpack.c.l.b16 %v2921
      %v3762 = vunpack.c.l.b16 %v2922
      %v3763 = vunpack.c.l.b16 %v2923
      %v3764 = vunpack.c.l.b16 %v2924
      %v3765 = vunpack.c.l.b16 %v2925
      %v3766 = vunpack.c.l.b16 %v2926
      %v3767 = vunpack.c.l.b16 %v2927
      %v3768 = vunpack.c.l.b16 %v2928
      %v3769 = vunpack.c.l.b16 %v2929
      %v3770 = vunpack.c.l.b16 %v2930
      %v3771 = vunpack.c.l.b16 %v2931
      %v3772 = vunpack.c.l.b16 %v2932
      %v3773 = vunpack.c.l.b16 %v2933
      %v3774 = vunpack.c.l.b16 %v2934
      %v3775 = vunpack.c.l.b16 %v2935
      %v3776 = vunpack.c.l.b16 %v2936
      %v3777 = vunpack.c.l.b16 %v2937
      %v3778 = vunpack.c.l.b16 %v2938
      %v3779 = vunpack.c.l.b16 %v2939
      %v3780 = vunpack.c.l.b16 %v2940
      %v3781 = vunpack.c.l.b16 %v2941
      %v3782 = vunpack.c.l.b16 %v2942
      %v3783 = vunpack.c.l.b16 %v2943
      %v3784 = vunpack.c.l.b16 %v2944
      %v3785 = vunpack.c.l.b16 %v2945
      %v3786 = vunpack.c.l.b16 %v2946
      %v3787 = vunpack.c.l.b16 %v2947
      %v3788 = vunpack.c.l.b16 %v2948
      %v3789 = vunpack.c.l.b16 %v2949
      %v3790 = vunpack.c.l.b16 %v2950
      %v3791 = vunpack.c.l.b16 %v2951
      %v3792 = vunpack.c.l.b16 %v2952
      %v3793 = vunpack.c.l.b16 %v2953
      %v3794 = vunpack.c.l.b16 %v2954
      %v3795 = vunpack.c.l.b16 %v2955
      %v3796 = vunpack.c.l.b16 %v2956
      %v3797 = vunpack.c.l.b16 %v2957
      %v3798 = vunpack.c.l.b16 %v2958
      %v3799 = vunpack.c.l.b16 %v2959
      %v3800 = vunpack.c.l.b16 %v2960
      %v3801 = vunpack.c.l.b16 %v2961
      %v3802 = vunpack.c.l.b16 %v2962
      %v3803 = vunpack.c.l.b16 %v2963
      %v3804 = vunpack.c.l.b16 %v2964
      %v3805 = vunpack.c.l.b16 %v2965
      %v3806 = vunpack.c.l.b16 %v2966
      %v3807 = vunpack.c.l.b16 %v2967
      %v3808 = vunpack.c.l.b16 %v2968
      %v3809 = vunpack.c.l.b16 %v2969
      %v3810 = vunpack.c.l.b16 %v2970
      %v3811 = vunpack.c.l.b16 %v2971
      %v3812 = vunpack.c.l.b16 %v2972
      %v3813 = vunpack.c.l.b16 %v2973
      %v3814 = vunpack.c.l.b16 %v2974
      %v3815 = vunpack.c.l.b16 %v2975
      %v3816 = vunpack.c.l.b16 %v2976
      %v3817 = vunpack.c.l.b16 %v2977
      %v3818 = vunpack.c.l.b16 %v2978
      %v3819 = vunpack.c.l.b16 %v2979
      %v3820 = vunpack.c.l.b16 %v2980
      %v3821 = vunpack.c.l.b16 %v2981
      %v3822 = vunpack.c.l.b16 %v2982
      %v3823 = vunpack.c.l.b16 %v2983
      %v3824 = vunpack.c.l.b16 %v2984
      %v3825 = vunpack.c.l.b16 %v2985
      %v3826 = vunpack.c.l.b16 %v2986
      %v3827 = vunpack.c.l.b16 %v2987
      %v3828 = vunpack.c.l.b16 %v2988
      %v3829 = vunpack.c.l.b16 %v2989
      %v3830 = vunpack.c.l.b16 %v2990
      %v3831 = vunpack.c.l.b16 %v2991
      %v3832 = vunpack.c.l.b16 %v2992
      %v3833 = vunpack.c.l.b16 %v2993
      %v3834 = vunpack.c.l.b16 %v2994
      %v3835 = vunpack.c.l.b16 %v2995
      %v3836 = vunpack.c.l.b16 %v2996
      %v3837 = vunpack.c.l.b16 %v2997
      %v3838 = vunpack.c.l.b16 %v2998
      %v3839 = vunpack.c.l.b16 %v2999
      %v3840 = vunpack.c.l.b16 %v3000
      %v3841 = vunpack.c.l.b16 %v3001
      %v3842 = vunpack.c.l.b16 %v3002
      %v3843 = vunpack.c.l.b16 %v3003
      %v3844 = vunpack.c.l.b16 %v3004
      %v3845 = vunpack.c.l.b16 %v3005
      %v3846 = vunpack.c.l.b16 %v3006
      %v3847 = vunpack.c.l.b16 %v3007
      %v3848 = vunpack.c.l.b16 %v3008
      %v3849 = vunpack.c.l.b16 %v3009
      %v3850 = vunpack.c.l.b16 %v3010
      %v3851 = vunpack.c.l.b16 %v3011
      %v3852 = vpack.c.b16 %v3709, %v3708
      %v3853 = vpack.c.b16 %v3711, %v3710
      %v3854 = vpack.c.b16 %v3713, %v3712
      %v3855 = vpack.c.b16 %v3715, %v3714
      %v3856 = vpack.c.b16 %v3717, %v3716
      %v3857 = vpack.c.b16 %v3719, %v3718
      %v3858 = vpack.c.b16 %v3721, %v3720
      %v3859 = vpack.c.b16 %v3723, %v3722
      %v3860 = vpack.c.b16 %v3725, %v3724
      %v3861 = vpack.c.b16 %v3727, %v3726
      %v3862 = vpack.c.b16 %v3729, %v3728
      %v3863 = vpack.c.b16 %v3731, %v3730
      %v3864 = vpack.c.b16 %v3733, %v3732
      %v3865 = vpack.c.b16 %v3735, %v3734
      %v3866 = vpack.c.b16 %v3737, %v3736
      %v3867 = vpack.c.b16 %v3739, %v3738
      %v3868 = vpack.c.b16 %v3741, %v3740
      %v3869 = vpack.c.b16 %v3743, %v3742
      %v3870 = vpack.c.b16 %v3745, %v3744
      %v3871 = vpack.c.b16 %v3747, %v3746
      %v3872 = vpack.c.b16 %v3749, %v3748
      %v3873 = vpack.c.b16 %v3751, %v3750
      %v3874 = vpack.c.b16 %v3753, %v3752
      %v3875 = vpack.c.b16 %v3755, %v3754
      %v3876 = vpack.c.b16 %v3757, %v3756
      %v3877 = vpack.c.b16 %v3759, %v3758
      %v3878 = vpack.c.b16 %v3761, %v3760
      %v3879 = vpack.c.b16 %v3763, %v3762
      %v3880 = vpack.c.b16 %v3765, %v3764
      %v3881 = vpack.c.b16 %v3767, %v3766
      %v3882 = vpack.c.b16 %v3769, %v3768
      %v3883 = vpack.c.b16 %v3771, %v3770
      %v3884 = vpack.c.b16 %v3773, %v3772
      %v3885 = vpack.c.b16 %v3775, %v3774
      %v3886 = vpack.c.b16 %v3777, %v3776
      %v3887 = vpack.c.b16 %v3779, %v3778
      %v3888 = vpack.c.b16 %v3781, %v3780
      %v3889 = vpack.c.b16 %v3783, %v3782
      %v3890 = vpack.c.b16 %v3785, %v3784
      %v3891 = vpack.c.b16 %v3787, %v3786
      %v3892 = vpack.c.b16 %v3789, %v3788
      %v3893 = vpack.c.b16 %v3791, %v3790
      %v3894 = vpack.c.b16 %v3793, %v3792
      %v3895 = vpack.c.b16 %v3795, %v3794
      %v3896 = vpack.c.b16 %v3797, %v3796
      %v3897 = vpack.c.b16 %v3799, %v3798
      %v3898 = vpack.c.b16 %v3801, %v3800
      %v3899 = vpack.c.b16 %v3803, %v3802
      %v3900 = vpack.c.b16 %v3805, %v3804
      %v3901 = vpack.c.b16 %v3807, %v3806
      %v3902 = vpack.c.b16 %v3809, %v3808
      %v3903 = vpack.c.b16 %v3811, %v3810
      %v3904 = vpack.c.b16 %v3813, %v3812
      %v3905 = vpack.c.b16 %v3815, %v3814
      %v3906 = vpack.c.b16 %v3817, %v3816
      %v3907 = vpack.c.b16 %v3819, %v3818
      %v3908 = vpack.c.b16 %v3821, %v3820
      %v3909 = vpack.c.b16 %v3823, %v3822
      %v3910 = vpack.c.b16 %v3825, %v3824
      %v3911 = vpack.c.b16 %v3827, %v3826
      %v3912 = vpack.c.b16 %v3829, %v3828
      %v3913 = vpack.c.b16 %v3831, %v3830
      %v3914 = vpack.c.b16 %v3833, %v3832
      %v3915 = vpack.c.b16 %v3835, %v3834
      %v3916 = vpack.c.b16 %v3837, %v3836
      %v3917 = vpack.c.b16 %v3839, %v3838
      %v3918 = vpack.c.b16 %v3841, %v3840
      %v3919 = vpack.c.b16 %v3843, %v3842
      %v3920 = vpack.c.b16 %v3845, %v3844
      %v3921 = vpack.c.b16 %v3847, %v3846
      %v3922 = vpack.c.b16 %v3849, %v3848
      %v3923 = vpack.c.b16 %v3851, %v3850
      %3996 = vmatpush.bf16.msra.mxu0 %v3859
      %3997 = vmatpush.bf16.msra.mxu0 %v3858
      %3998 = vmatpush.bf16.msra.mxu0 %v3857
      %3999 = vmatpush.bf16.msra.mxu0 %v3856
      %4000 = vmatpush.bf16.msra.mxu0 %v3855
      %4001 = vmatpush.bf16.msra.mxu0 %v3854
      %4002 = vmatpush.bf16.msra.mxu0 %v3853
      %4003 = vmatpush.bf16.msra.mxu0 %v3852
      %4004 = vmatmul.bf16.gmra.mxu0 %v3348
      %v4005 = vpop.f32.mrf.mxu0
      %v4006 = vadd.f32 0.0, %v4005
      %v4007 = vpop.f32.mrf.mxu0
      %v4008 = vadd.f32 0.0, %v4007
      %4009 = vmatmul.bf16.gmra.mxu0 %v3357
      %v4010 = vpop.f32.mrf.mxu0
      %v4011 = vpop.f32.mrf.mxu0
      %v4012 = vadd.f32 0.0, %v4011
      %4013 = vmatmul.bf16.gmra.mxu0 %v3366
      %v4014 = vpop.f32.mrf.mxu0
      %v4015 = vadd.f32 0.0, %v4014
      %v4016 = vpop.f32.mrf.mxu0
      %4017 = vmatmul.bf16.gmra.mxu0 %v3375
      %v4018 = vpop.f32.mrf.mxu0
      %v4019 = vadd.f32 0.0, %v4018
      %v4020 = vpop.f32.mrf.mxu0
      %v4021 = vadd.f32 0.0, %v4020
      %4022 = vmatmul.bf16.gmra.mxu0 %v3384
      %v4023 = vpop.f32.mrf.mxu0
      %v4024 = vpop.f32.mrf.mxu0
      %v4025 = vadd.f32 0.0, %v4024
      %4026 = vmatmul.bf16.gmra.mxu0 %v3393
      %v4027 = vpop.f32.mrf.mxu0
      %v4028 = vadd.f32 0.0, %v4027
      %v4029 = vpop.f32.mrf.mxu0
      %4030 = vmatmul.bf16.gmra.mxu0 %v3402
      %v4031 = vpop.f32.mrf.mxu0
      %v4032 = vadd.f32 0.0, %v4031
      %v4033 = vpop.f32.mrf.mxu0
      %v4034 = vadd.f32 0.0, %v4033
      %4035 = vmatmul.bf16.gmra.mxu0 %v3411
      %v4036 = vpop.f32.mrf.mxu0
      %v4037 = vpop.f32.mrf.mxu0
      %v4038 = vadd.f32 0.0, %v4037
      %4039 = vmatmul.bf16.gmra.mxu0 %v3420
      %v4040 = vpop.f32.mrf.mxu0
      %v4041 = vadd.f32 0.0, %v4040
      %v4042 = vpop.f32.mrf.mxu0
      %4043 = vmatmul.bf16.gmra.mxu0 %v3429
      %v4044 = vpop.f32.mrf.mxu0
      %v4045 = vadd.f32 0.0, %v4044
      %v4046 = vpop.f32.mrf.mxu0
      %v4047 = vadd.f32 0.0, %v4046
      %4048 = vmatmul.bf16.gmra.mxu0 %v3438
      %v4049 = vpop.f32.mrf.mxu0
      %v4050 = vpop.f32.mrf.mxu0
      %v4051 = vadd.f32 0.0, %v4050
      %4052 = vmatmul.bf16.gmra.mxu0 %v3447
      %v4053 = vpop.f32.mrf.mxu0
      %v4054 = vadd.f32 0.0, %v4053
      %v4055 = vpop.f32.mrf.mxu0
      %4056 = vdwg.mxu0
      %4057 = vmatpush.bf16.msra.mxu0 %v3867
      %4058 = vmatpush.bf16.msra.mxu0 %v3866
      %4059 = vmatpush.bf16.msra.mxu0 %v3865
      %4060 = vmatpush.bf16.msra.mxu0 %v3864
      %4061 = vmatpush.bf16.msra.mxu0 %v3863
      %4062 = vmatpush.bf16.msra.mxu0 %v3862
      %4063 = vmatpush.bf16.msra.mxu0 %v3861
      %4064 = vmatpush.bf16.msra.mxu0 %v3860
      %4065 = vmatmul.bf16.gmra.mxu0 %v3349
      %v4066 = vpop.f32.mrf.mxu0
      %v4067 = vadd.f32 %v4006, %v4066
      %v4068 = vpop.f32.mrf.mxu0
      %v4069 = vadd.f32 %v4008, %v4068
      %4070 = vmatmul.bf16.gmra.mxu0 %v3358
      %v4071 = vpop.f32.mrf.mxu0
      %v4072 = vpop.f32.mrf.mxu0
      %v4073 = vadd.f32 %v4012, %v4072
      %4074 = vmatmul.bf16.gmra.mxu0 %v3367
      %v4075 = vpop.f32.mrf.mxu0
      %v4076 = vadd.f32 %v4015, %v4075
      %v4077 = vpop.f32.mrf.mxu0
      %4078 = vmatmul.bf16.gmra.mxu0 %v3376
      %v4079 = vpop.f32.mrf.mxu0
      %v4080 = vadd.f32 %v4019, %v4079
      %v4081 = vpop.f32.mrf.mxu0
      %v4082 = vadd.f32 %v4021, %v4081
      %4083 = vmatmul.bf16.gmra.mxu0 %v3385
      %v4084 = vpop.f32.mrf.mxu0
      %v4085 = vpop.f32.mrf.mxu0
      %v4086 = vadd.f32 %v4025, %v4085
      %4087 = vmatmul.bf16.gmra.mxu0 %v3394
      %v4088 = vpop.f32.mrf.mxu0
      %v4089 = vadd.f32 %v4028, %v4088
      %v4090 = vpop.f32.mrf.mxu0
      %4091 = vmatmul.bf16.gmra.mxu0 %v3403
      %v4092 = vpop.f32.mrf.mxu0
      %v4093 = vadd.f32 %v4032, %v4092
      %v4094 = vpop.f32.mrf.mxu0
      %v4095 = vadd.f32 %v4034, %v4094
      %4096 = vmatmul.bf16.gmra.mxu0 %v3412
      %v4097 = vpop.f32.mrf.mxu0
      %v4098 = vpop.f32.mrf.mxu0
      %v4099 = vadd.f32 %v4038, %v4098
      %4100 = vmatmul.bf16.gmra.mxu0 %v3421
      %v4101 = vpop.f32.mrf.mxu0
      %v4102 = vadd.f32 %v4041, %v4101
      %v4103 = vpop.f32.mrf.mxu0
      %4104 = vmatmul.bf16.gmra.mxu0 %v3430
      %v4105 = vpop.f32.mrf.mxu0
      %v4106 = vadd.f32 %v4045, %v4105
      %v4107 = vpop.f32.mrf.mxu0
      %v4108 = vadd.f32 %v4047, %v4107
      %4109 = vmatmul.bf16.gmra.mxu0 %v3439
      %v4110 = vpop.f32.mrf.mxu0
      %v4111 = vpop.f32.mrf.mxu0
      %v4112 = vadd.f32 %v4051, %v4111
      %4113 = vmatmul.bf16.gmra.mxu0 %v3448
      %v4114 = vpop.f32.mrf.mxu0
      %v4115 = vadd.f32 %v4054, %v4114
      %v4116 = vpop.f32.mrf.mxu0
      %4117 = vdwg.mxu0
      %4118 = vmatpush.bf16.msra.mxu0 %v3875
      %4119 = vmatpush.bf16.msra.mxu0 %v3874
      %4120 = vmatpush.bf16.msra.mxu0 %v3873
      %4121 = vmatpush.bf16.msra.mxu0 %v3872
      %4122 = vmatpush.bf16.msra.mxu0 %v3871
      %4123 = vmatpush.bf16.msra.mxu0 %v3870
      %4124 = vmatpush.bf16.msra.mxu0 %v3869
      %4125 = vmatpush.bf16.msra.mxu0 %v3868
      %4126 = vmatmul.bf16.gmra.mxu0 %v3350
      %v4127 = vpop.f32.mrf.mxu0
      %v4128 = vadd.f32 %v4067, %v4127
      %v4129 = vpop.f32.mrf.mxu0
      %v4130 = vadd.f32 %v4069, %v4129
      %4131 = vmatmul.bf16.gmra.mxu0 %v3359
      %v4132 = vpop.f32.mrf.mxu0
      %v4133 = vpop.f32.mrf.mxu0
      %v4134 = vadd.f32 %v4073, %v4133
      %4135 = vmatmul.bf16.gmra.mxu0 %v3368
      %v4136 = vpop.f32.mrf.mxu0
      %v4137 = vadd.f32 %v4076, %v4136
      %v4138 = vpop.f32.mrf.mxu0
      %4139 = vmatmul.bf16.gmra.mxu0 %v3377
      %v4140 = vpop.f32.mrf.mxu0
      %v4141 = vadd.f32 %v4080, %v4140
      %v4142 = vpop.f32.mrf.mxu0
      %v4143 = vadd.f32 %v4082, %v4142
      %4144 = vmatmul.bf16.gmra.mxu0 %v3386
      %v4145 = vpop.f32.mrf.mxu0
      %v4146 = vpop.f32.mrf.mxu0
      %v4147 = vadd.f32 %v4086, %v4146
      %4148 = vmatmul.bf16.gmra.mxu0 %v3395
      %v4149 = vpop.f32.mrf.mxu0
      %v4150 = vadd.f32 %v4089, %v4149
      %v4151 = vpop.f32.mrf.mxu0
      %4152 = vmatmul.bf16.gmra.mxu0 %v3404
      %v4153 = vpop.f32.mrf.mxu0
      %v4154 = vadd.f32 %v4093, %v4153
      %v4155 = vpop.f32.mrf.mxu0
      %v4156 = vadd.f32 %v4095, %v4155
      %4157 = vmatmul.bf16.gmra.mxu0 %v3413
      %v4158 = vpop.f32.mrf.mxu0
      %v4159 = vpop.f32.mrf.mxu0
      %v4160 = vadd.f32 %v4099, %v4159
      %4161 = vmatmul.bf16.gmra.mxu0 %v3422
      %v4162 = vpop.f32.mrf.mxu0
      %v4163 = vadd.f32 %v4102, %v4162
      %v4164 = vpop.f32.mrf.mxu0
      %4165 = vmatmul.bf16.gmra.mxu0 %v3431
      %v4166 = vpop.f32.mrf.mxu0
      %v4167 = vadd.f32 %v4106, %v4166
      %v4168 = vpop.f32.mrf.mxu0
      %v4169 = vadd.f32 %v4108, %v4168
      %4170 = vmatmul.bf16.gmra.mxu0 %v3440
      %v4171 = vpop.f32.mrf.mxu0
      %v4172 = vpop.f32.mrf.mxu0
      %v4173 = vadd.f32 %v4112, %v4172
      %4174 = vmatmul.bf16.gmra.mxu0 %v3449
      %v4175 = vpop.f32.mrf.mxu0
      %v4176 = vadd.f32 %v4115, %v4175
      %v4177 = vpop.f32.mrf.mxu0
      %4178 = vdwg.mxu0
      %4179 = vmatpush.bf16.msra.mxu0 %v3883
      %4180 = vmatpush.bf16.msra.mxu0 %v3882
      %4181 = vmatpush.bf16.msra.mxu0 %v3881
      %4182 = vmatpush.bf16.msra.mxu0 %v3880
      %4183 = vmatpush.bf16.msra.mxu0 %v3879
      %4184 = vmatpush.bf16.msra.mxu0 %v3878
      %4185 = vmatpush.bf16.msra.mxu0 %v3877
      %4186 = vmatpush.bf16.msra.mxu0 %v3876
      %4187 = vmatmul.bf16.gmra.mxu0 %v3351
      %v4188 = vpop.f32.mrf.mxu0
      %v4189 = vadd.f32 %v4128, %v4188
      %v4190 = vpop.f32.mrf.mxu0
      %v4191 = vadd.f32 %v4130, %v4190
      %4192 = vmatmul.bf16.gmra.mxu0 %v3360
      %v4193 = vpop.f32.mrf.mxu0
      %v4194 = vpop.f32.mrf.mxu0
      %v4195 = vadd.f32 %v4134, %v4194
      %4196 = vmatmul.bf16.gmra.mxu0 %v3369
      %v4197 = vpop.f32.mrf.mxu0
      %v4198 = vadd.f32 %v4137, %v4197
      %v4199 = vpop.f32.mrf.mxu0
      %4200 = vmatmul.bf16.gmra.mxu0 %v3378
      %v4201 = vpop.f32.mrf.mxu0
      %v4202 = vadd.f32 %v4141, %v4201
      %v4203 = vpop.f32.mrf.mxu0
      %v4204 = vadd.f32 %v4143, %v4203
      %4205 = vmatmul.bf16.gmra.mxu0 %v3387
      %v4206 = vpop.f32.mrf.mxu0
      %v4207 = vpop.f32.mrf.mxu0
      %v4208 = vadd.f32 %v4147, %v4207
      %4209 = vmatmul.bf16.gmra.mxu0 %v3396
      %v4210 = vpop.f32.mrf.mxu0
      %v4211 = vadd.f32 %v4150, %v4210
      %v4212 = vpop.f32.mrf.mxu0
      %4213 = vmatmul.bf16.gmra.mxu0 %v3405
      %v4214 = vpop.f32.mrf.mxu0
      %v4215 = vadd.f32 %v4154, %v4214
      %v4216 = vpop.f32.mrf.mxu0
      %v4217 = vadd.f32 %v4156, %v4216
      %4218 = vmatmul.bf16.gmra.mxu0 %v3414
      %v4219 = vpop.f32.mrf.mxu0
      %v4220 = vpop.f32.mrf.mxu0
      %v4221 = vadd.f32 %v4160, %v4220
      %4222 = vmatmul.bf16.gmra.mxu0 %v3423
      %v4223 = vpop.f32.mrf.mxu0
      %v4224 = vadd.f32 %v4163, %v4223
      %v4225 = vpop.f32.mrf.mxu0
      %4226 = vmatmul.bf16.gmra.mxu0 %v3432
      %v4227 = vpop.f32.mrf.mxu0
      %v4228 = vadd.f32 %v4167, %v4227
      %v4229 = vpop.f32.mrf.mxu0
      %v4230 = vadd.f32 %v4169, %v4229
      %4231 = vmatmul.bf16.gmra.mxu0 %v3441
      %v4232 = vpop.f32.mrf.mxu0
      %v4233 = vpop.f32.mrf.mxu0
      %v4234 = vadd.f32 %v4173, %v4233
      %4235 = vmatmul.bf16.gmra.mxu0 %v3450
      %v4236 = vpop.f32.mrf.mxu0
      %v4237 = vadd.f32 %v4176, %v4236
      %v4238 = vpop.f32.mrf.mxu0
      %4239 = vdwg.mxu0
      %4240 = vmatpush.bf16.msra.mxu0 %v3891
      %4241 = vmatpush.bf16.msra.mxu0 %v3890
      %4242 = vmatpush.bf16.msra.mxu0 %v3889
      %4243 = vmatpush.bf16.msra.mxu0 %v3888
      %4244 = vmatpush.bf16.msra.mxu0 %v3887
      %4245 = vmatpush.bf16.msra.mxu0 %v3886
      %4246 = vmatpush.bf16.msra.mxu0 %v3885
      %4247 = vmatpush.bf16.msra.mxu0 %v3884
      %4248 = vmatmul.bf16.gmra.mxu0 %v3352
      %v4249 = vpop.f32.mrf.mxu0
      %v4250 = vadd.f32 %v4189, %v4249
      %v4251 = vpop.f32.mrf.mxu0
      %v4252 = vadd.f32 %v4191, %v4251
      %4253 = vmatmul.bf16.gmra.mxu0 %v3361
      %v4254 = vpop.f32.mrf.mxu0
      %v4255 = vpop.f32.mrf.mxu0
      %v4256 = vadd.f32 %v4195, %v4255
      %4257 = vmatmul.bf16.gmra.mxu0 %v3370
      %v4258 = vpop.f32.mrf.mxu0
      %v4259 = vadd.f32 %v4198, %v4258
      %v4260 = vpop.f32.mrf.mxu0
      %4261 = vmatmul.bf16.gmra.mxu0 %v3379
      %v4262 = vpop.f32.mrf.mxu0
      %v4263 = vadd.f32 %v4202, %v4262
      %v4264 = vpop.f32.mrf.mxu0
      %v4265 = vadd.f32 %v4204, %v4264
      %4266 = vmatmul.bf16.gmra.mxu0 %v3388
      %v4267 = vpop.f32.mrf.mxu0
      %v4268 = vpop.f32.mrf.mxu0
      %v4269 = vadd.f32 %v4208, %v4268
      %4270 = vmatmul.bf16.gmra.mxu0 %v3397
      %v4271 = vpop.f32.mrf.mxu0
      %v4272 = vadd.f32 %v4211, %v4271
      %v4273 = vpop.f32.mrf.mxu0
      %4274 = vmatmul.bf16.gmra.mxu0 %v3406
      %v4275 = vpop.f32.mrf.mxu0
      %v4276 = vadd.f32 %v4215, %v4275
      %v4277 = vpop.f32.mrf.mxu0
      %v4278 = vadd.f32 %v4217, %v4277
      %4279 = vmatmul.bf16.gmra.mxu0 %v3415
      %v4280 = vpop.f32.mrf.mxu0
      %v4281 = vpop.f32.mrf.mxu0
      %v4282 = vadd.f32 %v4221, %v4281
      %4283 = vmatmul.bf16.gmra.mxu0 %v3424
      %v4284 = vpop.f32.mrf.mxu0
      %v4285 = vadd.f32 %v4224, %v4284
      %v4286 = vpop.f32.mrf.mxu0
      %4287 = vmatmul.bf16.gmra.mxu0 %v3433
      %v4288 = vpop.f32.mrf.mxu0
      %v4289 = vadd.f32 %v4228, %v4288
      %v4290 = vpop.f32.mrf.mxu0
      %v4291 = vadd.f32 %v4230, %v4290
      %4292 = vmatmul.bf16.gmra.mxu0 %v3442
      %v4293 = vpop.f32.mrf.mxu0
      %v4294 = vpop.f32.mrf.mxu0
      %v4295 = vadd.f32 %v4234, %v4294
      %4296 = vmatmul.bf16.gmra.mxu0 %v3451
      %v4297 = vpop.f32.mrf.mxu0
      %v4298 = vadd.f32 %v4237, %v4297
      %v4299 = vpop.f32.mrf.mxu0
      %4300 = vdwg.mxu0
      %4301 = vmatpush.bf16.msra.mxu0 %v3899
      %4302 = vmatpush.bf16.msra.mxu0 %v3898
      %4303 = vmatpush.bf16.msra.mxu0 %v3897
      %4304 = vmatpush.bf16.msra.mxu0 %v3896
      %4305 = vmatpush.bf16.msra.mxu0 %v3895
      %4306 = vmatpush.bf16.msra.mxu0 %v3894
      %4307 = vmatpush.bf16.msra.mxu0 %v3893
      %4308 = vmatpush.bf16.msra.mxu0 %v3892
      %4309 = vmatmul.bf16.gmra.mxu0 %v3353
      %v4310 = vpop.f32.mrf.mxu0
      %v4311 = vadd.f32 %v4250, %v4310
      %v4312 = vpop.f32.mrf.mxu0
      %v4313 = vadd.f32 %v4252, %v4312
      %4314 = vmatmul.bf16.gmra.mxu0 %v3362
      %v4315 = vpop.f32.mrf.mxu0
      %v4316 = vpop.f32.mrf.mxu0
      %v4317 = vadd.f32 %v4256, %v4316
      %4318 = vmatmul.bf16.gmra.mxu0 %v3371
      %v4319 = vpop.f32.mrf.mxu0
      %v4320 = vadd.f32 %v4259, %v4319
      %v4321 = vpop.f32.mrf.mxu0
      %4322 = vmatmul.bf16.gmra.mxu0 %v3380
      %v4323 = vpop.f32.mrf.mxu0
      %v4324 = vadd.f32 %v4263, %v4323
      %v4325 = vpop.f32.mrf.mxu0
      %v4326 = vadd.f32 %v4265, %v4325
      %4327 = vmatmul.bf16.gmra.mxu0 %v3389
      %v4328 = vpop.f32.mrf.mxu0
      %v4329 = vpop.f32.mrf.mxu0
      %v4330 = vadd.f32 %v4269, %v4329
      %4331 = vmatmul.bf16.gmra.mxu0 %v3398
      %v4332 = vpop.f32.mrf.mxu0
      %v4333 = vadd.f32 %v4272, %v4332
      %v4334 = vpop.f32.mrf.mxu0
      %4335 = vmatmul.bf16.gmra.mxu0 %v3407
      %v4336 = vpop.f32.mrf.mxu0
      %v4337 = vadd.f32 %v4276, %v4336
      %v4338 = vpop.f32.mrf.mxu0
      %v4339 = vadd.f32 %v4278, %v4338
      %4340 = vmatmul.bf16.gmra.mxu0 %v3416
      %v4341 = vpop.f32.mrf.mxu0
      %v4342 = vpop.f32.mrf.mxu0
      %v4343 = vadd.f32 %v4282, %v4342
      %4344 = vmatmul.bf16.gmra.mxu0 %v3425
      %v4345 = vpop.f32.mrf.mxu0
      %v4346 = vadd.f32 %v4285, %v4345
      %v4347 = vpop.f32.mrf.mxu0
      %4348 = vmatmul.bf16.gmra.mxu0 %v3434
      %v4349 = vpop.f32.mrf.mxu0
      %v4350 = vadd.f32 %v4289, %v4349
      %v4351 = vpop.f32.mrf.mxu0
      %v4352 = vadd.f32 %v4291, %v4351
      %4353 = vmatmul.bf16.gmra.mxu0 %v3443
      %v4354 = vpop.f32.mrf.mxu0
      %v4355 = vpop.f32.mrf.mxu0
      %v4356 = vadd.f32 %v4295, %v4355
      %4357 = vmatmul.bf16.gmra.mxu0 %v3452
      %v4358 = vpop.f32.mrf.mxu0
      %v4359 = vadd.f32 %v4298, %v4358
      %v4360 = vpop.f32.mrf.mxu0
      %4361 = vdwg.mxu0
      %4362 = vmatpush.bf16.msra.mxu0 %v3907
      %4363 = vmatpush.bf16.msra.mxu0 %v3906
      %4364 = vmatpush.bf16.msra.mxu0 %v3905
      %4365 = vmatpush.bf16.msra.mxu0 %v3904
      %4366 = vmatpush.bf16.msra.mxu0 %v3903
      %4367 = vmatpush.bf16.msra.mxu0 %v3902
      %4368 = vmatpush.bf16.msra.mxu0 %v3901
      %4369 = vmatpush.bf16.msra.mxu0 %v3900
      %4370 = vmatmul.bf16.gmra.mxu0 %v3354
      %v4371 = vpop.f32.mrf.mxu0
      %v4372 = vadd.f32 %v4311, %v4371
      %v4373 = vpop.f32.mrf.mxu0
      %v4374 = vadd.f32 %v4313, %v4373
      %4375 = vmatmul.bf16.gmra.mxu0 %v3363
      %v4376 = vpop.f32.mrf.mxu0
      %v4377 = vpop.f32.mrf.mxu0
      %v4378 = vadd.f32 %v4317, %v4377
      %4379 = vmatmul.bf16.gmra.mxu0 %v3372
      %v4380 = vpop.f32.mrf.mxu0
      %v4381 = vadd.f32 %v4320, %v4380
      %v4382 = vpop.f32.mrf.mxu0
      %4383 = vmatmul.bf16.gmra.mxu0 %v3381
      %v4384 = vpop.f32.mrf.mxu0
      %v4385 = vadd.f32 %v4324, %v4384
      %v4386 = vpop.f32.mrf.mxu0
      %v4387 = vadd.f32 %v4326, %v4386
      %4388 = vmatmul.bf16.gmra.mxu0 %v3390
      %v4389 = vpop.f32.mrf.mxu0
      %v4390 = vpop.f32.mrf.mxu0
      %v4391 = vadd.f32 %v4330, %v4390
      %4392 = vmatmul.bf16.gmra.mxu0 %v3399
      %v4393 = vpop.f32.mrf.mxu0
      %v4394 = vadd.f32 %v4333, %v4393
      %v4395 = vpop.f32.mrf.mxu0
      %4396 = vmatmul.bf16.gmra.mxu0 %v3408
      %v4397 = vpop.f32.mrf.mxu0
      %v4398 = vadd.f32 %v4337, %v4397
      %v4399 = vpop.f32.mrf.mxu0
      %v4400 = vadd.f32 %v4339, %v4399
      %4401 = vmatmul.bf16.gmra.mxu0 %v3417
      %v4402 = vpop.f32.mrf.mxu0
      %v4403 = vpop.f32.mrf.mxu0
      %v4404 = vadd.f32 %v4343, %v4403
      %4405 = vmatmul.bf16.gmra.mxu0 %v3426
      %v4406 = vpop.f32.mrf.mxu0
      %v4407 = vadd.f32 %v4346, %v4406
      %v4408 = vpop.f32.mrf.mxu0
      %4409 = vmatmul.bf16.gmra.mxu0 %v3435
      %v4410 = vpop.f32.mrf.mxu0
      %v4411 = vadd.f32 %v4350, %v4410
      %v4412 = vpop.f32.mrf.mxu0
      %v4413 = vadd.f32 %v4352, %v4412
      %4414 = vmatmul.bf16.gmra.mxu0 %v3444
      %v4415 = vpop.f32.mrf.mxu0
      %v4416 = vpop.f32.mrf.mxu0
      %v4417 = vadd.f32 %v4356, %v4416
      %4418 = vmatmul.bf16.gmra.mxu0 %v3453
      %v4419 = vpop.f32.mrf.mxu0
      %v4420 = vadd.f32 %v4359, %v4419
      %v4421 = vpop.f32.mrf.mxu0
      %4422 = vdwg.mxu0
      %4423 = vmatpush.bf16.msra.mxu0 %v3915
      %4424 = vmatpush.bf16.msra.mxu0 %v3914
      %4425 = vmatpush.bf16.msra.mxu0 %v3913
      %4426 = vmatpush.bf16.msra.mxu0 %v3912
      %4427 = vmatpush.bf16.msra.mxu0 %v3911
      %4428 = vmatpush.bf16.msra.mxu0 %v3910
      %4429 = vmatpush.bf16.msra.mxu0 %v3909
      %4430 = vmatpush.bf16.msra.mxu0 %v3908
      %4431 = vmatmul.bf16.gmra.mxu0 %v3355
      %v4432 = vpop.f32.mrf.mxu0
      %v4433 = vadd.f32 %v4372, %v4432
      %v4434 = vpop.f32.mrf.mxu0
      %v4435 = vadd.f32 %v4374, %v4434
      %4436 = vmatmul.bf16.gmra.mxu0 %v3364
      %v4437 = vpop.f32.mrf.mxu0
      %v4438 = vpop.f32.mrf.mxu0
      %v4439 = vadd.f32 %v4378, %v4438
      %4440 = vmatmul.bf16.gmra.mxu0 %v3373
      %v4441 = vpop.f32.mrf.mxu0
      %v4442 = vadd.f32 %v4381, %v4441
      %v4443 = vpop.f32.mrf.mxu0
      %4444 = vmatmul.bf16.gmra.mxu0 %v3382
      %v4445 = vpop.f32.mrf.mxu0
      %v4446 = vadd.f32 %v4385, %v4445
      %v4447 = vpop.f32.mrf.mxu0
      %v4448 = vadd.f32 %v4387, %v4447
      %4449 = vmatmul.bf16.gmra.mxu0 %v3391
      %v4450 = vpop.f32.mrf.mxu0
      %v4451 = vpop.f32.mrf.mxu0
      %v4452 = vadd.f32 %v4391, %v4451
      %4453 = vmatmul.bf16.gmra.mxu0 %v3400
      %v4454 = vpop.f32.mrf.mxu0
      %v4455 = vadd.f32 %v4394, %v4454
      %v4456 = vpop.f32.mrf.mxu0
      %4457 = vmatmul.bf16.gmra.mxu0 %v3409
      %v4458 = vpop.f32.mrf.mxu0
      %v4459 = vadd.f32 %v4398, %v4458
      %v4460 = vpop.f32.mrf.mxu0
      %v4461 = vadd.f32 %v4400, %v4460
      %4462 = vmatmul.bf16.gmra.mxu0 %v3418
      %v4463 = vpop.f32.mrf.mxu0
      %v4464 = vpop.f32.mrf.mxu0
      %v4465 = vadd.f32 %v4404, %v4464
      %4466 = vmatmul.bf16.gmra.mxu0 %v3427
      %v4467 = vpop.f32.mrf.mxu0
      %v4468 = vadd.f32 %v4407, %v4467
      %v4469 = vpop.f32.mrf.mxu0
      %4470 = vmatmul.bf16.gmra.mxu0 %v3436
      %v4471 = vpop.f32.mrf.mxu0
      %v4472 = vadd.f32 %v4411, %v4471
      %v4473 = vpop.f32.mrf.mxu0
      %v4474 = vadd.f32 %v4413, %v4473
      %4475 = vmatmul.bf16.gmra.mxu0 %v3445
      %v4476 = vpop.f32.mrf.mxu0
      %v4477 = vpop.f32.mrf.mxu0
      %v4478 = vadd.f32 %v4417, %v4477
      %4479 = vmatmul.bf16.gmra.mxu0 %v3454
      %v4480 = vpop.f32.mrf.mxu0
      %v4481 = vadd.f32 %v4420, %v4480
      %v4482 = vpop.f32.mrf.mxu0
      %4483 = vdwg.mxu0
      %4484 = vmatpush.bf16.msra.mxu0 %v3923
      %4485 = vmatpush.bf16.msra.mxu0 %v3922
      %4486 = vmatpush.bf16.msra.mxu0 %v3921
      %4487 = vmatpush.bf16.msra.mxu0 %v3920
      %4488 = vmatpush.bf16.msra.mxu0 %v3919
      %4489 = vmatpush.bf16.msra.mxu0 %v3918
      %4490 = vmatpush.bf16.msra.mxu0 %v3917
      %4491 = vmatpush.bf16.msra.mxu0 %v3916
      %4492 = vmatmul.bf16.gmra.mxu0 %v3356
      %v4493 = vpop.f32.mrf.mxu0
      %v4494 = vadd.f32 %v4433, %v4493
      %v4495 = vpop.f32.mrf.mxu0
      %v4496 = vadd.f32 %v4435, %v4495
      %4497 = vmatmul.bf16.gmra.mxu0 %v3365
      %v4498 = vpop.f32.mrf.mxu0
      %v4499 = vpop.f32.mrf.mxu0
      %v4500 = vadd.f32 %v4439, %v4499
      %4501 = vmatmul.bf16.gmra.mxu0 %v3374
      %v4502 = vpop.f32.mrf.mxu0
      %v4503 = vadd.f32 %v4442, %v4502
      %v4504 = vpop.f32.mrf.mxu0
      %4505 = vmatmul.bf16.gmra.mxu0 %v3383
      %v4506 = vpop.f32.mrf.mxu0
      %v4507 = vadd.f32 %v4446, %v4506
      %v4508 = vpop.f32.mrf.mxu0
      %v4509 = vadd.f32 %v4448, %v4508
      %4510 = vmatmul.bf16.gmra.mxu0 %v3392
      %v4511 = vpop.f32.mrf.mxu0
      %v4512 = vpop.f32.mrf.mxu0
      %v4513 = vadd.f32 %v4452, %v4512
      %4514 = vmatmul.bf16.gmra.mxu0 %v3401
      %v4515 = vpop.f32.mrf.mxu0
      %v4516 = vadd.f32 %v4455, %v4515
      %v4517 = vpop.f32.mrf.mxu0
      %4518 = vmatmul.bf16.gmra.mxu0 %v3410
      %v4519 = vpop.f32.mrf.mxu0
      %v4520 = vadd.f32 %v4459, %v4519
      %v4521 = vpop.f32.mrf.mxu0
      %v4522 = vadd.f32 %v4461, %v4521
      %4523 = vmatmul.bf16.gmra.mxu0 %v3419
      %v4524 = vpop.f32.mrf.mxu0
      %v4525 = vpop.f32.mrf.mxu0
      %v4526 = vadd.f32 %v4465, %v4525
      %4527 = vmatmul.bf16.gmra.mxu0 %v3428
      %v4528 = vpop.f32.mrf.mxu0
      %v4529 = vadd.f32 %v4468, %v4528
      %v4530 = vpop.f32.mrf.mxu0
      %4531 = vmatmul.bf16.gmra.mxu0 %v3437
      %v4532 = vpop.f32.mrf.mxu0
      %v4533 = vadd.f32 %v4472, %v4532
      %v4534 = vpop.f32.mrf.mxu0
      %v4535 = vadd.f32 %v4474, %v4534
      %4536 = vmatmul.bf16.gmra.mxu0 %v3446
      %v4537 = vpop.f32.mrf.mxu0
      %v4538 = vpop.f32.mrf.mxu0
      %v4539 = vadd.f32 %v4478, %v4538
      %4540 = vmatmul.bf16.gmra.mxu0 %v3455
      %v4541 = vpop.f32.mrf.mxu0
      %v4542 = vadd.f32 %v4481, %v4541
      %v4543 = vpop.f32.mrf.mxu0
      %4544 = vdwg.mxu0
      %v4546 = vperm.slane %v363, 0
      %v4548 = vmul.f32 %v4494, %v4546
      %v4549 = vmul.f32 %v4496, %v4546
      %v4550 = vmul.f32 %v4500, %v4546
      %v4551 = vmul.f32 %v4503, %v4546
      %v4552 = vmul.f32 %v4507, %v4546
      %v4553 = vmul.f32 %v4509, %v4546
      %v4554 = vmul.f32 %v4513, %v4546
      %v4555 = vmul.f32 %v4516, %v4546
      %v4556 = vmul.f32 %v4520, %v4546
      %v4557 = vmul.f32 %v4522, %v4546
      %v4558 = vmul.f32 %v4526, %v4546
      %v4559 = vmul.f32 %v4529, %v4546
      %v4560 = vmul.f32 %v4533, %v4546
      %v4561 = vmul.f32 %v4535, %v4546
      %v4562 = vmul.f32 %v4539, %v4546
      %v4563 = vmul.f32 %v4542, %v4546
      %v4565 = vperm.slane %v364, 0
      %v4567 = vadd.f32 %v4548, %v4565
      %v4568 = vadd.f32 %v4549, %v4565
      %v4569 = vadd.f32 %v4550, %v4565
      %v4570 = vadd.f32 %v4551, %v4565
      %v4571 = vadd.f32 %v4552, %v4565
      %v4572 = vadd.f32 %v4553, %v4565
      %v4573 = vadd.f32 %v4554, %v4565
      %v4574 = vadd.f32 %v4555, %v4565
      %v4575 = vadd.f32 %v4556, %v4565
      %v4576 = vadd.f32 %v4557, %v4565
      %v4577 = vadd.f32 %v4558, %v4565
      %v4578 = vadd.f32 %v4559, %v4565
      %v4579 = vadd.f32 %v4560, %v4565
      %v4580 = vadd.f32 %v4561, %v4565
      %v4581 = vadd.f32 %v4562, %v4565
      %v4582 = vadd.f32 %v4563, %v4565
      %v4583 = vmax.f32 %v4567, 0.0
      %v4584 = vmax.f32 %v4568, 0.0
      %v4585 = vmax.f32 %v4569, 0.0
      %v4586 = vmax.f32 %v4570, 0.0
      %v4587 = vmax.f32 %v4571, 0.0
      %v4588 = vmax.f32 %v4572, 0.0
      %v4589 = vmax.f32 %v4573, 0.0
      %v4590 = vmax.f32 %v4574, 0.0
      %v4591 = vmax.f32 %v4575, 0.0
      %v4592 = vmax.f32 %v4576, 0.0
      %v4593 = vmax.f32 %v4577, 0.0
      %v4594 = vmax.f32 %v4578, 0.0
      %v4595 = vmax.f32 %v4579, 0.0
      %v4596 = vmax.f32 %v4580, 0.0
      %v4597 = vmax.f32 %v4581, 0.0
      %v4598 = vmax.f32 %v4582, 0.0
      %v4599 = vpack.c.bf16 %v4583, %v4583
      %v4600 = vpack.c.bf16 %v4584, %v4584
      %v4601 = vpack.c.bf16 %v4585, %v4585
      %v4602 = vpack.c.bf16 %v4586, %v4586
      %v4603 = vpack.c.bf16 %v4587, %v4587
      %v4604 = vpack.c.bf16 %v4588, %v4588
      %v4605 = vpack.c.bf16 %v4589, %v4589
      %v4606 = vpack.c.bf16 %v4590, %v4590
      %v4607 = vpack.c.bf16 %v4591, %v4591
      %v4608 = vpack.c.bf16 %v4592, %v4592
      %v4609 = vpack.c.bf16 %v4593, %v4593
      %v4610 = vpack.c.bf16 %v4594, %v4594
      %v4611 = vpack.c.bf16 %v4595, %v4595
      %v4612 = vpack.c.bf16 %v4596, %v4596
      %v4613 = vpack.c.bf16 %v4597, %v4597
      %v4614 = vpack.c.bf16 %v4598, %v4598
      %4615 = vst [vmem:[#allocation4] sm:$0xf] %v4599
      %4616 = vst [vmem:[#allocation4 + $0x4] sm:$0xf] %v4600
      %4617 = vst [vmem:[#allocation4 + $0x8] sm:$0xf] %v4601
      %4618 = vst [vmem:[#allocation4 + $0xc] sm:$0xf] %v4602
      %4619 = vst [vmem:[#allocation4 + $0x10] sm:$0xf] %v4603
      %4620 = vst [vmem:[#allocation4 + $0x14] sm:$0xf] %v4604
      %4621 = vst [vmem:[#allocation4 + $0x18] sm:$0xf] %v4605
      %4622 = vst [vmem:[#allocation4 + $0x1c] sm:$0xf] %v4606
      %4623 = vst [vmem:[#allocation4 + $0x20] sm:$0xf] %v4607
      %4624 = vst [vmem:[#allocation4 + $0x24] sm:$0xf] %v4608
      %4625 = vst [vmem:[#allocation4 + $0x28] sm:$0xf] %v4609
      %4626 = vst [vmem:[#allocation4 + $0x2c] sm:$0xf] %v4610
      %4627 = vst [vmem:[#allocation4 + $0x30] sm:$0xf] %v4611
      %4628 = vst [vmem:[#allocation4 + $0x34] sm:$0xf] %v4612
      %4629 = vst [vmem:[#allocation4 + $0x38] sm:$0xf] %v4613
      %4630 = vst [vmem:[#allocation4 + $0x3c] sm:$0xf] %v4614
      %v4631 = vld [vmem:[#allocation4] sm:$0xf]
      %v4632 = vld [vmem:[#allocation4 + $0x4] sm:$0xf]
      %v4633 = vld [vmem:[#allocation4 + $0x8] sm:$0xf]
      %v4634 = vld [vmem:[#allocation4 + $0xc] sm:$0xf]
      %v4635 = vld [vmem:[#allocation4 + $0x10] sm:$0xf]
      %v4636 = vld [vmem:[#allocation4 + $0x14] sm:$0xf]
      %v4637 = vld [vmem:[#allocation4 + $0x18] sm:$0xf]
      %v4638 = vld [vmem:[#allocation4 + $0x1c] sm:$0xf]
      %v4639 = vld [vmem:[#allocation4 + $0x20] sm:$0xf]
      %v4640 = vld [vmem:[#allocation4 + $0x24] sm:$0xf]
      %v4641 = vld [vmem:[#allocation4 + $0x28] sm:$0xf]
      %v4642 = vld [vmem:[#allocation4 + $0x2c] sm:$0xf]
      %v4643 = vld [vmem:[#allocation4 + $0x30] sm:$0xf]
      %v4644 = vld [vmem:[#allocation4 + $0x34] sm:$0xf]
      %v4645 = vld [vmem:[#allocation4 + $0x38] sm:$0xf]
      %v4646 = vld [vmem:[#allocation4 + $0x3c] sm:$0xf]
      %v4647 = vld [vmem:[%s7] sm:$0xf]
      %v4648 = vld [vmem:[%s7 + $0x4] sm:$0xf]
      %v4649 = vld [vmem:[%s7 + $0x8] sm:$0xf]
      %v4650 = vld [vmem:[%s7 + $0xc] sm:$0xf]
      %v4651 = vld [vmem:[%s7 + $0x10] sm:$0xf]
      %v4652 = vld [vmem:[%s7 + $0x14] sm:$0xf]
      %v4653 = vld [vmem:[%s7 + $0x18] sm:$0xf]
      %v4654 = vld [vmem:[%s7 + $0x1c] sm:$0xf]
      %v4655 = vld [vmem:[%s7 + $0x20] sm:$0xf]
      %v4656 = vld [vmem:[%s7 + $0x24] sm:$0xf]
      %v4657 = vld [vmem:[%s7 + $0x28] sm:$0xf]
      %v4658 = vld [vmem:[%s7 + $0x2c] sm:$0xf]
      %v4659 = vld [vmem:[%s7 + $0x30] sm:$0xf]
      %v4660 = vld [vmem:[%s7 + $0x34] sm:$0xf]
      %v4661 = vld [vmem:[%s7 + $0x38] sm:$0xf]
      %v4662 = vld [vmem:[%s7 + $0x3c] sm:$0xf]
      %v4679 = vunpack.c.l.b16 %v4631
      %v4680 = vunpack.c.l.b16 %v4632
      %v4681 = vunpack.c.l.b16 %v4633
      %v4682 = vunpack.c.l.b16 %v4634
      %v4683 = vunpack.c.l.b16 %v4635
      %v4684 = vunpack.c.l.b16 %v4636
      %v4685 = vunpack.c.l.b16 %v4637
      %v4686 = vunpack.c.l.b16 %v4638
      %v4687 = vunpack.c.l.b16 %v4639
      %v4688 = vunpack.c.l.b16 %v4640
      %v4689 = vunpack.c.l.b16 %v4641
      %v4690 = vunpack.c.l.b16 %v4642
      %v4691 = vunpack.c.l.b16 %v4643
      %v4692 = vunpack.c.l.b16 %v4644
      %v4693 = vunpack.c.l.b16 %v4645
      %v4694 = vunpack.c.l.b16 %v4646
      %v4695 = vpack.c.b16 %v4680, %v4679
      %v4696 = vpack.c.b16 %v4682, %v4681
      %v4697 = vpack.c.b16 %v4684, %v4683
      %v4698 = vpack.c.b16 %v4686, %v4685
      %v4699 = vpack.c.b16 %v4688, %v4687
      %v4700 = vpack.c.b16 %v4690, %v4689
      %v4701 = vpack.c.b16 %v4692, %v4691
      %v4702 = vpack.c.b16 %v4694, %v4693
      %v4727 = vunpack.c.l.b16 %v4647
      %v4728 = vunpack.c.l.b16 %v4648
      %v4729 = vunpack.c.l.b16 %v4649
      %v4730 = vunpack.c.l.b16 %v4650
      %v4731 = vunpack.c.l.b16 %v4651
      %v4732 = vunpack.c.l.b16 %v4652
      %v4733 = vunpack.c.l.b16 %v4653
      %v4734 = vunpack.c.l.b16 %v4654
      %v4735 = vunpack.c.l.b16 %v4655
      %v4736 = vunpack.c.l.b16 %v4656
      %v4737 = vunpack.c.l.b16 %v4657
      %v4738 = vunpack.c.l.b16 %v4658
      %v4739 = vunpack.c.l.b16 %v4659
      %v4740 = vunpack.c.l.b16 %v4660
      %v4741 = vunpack.c.l.b16 %v4661
      %v4742 = vunpack.c.l.b16 %v4662
      %v4743 = vpack.c.b16 %v4728, %v4727
      %v4744 = vpack.c.b16 %v4730, %v4729
      %v4745 = vpack.c.b16 %v4732, %v4731
      %v4746 = vpack.c.b16 %v4734, %v4733
      %v4747 = vpack.c.b16 %v4736, %v4735
      %v4748 = vpack.c.b16 %v4738, %v4737
      %v4749 = vpack.c.b16 %v4740, %v4739
      %v4750 = vpack.c.b16 %v4742, %v4741
      %4759 = vmatpush.bf16.msra.mxu0 %v4750
      %4760 = vmatpush.bf16.msra.mxu0 %v4749
      %4761 = vmatpush.bf16.msra.mxu0 %v4748
      %4762 = vmatpush.bf16.msra.mxu0 %v4747
      %4763 = vmatpush.bf16.msra.mxu0 %v4746
      %4764 = vmatpush.bf16.msra.mxu0 %v4745
      %4765 = vmatpush.bf16.msra.mxu0 %v4744
      %4766 = vmatpush.bf16.msra.mxu0 %v4743
      %4767 = vmatmul.bf16.gmra.mxu0 %v4695
      %v4768 = vpop.f32.mrf.mxu0
      %v4769 = vadd.f32 0.0, %v4768
      %v4770 = vpop.f32.mrf.mxu0
      %v4771 = vadd.f32 0.0, %v4770
      %4772 = vmatmul.bf16.gmra.mxu0 %v4696
      %v4773 = vpop.f32.mrf.mxu0
      %v4774 = vadd.f32 0.0, %v4773
      %v4775 = vpop.f32.mrf.mxu0
      %v4776 = vadd.f32 0.0, %v4775
      %4777 = vmatmul.bf16.gmra.mxu0 %v4697
      %v4778 = vpop.f32.mrf.mxu0
      %v4779 = vadd.f32 0.0, %v4778
      %v4780 = vpop.f32.mrf.mxu0
      %v4781 = vadd.f32 0.0, %v4780
      %4782 = vmatmul.bf16.gmra.mxu0 %v4698
      %v4783 = vpop.f32.mrf.mxu0
      %v4784 = vadd.f32 0.0, %v4783
      %v4785 = vpop.f32.mrf.mxu0
      %v4786 = vadd.f32 0.0, %v4785
      %4787 = vmatmul.bf16.gmra.mxu0 %v4699
      %v4788 = vpop.f32.mrf.mxu0
      %v4789 = vadd.f32 0.0, %v4788
      %v4790 = vpop.f32.mrf.mxu0
      %v4791 = vadd.f32 0.0, %v4790
      %4792 = vmatmul.bf16.gmra.mxu0 %v4700
      %v4793 = vpop.f32.mrf.mxu0
      %v4794 = vadd.f32 0.0, %v4793
      %v4795 = vpop.f32.mrf.mxu0
      %v4796 = vadd.f32 0.0, %v4795
      %4797 = vmatmul.bf16.gmra.mxu0 %v4701
      %v4798 = vpop.f32.mrf.mxu0
      %v4799 = vadd.f32 0.0, %v4798
      %v4800 = vpop.f32.mrf.mxu0
      %v4801 = vadd.f32 0.0, %v4800
      %4802 = vmatmul.bf16.gmra.mxu0 %v4702
      %v4803 = vpop.f32.mrf.mxu0
      %v4804 = vadd.f32 0.0, %v4803
      %v4805 = vpop.f32.mrf.mxu0
      %v4806 = vadd.f32 0.0, %v4805
      %4807 = vdwg.mxu0
      %v4809 = vperm.slane %v365, 0
      %v4811 = vmul.f32 %v4769, %v4809
      %v4812 = vmul.f32 %v4771, %v4809
      %v4813 = vmul.f32 %v4774, %v4809
      %v4814 = vmul.f32 %v4776, %v4809
      %v4815 = vmul.f32 %v4779, %v4809
      %v4816 = vmul.f32 %v4781, %v4809
      %v4817 = vmul.f32 %v4784, %v4809
      %v4818 = vmul.f32 %v4786, %v4809
      %v4819 = vmul.f32 %v4789, %v4809
      %v4820 = vmul.f32 %v4791, %v4809
      %v4821 = vmul.f32 %v4794, %v4809
      %v4822 = vmul.f32 %v4796, %v4809
      %v4823 = vmul.f32 %v4799, %v4809
      %v4824 = vmul.f32 %v4801, %v4809
      %v4825 = vmul.f32 %v4804, %v4809
      %v4826 = vmul.f32 %v4806, %v4809
      %v4828 = vperm.slane %v366, 0
      %v4830 = vadd.f32 %v4811, %v4828
      %v4831 = vadd.f32 %v4812, %v4828
      %v4832 = vadd.f32 %v4813, %v4828
      %v4833 = vadd.f32 %v4814, %v4828
      %v4834 = vadd.f32 %v4815, %v4828
      %v4835 = vadd.f32 %v4816, %v4828
      %v4836 = vadd.f32 %v4817, %v4828
      %v4837 = vadd.f32 %v4818, %v4828
      %v4838 = vadd.f32 %v4819, %v4828
      %v4839 = vadd.f32 %v4820, %v4828
      %v4840 = vadd.f32 %v4821, %v4828
      %v4841 = vadd.f32 %v4822, %v4828
      %v4842 = vadd.f32 %v4823, %v4828
      %v4843 = vadd.f32 %v4824, %v4828
      %v4844 = vadd.f32 %v4825, %v4828
      %v4845 = vadd.f32 %v4826, %v4828
      %v4846 = vld [vmem:[%s354] sm:$0xff]
      %v4847 = vld [vmem:[%s354 + $0x8] sm:$0xff]
      %v4848 = vld [vmem:[%s354 + $0x10] sm:$0xff]
      %v4849 = vld [vmem:[%s354 + $0x18] sm:$0xff]
      %v4850 = vld [vmem:[%s354 + $0x20] sm:$0xff]
      %v4851 = vld [vmem:[%s354 + $0x28] sm:$0xff]
      %v4852 = vld [vmem:[%s354 + $0x30] sm:$0xff]
      %v4853 = vld [vmem:[%s354 + $0x38] sm:$0xff]
      %v4854 = vld [vmem:[%s354 + $0x40] sm:$0xff]
      %v4855 = vld [vmem:[%s354 + $0x48] sm:$0xff]
      %v4856 = vld [vmem:[%s354 + $0x50] sm:$0xff]
      %v4857 = vld [vmem:[%s354 + $0x58] sm:$0xff]
      %v4858 = vld [vmem:[%s354 + $0x60] sm:$0xff]
      %v4859 = vld [vmem:[%s354 + $0x68] sm:$0xff]
      %v4860 = vld [vmem:[%s354 + $0x70] sm:$0xff]
      %v4861 = vld [vmem:[%s354 + $0x78] sm:$0xff]
      %v4862 = vadd.f32 %v4830, %v4846
      %v4863 = vadd.f32 %v4831, %v4847
      %v4864 = vadd.f32 %v4832, %v4848
      %v4865 = vadd.f32 %v4833, %v4849
      %v4866 = vadd.f32 %v4834, %v4850
      %v4867 = vadd.f32 %v4835, %v4851
      %v4868 = vadd.f32 %v4836, %v4852
      %v4869 = vadd.f32 %v4837, %v4853
      %v4870 = vadd.f32 %v4838, %v4854
      %v4871 = vadd.f32 %v4839, %v4855
      %v4872 = vadd.f32 %v4840, %v4856
      %v4873 = vadd.f32 %v4841, %v4857
      %v4874 = vadd.f32 %v4842, %v4858
      %v4875 = vadd.f32 %v4843, %v4859
      %v4876 = vadd.f32 %v4844, %v4860
      %v4877 = vadd.f32 %v4845, %v4861
      %v4878 = vmax.f32 %v4862, 0.0
      %v4879 = vmax.f32 %v4863, 0.0
      %v4880 = vmax.f32 %v4864, 0.0
      %v4881 = vmax.f32 %v4865, 0.0
      %v4882 = vmax.f32 %v4866, 0.0
      %v4883 = vmax.f32 %v4867, 0.0
      %v4884 = vmax.f32 %v4868, 0.0
      %v4885 = vmax.f32 %v4869, 0.0
      %v4886 = vmax.f32 %v4870, 0.0
      %v4887 = vmax.f32 %v4871, 0.0
      %v4888 = vmax.f32 %v4872, 0.0
      %v4889 = vmax.f32 %v4873, 0.0
      %v4890 = vmax.f32 %v4874, 0.0
      %v4891 = vmax.f32 %v4875, 0.0
      %v4892 = vmax.f32 %v4876, 0.0
      %v4893 = vmax.f32 %v4877, 0.0
      %4894 = vst.msk [vmem:[%s359] sm:$0xff] %vm407, %v4878
      %4895 = vst.msk [vmem:[%s359 + $0x8] sm:$0xff] %vm407, %v4879
      %4896 = vst.msk [vmem:[%s359 + $0x10] sm:$0xff] %vm407, %v4880
      %4897 = vst.msk [vmem:[%s359 + $0x18] sm:$0xff] %vm407, %v4881
      %4898 = vst.msk [vmem:[%s359 + $0x20] sm:$0xff] %vm407, %v4882
      %4899 = vst.msk [vmem:[%s359 + $0x28] sm:$0xff] %vm407, %v4883
      %4900 = vst.msk [vmem:[%s359 + $0x30] sm:$0xff] %vm407, %v4884
      %4901 = vst.msk [vmem:[%s359 + $0x38] sm:$0xff] %vm407, %v4885
      %4902 = vst.msk [vmem:[%s359 + $0x40] sm:$0xff] %vm407, %v4886
      %4903 = vst.msk [vmem:[%s359 + $0x48] sm:$0xff] %vm407, %v4887
      %4904 = vst.msk [vmem:[%s359 + $0x50] sm:$0xff] %vm407, %v4888
      %4905 = vst.msk [vmem:[%s359 + $0x58] sm:$0xff] %vm407, %v4889
      %4906 = vst.msk [vmem:[%s359 + $0x60] sm:$0xff] %vm407, %v4890
      %4907 = vst.msk [vmem:[%s359 + $0x68] sm:$0xff] %vm407, %v4891
      %4908 = vst.msk [vmem:[%s359 + $0x70] sm:$0xff] %vm407, %v4892
      %4909 = vst.msk [vmem:[%s359 + $0x78] sm:$0xff] %vm407, %v4893
      %v4910 = vld [vmem:[#allocation2 + $0x60] sm:$0x8]
      %v4911 = vld [vmem:[#allocation2 + $0x64] sm:$0xf]
      %v4912 = vld [vmem:[#allocation2 + $0x68] sm:$0xf]
      %v4913 = vld [vmem:[#allocation2 + $0x6c] sm:$0xf]
      %v4914 = vld [vmem:[#allocation2 + $0x70] sm:$0xf]
      %v4915 = vld [vmem:[#allocation2 + $0x74] sm:$0xf]
      %v4916 = vld [vmem:[#allocation2 + $0x78] sm:$0xf]
      %v4917 = vld [vmem:[#allocation2 + $0x7c] sm:$0xf]
      %v4918 = vld [vmem:[#allocation2 + $0x80] sm:$0xf]
      %v4919 = vld [vmem:[#allocation2 + $0x84] sm:$0xf]
      %v4920 = vld [vmem:[#allocation2 + $0x88] sm:$0xf]
      %v4921 = vld [vmem:[#allocation2 + $0x8c] sm:$0xf]
      %v4922 = vld [vmem:[#allocation2 + $0x90] sm:$0xf]
      %v4923 = vld [vmem:[#allocation2 + $0x94] sm:$0xf]
      %v4924 = vld [vmem:[#allocation2 + $0x98] sm:$0xf]
      %v4925 = vld [vmem:[#allocation2 + $0x9c] sm:$0xf]
      %v4926 = vld [vmem:[#allocation2 + $0xa0] sm:$0xf]
      %v4927 = vld [vmem:[#allocation2 + $0xa4] sm:$0xf]
      %v4928 = vld [vmem:[#allocation2 + $0xa8] sm:$0xf]
      %v4929 = vld [vmem:[#allocation2 + $0xac] sm:$0xf]
      %v4930 = vld [vmem:[#allocation2 + $0xb0] sm:$0xf]
      %v4931 = vld [vmem:[#allocation2 + $0xb4] sm:$0xf]
      %v4932 = vld [vmem:[#allocation2 + $0xb8] sm:$0xf]
      %v4933 = vld [vmem:[#allocation2 + $0xbc] sm:$0xf]
      %v4934 = vld [vmem:[#allocation2 + $0xc0] sm:$0xf]
      %v4936 = vshrl.u32 %v4910, 16
      %v4938 = vrot.slane %v4936, 7
      %v4939 = vrot.slane %v4938, 4
      %v4941 = vshrl.u32 %v4911, 16
      %v4943 = vrot.slane %v4941, 7
      %v4944 = vshll.u32 %v4911, 16
      %v4946 = vor.u32 %v4943, %v4944
      %v4947 = vsel %vm795, %v4939, %v4946
      %v4948 = vrot.slane %v4943, 4
      %v4950 = vshrl.u32 %v4912, 16
      %v4952 = vrot.slane %v4950, 7
      %v4953 = vshll.u32 %v4912, 16
      %v4955 = vor.u32 %v4952, %v4953
      %v4956 = vsel %vm795, %v4948, %v4955
      %v4957 = vrot.slane %v4952, 4
      %v4959 = vshrl.u32 %v4913, 16
      %v4961 = vrot.slane %v4959, 7
      %v4962 = vshll.u32 %v4913, 16
      %v4964 = vor.u32 %v4961, %v4962
      %v4965 = vsel %vm795, %v4957, %v4964
      %v4966 = vrot.slane %v4961, 4
      %v4968 = vshrl.u32 %v4914, 16
      %v4970 = vrot.slane %v4968, 7
      %v4971 = vshll.u32 %v4914, 16
      %v4973 = vor.u32 %v4970, %v4971
      %v4974 = vsel %vm795, %v4966, %v4973
      %v4975 = vrot.slane %v4970, 4
      %v4977 = vshrl.u32 %v4915, 16
      %v4979 = vrot.slane %v4977, 7
      %v4980 = vshll.u32 %v4915, 16
      %v4982 = vor.u32 %v4979, %v4980
      %v4983 = vsel %vm795, %v4975, %v4982
      %v4984 = vrot.slane %v4979, 4
      %v4986 = vshrl.u32 %v4916, 16
      %v4988 = vrot.slane %v4986, 7
      %v4989 = vshll.u32 %v4916, 16
      %v4991 = vor.u32 %v4988, %v4989
      %v4992 = vsel %vm795, %v4984, %v4991
      %v4993 = vrot.slane %v4988, 4
      %v4995 = vshrl.u32 %v4917, 16
      %v4997 = vrot.slane %v4995, 7
      %v4998 = vshll.u32 %v4917, 16
      %v5000 = vor.u32 %v4997, %v4998
      %v5001 = vsel %vm795, %v4993, %v5000
      %v5002 = vrot.slane %v4997, 4
      %v5004 = vshrl.u32 %v4918, 16
      %v5006 = vrot.slane %v5004, 7
      %v5007 = vshll.u32 %v4918, 16
      %v5009 = vor.u32 %v5006, %v5007
      %v5010 = vsel %vm795, %v5002, %v5009
      %v5011 = vrot.slane %v5006, 4
      %v5013 = vshrl.u32 %v4919, 16
      %v5015 = vrot.slane %v5013, 7
      %v5016 = vshll.u32 %v4919, 16
      %v5018 = vor.u32 %v5015, %v5016
      %v5019 = vsel %vm795, %v5011, %v5018
      %v5020 = vrot.slane %v5015, 4
      %v5022 = vshrl.u32 %v4920, 16
      %v5024 = vrot.slane %v5022, 7
      %v5025 = vshll.u32 %v4920, 16
      %v5027 = vor.u32 %v5024, %v5025
      %v5028 = vsel %vm795, %v5020, %v5027
      %v5029 = vrot.slane %v5024, 4
      %v5031 = vshrl.u32 %v4921, 16
      %v5033 = vrot.slane %v5031, 7
      %v5034 = vshll.u32 %v4921, 16
      %v5036 = vor.u32 %v5033, %v5034
      %v5037 = vsel %vm795, %v5029, %v5036
      %v5038 = vrot.slane %v5033, 4
      %v5040 = vshrl.u32 %v4922, 16
      %v5042 = vrot.slane %v5040, 7
      %v5043 = vshll.u32 %v4922, 16
      %v5045 = vor.u32 %v5042, %v5043
      %v5046 = vsel %vm795, %v5038, %v5045
      %v5047 = vrot.slane %v5042, 4
      %v5049 = vshrl.u32 %v4923, 16
      %v5051 = vrot.slane %v5049, 7
      %v5052 = vshll.u32 %v4923, 16
      %v5054 = vor.u32 %v5051, %v5052
      %v5055 = vsel %vm795, %v5047, %v5054
      %v5056 = vrot.slane %v5051, 4
      %v5058 = vshrl.u32 %v4924, 16
      %v5060 = vrot.slane %v5058, 7
      %v5061 = vshll.u32 %v4924, 16
      %v5063 = vor.u32 %v5060, %v5061
      %v5064 = vsel %vm795, %v5056, %v5063
      %v5065 = vrot.slane %v5060, 4
      %v5067 = vshrl.u32 %v4925, 16
      %v5069 = vrot.slane %v5067, 7
      %v5070 = vshll.u32 %v4925, 16
      %v5072 = vor.u32 %v5069, %v5070
      %v5073 = vsel %vm795, %v5065, %v5072
      %v5074 = vrot.slane %v5069, 4
      %v5076 = vshrl.u32 %v4926, 16
      %v5078 = vrot.slane %v5076, 7
      %v5079 = vshll.u32 %v4926, 16
      %v5081 = vor.u32 %v5078, %v5079
      %v5082 = vsel %vm795, %v5074, %v5081
      %v5083 = vrot.slane %v5078, 4
      %v5085 = vshrl.u32 %v4927, 16
      %v5087 = vrot.slane %v5085, 7
      %v5088 = vshll.u32 %v4927, 16
      %v5090 = vor.u32 %v5087, %v5088
      %v5091 = vsel %vm795, %v5083, %v5090
      %v5092 = vrot.slane %v5087, 4
      %v5094 = vshrl.u32 %v4928, 16
      %v5096 = vrot.slane %v5094, 7
      %v5097 = vshll.u32 %v4928, 16
      %v5099 = vor.u32 %v5096, %v5097
      %v5100 = vsel %vm795, %v5092, %v5099
      %v5101 = vrot.slane %v5096, 4
      %v5103 = vshrl.u32 %v4929, 16
      %v5105 = vrot.slane %v5103, 7
      %v5106 = vshll.u32 %v4929, 16
      %v5108 = vor.u32 %v5105, %v5106
      %v5109 = vsel %vm795, %v5101, %v5108
      %v5110 = vrot.slane %v5105, 4
      %v5112 = vshrl.u32 %v4930, 16
      %v5114 = vrot.slane %v5112, 7
      %v5115 = vshll.u32 %v4930, 16
      %v5117 = vor.u32 %v5114, %v5115
      %v5118 = vsel %vm795, %v5110, %v5117
      %v5119 = vrot.slane %v5114, 4
      %v5121 = vshrl.u32 %v4931, 16
      %v5123 = vrot.slane %v5121, 7
      %v5124 = vshll.u32 %v4931, 16
      %v5126 = vor.u32 %v5123, %v5124
      %v5127 = vsel %vm795, %v5119, %v5126
      %v5128 = vrot.slane %v5123, 4
      %v5130 = vshrl.u32 %v4932, 16
      %v5132 = vrot.slane %v5130, 7
      %v5133 = vshll.u32 %v4932, 16
      %v5135 = vor.u32 %v5132, %v5133
      %v5136 = vsel %vm795, %v5128, %v5135
      %v5137 = vrot.slane %v5132, 4
      %v5139 = vshrl.u32 %v4933, 16
      %v5141 = vrot.slane %v5139, 7
      %v5142 = vshll.u32 %v4933, 16
      %v5144 = vor.u32 %v5141, %v5142
      %v5145 = vsel %vm795, %v5137, %v5144
      %v5146 = vrot.slane %v5141, 4
      %v5148 = vshrl.u32 %v4934, 16
      %v5150 = vrot.slane %v5148, 7
      %v5151 = vshll.u32 %v4934, 16
      %v5153 = vor.u32 %v5150, %v5151
      %v5154 = vsel %vm795, %v5146, %v5153
      %5179 = vst [vmem:[#allocation3] sm:$0xf] %v4947
      %5180 = vst [vmem:[#allocation3 + $0x24] sm:$0xf] %v4956
      %5181 = vst [vmem:[#allocation3 + $0x48] sm:$0xf] %v4965
      %5182 = vst [vmem:[#allocation3 + $0x6c] sm:$0xf] %v4974
      %5183 = vst [vmem:[#allocation3 + $0x90] sm:$0xf] %v4983
      %5184 = vst [vmem:[#allocation3 + $0xb4] sm:$0xf] %v4992
      %5185 = vst [vmem:[#allocation3 + $0xd8] sm:$0xf] %v5001
      %5186 = vst [vmem:[#allocation3 + $0xfc] sm:$0xf] %v5010
      %5187 = vst [vmem:[#allocation3 + $0x120] sm:$0xf] %v5019
      %5188 = vst [vmem:[#allocation3 + $0x144] sm:$0xf] %v5028
      %5189 = vst [vmem:[#allocation3 + $0x168] sm:$0xf] %v5037
      %5190 = vst [vmem:[#allocation3 + $0x18c] sm:$0xf] %v5046
      %5191 = vst [vmem:[#allocation3 + $0x1b0] sm:$0xf] %v5055
      %5192 = vst [vmem:[#allocation3 + $0x1d4] sm:$0xf] %v5064
      %5193 = vst [vmem:[#allocation3 + $0x1f8] sm:$0xf] %v5073
      %5194 = vst [vmem:[#allocation3 + $0x21c] sm:$0xf] %v5082
      %5195 = vst [vmem:[#allocation3 + $0x240] sm:$0xf] %v5091
      %5196 = vst [vmem:[#allocation3 + $0x264] sm:$0xf] %v5100
      %5197 = vst [vmem:[#allocation3 + $0x288] sm:$0xf] %v5109
      %5198 = vst [vmem:[#allocation3 + $0x2ac] sm:$0xf] %v5118
      %5199 = vst [vmem:[#allocation3 + $0x2d0] sm:$0xf] %v5127
      %5200 = vst [vmem:[#allocation3 + $0x2f4] sm:$0xf] %v5136
      %5201 = vst [vmem:[#allocation3 + $0x318] sm:$0xf] %v5145
      %5202 = vst [vmem:[#allocation3 + $0x33c] sm:$0xf] %v5154
      %v5203 = vld [vmem:[#allocation2 + $0x64] sm:$0xf]
      %v5204 = vld [vmem:[#allocation2 + $0x68] sm:$0xf]
      %v5205 = vld [vmem:[#allocation2 + $0x6c] sm:$0xf]
      %v5206 = vld [vmem:[#allocation2 + $0x70] sm:$0xf]
      %v5207 = vld [vmem:[#allocation2 + $0x74] sm:$0xf]
      %v5208 = vld [vmem:[#allocation2 + $0x78] sm:$0xf]
      %v5209 = vld [vmem:[#allocation2 + $0x7c] sm:$0xf]
      %v5210 = vld [vmem:[#allocation2 + $0x80] sm:$0xf]
      %v5211 = vld [vmem:[#allocation2 + $0x84] sm:$0xf]
      %v5212 = vld [vmem:[#allocation2 + $0x88] sm:$0xf]
      %v5213 = vld [vmem:[#allocation2 + $0x8c] sm:$0xf]
      %v5214 = vld [vmem:[#allocation2 + $0x90] sm:$0xf]
      %v5215 = vld [vmem:[#allocation2 + $0x94] sm:$0xf]
      %v5216 = vld [vmem:[#allocation2 + $0x98] sm:$0xf]
      %v5217 = vld [vmem:[#allocation2 + $0x9c] sm:$0xf]
      %v5218 = vld [vmem:[#allocation2 + $0xa0] sm:$0xf]
      %v5219 = vld [vmem:[#allocation2 + $0xa4] sm:$0xf]
      %v5220 = vld [vmem:[#allocation2 + $0xa8] sm:$0xf]
      %v5221 = vld [vmem:[#allocation2 + $0xac] sm:$0xf]
      %v5222 = vld [vmem:[#allocation2 + $0xb0] sm:$0xf]
      %v5223 = vld [vmem:[#allocation2 + $0xb4] sm:$0xf]
      %v5224 = vld [vmem:[#allocation2 + $0xb8] sm:$0xf]
      %v5225 = vld [vmem:[#allocation2 + $0xbc] sm:$0xf]
      %v5226 = vld [vmem:[#allocation2 + $0xc0] sm:$0xf]
      %5227 = vst [vmem:[#allocation3 + $0x4] sm:$0xf] %v5203
      %5228 = vst [vmem:[#allocation3 + $0x28] sm:$0xf] %v5204
      %5229 = vst [vmem:[#allocation3 + $0x4c] sm:$0xf] %v5205
      %5230 = vst [vmem:[#allocation3 + $0x70] sm:$0xf] %v5206
      %5231 = vst [vmem:[#allocation3 + $0x94] sm:$0xf] %v5207
      %5232 = vst [vmem:[#allocation3 + $0xb8] sm:$0xf] %v5208
      %5233 = vst [vmem:[#allocation3 + $0xdc] sm:$0xf] %v5209
      %5234 = vst [vmem:[#allocation3 + $0x100] sm:$0xf] %v5210
      %5235 = vst [vmem:[#allocation3 + $0x124] sm:$0xf] %v5211
      %5236 = vst [vmem:[#allocation3 + $0x148] sm:$0xf] %v5212
      %5237 = vst [vmem:[#allocation3 + $0x16c] sm:$0xf] %v5213
      %5238 = vst [vmem:[#allocation3 + $0x190] sm:$0xf] %v5214
      %5239 = vst [vmem:[#allocation3 + $0x1b4] sm:$0xf] %v5215
      %5240 = vst [vmem:[#allocation3 + $0x1d8] sm:$0xf] %v5216
      %5241 = vst [vmem:[#allocation3 + $0x1fc] sm:$0xf] %v5217
      %5242 = vst [vmem:[#allocation3 + $0x220] sm:$0xf] %v5218
      %5243 = vst [vmem:[#allocation3 + $0x244] sm:$0xf] %v5219
      %5244 = vst [vmem:[#allocation3 + $0x268] sm:$0xf] %v5220
      %5245 = vst [vmem:[#allocation3 + $0x28c] sm:$0xf] %v5221
      %5246 = vst [vmem:[#allocation3 + $0x2b0] sm:$0xf] %v5222
      %5247 = vst [vmem:[#allocation3 + $0x2d4] sm:$0xf] %v5223
      %5248 = vst [vmem:[#allocation3 + $0x2f8] sm:$0xf] %v5224
      %5249 = vst [vmem:[#allocation3 + $0x31c] sm:$0xf] %v5225
      %5250 = vst [vmem:[#allocation3 + $0x340] sm:$0xf] %v5226
      %v5251 = vld [vmem:[#allocation2 + $0x64] sm:$0xf]
      %v5252 = vld [vmem:[#allocation2 + $0x68] sm:$0xf]
      %v5253 = vld [vmem:[#allocation2 + $0x6c] sm:$0xf]
      %v5254 = vld [vmem:[#allocation2 + $0x70] sm:$0xf]
      %v5255 = vld [vmem:[#allocation2 + $0x74] sm:$0xf]
      %v5256 = vld [vmem:[#allocation2 + $0x78] sm:$0xf]
      %v5257 = vld [vmem:[#allocation2 + $0x7c] sm:$0xf]
      %v5258 = vld [vmem:[#allocation2 + $0x80] sm:$0xf]
      %v5259 = vld [vmem:[#allocation2 + $0x84] sm:$0xf]
      %v5260 = vld [vmem:[#allocation2 + $0x88] sm:$0xf]
      %v5261 = vld [vmem:[#allocation2 + $0x8c] sm:$0xf]
      %v5262 = vld [vmem:[#allocation2 + $0x90] sm:$0xf]
      %v5263 = vld [vmem:[#allocation2 + $0x94] sm:$0xf]
      %v5264 = vld [vmem:[#allocation2 + $0x98] sm:$0xf]
      %v5265 = vld [vmem:[#allocation2 + $0x9c] sm:$0xf]
      %v5266 = vld [vmem:[#allocation2 + $0xa0] sm:$0xf]
      %v5267 = vld [vmem:[#allocation2 + $0xa4] sm:$0xf]
      %v5268 = vld [vmem:[#allocation2 + $0xa8] sm:$0xf]
      %v5269 = vld [vmem:[#allocation2 + $0xac] sm:$0xf]
      %v5270 = vld [vmem:[#allocation2 + $0xb0] sm:$0xf]
      %v5271 = vld [vmem:[#allocation2 + $0xb4] sm:$0xf]
      %v5272 = vld [vmem:[#allocation2 + $0xb8] sm:$0xf]
      %v5273 = vld [vmem:[#allocation2 + $0xbc] sm:$0xf]
      %v5274 = vld [vmem:[#allocation2 + $0xc0] sm:$0xf]
      %v5275 = vld [vmem:[#allocation2 + $0xc4] sm:$0x1]
      %v5277 = vshrl.u32 %v5251, 16
      %v5279 = vrot.slane %v5277, 4
      %v5280 = vshll.u32 %v5251, 16
      %v5282 = vrot.slane %v5280, 5
      %v5283 = vor.u32 %v5279, %v5282
      %v5284 = vrot.slane %v5283, 4
      %v5286 = vshll.u32 %v5252, 16
      %v5288 = vrot.slane %v5286, 5
      %v5289 = vsel %vm1139, %v5284, %v5288
      %v5290 = vshrl.u32 %v5252, 16
      %v5292 = vrot.slane %v5290, 4
      %v5293 = vor.u32 %v5292, %v5288
      %v5294 = vrot.slane %v5293, 4
      %v5296 = vshll.u32 %v5253, 16
      %v5298 = vrot.slane %v5296, 5
      %v5299 = vsel %vm1139, %v5294, %v5298
      %v5300 = vshrl.u32 %v5253, 16
      %v5302 = vrot.slane %v5300, 4
      %v5303 = vor.u32 %v5302, %v5298
      %v5304 = vrot.slane %v5303, 4
      %v5306 = vshll.u32 %v5254, 16
      %v5308 = vrot.slane %v5306, 5
      %v5309 = vsel %vm1139, %v5304, %v5308
      %v5310 = vshrl.u32 %v5254, 16
      %v5312 = vrot.slane %v5310, 4
      %v5313 = vor.u32 %v5312, %v5308
      %v5314 = vrot.slane %v5313, 4
      %v5316 = vshll.u32 %v5255, 16
      %v5318 = vrot.slane %v5316, 5
      %v5319 = vsel %vm1139, %v5314, %v5318
      %v5320 = vshrl.u32 %v5255, 16
      %v5322 = vrot.slane %v5320, 4
      %v5323 = vor.u32 %v5322, %v5318
      %v5324 = vrot.slane %v5323, 4
      %v5326 = vshll.u32 %v5256, 16
      %v5328 = vrot.slane %v5326, 5
      %v5329 = vsel %vm1139, %v5324, %v5328
      %v5330 = vshrl.u32 %v5256, 16
      %v5332 = vrot.slane %v5330, 4
      %v5333 = vor.u32 %v5332, %v5328
      %v5334 = vrot.slane %v5333, 4
      %v5336 = vshll.u32 %v5257, 16
      %v5338 = vrot.slane %v5336, 5
      %v5339 = vsel %vm1139, %v5334, %v5338
      %v5340 = vshrl.u32 %v5257, 16
      %v5342 = vrot.slane %v5340, 4
      %v5343 = vor.u32 %v5342, %v5338
      %v5344 = vrot.slane %v5343, 4
      %v5346 = vshll.u32 %v5258, 16
      %v5348 = vrot.slane %v5346, 5
      %v5349 = vsel %vm1139, %v5344, %v5348
      %v5350 = vshrl.u32 %v5258, 16
      %v5352 = vrot.slane %v5350, 4
      %v5353 = vor.u32 %v5352, %v5348
      %v5354 = vrot.slane %v5353, 4
      %v5356 = vshll.u32 %v5259, 16
      %v5358 = vrot.slane %v5356, 5
      %v5359 = vsel %vm1139, %v5354, %v5358
      %v5360 = vshrl.u32 %v5259, 16
      %v5362 = vrot.slane %v5360, 4
      %v5363 = vor.u32 %v5362, %v5358
      %v5364 = vrot.slane %v5363, 4
      %v5366 = vshll.u32 %v5260, 16
      %v5368 = vrot.slane %v5366, 5
      %v5369 = vsel %vm1139, %v5364, %v5368
      %v5370 = vshrl.u32 %v5260, 16
      %v5372 = vrot.slane %v5370, 4
      %v5373 = vor.u32 %v5372, %v5368
      %v5374 = vrot.slane %v5373, 4
      %v5376 = vshll.u32 %v5261, 16
      %v5378 = vrot.slane %v5376, 5
      %v5379 = vsel %vm1139, %v5374, %v5378
      %v5380 = vshrl.u32 %v5261, 16
      %v5382 = vrot.slane %v5380, 4
      %v5383 = vor.u32 %v5382, %v5378
      %v5384 = vrot.slane %v5383, 4
      %v5386 = vshll.u32 %v5262, 16
      %v5388 = vrot.slane %v5386, 5
      %v5389 = vsel %vm1139, %v5384, %v5388
      %v5390 = vshrl.u32 %v5262, 16
      %v5392 = vrot.slane %v5390, 4
      %v5393 = vor.u32 %v5392, %v5388
      %v5394 = vrot.slane %v5393, 4
      %v5396 = vshll.u32 %v5263, 16
      %v5398 = vrot.slane %v5396, 5
      %v5399 = vsel %vm1139, %v5394, %v5398
      %v5400 = vshrl.u32 %v5263, 16
      %v5402 = vrot.slane %v5400, 4
      %v5403 = vor.u32 %v5402, %v5398
      %v5404 = vrot.slane %v5403, 4
      %v5406 = vshll.u32 %v5264, 16
      %v5408 = vrot.slane %v5406, 5
      %v5409 = vsel %vm1139, %v5404, %v5408
      %v5410 = vshrl.u32 %v5264, 16
      %v5412 = vrot.slane %v5410, 4
      %v5413 = vor.u32 %v5412, %v5408
      %v5414 = vrot.slane %v5413, 4
      %v5416 = vshll.u32 %v5265, 16
      %v5418 = vrot.slane %v5416, 5
      %v5419 = vsel %vm1139, %v5414, %v5418
      %v5420 = vshrl.u32 %v5265, 16
      %v5422 = vrot.slane %v5420, 4
      %v5423 = vor.u32 %v5422, %v5418
      %v5424 = vrot.slane %v5423, 4
      %v5426 = vshll.u32 %v5266, 16
      %v5428 = vrot.slane %v5426, 5
      %v5429 = vsel %vm1139, %v5424, %v5428
      %v5430 = vshrl.u32 %v5266, 16
      %v5432 = vrot.slane %v5430, 4
      %v5433 = vor.u32 %v5432, %v5428
      %v5434 = vrot.slane %v5433, 4
      %v5436 = vshll.u32 %v5267, 16
      %v5438 = vrot.slane %v5436, 5
      %v5439 = vsel %vm1139, %v5434, %v5438
      %v5440 = vshrl.u32 %v5267, 16
      %v5442 = vrot.slane %v5440, 4
      %v5443 = vor.u32 %v5442, %v5438
      %v5444 = vrot.slane %v5443, 4
      %v5446 = vshll.u32 %v5268, 16
      %v5448 = vrot.slane %v5446, 5
      %v5449 = vsel %vm1139, %v5444, %v5448
      %v5450 = vshrl.u32 %v5268, 16
      %v5452 = vrot.slane %v5450, 4
      %v5453 = vor.u32 %v5452, %v5448
      %v5454 = vrot.slane %v5453, 4
      %v5456 = vshll.u32 %v5269, 16
      %v5458 = vrot.slane %v5456, 5
      %v5459 = vsel %vm1139, %v5454, %v5458
      %v5460 = vshrl.u32 %v5269, 16
      %v5462 = vrot.slane %v5460, 4
      %v5463 = vor.u32 %v5462, %v5458
      %v5464 = vrot.slane %v5463, 4
      %v5466 = vshll.u32 %v5270, 16
      %v5468 = vrot.slane %v5466, 5
      %v5469 = vsel %vm1139, %v5464, %v5468
      %v5470 = vshrl.u32 %v5270, 16
      %v5472 = vrot.slane %v5470, 4
      %v5473 = vor.u32 %v5472, %v5468
      %v5474 = vrot.slane %v5473, 4
      %v5476 = vshll.u32 %v5271, 16
      %v5478 = vrot.slane %v5476, 5
      %v5479 = vsel %vm1139, %v5474, %v5478
      %v5480 = vshrl.u32 %v5271, 16
      %v5482 = vrot.slane %v5480, 4
      %v5483 = vor.u32 %v5482, %v5478
      %v5484 = vrot.slane %v5483, 4
      %v5486 = vshll.u32 %v5272, 16
      %v5488 = vrot.slane %v5486, 5
      %v5489 = vsel %vm1139, %v5484, %v5488
      %v5490 = vshrl.u32 %v5272, 16
      %v5492 = vrot.slane %v5490, 4
      %v5493 = vor.u32 %v5492, %v5488
      %v5494 = vrot.slane %v5493, 4
      %v5496 = vshll.u32 %v5273, 16
      %v5498 = vrot.slane %v5496, 5
      %v5499 = vsel %vm1139, %v5494, %v5498
      %v5500 = vshrl.u32 %v5273, 16
      %v5502 = vrot.slane %v5500, 4
      %v5503 = vor.u32 %v5502, %v5498
      %v5504 = vrot.slane %v5503, 4
      %v5506 = vshll.u32 %v5274, 16
      %v5508 = vrot.slane %v5506, 5
      %v5509 = vsel %vm1139, %v5504, %v5508
      %v5510 = vshrl.u32 %v5274, 16
      %v5512 = vrot.slane %v5510, 4
      %v5513 = vor.u32 %v5512, %v5508
      %v5514 = vrot.slane %v5513, 4
      %v5516 = vshll.u32 %v5275, 16
      %v5518 = vrot.slane %v5516, 5
      %v5519 = vsel %vm1139, %v5514, %v5518
      %5544 = vst [vmem:[#allocation3 + $0x8] sm:$0xf] %v5289
      %5545 = vst [vmem:[#allocation3 + $0x2c] sm:$0xf] %v5299
      %5546 = vst [vmem:[#allocation3 + $0x50] sm:$0xf] %v5309
      %5547 = vst [vmem:[#allocation3 + $0x74] sm:$0xf] %v5319
      %5548 = vst [vmem:[#allocation3 + $0x98] sm:$0xf] %v5329
      %5549 = vst [vmem:[#allocation3 + $0xbc] sm:$0xf] %v5339
      %5550 = vst [vmem:[#allocation3 + $0xe0] sm:$0xf] %v5349
      %5551 = vst [vmem:[#allocation3 + $0x104] sm:$0xf] %v5359
      %5552 = vst [vmem:[#allocation3 + $0x128] sm:$0xf] %v5369
      %5553 = vst [vmem:[#allocation3 + $0x14c] sm:$0xf] %v5379
      %5554 = vst [vmem:[#allocation3 + $0x170] sm:$0xf] %v5389
      %5555 = vst [vmem:[#allocation3 + $0x194] sm:$0xf] %v5399
      %5556 = vst [vmem:[#allocation3 + $0x1b8] sm:$0xf] %v5409
      %5557 = vst [vmem:[#allocation3 + $0x1dc] sm:$0xf] %v5419
      %5558 = vst [vmem:[#allocation3 + $0x200] sm:$0xf] %v5429
      %5559 = vst [vmem:[#allocation3 + $0x224] sm:$0xf] %v5439
      %5560 = vst [vmem:[#allocation3 + $0x248] sm:$0xf] %v5449
      %5561 = vst [vmem:[#allocation3 + $0x26c] sm:$0xf] %v5459
      %5562 = vst [vmem:[#allocation3 + $0x290] sm:$0xf] %v5469
      %5563 = vst [vmem:[#allocation3 + $0x2b4] sm:$0xf] %v5479
      %5564 = vst [vmem:[#allocation3 + $0x2d8] sm:$0xf] %v5489
      %5565 = vst [vmem:[#allocation3 + $0x2fc] sm:$0xf] %v5499
      %5566 = vst [vmem:[#allocation3 + $0x320] sm:$0xf] %v5509
      %5567 = vst [vmem:[#allocation3 + $0x344] sm:$0xf] %v5519
      %v5568 = vld [vmem:[#allocation2 + $0x6c] sm:$0x8]
      %v5569 = vld [vmem:[#allocation2 + $0x70] sm:$0xf]
      %v5570 = vld [vmem:[#allocation2 + $0x74] sm:$0xf]
      %v5571 = vld [vmem:[#allocation2 + $0x78] sm:$0xf]
      %v5572 = vld [vmem:[#allocation2 + $0x7c] sm:$0xf]
      %v5573 = vld [vmem:[#allocation2 + $0x80] sm:$0xf]
      %v5574 = vld [vmem:[#allocation2 + $0x84] sm:$0xf]
      %v5575 = vld [vmem:[#allocation2 + $0x88] sm:$0xf]
      %v5576 = vld [vmem:[#allocation2 + $0x8c] sm:$0xf]
      %v5577 = vld [vmem:[#allocation2 + $0x90] sm:$0xf]
      %v5578 = vld [vmem:[#allocation2 + $0x94] sm:$0xf]
      %v5579 = vld [vmem:[#allocation2 + $0x98] sm:$0xf]
      %v5580 = vld [vmem:[#allocation2 + $0x9c] sm:$0xf]
      %v5581 = vld [vmem:[#allocation2 + $0xa0] sm:$0xf]
      %v5582 = vld [vmem:[#allocation2 + $0xa4] sm:$0xf]
      %v5583 = vld [vmem:[#allocation2 + $0xa8] sm:$0xf]
      %v5584 = vld [vmem:[#allocation2 + $0xac] sm:$0xf]
      %v5585 = vld [vmem:[#allocation2 + $0xb0] sm:$0xf]
      %v5586 = vld [vmem:[#allocation2 + $0xb4] sm:$0xf]
      %v5587 = vld [vmem:[#allocation2 + $0xb8] sm:$0xf]
      %v5588 = vld [vmem:[#allocation2 + $0xbc] sm:$0xf]
      %v5589 = vld [vmem:[#allocation2 + $0xc0] sm:$0xf]
      %v5590 = vld [vmem:[#allocation2 + $0xc4] sm:$0xf]
      %v5591 = vld [vmem:[#allocation2 + $0xc8] sm:$0xf]
      %v5592 = vld [vmem:[#allocation2 + $0xcc] sm:$0xf]
      %v5594 = vshrl.u32 %v5568, 16
      %v5596 = vrot.slane %v5594, 7
      %v5597 = vrot.slane %v5596, 4
      %v5599 = vshrl.u32 %v5569, 16
      %v5601 = vrot.slane %v5599, 7
      %v5602 = vshll.u32 %v5569, 16
      %v5604 = vor.u32 %v5601, %v5602
      %v5605 = vsel %vm795, %v5597, %v5604
      %v5606 = vrot.slane %v5601, 4
      %v5608 = vshrl.u32 %v5570, 16
      %v5610 = vrot.slane %v5608, 7
      %v5611 = vshll.u32 %v5570, 16
      %v5613 = vor.u32 %v5610, %v5611
      %v5614 = vsel %vm795, %v5606, %v5613
      %v5615 = vrot.slane %v5610, 4
      %v5617 = vshrl.u32 %v5571, 16
      %v5619 = vrot.slane %v5617, 7
      %v5620 = vshll.u32 %v5571, 16
      %v5622 = vor.u32 %v5619, %v5620
      %v5623 = vsel %vm795, %v5615, %v5622
      %v5624 = vrot.slane %v5619, 4
      %v5626 = vshrl.u32 %v5572, 16
      %v5628 = vrot.slane %v5626, 7
      %v5629 = vshll.u32 %v5572, 16
      %v5631 = vor.u32 %v5628, %v5629
      %v5632 = vsel %vm795, %v5624, %v5631
      %v5633 = vrot.slane %v5628, 4
      %v5635 = vshrl.u32 %v5573, 16
      %v5637 = vrot.slane %v5635, 7
      %v5638 = vshll.u32 %v5573, 16
      %v5640 = vor.u32 %v5637, %v5638
      %v5641 = vsel %vm795, %v5633, %v5640
      %v5642 = vrot.slane %v5637, 4
      %v5644 = vshrl.u32 %v5574, 16
      %v5646 = vrot.slane %v5644, 7
      %v5647 = vshll.u32 %v5574, 16
      %v5649 = vor.u32 %v5646, %v5647
      %v5650 = vsel %vm795, %v5642, %v5649
      %v5651 = vrot.slane %v5646, 4
      %v5653 = vshrl.u32 %v5575, 16
      %v5655 = vrot.slane %v5653, 7
      %v5656 = vshll.u32 %v5575, 16
      %v5658 = vor.u32 %v5655, %v5656
      %v5659 = vsel %vm795, %v5651, %v5658
      %v5660 = vrot.slane %v5655, 4
      %v5662 = vshrl.u32 %v5576, 16
      %v5664 = vrot.slane %v5662, 7
      %v5665 = vshll.u32 %v5576, 16
      %v5667 = vor.u32 %v5664, %v5665
      %v5668 = vsel %vm795, %v5660, %v5667
      %v5669 = vrot.slane %v5664, 4
      %v5671 = vshrl.u32 %v5577, 16
      %v5673 = vrot.slane %v5671, 7
      %v5674 = vshll.u32 %v5577, 16
      %v5676 = vor.u32 %v5673, %v5674
      %v5677 = vsel %vm795, %v5669, %v5676
      %v5678 = vrot.slane %v5673, 4
      %v5680 = vshrl.u32 %v5578, 16
      %v5682 = vrot.slane %v5680, 7
      %v5683 = vshll.u32 %v5578, 16
      %v5685 = vor.u32 %v5682, %v5683
      %v5686 = vsel %vm795, %v5678, %v5685
      %v5687 = vrot.slane %v5682, 4
      %v5689 = vshrl.u32 %v5579, 16
      %v5691 = vrot.slane %v5689, 7
      %v5692 = vshll.u32 %v5579, 16
      %v5694 = vor.u32 %v5691, %v5692
      %v5695 = vsel %vm795, %v5687, %v5694
      %v5696 = vrot.slane %v5691, 4
      %v5698 = vshrl.u32 %v5580, 16
      %v5700 = vrot.slane %v5698, 7
      %v5701 = vshll.u32 %v5580, 16
      %v5703 = vor.u32 %v5700, %v5701
      %v5704 = vsel %vm795, %v5696, %v5703
      %v5705 = vrot.slane %v5700, 4
      %v5707 = vshrl.u32 %v5581, 16
      %v5709 = vrot.slane %v5707, 7
      %v5710 = vshll.u32 %v5581, 16
      %v5712 = vor.u32 %v5709, %v5710
      %v5713 = vsel %vm795, %v5705, %v5712
      %v5714 = vrot.slane %v5709, 4
      %v5716 = vshrl.u32 %v5582, 16
      %v5718 = vrot.slane %v5716, 7
      %v5719 = vshll.u32 %v5582, 16
      %v5721 = vor.u32 %v5718, %v5719
      %v5722 = vsel %vm795, %v5714, %v5721
      %v5723 = vrot.slane %v5718, 4
      %v5725 = vshrl.u32 %v5583, 16
      %v5727 = vrot.slane %v5725, 7
      %v5728 = vshll.u32 %v5583, 16
      %v5730 = vor.u32 %v5727, %v5728
      %v5731 = vsel %vm795, %v5723, %v5730
      %v5732 = vrot.slane %v5727, 4
      %v5734 = vshrl.u32 %v5584, 16
      %v5736 = vrot.slane %v5734, 7
      %v5737 = vshll.u32 %v5584, 16
      %v5739 = vor.u32 %v5736, %v5737
      %v5740 = vsel %vm795, %v5732, %v5739
      %v5741 = vrot.slane %v5736, 4
      %v5743 = vshrl.u32 %v5585, 16
      %v5745 = vrot.slane %v5743, 7
      %v5746 = vshll.u32 %v5585, 16
      %v5748 = vor.u32 %v5745, %v5746
      %v5749 = vsel %vm795, %v5741, %v5748
      %v5750 = vrot.slane %v5745, 4
      %v5752 = vshrl.u32 %v5586, 16
      %v5754 = vrot.slane %v5752, 7
      %v5755 = vshll.u32 %v5586, 16
      %v5757 = vor.u32 %v5754, %v5755
      %v5758 = vsel %vm795, %v5750, %v5757
      %v5759 = vrot.slane %v5754, 4
      %v5761 = vshrl.u32 %v5587, 16
      %v5763 = vrot.slane %v5761, 7
      %v5764 = vshll.u32 %v5587, 16
      %v5766 = vor.u32 %v5763, %v5764
      %v5767 = vsel %vm795, %v5759, %v5766
      %v5768 = vrot.slane %v5763, 4
      %v5770 = vshrl.u32 %v5588, 16
      %v5772 = vrot.slane %v5770, 7
      %v5773 = vshll.u32 %v5588, 16
      %v5775 = vor.u32 %v5772, %v5773
      %v5776 = vsel %vm795, %v5768, %v5775
      %v5777 = vrot.slane %v5772, 4
      %v5779 = vshrl.u32 %v5589, 16
      %v5781 = vrot.slane %v5779, 7
      %v5782 = vshll.u32 %v5589, 16
      %v5784 = vor.u32 %v5781, %v5782
      %v5785 = vsel %vm795, %v5777, %v5784
      %v5786 = vrot.slane %v5781, 4
      %v5788 = vshrl.u32 %v5590, 16
      %v5790 = vrot.slane %v5788, 7
      %v5791 = vshll.u32 %v5590, 16
      %v5793 = vor.u32 %v5790, %v5791
      %v5794 = vsel %vm795, %v5786, %v5793
      %v5795 = vrot.slane %v5790, 4
      %v5797 = vshrl.u32 %v5591, 16
      %v5799 = vrot.slane %v5797, 7
      %v5800 = vshll.u32 %v5591, 16
      %v5802 = vor.u32 %v5799, %v5800
      %v5803 = vsel %vm795, %v5795, %v5802
      %v5804 = vrot.slane %v5799, 4
      %v5806 = vshrl.u32 %v5592, 16
      %v5808 = vrot.slane %v5806, 7
      %v5809 = vshll.u32 %v5592, 16
      %v5811 = vor.u32 %v5808, %v5809
      %v5812 = vsel %vm795, %v5804, %v5811
      %5837 = vst [vmem:[#allocation3 + $0xc] sm:$0xf] %v5605
      %5838 = vst [vmem:[#allocation3 + $0x30] sm:$0xf] %v5614
      %5839 = vst [vmem:[#allocation3 + $0x54] sm:$0xf] %v5623
      %5840 = vst [vmem:[#allocation3 + $0x78] sm:$0xf] %v5632
      %5841 = vst [vmem:[#allocation3 + $0x9c] sm:$0xf] %v5641
      %5842 = vst [vmem:[#allocation3 + $0xc0] sm:$0xf] %v5650
      %5843 = vst [vmem:[#allocation3 + $0xe4] sm:$0xf] %v5659
      %5844 = vst [vmem:[#allocation3 + $0x108] sm:$0xf] %v5668
      %5845 = vst [vmem:[#allocation3 + $0x12c] sm:$0xf] %v5677
      %5846 = vst [vmem:[#allocation3 + $0x150] sm:$0xf] %v5686
      %5847 = vst [vmem:[#allocation3 + $0x174] sm:$0xf] %v5695
      %5848 = vst [vmem:[#allocation3 + $0x198] sm:$0xf] %v5704
      %5849 = vst [vmem:[#allocation3 + $0x1bc] sm:$0xf] %v5713
      %5850 = vst [vmem:[#allocation3 + $0x1e0] sm:$0xf] %v5722
      %5851 = vst [vmem:[#allocation3 + $0x204] sm:$0xf] %v5731
      %5852 = vst [vmem:[#allocation3 + $0x228] sm:$0xf] %v5740
      %5853 = vst [vmem:[#allocation3 + $0x24c] sm:$0xf] %v5749
      %5854 = vst [vmem:[#allocation3 + $0x270] sm:$0xf] %v5758
      %5855 = vst [vmem:[#allocation3 + $0x294] sm:$0xf] %v5767
      %5856 = vst [vmem:[#allocation3 + $0x2b8] sm:$0xf] %v5776
      %5857 = vst [vmem:[#allocation3 + $0x2dc] sm:$0xf] %v5785
      %5858 = vst [vmem:[#allocation3 + $0x300] sm:$0xf] %v5794
      %5859 = vst [vmem:[#allocation3 + $0x324] sm:$0xf] %v5803
      %5860 = vst [vmem:[#allocation3 + $0x348] sm:$0xf] %v5812
      %v5861 = vld [vmem:[#allocation2 + $0x70] sm:$0xf]
      %v5862 = vld [vmem:[#allocation2 + $0x74] sm:$0xf]
      %v5863 = vld [vmem:[#allocation2 + $0x78] sm:$0xf]
      %v5864 = vld [vmem:[#allocation2 + $0x7c] sm:$0xf]
      %v5865 = vld [vmem:[#allocation2 + $0x80] sm:$0xf]
      %v5866 = vld [vmem:[#allocation2 + $0x84] sm:$0xf]
      %v5867 = vld [vmem:[#allocation2 + $0x88] sm:$0xf]
      %v5868 = vld [vmem:[#allocation2 + $0x8c] sm:$0xf]
      %v5869 = vld [vmem:[#allocation2 + $0x90] sm:$0xf]
      %v5870 = vld [vmem:[#allocation2 + $0x94] sm:$0xf]
      %v5871 = vld [vmem:[#allocation2 + $0x98] sm:$0xf]
      %v5872 = vld [vmem:[#allocation2 + $0x9c] sm:$0xf]
      %v5873 = vld [vmem:[#allocation2 + $0xa0] sm:$0xf]
      %v5874 = vld [vmem:[#allocation2 + $0xa4] sm:$0xf]
      %v5875 = vld [vmem:[#allocation2 + $0xa8] sm:$0xf]
      %v5876 = vld [vmem:[#allocation2 + $0xac] sm:$0xf]
      %v5877 = vld [vmem:[#allocation2 + $0xb0] sm:$0xf]
      %v5878 = vld [vmem:[#allocation2 + $0xb4] sm:$0xf]
      %v5879 = vld [vmem:[#allocation2 + $0xb8] sm:$0xf]
      %v5880 = vld [vmem:[#allocation2 + $0xbc] sm:$0xf]
      %v5881 = vld [vmem:[#allocation2 + $0xc0] sm:$0xf]
      %v5882 = vld [vmem:[#allocation2 + $0xc4] sm:$0xf]
      %v5883 = vld [vmem:[#allocation2 + $0xc8] sm:$0xf]
      %v5884 = vld [vmem:[#allocation2 + $0xcc] sm:$0xf]
      %5885 = vst [vmem:[#allocation3 + $0x10] sm:$0xf] %v5861
      %5886 = vst [vmem:[#allocation3 + $0x34] sm:$0xf] %v5862
      %5887 = vst [vmem:[#allocation3 + $0x58] sm:$0xf] %v5863
      %5888 = vst [vmem:[#allocation3 + $0x7c] sm:$0xf] %v5864
      %5889 = vst [vmem:[#allocation3 + $0xa0] sm:$0xf] %v5865
      %5890 = vst [vmem:[#allocation3 + $0xc4] sm:$0xf] %v5866
      %5891 = vst [vmem:[#allocation3 + $0xe8] sm:$0xf] %v5867
      %5892 = vst [vmem:[#allocation3 + $0x10c] sm:$0xf] %v5868
      %5893 = vst [vmem:[#allocation3 + $0x130] sm:$0xf] %v5869
      %5894 = vst [vmem:[#allocation3 + $0x154] sm:$0xf] %v5870
      %5895 = vst [vmem:[#allocation3 + $0x178] sm:$0xf] %v5871
      %5896 = vst [vmem:[#allocation3 + $0x19c] sm:$0xf] %v5872
      %5897 = vst [vmem:[#allocation3 + $0x1c0] sm:$0xf] %v5873
      %5898 = vst [vmem:[#allocation3 + $0x1e4] sm:$0xf] %v5874
      %5899 = vst [vmem:[#allocation3 + $0x208] sm:$0xf] %v5875
      %5900 = vst [vmem:[#allocation3 + $0x22c] sm:$0xf] %v5876
      %5901 = vst [vmem:[#allocation3 + $0x250] sm:$0xf] %v5877
      %5902 = vst [vmem:[#allocation3 + $0x274] sm:$0xf] %v5878
      %5903 = vst [vmem:[#allocation3 + $0x298] sm:$0xf] %v5879
      %5904 = vst [vmem:[#allocation3 + $0x2bc] sm:$0xf] %v5880
      %5905 = vst [vmem:[#allocation3 + $0x2e0] sm:$0xf] %v5881
      %5906 = vst [vmem:[#allocation3 + $0x304] sm:$0xf] %v5882
      %5907 = vst [vmem:[#allocation3 + $0x328] sm:$0xf] %v5883
      %5908 = vst [vmem:[#allocation3 + $0x34c] sm:$0xf] %v5884
      %v5909 = vld [vmem:[#allocation2 + $0x70] sm:$0xf]
      %v5910 = vld [vmem:[#allocation2 + $0x74] sm:$0xf]
      %v5911 = vld [vmem:[#allocation2 + $0x78] sm:$0xf]
      %v5912 = vld [vmem:[#allocation2 + $0x7c] sm:$0xf]
      %v5913 = vld [vmem:[#allocation2 + $0x80] sm:$0xf]
      %v5914 = vld [vmem:[#allocation2 + $0x84] sm:$0xf]
      %v5915 = vld [vmem:[#allocation2 + $0x88] sm:$0xf]
      %v5916 = vld [vmem:[#allocation2 + $0x8c] sm:$0xf]
      %v5917 = vld [vmem:[#allocation2 + $0x90] sm:$0xf]
      %v5918 = vld [vmem:[#allocation2 + $0x94] sm:$0xf]
      %v5919 = vld [vmem:[#allocation2 + $0x98] sm:$0xf]
      %v5920 = vld [vmem:[#allocation2 + $0x9c] sm:$0xf]
      %v5921 = vld [vmem:[#allocation2 + $0xa0] sm:$0xf]
      %v5922 = vld [vmem:[#allocation2 + $0xa4] sm:$0xf]
      %v5923 = vld [vmem:[#allocation2 + $0xa8] sm:$0xf]
      %v5924 = vld [vmem:[#allocation2 + $0xac] sm:$0xf]
      %v5925 = vld [vmem:[#allocation2 + $0xb0] sm:$0xf]
      %v5926 = vld [vmem:[#allocation2 + $0xb4] sm:$0xf]
      %v5927 = vld [vmem:[#allocation2 + $0xb8] sm:$0xf]
      %v5928 = vld [vmem:[#allocation2 + $0xbc] sm:$0xf]
      %v5929 = vld [vmem:[#allocation2 + $0xc0] sm:$0xf]
      %v5930 = vld [vmem:[#allocation2 + $0xc4] sm:$0xf]
      %v5931 = vld [vmem:[#allocation2 + $0xc8] sm:$0xf]
      %v5932 = vld [vmem:[#allocation2 + $0xcc] sm:$0xf]
      %v5933 = vld [vmem:[#allocation2 + $0xd0] sm:$0x1]
      %v5935 = vshrl.u32 %v5909, 16
      %v5937 = vrot.slane %v5935, 4
      %v5938 = vshll.u32 %v5909, 16
      %v5940 = vrot.slane %v5938, 5
      %v5941 = vor.u32 %v5937, %v5940
      %v5942 = vrot.slane %v5941, 4
      %v5944 = vshll.u32 %v5910, 16
      %v5946 = vrot.slane %v5944, 5
      %v5947 = vsel %vm1139, %v5942, %v5946
      %v5948 = vshrl.u32 %v5910, 16
      %v5950 = vrot.slane %v5948, 4
      %v5951 = vor.u32 %v5950, %v5946
      %v5952 = vrot.slane %v5951, 4
      %v5954 = vshll.u32 %v5911, 16
      %v5956 = vrot.slane %v5954, 5
      %v5957 = vsel %vm1139, %v5952, %v5956
      %v5958 = vshrl.u32 %v5911, 16
      %v5960 = vrot.slane %v5958, 4
      %v5961 = vor.u32 %v5960, %v5956
      %v5962 = vrot.slane %v5961, 4
      %v5964 = vshll.u32 %v5912, 16
      %v5966 = vrot.slane %v5964, 5
      %v5967 = vsel %vm1139, %v5962, %v5966
      %v5968 = vshrl.u32 %v5912, 16
      %v5970 = vrot.slane %v5968, 4
      %v5971 = vor.u32 %v5970, %v5966
      %v5972 = vrot.slane %v5971, 4
      %v5974 = vshll.u32 %v5913, 16
      %v5976 = vrot.slane %v5974, 5
      %v5977 = vsel %vm1139, %v5972, %v5976
      %v5978 = vshrl.u32 %v5913, 16
      %v5980 = vrot.slane %v5978, 4
      %v5981 = vor.u32 %v5980, %v5976
      %v5982 = vrot.slane %v5981, 4
      %v5984 = vshll.u32 %v5914, 16
      %v5986 = vrot.slane %v5984, 5
      %v5987 = vsel %vm1139, %v5982, %v5986
      %v5988 = vshrl.u32 %v5914, 16
      %v5990 = vrot.slane %v5988, 4
      %v5991 = vor.u32 %v5990, %v5986
      %v5992 = vrot.slane %v5991, 4
      %v5994 = vshll.u32 %v5915, 16
      %v5996 = vrot.slane %v5994, 5
      %v5997 = vsel %vm1139, %v5992, %v5996
      %v5998 = vshrl.u32 %v5915, 16
      %v6000 = vrot.slane %v5998, 4
      %v6001 = vor.u32 %v6000, %v5996
      %v6002 = vrot.slane %v6001, 4
      %v6004 = vshll.u32 %v5916, 16
      %v6006 = vrot.slane %v6004, 5
      %v6007 = vsel %vm1139, %v6002, %v6006
      %v6008 = vshrl.u32 %v5916, 16
      %v6010 = vrot.slane %v6008, 4
      %v6011 = vor.u32 %v6010, %v6006
      %v6012 = vrot.slane %v6011, 4
      %v6014 = vshll.u32 %v5917, 16
      %v6016 = vrot.slane %v6014, 5
      %v6017 = vsel %vm1139, %v6012, %v6016
      %v6018 = vshrl.u32 %v5917, 16
      %v6020 = vrot.slane %v6018, 4
      %v6021 = vor.u32 %v6020, %v6016
      %v6022 = vrot.slane %v6021, 4
      %v6024 = vshll.u32 %v5918, 16
      %v6026 = vrot.slane %v6024, 5
      %v6027 = vsel %vm1139, %v6022, %v6026
      %v6028 = vshrl.u32 %v5918, 16
      %v6030 = vrot.slane %v6028, 4
      %v6031 = vor.u32 %v6030, %v6026
      %v6032 = vrot.slane %v6031, 4
      %v6034 = vshll.u32 %v5919, 16
      %v6036 = vrot.slane %v6034, 5
      %v6037 = vsel %vm1139, %v6032, %v6036
      %v6038 = vshrl.u32 %v5919, 16
      %v6040 = vrot.slane %v6038, 4
      %v6041 = vor.u32 %v6040, %v6036
      %v6042 = vrot.slane %v6041, 4
      %v6044 = vshll.u32 %v5920, 16
      %v6046 = vrot.slane %v6044, 5
      %v6047 = vsel %vm1139, %v6042, %v6046
      %v6048 = vshrl.u32 %v5920, 16
      %v6050 = vrot.slane %v6048, 4
      %v6051 = vor.u32 %v6050, %v6046
      %v6052 = vrot.slane %v6051, 4
      %v6054 = vshll.u32 %v5921, 16
      %v6056 = vrot.slane %v6054, 5
      %v6057 = vsel %vm1139, %v6052, %v6056
      %v6058 = vshrl.u32 %v5921, 16
      %v6060 = vrot.slane %v6058, 4
      %v6061 = vor.u32 %v6060, %v6056
      %v6062 = vrot.slane %v6061, 4
      %v6064 = vshll.u32 %v5922, 16
      %v6066 = vrot.slane %v6064, 5
      %v6067 = vsel %vm1139, %v6062, %v6066
      %v6068 = vshrl.u32 %v5922, 16
      %v6070 = vrot.slane %v6068, 4
      %v6071 = vor.u32 %v6070, %v6066
      %v6072 = vrot.slane %v6071, 4
      %v6074 = vshll.u32 %v5923, 16
      %v6076 = vrot.slane %v6074, 5
      %v6077 = vsel %vm1139, %v6072, %v6076
      %v6078 = vshrl.u32 %v5923, 16
      %v6080 = vrot.slane %v6078, 4
      %v6081 = vor.u32 %v6080, %v6076
      %v6082 = vrot.slane %v6081, 4
      %v6084 = vshll.u32 %v5924, 16
      %v6086 = vrot.slane %v6084, 5
      %v6087 = vsel %vm1139, %v6082, %v6086
      %v6088 = vshrl.u32 %v5924, 16
      %v6090 = vrot.slane %v6088, 4
      %v6091 = vor.u32 %v6090, %v6086
      %v6092 = vrot.slane %v6091, 4
      %v6094 = vshll.u32 %v5925, 16
      %v6096 = vrot.slane %v6094, 5
      %v6097 = vsel %vm1139, %v6092, %v6096
      %v6098 = vshrl.u32 %v5925, 16
      %v6100 = vrot.slane %v6098, 4
      %v6101 = vor.u32 %v6100, %v6096
      %v6102 = vrot.slane %v6101, 4
      %v6104 = vshll.u32 %v5926, 16
      %v6106 = vrot.slane %v6104, 5
      %v6107 = vsel %vm1139, %v6102, %v6106
      %v6108 = vshrl.u32 %v5926, 16
      %v6110 = vrot.slane %v6108, 4
      %v6111 = vor.u32 %v6110, %v6106
      %v6112 = vrot.slane %v6111, 4
      %v6114 = vshll.u32 %v5927, 16
      %v6116 = vrot.slane %v6114, 5
      %v6117 = vsel %vm1139, %v6112, %v6116
      %v6118 = vshrl.u32 %v5927, 16
      %v6120 = vrot.slane %v6118, 4
      %v6121 = vor.u32 %v6120, %v6116
      %v6122 = vrot.slane %v6121, 4
      %v6124 = vshll.u32 %v5928, 16
      %v6126 = vrot.slane %v6124, 5
      %v6127 = vsel %vm1139, %v6122, %v6126
      %v6128 = vshrl.u32 %v5928, 16
      %v6130 = vrot.slane %v6128, 4
      %v6131 = vor.u32 %v6130, %v6126
      %v6132 = vrot.slane %v6131, 4
      %v6134 = vshll.u32 %v5929, 16
      %v6136 = vrot.slane %v6134, 5
      %v6137 = vsel %vm1139, %v6132, %v6136
      %v6138 = vshrl.u32 %v5929, 16
      %v6140 = vrot.slane %v6138, 4
      %v6141 = vor.u32 %v6140, %v6136
      %v6142 = vrot.slane %v6141, 4
      %v6144 = vshll.u32 %v5930, 16
      %v6146 = vrot.slane %v6144, 5
      %v6147 = vsel %vm1139, %v6142, %v6146
      %v6148 = vshrl.u32 %v5930, 16
      %v6150 = vrot.slane %v6148, 4
      %v6151 = vor.u32 %v6150, %v6146
      %v6152 = vrot.slane %v6151, 4
      %v6154 = vshll.u32 %v5931, 16
      %v6156 = vrot.slane %v6154, 5
      %v6157 = vsel %vm1139, %v6152, %v6156
      %v6158 = vshrl.u32 %v5931, 16
      %v6160 = vrot.slane %v6158, 4
      %v6161 = vor.u32 %v6160, %v6156
      %v6162 = vrot.slane %v6161, 4
      %v6164 = vshll.u32 %v5932, 16
      %v6166 = vrot.slane %v6164, 5
      %v6167 = vsel %vm1139, %v6162, %v6166
      %v6168 = vshrl.u32 %v5932, 16
      %v6170 = vrot.slane %v6168, 4
      %v6171 = vor.u32 %v6170, %v6166
      %v6172 = vrot.slane %v6171, 4
      %v6174 = vshll.u32 %v5933, 16
      %v6176 = vrot.slane %v6174, 5
      %v6177 = vsel %vm1139, %v6172, %v6176
      %6202 = vst [vmem:[#allocation3 + $0x14] sm:$0xf] %v5947
      %6203 = vst [vmem:[#allocation3 + $0x38] sm:$0xf] %v5957
      %6204 = vst [vmem:[#allocation3 + $0x5c] sm:$0xf] %v5967
      %6205 = vst [vmem:[#allocation3 + $0x80] sm:$0xf] %v5977
      %6206 = vst [vmem:[#allocation3 + $0xa4] sm:$0xf] %v5987
      %6207 = vst [vmem:[#allocation3 + $0xc8] sm:$0xf] %v5997
      %6208 = vst [vmem:[#allocation3 + $0xec] sm:$0xf] %v6007
      %6209 = vst [vmem:[#allocation3 + $0x110] sm:$0xf] %v6017
      %6210 = vst [vmem:[#allocation3 + $0x134] sm:$0xf] %v6027
      %6211 = vst [vmem:[#allocation3 + $0x158] sm:$0xf] %v6037
      %6212 = vst [vmem:[#allocation3 + $0x17c] sm:$0xf] %v6047
      %6213 = vst [vmem:[#allocation3 + $0x1a0] sm:$0xf] %v6057
      %6214 = vst [vmem:[#allocation3 + $0x1c4] sm:$0xf] %v6067
      %6215 = vst [vmem:[#allocation3 + $0x1e8] sm:$0xf] %v6077
      %6216 = vst [vmem:[#allocation3 + $0x20c] sm:$0xf] %v6087
      %6217 = vst [vmem:[#allocation3 + $0x230] sm:$0xf] %v6097
      %6218 = vst [vmem:[#allocation3 + $0x254] sm:$0xf] %v6107
      %6219 = vst [vmem:[#allocation3 + $0x278] sm:$0xf] %v6117
      %6220 = vst [vmem:[#allocation3 + $0x29c] sm:$0xf] %v6127
      %6221 = vst [vmem:[#allocation3 + $0x2c0] sm:$0xf] %v6137
      %6222 = vst [vmem:[#allocation3 + $0x2e4] sm:$0xf] %v6147
      %6223 = vst [vmem:[#allocation3 + $0x308] sm:$0xf] %v6157
      %6224 = vst [vmem:[#allocation3 + $0x32c] sm:$0xf] %v6167
      %6225 = vst [vmem:[#allocation3 + $0x350] sm:$0xf] %v6177
      %v6226 = vld [vmem:[#allocation2 + $0x78] sm:$0x8]
      %v6227 = vld [vmem:[#allocation2 + $0x7c] sm:$0xf]
      %v6228 = vld [vmem:[#allocation2 + $0x80] sm:$0xf]
      %v6229 = vld [vmem:[#allocation2 + $0x84] sm:$0xf]
      %v6230 = vld [vmem:[#allocation2 + $0x88] sm:$0xf]
      %v6231 = vld [vmem:[#allocation2 + $0x8c] sm:$0xf]
      %v6232 = vld [vmem:[#allocation2 + $0x90] sm:$0xf]
      %v6233 = vld [vmem:[#allocation2 + $0x94] sm:$0xf]
      %v6234 = vld [vmem:[#allocation2 + $0x98] sm:$0xf]
      %v6235 = vld [vmem:[#allocation2 + $0x9c] sm:$0xf]
      %v6236 = vld [vmem:[#allocation2 + $0xa0] sm:$0xf]
      %v6237 = vld [vmem:[#allocation2 + $0xa4] sm:$0xf]
      %v6238 = vld [vmem:[#allocation2 + $0xa8] sm:$0xf]
      %v6239 = vld [vmem:[#allocation2 + $0xac] sm:$0xf]
      %v6240 = vld [vmem:[#allocation2 + $0xb0] sm:$0xf]
      %v6241 = vld [vmem:[#allocation2 + $0xb4] sm:$0xf]
      %v6242 = vld [vmem:[#allocation2 + $0xb8] sm:$0xf]
      %v6243 = vld [vmem:[#allocation2 + $0xbc] sm:$0xf]
      %v6244 = vld [vmem:[#allocation2 + $0xc0] sm:$0xf]
      %v6245 = vld [vmem:[#allocation2 + $0xc4] sm:$0xf]
      %v6246 = vld [vmem:[#allocation2 + $0xc8] sm:$0xf]
      %v6247 = vld [vmem:[#allocation2 + $0xcc] sm:$0xf]
      %v6248 = vld [vmem:[#allocation2 + $0xd0] sm:$0xf]
      %v6249 = vld [vmem:[#allocation2 + $0xd4] sm:$0xf]
      %v6250 = vld [vmem:[#allocation2 + $0xd8] sm:$0xf]
      %v6252 = vshrl.u32 %v6226, 16
      %v6254 = vrot.slane %v6252, 7
      %v6255 = vrot.slane %v6254, 4
      %v6257 = vshrl.u32 %v6227, 16
      %v6259 = vrot.slane %v6257, 7
      %v6260 = vshll.u32 %v6227, 16
      %v6262 = vor.u32 %v6259, %v6260
      %v6263 = vsel %vm795, %v6255, %v6262
      %v6264 = vrot.slane %v6259, 4
      %v6266 = vshrl.u32 %v6228, 16
      %v6268 = vrot.slane %v6266, 7
      %v6269 = vshll.u32 %v6228, 16
      %v6271 = vor.u32 %v6268, %v6269
      %v6272 = vsel %vm795, %v6264, %v6271
      %v6273 = vrot.slane %v6268, 4
      %v6275 = vshrl.u32 %v6229, 16
      %v6277 = vrot.slane %v6275, 7
      %v6278 = vshll.u32 %v6229, 16
      %v6280 = vor.u32 %v6277, %v6278
      %v6281 = vsel %vm795, %v6273, %v6280
      %v6282 = vrot.slane %v6277, 4
      %v6284 = vshrl.u32 %v6230, 16
      %v6286 = vrot.slane %v6284, 7
      %v6287 = vshll.u32 %v6230, 16
      %v6289 = vor.u32 %v6286, %v6287
      %v6290 = vsel %vm795, %v6282, %v6289
      %v6291 = vrot.slane %v6286, 4
      %v6293 = vshrl.u32 %v6231, 16
      %v6295 = vrot.slane %v6293, 7
      %v6296 = vshll.u32 %v6231, 16
      %v6298 = vor.u32 %v6295, %v6296
      %v6299 = vsel %vm795, %v6291, %v6298
      %v6300 = vrot.slane %v6295, 4
      %v6302 = vshrl.u32 %v6232, 16
      %v6304 = vrot.slane %v6302, 7
      %v6305 = vshll.u32 %v6232, 16
      %v6307 = vor.u32 %v6304, %v6305
      %v6308 = vsel %vm795, %v6300, %v6307
      %v6309 = vrot.slane %v6304, 4
      %v6311 = vshrl.u32 %v6233, 16
      %v6313 = vrot.slane %v6311, 7
      %v6314 = vshll.u32 %v6233, 16
      %v6316 = vor.u32 %v6313, %v6314
      %v6317 = vsel %vm795, %v6309, %v6316
      %v6318 = vrot.slane %v6313, 4
      %v6320 = vshrl.u32 %v6234, 16
      %v6322 = vrot.slane %v6320, 7
      %v6323 = vshll.u32 %v6234, 16
      %v6325 = vor.u32 %v6322, %v6323
      %v6326 = vsel %vm795, %v6318, %v6325
      %v6327 = vrot.slane %v6322, 4
      %v6329 = vshrl.u32 %v6235, 16
      %v6331 = vrot.slane %v6329, 7
      %v6332 = vshll.u32 %v6235, 16
      %v6334 = vor.u32 %v6331, %v6332
      %v6335 = vsel %vm795, %v6327, %v6334
      %v6336 = vrot.slane %v6331, 4
      %v6338 = vshrl.u32 %v6236, 16
      %v6340 = vrot.slane %v6338, 7
      %v6341 = vshll.u32 %v6236, 16
      %v6343 = vor.u32 %v6340, %v6341
      %v6344 = vsel %vm795, %v6336, %v6343
      %v6345 = vrot.slane %v6340, 4
      %v6347 = vshrl.u32 %v6237, 16
      %v6349 = vrot.slane %v6347, 7
      %v6350 = vshll.u32 %v6237, 16
      %v6352 = vor.u32 %v6349, %v6350
      %v6353 = vsel %vm795, %v6345, %v6352
      %v6354 = vrot.slane %v6349, 4
      %v6356 = vshrl.u32 %v6238, 16
      %v6358 = vrot.slane %v6356, 7
      %v6359 = vshll.u32 %v6238, 16
      %v6361 = vor.u32 %v6358, %v6359
      %v6362 = vsel %vm795, %v6354, %v6361
      %v6363 = vrot.slane %v6358, 4
      %v6365 = vshrl.u32 %v6239, 16
      %v6367 = vrot.slane %v6365, 7
      %v6368 = vshll.u32 %v6239, 16
      %v6370 = vor.u32 %v6367, %v6368
      %v6371 = vsel %vm795, %v6363, %v6370
      %v6372 = vrot.slane %v6367, 4
      %v6374 = vshrl.u32 %v6240, 16
      %v6376 = vrot.slane %v6374, 7
      %v6377 = vshll.u32 %v6240, 16
      %v6379 = vor.u32 %v6376, %v6377
      %v6380 = vsel %vm795, %v6372, %v6379
      %v6381 = vrot.slane %v6376, 4
      %v6383 = vshrl.u32 %v6241, 16
      %v6385 = vrot.slane %v6383, 7
      %v6386 = vshll.u32 %v6241, 16
      %v6388 = vor.u32 %v6385, %v6386
      %v6389 = vsel %vm795, %v6381, %v6388
      %v6390 = vrot.slane %v6385, 4
      %v6392 = vshrl.u32 %v6242, 16
      %v6394 = vrot.slane %v6392, 7
      %v6395 = vshll.u32 %v6242, 16
      %v6397 = vor.u32 %v6394, %v6395
      %v6398 = vsel %vm795, %v6390, %v6397
      %v6399 = vrot.slane %v6394, 4
      %v6401 = vshrl.u32 %v6243, 16
      %v6403 = vrot.slane %v6401, 7
      %v6404 = vshll.u32 %v6243, 16
      %v6406 = vor.u32 %v6403, %v6404
      %v6407 = vsel %vm795, %v6399, %v6406
      %v6408 = vrot.slane %v6403, 4
      %v6410 = vshrl.u32 %v6244, 16
      %v6412 = vrot.slane %v6410, 7
      %v6413 = vshll.u32 %v6244, 16
      %v6415 = vor.u32 %v6412, %v6413
      %v6416 = vsel %vm795, %v6408, %v6415
      %v6417 = vrot.slane %v6412, 4
      %v6419 = vshrl.u32 %v6245, 16
      %v6421 = vrot.slane %v6419, 7
      %v6422 = vshll.u32 %v6245, 16
      %v6424 = vor.u32 %v6421, %v6422
      %v6425 = vsel %vm795, %v6417, %v6424
      %v6426 = vrot.slane %v6421, 4
      %v6428 = vshrl.u32 %v6246, 16
      %v6430 = vrot.slane %v6428, 7
      %v6431 = vshll.u32 %v6246, 16
      %v6433 = vor.u32 %v6430, %v6431
      %v6434 = vsel %vm795, %v6426, %v6433
      %v6435 = vrot.slane %v6430, 4
      %v6437 = vshrl.u32 %v6247, 16
      %v6439 = vrot.slane %v6437, 7
      %v6440 = vshll.u32 %v6247, 16
      %v6442 = vor.u32 %v6439, %v6440
      %v6443 = vsel %vm795, %v6435, %v6442
      %v6444 = vrot.slane %v6439, 4
      %v6446 = vshrl.u32 %v6248, 16
      %v6448 = vrot.slane %v6446, 7
      %v6449 = vshll.u32 %v6248, 16
      %v6451 = vor.u32 %v6448, %v6449
      %v6452 = vsel %vm795, %v6444, %v6451
      %v6453 = vrot.slane %v6448, 4
      %v6455 = vshrl.u32 %v6249, 16
      %v6457 = vrot.slane %v6455, 7
      %v6458 = vshll.u32 %v6249, 16
      %v6460 = vor.u32 %v6457, %v6458
      %v6461 = vsel %vm795, %v6453, %v6460
      %v6462 = vrot.slane %v6457, 4
      %v6464 = vshrl.u32 %v6250, 16
      %v6466 = vrot.slane %v6464, 7
      %v6467 = vshll.u32 %v6250, 16
      %v6469 = vor.u32 %v6466, %v6467
      %v6470 = vsel %vm795, %v6462, %v6469
      %6495 = vst [vmem:[#allocation3 + $0x18] sm:$0xf] %v6263
      %6496 = vst [vmem:[#allocation3 + $0x3c] sm:$0xf] %v6272
      %6497 = vst [vmem:[#allocation3 + $0x60] sm:$0xf] %v6281
      %6498 = vst [vmem:[#allocation3 + $0x84] sm:$0xf] %v6290
      %6499 = vst [vmem:[#allocation3 + $0xa8] sm:$0xf] %v6299
      %6500 = vst [vmem:[#allocation3 + $0xcc] sm:$0xf] %v6308
      %6501 = vst [vmem:[#allocation3 + $0xf0] sm:$0xf] %v6317
      %6502 = vst [vmem:[#allocation3 + $0x114] sm:$0xf] %v6326
      %6503 = vst [vmem:[#allocation3 + $0x138] sm:$0xf] %v6335
      %6504 = vst [vmem:[#allocation3 + $0x15c] sm:$0xf] %v6344
      %6505 = vst [vmem:[#allocation3 + $0x180] sm:$0xf] %v6353
      %6506 = vst [vmem:[#allocation3 + $0x1a4] sm:$0xf] %v6362
      %6507 = vst [vmem:[#allocation3 + $0x1c8] sm:$0xf] %v6371
      %6508 = vst [vmem:[#allocation3 + $0x1ec] sm:$0xf] %v6380
      %6509 = vst [vmem:[#allocation3 + $0x210] sm:$0xf] %v6389
      %6510 = vst [vmem:[#allocation3 + $0x234] sm:$0xf] %v6398
      %6511 = vst [vmem:[#allocation3 + $0x258] sm:$0xf] %v6407
      %6512 = vst [vmem:[#allocation3 + $0x27c] sm:$0xf] %v6416
      %6513 = vst [vmem:[#allocation3 + $0x2a0] sm:$0xf] %v6425
      %6514 = vst [vmem:[#allocation3 + $0x2c4] sm:$0xf] %v6434
      %6515 = vst [vmem:[#allocation3 + $0x2e8] sm:$0xf] %v6443
      %6516 = vst [vmem:[#allocation3 + $0x30c] sm:$0xf] %v6452
      %6517 = vst [vmem:[#allocation3 + $0x330] sm:$0xf] %v6461
      %6518 = vst [vmem:[#allocation3 + $0x354] sm:$0xf] %v6470
      %v6519 = vld [vmem:[#allocation2 + $0x7c] sm:$0xf]
      %v6520 = vld [vmem:[#allocation2 + $0x80] sm:$0xf]
      %v6521 = vld [vmem:[#allocation2 + $0x84] sm:$0xf]
      %v6522 = vld [vmem:[#allocation2 + $0x88] sm:$0xf]
      %v6523 = vld [vmem:[#allocation2 + $0x8c] sm:$0xf]
      %v6524 = vld [vmem:[#allocation2 + $0x90] sm:$0xf]
      %v6525 = vld [vmem:[#allocation2 + $0x94] sm:$0xf]
      %v6526 = vld [vmem:[#allocation2 + $0x98] sm:$0xf]
      %v6527 = vld [vmem:[#allocation2 + $0x9c] sm:$0xf]
      %v6528 = vld [vmem:[#allocation2 + $0xa0] sm:$0xf]
      %v6529 = vld [vmem:[#allocation2 + $0xa4] sm:$0xf]
      %v6530 = vld [vmem:[#allocation2 + $0xa8] sm:$0xf]
      %v6531 = vld [vmem:[#allocation2 + $0xac] sm:$0xf]
      %v6532 = vld [vmem:[#allocation2 + $0xb0] sm:$0xf]
      %v6533 = vld [vmem:[#allocation2 + $0xb4] sm:$0xf]
      %v6534 = vld [vmem:[#allocation2 + $0xb8] sm:$0xf]
      %v6535 = vld [vmem:[#allocation2 + $0xbc] sm:$0xf]
      %v6536 = vld [vmem:[#allocation2 + $0xc0] sm:$0xf]
      %v6537 = vld [vmem:[#allocation2 + $0xc4] sm:$0xf]
      %v6538 = vld [vmem:[#allocation2 + $0xc8] sm:$0xf]
      %v6539 = vld [vmem:[#allocation2 + $0xcc] sm:$0xf]
      %v6540 = vld [vmem:[#allocation2 + $0xd0] sm:$0xf]
      %v6541 = vld [vmem:[#allocation2 + $0xd4] sm:$0xf]
      %v6542 = vld [vmem:[#allocation2 + $0xd8] sm:$0xf]
      %6543 = vst [vmem:[#allocation3 + $0x1c] sm:$0xf] %v6519
      %6544 = vst [vmem:[#allocation3 + $0x40] sm:$0xf] %v6520
      %6545 = vst [vmem:[#allocation3 + $0x64] sm:$0xf] %v6521
      %6546 = vst [vmem:[#allocation3 + $0x88] sm:$0xf] %v6522
      %6547 = vst [vmem:[#allocation3 + $0xac] sm:$0xf] %v6523
      %6548 = vst [vmem:[#allocation3 + $0xd0] sm:$0xf] %v6524
      %6549 = vst [vmem:[#allocation3 + $0xf4] sm:$0xf] %v6525
      %6550 = vst [vmem:[#allocation3 + $0x118] sm:$0xf] %v6526
      %6551 = vst [vmem:[#allocation3 + $0x13c] sm:$0xf] %v6527
      %6552 = vst [vmem:[#allocation3 + $0x160] sm:$0xf] %v6528
      %6553 = vst [vmem:[#allocation3 + $0x184] sm:$0xf] %v6529
      %6554 = vst [vmem:[#allocation3 + $0x1a8] sm:$0xf] %v6530
      %6555 = vst [vmem:[#allocation3 + $0x1cc] sm:$0xf] %v6531
      %6556 = vst [vmem:[#allocation3 + $0x1f0] sm:$0xf] %v6532
      %6557 = vst [vmem:[#allocation3 + $0x214] sm:$0xf] %v6533
      %6558 = vst [vmem:[#allocation3 + $0x238] sm:$0xf] %v6534
      %6559 = vst [vmem:[#allocation3 + $0x25c] sm:$0xf] %v6535
      %6560 = vst [vmem:[#allocation3 + $0x280] sm:$0xf] %v6536
      %6561 = vst [vmem:[#allocation3 + $0x2a4] sm:$0xf] %v6537
      %6562 = vst [vmem:[#allocation3 + $0x2c8] sm:$0xf] %v6538
      %6563 = vst [vmem:[#allocation3 + $0x2ec] sm:$0xf] %v6539
      %6564 = vst [vmem:[#allocation3 + $0x310] sm:$0xf] %v6540
      %6565 = vst [vmem:[#allocation3 + $0x334] sm:$0xf] %v6541
      %6566 = vst [vmem:[#allocation3 + $0x358] sm:$0xf] %v6542
      %v6567 = vld [vmem:[#allocation2 + $0x7c] sm:$0xf]
      %v6568 = vld [vmem:[#allocation2 + $0x80] sm:$0xf]
      %v6569 = vld [vmem:[#allocation2 + $0x84] sm:$0xf]
      %v6570 = vld [vmem:[#allocation2 + $0x88] sm:$0xf]
      %v6571 = vld [vmem:[#allocation2 + $0x8c] sm:$0xf]
      %v6572 = vld [vmem:[#allocation2 + $0x90] sm:$0xf]
      %v6573 = vld [vmem:[#allocation2 + $0x94] sm:$0xf]
      %v6574 = vld [vmem:[#allocation2 + $0x98] sm:$0xf]
      %v6575 = vld [vmem:[#allocation2 + $0x9c] sm:$0xf]
      %v6576 = vld [vmem:[#allocation2 + $0xa0] sm:$0xf]
      %v6577 = vld [vmem:[#allocation2 + $0xa4] sm:$0xf]
      %v6578 = vld [vmem:[#allocation2 + $0xa8] sm:$0xf]
      %v6579 = vld [vmem:[#allocation2 + $0xac] sm:$0xf]
      %v6580 = vld [vmem:[#allocation2 + $0xb0] sm:$0xf]
      %v6581 = vld [vmem:[#allocation2 + $0xb4] sm:$0xf]
      %v6582 = vld [vmem:[#allocation2 + $0xb8] sm:$0xf]
      %v6583 = vld [vmem:[#allocation2 + $0xbc] sm:$0xf]
      %v6584 = vld [vmem:[#allocation2 + $0xc0] sm:$0xf]
      %v6585 = vld [vmem:[#allocation2 + $0xc4] sm:$0xf]
      %v6586 = vld [vmem:[#allocation2 + $0xc8] sm:$0xf]
      %v6587 = vld [vmem:[#allocation2 + $0xcc] sm:$0xf]
      %v6588 = vld [vmem:[#allocation2 + $0xd0] sm:$0xf]
      %v6589 = vld [vmem:[#allocation2 + $0xd4] sm:$0xf]
      %v6590 = vld [vmem:[#allocation2 + $0xd8] sm:$0xf]
      %v6591 = vld [vmem:[#allocation2 + $0xdc] sm:$0x1]
      %v6593 = vshrl.u32 %v6567, 16
      %v6595 = vrot.slane %v6593, 4
      %v6596 = vshll.u32 %v6567, 16
      %v6598 = vrot.slane %v6596, 5
      %v6599 = vor.u32 %v6595, %v6598
      %v6600 = vrot.slane %v6599, 4
      %v6602 = vshll.u32 %v6568, 16
      %v6604 = vrot.slane %v6602, 5
      %v6605 = vsel %vm1139, %v6600, %v6604
      %v6606 = vshrl.u32 %v6568, 16
      %v6608 = vrot.slane %v6606, 4
      %v6609 = vor.u32 %v6608, %v6604
      %v6610 = vrot.slane %v6609, 4
      %v6612 = vshll.u32 %v6569, 16
      %v6614 = vrot.slane %v6612, 5
      %v6615 = vsel %vm1139, %v6610, %v6614
      %v6616 = vshrl.u32 %v6569, 16
      %v6618 = vrot.slane %v6616, 4
      %v6619 = vor.u32 %v6618, %v6614
      %v6620 = vrot.slane %v6619, 4
      %v6622 = vshll.u32 %v6570, 16
      %v6624 = vrot.slane %v6622, 5
      %v6625 = vsel %vm1139, %v6620, %v6624
      %v6626 = vshrl.u32 %v6570, 16
      %v6628 = vrot.slane %v6626, 4
      %v6629 = vor.u32 %v6628, %v6624
      %v6630 = vrot.slane %v6629, 4
      %v6632 = vshll.u32 %v6571, 16
      %v6634 = vrot.slane %v6632, 5
      %v6635 = vsel %vm1139, %v6630, %v6634
      %v6636 = vshrl.u32 %v6571, 16
      %v6638 = vrot.slane %v6636, 4
      %v6639 = vor.u32 %v6638, %v6634
      %v6640 = vrot.slane %v6639, 4
      %v6642 = vshll.u32 %v6572, 16
      %v6644 = vrot.slane %v6642, 5
      %v6645 = vsel %vm1139, %v6640, %v6644
      %v6646 = vshrl.u32 %v6572, 16
      %v6648 = vrot.slane %v6646, 4
      %v6649 = vor.u32 %v6648, %v6644
      %v6650 = vrot.slane %v6649, 4
      %v6652 = vshll.u32 %v6573, 16
      %v6654 = vrot.slane %v6652, 5
      %v6655 = vsel %vm1139, %v6650, %v6654
      %v6656 = vshrl.u32 %v6573, 16
      %v6658 = vrot.slane %v6656, 4
      %v6659 = vor.u32 %v6658, %v6654
      %v6660 = vrot.slane %v6659, 4
      %v6662 = vshll.u32 %v6574, 16
      %v6664 = vrot.slane %v6662, 5
      %v6665 = vsel %vm1139, %v6660, %v6664
      %v6666 = vshrl.u32 %v6574, 16
      %v6668 = vrot.slane %v6666, 4
      %v6669 = vor.u32 %v6668, %v6664
      %v6670 = vrot.slane %v6669, 4
      %v6672 = vshll.u32 %v6575, 16
      %v6674 = vrot.slane %v6672, 5
      %v6675 = vsel %vm1139, %v6670, %v6674
      %v6676 = vshrl.u32 %v6575, 16
      %v6678 = vrot.slane %v6676, 4
      %v6679 = vor.u32 %v6678, %v6674
      %v6680 = vrot.slane %v6679, 4
      %v6682 = vshll.u32 %v6576, 16
      %v6684 = vrot.slane %v6682, 5
      %v6685 = vsel %vm1139, %v6680, %v6684
      %v6686 = vshrl.u32 %v6576, 16
      %v6688 = vrot.slane %v6686, 4
      %v6689 = vor.u32 %v6688, %v6684
      %v6690 = vrot.slane %v6689, 4
      %v6692 = vshll.u32 %v6577, 16
      %v6694 = vrot.slane %v6692, 5
      %v6695 = vsel %vm1139, %v6690, %v6694
      %v6696 = vshrl.u32 %v6577, 16
      %v6698 = vrot.slane %v6696, 4
      %v6699 = vor.u32 %v6698, %v6694
      %v6700 = vrot.slane %v6699, 4
      %v6702 = vshll.u32 %v6578, 16
      %v6704 = vrot.slane %v6702, 5
      %v6705 = vsel %vm1139, %v6700, %v6704
      %v6706 = vshrl.u32 %v6578, 16
      %v6708 = vrot.slane %v6706, 4
      %v6709 = vor.u32 %v6708, %v6704
      %v6710 = vrot.slane %v6709, 4
      %v6712 = vshll.u32 %v6579, 16
      %v6714 = vrot.slane %v6712, 5
      %v6715 = vsel %vm1139, %v6710, %v6714
      %v6716 = vshrl.u32 %v6579, 16
      %v6718 = vrot.slane %v6716, 4
      %v6719 = vor.u32 %v6718, %v6714
      %v6720 = vrot.slane %v6719, 4
      %v6722 = vshll.u32 %v6580, 16
      %v6724 = vrot.slane %v6722, 5
      %v6725 = vsel %vm1139, %v6720, %v6724
      %v6726 = vshrl.u32 %v6580, 16
      %v6728 = vrot.slane %v6726, 4
      %v6729 = vor.u32 %v6728, %v6724
      %v6730 = vrot.slane %v6729, 4
      %v6732 = vshll.u32 %v6581, 16
      %v6734 = vrot.slane %v6732, 5
      %v6735 = vsel %vm1139, %v6730, %v6734
      %v6736 = vshrl.u32 %v6581, 16
      %v6738 = vrot.slane %v6736, 4
      %v6739 = vor.u32 %v6738, %v6734
      %v6740 = vrot.slane %v6739, 4
      %v6742 = vshll.u32 %v6582, 16
      %v6744 = vrot.slane %v6742, 5
      %v6745 = vsel %vm1139, %v6740, %v6744
      %v6746 = vshrl.u32 %v6582, 16
      %v6748 = vrot.slane %v6746, 4
      %v6749 = vor.u32 %v6748, %v6744
      %v6750 = vrot.slane %v6749, 4
      %v6752 = vshll.u32 %v6583, 16
      %v6754 = vrot.slane %v6752, 5
      %v6755 = vsel %vm1139, %v6750, %v6754
      %v6756 = vshrl.u32 %v6583, 16
      %v6758 = vrot.slane %v6756, 4
      %v6759 = vor.u32 %v6758, %v6754
      %v6760 = vrot.slane %v6759, 4
      %v6762 = vshll.u32 %v6584, 16
      %v6764 = vrot.slane %v6762, 5
      %v6765 = vsel %vm1139, %v6760, %v6764
      %v6766 = vshrl.u32 %v6584, 16
      %v6768 = vrot.slane %v6766, 4
      %v6769 = vor.u32 %v6768, %v6764
      %v6770 = vrot.slane %v6769, 4
      %v6772 = vshll.u32 %v6585, 16
      %v6774 = vrot.slane %v6772, 5
      %v6775 = vsel %vm1139, %v6770, %v6774
      %v6776 = vshrl.u32 %v6585, 16
      %v6778 = vrot.slane %v6776, 4
      %v6779 = vor.u32 %v6778, %v6774
      %v6780 = vrot.slane %v6779, 4
      %v6782 = vshll.u32 %v6586, 16
      %v6784 = vrot.slane %v6782, 5
      %v6785 = vsel %vm1139, %v6780, %v6784
      %v6786 = vshrl.u32 %v6586, 16
      %v6788 = vrot.slane %v6786, 4
      %v6789 = vor.u32 %v6788, %v6784
      %v6790 = vrot.slane %v6789, 4
      %v6792 = vshll.u32 %v6587, 16
      %v6794 = vrot.slane %v6792, 5
      %v6795 = vsel %vm1139, %v6790, %v6794
      %v6796 = vshrl.u32 %v6587, 16
      %v6798 = vrot.slane %v6796, 4
      %v6799 = vor.u32 %v6798, %v6794
      %v6800 = vrot.slane %v6799, 4
      %v6802 = vshll.u32 %v6588, 16
      %v6804 = vrot.slane %v6802, 5
      %v6805 = vsel %vm1139, %v6800, %v6804
      %v6806 = vshrl.u32 %v6588, 16
      %v6808 = vrot.slane %v6806, 4
      %v6809 = vor.u32 %v6808, %v6804
      %v6810 = vrot.slane %v6809, 4
      %v6812 = vshll.u32 %v6589, 16
      %v6814 = vrot.slane %v6812, 5
      %v6815 = vsel %vm1139, %v6810, %v6814
      %v6816 = vshrl.u32 %v6589, 16
      %v6818 = vrot.slane %v6816, 4
      %v6819 = vor.u32 %v6818, %v6814
      %v6820 = vrot.slane %v6819, 4
      %v6822 = vshll.u32 %v6590, 16
      %v6824 = vrot.slane %v6822, 5
      %v6825 = vsel %vm1139, %v6820, %v6824
      %v6826 = vshrl.u32 %v6590, 16
      %v6828 = vrot.slane %v6826, 4
      %v6829 = vor.u32 %v6828, %v6824
      %v6830 = vrot.slane %v6829, 4
      %v6832 = vshll.u32 %v6591, 16
      %v6834 = vrot.slane %v6832, 5
      %v6835 = vsel %vm1139, %v6830, %v6834
      %6860 = vst [vmem:[#allocation3 + $0x20] sm:$0xf] %v6605
      %6861 = vst [vmem:[#allocation3 + $0x44] sm:$0xf] %v6615
      %6862 = vst [vmem:[#allocation3 + $0x68] sm:$0xf] %v6625
      %6863 = vst [vmem:[#allocation3 + $0x8c] sm:$0xf] %v6635
      %6864 = vst [vmem:[#allocation3 + $0xb0] sm:$0xf] %v6645
      %6865 = vst [vmem:[#allocation3 + $0xd4] sm:$0xf] %v6655
      %6866 = vst [vmem:[#allocation3 + $0xf8] sm:$0xf] %v6665
      %6867 = vst [vmem:[#allocation3 + $0x11c] sm:$0xf] %v6675
      %6868 = vst [vmem:[#allocation3 + $0x140] sm:$0xf] %v6685
      %6869 = vst [vmem:[#allocation3 + $0x164] sm:$0xf] %v6695
      %6870 = vst [vmem:[#allocation3 + $0x188] sm:$0xf] %v6705
      %6871 = vst [vmem:[#allocation3 + $0x1ac] sm:$0xf] %v6715
      %6872 = vst [vmem:[#allocation3 + $0x1d0] sm:$0xf] %v6725
      %6873 = vst [vmem:[#allocation3 + $0x1f4] sm:$0xf] %v6735
      %6874 = vst [vmem:[#allocation3 + $0x218] sm:$0xf] %v6745
      %6875 = vst [vmem:[#allocation3 + $0x23c] sm:$0xf] %v6755
      %6876 = vst [vmem:[#allocation3 + $0x260] sm:$0xf] %v6765
      %6877 = vst [vmem:[#allocation3 + $0x284] sm:$0xf] %v6775
      %6878 = vst [vmem:[#allocation3 + $0x2a8] sm:$0xf] %v6785
      %6879 = vst [vmem:[#allocation3 + $0x2cc] sm:$0xf] %v6795
      %6880 = vst [vmem:[#allocation3 + $0x2f0] sm:$0xf] %v6805
      %6881 = vst [vmem:[#allocation3 + $0x314] sm:$0xf] %v6815
      %6882 = vst [vmem:[#allocation3 + $0x338] sm:$0xf] %v6825
      %6883 = vst [vmem:[#allocation3 + $0x35c] sm:$0xf] %v6835
      %v6884 = vld [vmem:[#allocation3] sm:$0xff]
      %v6885 = vld [vmem:[#allocation3 + $0x8] sm:$0xff]
      %v6886 = vld [vmem:[#allocation3 + $0x10] sm:$0xff]
      %v6887 = vld [vmem:[#allocation3 + $0x18] sm:$0xff]
      %v6888 = vld [vmem:[#allocation3 + $0x20] sm:$0xf]
      %v6889 = vld [vmem:[#allocation3 + $0x24] sm:$0xff]
      %v6890 = vld [vmem:[#allocation3 + $0x2c] sm:$0xff]
      %v6891 = vld [vmem:[#allocation3 + $0x34] sm:$0xff]
      %v6892 = vld [vmem:[#allocation3 + $0x3c] sm:$0xff]
      %v6893 = vld [vmem:[#allocation3 + $0x44] sm:$0xf]
      %v6894 = vld [vmem:[#allocation3 + $0x48] sm:$0xff]
      %v6895 = vld [vmem:[#allocation3 + $0x50] sm:$0xff]
      %v6896 = vld [vmem:[#allocation3 + $0x58] sm:$0xff]
      %v6897 = vld [vmem:[#allocation3 + $0x60] sm:$0xff]
      %v6898 = vld [vmem:[#allocation3 + $0x68] sm:$0xf]
      %v6899 = vld [vmem:[#allocation3 + $0x6c] sm:$0xff]
      %v6900 = vld [vmem:[#allocation3 + $0x74] sm:$0xff]
      %v6901 = vld [vmem:[#allocation3 + $0x7c] sm:$0xff]
      %v6902 = vld [vmem:[#allocation3 + $0x84] sm:$0xff]
      %v6903 = vld [vmem:[#allocation3 + $0x8c] sm:$0xf]
      %v6904 = vld [vmem:[#allocation3 + $0x90] sm:$0xff]
      %v6905 = vld [vmem:[#allocation3 + $0x98] sm:$0xff]
      %v6906 = vld [vmem:[#allocation3 + $0xa0] sm:$0xff]
      %v6907 = vld [vmem:[#allocation3 + $0xa8] sm:$0xff]
      %v6908 = vld [vmem:[#allocation3 + $0xb0] sm:$0xf]
      %v6909 = vld [vmem:[#allocation3 + $0xb4] sm:$0xff]
      %v6910 = vld [vmem:[#allocation3 + $0xbc] sm:$0xff]
      %v6911 = vld [vmem:[#allocation3 + $0xc4] sm:$0xff]
      %v6912 = vld [vmem:[#allocation3 + $0xcc] sm:$0xff]
      %v6913 = vld [vmem:[#allocation3 + $0xd4] sm:$0xf]
      %v6914 = vld [vmem:[#allocation3 + $0xd8] sm:$0xff]
      %v6915 = vld [vmem:[#allocation3 + $0xe0] sm:$0xff]
      %v6916 = vld [vmem:[#allocation3 + $0xe8] sm:$0xff]
      %v6917 = vld [vmem:[#allocation3 + $0xf0] sm:$0xff]
      %v6918 = vld [vmem:[#allocation3 + $0xf8] sm:$0xf]
      %v6919 = vld [vmem:[#allocation3 + $0xfc] sm:$0xff]
      %v6920 = vld [vmem:[#allocation3 + $0x104] sm:$0xff]
      %v6921 = vld [vmem:[#allocation3 + $0x10c] sm:$0xff]
      %v6922 = vld [vmem:[#allocation3 + $0x114] sm:$0xff]
      %v6923 = vld [vmem:[#allocation3 + $0x11c] sm:$0xf]
      %v6924 = vld [vmem:[#allocation3 + $0x120] sm:$0xff]
      %v6925 = vld [vmem:[#allocation3 + $0x128] sm:$0xff]
      %v6926 = vld [vmem:[#allocation3 + $0x130] sm:$0xff]
      %v6927 = vld [vmem:[#allocation3 + $0x138] sm:$0xff]
      %v6928 = vld [vmem:[#allocation3 + $0x140] sm:$0xf]
      %v6929 = vld [vmem:[#allocation3 + $0x144] sm:$0xff]
      %v6930 = vld [vmem:[#allocation3 + $0x14c] sm:$0xff]
      %v6931 = vld [vmem:[#allocation3 + $0x154] sm:$0xff]
      %v6932 = vld [vmem:[#allocation3 + $0x15c] sm:$0xff]
      %v6933 = vld [vmem:[#allocation3 + $0x164] sm:$0xf]
      %v6934 = vld [vmem:[#allocation3 + $0x168] sm:$0xff]
      %v6935 = vld [vmem:[#allocation3 + $0x170] sm:$0xff]
      %v6936 = vld [vmem:[#allocation3 + $0x178] sm:$0xff]
      %v6937 = vld [vmem:[#allocation3 + $0x180] sm:$0xff]
      %v6938 = vld [vmem:[#allocation3 + $0x188] sm:$0xf]
      %v6939 = vld [vmem:[#allocation3 + $0x18c] sm:$0xff]
      %v6940 = vld [vmem:[#allocation3 + $0x194] sm:$0xff]
      %v6941 = vld [vmem:[#allocation3 + $0x19c] sm:$0xff]
      %v6942 = vld [vmem:[#allocation3 + $0x1a4] sm:$0xff]
      %v6943 = vld [vmem:[#allocation3 + $0x1ac] sm:$0xf]
      %v6944 = vld [vmem:[#allocation3 + $0x1b0] sm:$0xff]
      %v6945 = vld [vmem:[#allocation3 + $0x1b8] sm:$0xff]
      %v6946 = vld [vmem:[#allocation3 + $0x1c0] sm:$0xff]
      %v6947 = vld [vmem:[#allocation3 + $0x1c8] sm:$0xff]
      %v6948 = vld [vmem:[#allocation3 + $0x1d0] sm:$0xf]
      %v6949 = vld [vmem:[#allocation3 + $0x1d4] sm:$0xff]
      %v6950 = vld [vmem:[#allocation3 + $0x1dc] sm:$0xff]
      %v6951 = vld [vmem:[#allocation3 + $0x1e4] sm:$0xff]
      %v6952 = vld [vmem:[#allocation3 + $0x1ec] sm:$0xff]
      %v6953 = vld [vmem:[#allocation3 + $0x1f4] sm:$0xf]
      %v6954 = vld [vmem:[#allocation3 + $0x1f8] sm:$0xff]
      %v6955 = vld [vmem:[#allocation3 + $0x200] sm:$0xff]
      %v6956 = vld [vmem:[#allocation3 + $0x208] sm:$0xff]
      %v6957 = vld [vmem:[#allocation3 + $0x210] sm:$0xff]
      %v6958 = vld [vmem:[#allocation3 + $0x218] sm:$0xf]
      %v6959 = vld [vmem:[#allocation3 + $0x21c] sm:$0xff]
      %v6960 = vld [vmem:[#allocation3 + $0x224] sm:$0xff]
      %v6961 = vld [vmem:[#allocation3 + $0x22c] sm:$0xff]
      %v6962 = vld [vmem:[#allocation3 + $0x234] sm:$0xff]
      %v6963 = vld [vmem:[#allocation3 + $0x23c] sm:$0xf]
      %v6964 = vld [vmem:[#allocation3 + $0x240] sm:$0xff]
      %v6965 = vld [vmem:[#allocation3 + $0x248] sm:$0xff]
      %v6966 = vld [vmem:[#allocation3 + $0x250] sm:$0xff]
      %v6967 = vld [vmem:[#allocation3 + $0x258] sm:$0xff]
      %v6968 = vld [vmem:[#allocation3 + $0x260] sm:$0xf]
      %v6969 = vld [vmem:[#allocation3 + $0x264] sm:$0xff]
      %v6970 = vld [vmem:[#allocation3 + $0x26c] sm:$0xff]
      %v6971 = vld [vmem:[#allocation3 + $0x274] sm:$0xff]
      %v6972 = vld [vmem:[#allocation3 + $0x27c] sm:$0xff]
      %v6973 = vld [vmem:[#allocation3 + $0x284] sm:$0xf]
      %v6974 = vld [vmem:[#allocation3 + $0x288] sm:$0xff]
      %v6975 = vld [vmem:[#allocation3 + $0x290] sm:$0xff]
      %v6976 = vld [vmem:[#allocation3 + $0x298] sm:$0xff]
      %v6977 = vld [vmem:[#allocation3 + $0x2a0] sm:$0xff]
      %v6978 = vld [vmem:[#allocation3 + $0x2a8] sm:$0xf]
      %v6979 = vld [vmem:[#allocation3 + $0x2ac] sm:$0xff]
      %v6980 = vld [vmem:[#allocation3 + $0x2b4] sm:$0xff]
      %v6981 = vld [vmem:[#allocation3 + $0x2bc] sm:$0xff]
      %v6982 = vld [vmem:[#allocation3 + $0x2c4] sm:$0xff]
      %v6983 = vld [vmem:[#allocation3 + $0x2cc] sm:$0xf]
      %v6984 = vld [vmem:[#allocation3 + $0x2d0] sm:$0xff]
      %v6985 = vld [vmem:[#allocation3 + $0x2d8] sm:$0xff]
      %v6986 = vld [vmem:[#allocation3 + $0x2e0] sm:$0xff]
      %v6987 = vld [vmem:[#allocation3 + $0x2e8] sm:$0xff]
      %v6988 = vld [vmem:[#allocation3 + $0x2f0] sm:$0xf]
      %v6989 = vld [vmem:[#allocation3 + $0x2f4] sm:$0xff]
      %v6990 = vld [vmem:[#allocation3 + $0x2fc] sm:$0xff]
      %v6991 = vld [vmem:[#allocation3 + $0x304] sm:$0xff]
      %v6992 = vld [vmem:[#allocation3 + $0x30c] sm:$0xff]
      %v6993 = vld [vmem:[#allocation3 + $0x314] sm:$0xf]
      %v6994 = vld [vmem:[#allocation3 + $0x318] sm:$0xff]
      %v6995 = vld [vmem:[#allocation3 + $0x320] sm:$0xff]
      %v6996 = vld [vmem:[#allocation3 + $0x328] sm:$0xff]
      %v6997 = vld [vmem:[#allocation3 + $0x330] sm:$0xff]
      %v6998 = vld [vmem:[#allocation3 + $0x338] sm:$0xf]
      %v6999 = vld [vmem:[#allocation3 + $0x33c] sm:$0xff]
      %v7000 = vld [vmem:[#allocation3 + $0x344] sm:$0xff]
      %v7001 = vld [vmem:[#allocation3 + $0x34c] sm:$0xff]
      %v7002 = vld [vmem:[#allocation3 + $0x354] sm:$0xff]
      %v7003 = vld [vmem:[#allocation3 + $0x35c] sm:$0xf]
      %v7004 = vld [vmem:[%s4] sm:$0xf]
      %v7005 = vld [vmem:[%s4 + $0x4] sm:$0xf]
      %v7006 = vld [vmem:[%s4 + $0x8] sm:$0xf]
      %v7007 = vld [vmem:[%s4 + $0xc] sm:$0xf]
      %v7008 = vld [vmem:[%s4 + $0x10] sm:$0xf]
      %v7009 = vld [vmem:[%s4 + $0x14] sm:$0xf]
      %v7010 = vld [vmem:[%s4 + $0x18] sm:$0xf]
      %v7011 = vld [vmem:[%s4 + $0x1c] sm:$0xf]
      %v7012 = vld [vmem:[%s4 + $0x20] sm:$0xf]
      %v7013 = vld [vmem:[%s4 + $0x24] sm:$0xf]
      %v7014 = vld [vmem:[%s4 + $0x28] sm:$0xf]
      %v7015 = vld [vmem:[%s4 + $0x2c] sm:$0xf]
      %v7016 = vld [vmem:[%s4 + $0x30] sm:$0xf]
      %v7017 = vld [vmem:[%s4 + $0x34] sm:$0xf]
      %v7018 = vld [vmem:[%s4 + $0x38] sm:$0xf]
      %v7019 = vld [vmem:[%s4 + $0x3c] sm:$0xf]
      %v7020 = vld [vmem:[%s4 + $0x40] sm:$0xf]
      %v7021 = vld [vmem:[%s4 + $0x44] sm:$0xf]
      %v7022 = vld [vmem:[%s4 + $0x48] sm:$0xf]
      %v7023 = vld [vmem:[%s4 + $0x4c] sm:$0xf]
      %v7024 = vld [vmem:[%s4 + $0x50] sm:$0xf]
      %v7025 = vld [vmem:[%s4 + $0x54] sm:$0xf]
      %v7026 = vld [vmem:[%s4 + $0x58] sm:$0xf]
      %v7027 = vld [vmem:[%s4 + $0x5c] sm:$0xf]
      %v7028 = vld [vmem:[%s4 + $0x60] sm:$0xf]
      %v7029 = vld [vmem:[%s4 + $0x64] sm:$0xf]
      %v7030 = vld [vmem:[%s4 + $0x68] sm:$0xf]
      %v7031 = vld [vmem:[%s4 + $0x6c] sm:$0xf]
      %v7032 = vld [vmem:[%s4 + $0x70] sm:$0xf]
      %v7033 = vld [vmem:[%s4 + $0x74] sm:$0xf]
      %v7034 = vld [vmem:[%s4 + $0x78] sm:$0xf]
      %v7035 = vld [vmem:[%s4 + $0x7c] sm:$0xf]
      %v7036 = vld [vmem:[%s4 + $0x80] sm:$0xf]
      %v7037 = vld [vmem:[%s4 + $0x84] sm:$0xf]
      %v7038 = vld [vmem:[%s4 + $0x88] sm:$0xf]
      %v7039 = vld [vmem:[%s4 + $0x8c] sm:$0xf]
      %v7040 = vld [vmem:[%s4 + $0x90] sm:$0xf]
      %v7041 = vld [vmem:[%s4 + $0x94] sm:$0xf]
      %v7042 = vld [vmem:[%s4 + $0x98] sm:$0xf]
      %v7043 = vld [vmem:[%s4 + $0x9c] sm:$0xf]
      %v7044 = vld [vmem:[%s4 + $0xa0] sm:$0xf]
      %v7045 = vld [vmem:[%s4 + $0xa4] sm:$0xf]
      %v7046 = vld [vmem:[%s4 + $0xa8] sm:$0xf]
      %v7047 = vld [vmem:[%s4 + $0xac] sm:$0xf]
      %v7048 = vld [vmem:[%s4 + $0xb0] sm:$0xf]
      %v7049 = vld [vmem:[%s4 + $0xb4] sm:$0xf]
      %v7050 = vld [vmem:[%s4 + $0xb8] sm:$0xf]
      %v7051 = vld [vmem:[%s4 + $0xbc] sm:$0xf]
      %v7052 = vld [vmem:[%s4 + $0xc0] sm:$0xf]
      %v7053 = vld [vmem:[%s4 + $0xc4] sm:$0xf]
      %v7054 = vld [vmem:[%s4 + $0xc8] sm:$0xf]
      %v7055 = vld [vmem:[%s4 + $0xcc] sm:$0xf]
      %v7056 = vld [vmem:[%s4 + $0xd0] sm:$0xf]
      %v7057 = vld [vmem:[%s4 + $0xd4] sm:$0xf]
      %v7058 = vld [vmem:[%s4 + $0xd8] sm:$0xf]
      %v7059 = vld [vmem:[%s4 + $0xdc] sm:$0xf]
      %v7060 = vld [vmem:[%s4 + $0xe0] sm:$0xf]
      %v7061 = vld [vmem:[%s4 + $0xe4] sm:$0xf]
      %v7062 = vld [vmem:[%s4 + $0xe8] sm:$0xf]
      %v7063 = vld [vmem:[%s4 + $0xec] sm:$0xf]
      %v7064 = vld [vmem:[%s4 + $0xf0] sm:$0xf]
      %v7065 = vld [vmem:[%s4 + $0xf4] sm:$0xf]
      %v7066 = vld [vmem:[%s4 + $0xf8] sm:$0xf]
      %v7067 = vld [vmem:[%s4 + $0xfc] sm:$0xf]
      %v7068 = vld [vmem:[%s4 + $0x100] sm:$0xf]
      %v7069 = vld [vmem:[%s4 + $0x104] sm:$0xf]
      %v7070 = vld [vmem:[%s4 + $0x108] sm:$0xf]
      %v7071 = vld [vmem:[%s4 + $0x10c] sm:$0xf]
      %v7072 = vld [vmem:[%s4 + $0x110] sm:$0xf]
      %v7073 = vld [vmem:[%s4 + $0x114] sm:$0xf]
      %v7074 = vld [vmem:[%s4 + $0x118] sm:$0xf]
      %v7075 = vld [vmem:[%s4 + $0x11c] sm:$0xf]
      %v7076 = vld [vmem:[%s4 + $0x120] sm:$0xf]
      %v7077 = vld [vmem:[%s4 + $0x124] sm:$0xf]
      %v7078 = vld [vmem:[%s4 + $0x128] sm:$0xf]
      %v7079 = vld [vmem:[%s4 + $0x12c] sm:$0xf]
      %v7080 = vld [vmem:[%s4 + $0x130] sm:$0xf]
      %v7081 = vld [vmem:[%s4 + $0x134] sm:$0xf]
      %v7082 = vld [vmem:[%s4 + $0x138] sm:$0xf]
      %v7083 = vld [vmem:[%s4 + $0x13c] sm:$0xf]
      %v7084 = vld [vmem:[%s4 + $0x140] sm:$0xf]
      %v7085 = vld [vmem:[%s4 + $0x144] sm:$0xf]
      %v7086 = vld [vmem:[%s4 + $0x148] sm:$0xf]
      %v7087 = vld [vmem:[%s4 + $0x14c] sm:$0xf]
      %v7088 = vld [vmem:[%s4 + $0x150] sm:$0xf]
      %v7089 = vld [vmem:[%s4 + $0x154] sm:$0xf]
      %v7090 = vld [vmem:[%s4 + $0x158] sm:$0xf]
      %v7091 = vld [vmem:[%s4 + $0x15c] sm:$0xf]
      %v7092 = vld [vmem:[%s4 + $0x160] sm:$0xf]
      %v7093 = vld [vmem:[%s4 + $0x164] sm:$0xf]
      %v7094 = vld [vmem:[%s4 + $0x168] sm:$0xf]
      %v7095 = vld [vmem:[%s4 + $0x16c] sm:$0xf]
      %v7096 = vld [vmem:[%s4 + $0x170] sm:$0xf]
      %v7097 = vld [vmem:[%s4 + $0x174] sm:$0xf]
      %v7098 = vld [vmem:[%s4 + $0x178] sm:$0xf]
      %v7099 = vld [vmem:[%s4 + $0x17c] sm:$0xf]
      %v7100 = vld [vmem:[%s4 + $0x180] sm:$0xf]
      %v7101 = vld [vmem:[%s4 + $0x184] sm:$0xf]
      %v7102 = vld [vmem:[%s4 + $0x188] sm:$0xf]
      %v7103 = vld [vmem:[%s4 + $0x18c] sm:$0xf]
      %v7104 = vld [vmem:[%s4 + $0x190] sm:$0xf]
      %v7105 = vld [vmem:[%s4 + $0x194] sm:$0xf]
      %v7106 = vld [vmem:[%s4 + $0x198] sm:$0xf]
      %v7107 = vld [vmem:[%s4 + $0x19c] sm:$0xf]
      %v7108 = vld [vmem:[%s4 + $0x1a0] sm:$0xf]
      %v7109 = vld [vmem:[%s4 + $0x1a4] sm:$0xf]
      %v7110 = vld [vmem:[%s4 + $0x1a8] sm:$0xf]
      %v7111 = vld [vmem:[%s4 + $0x1ac] sm:$0xf]
      %v7112 = vld [vmem:[%s4 + $0x1b0] sm:$0xf]
      %v7113 = vld [vmem:[%s4 + $0x1b4] sm:$0xf]
      %v7114 = vld [vmem:[%s4 + $0x1b8] sm:$0xf]
      %v7115 = vld [vmem:[%s4 + $0x1bc] sm:$0xf]
      %v7116 = vld [vmem:[%s4 + $0x1c0] sm:$0xf]
      %v7117 = vld [vmem:[%s4 + $0x1c4] sm:$0xf]
      %v7118 = vld [vmem:[%s4 + $0x1c8] sm:$0xf]
      %v7119 = vld [vmem:[%s4 + $0x1cc] sm:$0xf]
      %v7120 = vld [vmem:[%s4 + $0x1d0] sm:$0xf]
      %v7121 = vld [vmem:[%s4 + $0x1d4] sm:$0xf]
      %v7122 = vld [vmem:[%s4 + $0x1d8] sm:$0xf]
      %v7123 = vld [vmem:[%s4 + $0x1dc] sm:$0xf]
      %v7124 = vld [vmem:[%s4 + $0x1e0] sm:$0xf]
      %v7125 = vld [vmem:[%s4 + $0x1e4] sm:$0xf]
      %v7126 = vld [vmem:[%s4 + $0x1e8] sm:$0xf]
      %v7127 = vld [vmem:[%s4 + $0x1ec] sm:$0xf]
      %v7128 = vld [vmem:[%s4 + $0x1f0] sm:$0xf]
      %v7129 = vld [vmem:[%s4 + $0x1f4] sm:$0xf]
      %v7130 = vld [vmem:[%s4 + $0x1f8] sm:$0xf]
      %v7131 = vld [vmem:[%s4 + $0x1fc] sm:$0xf]
      %v7132 = vld [vmem:[%s4 + $0x200] sm:$0xf]
      %v7133 = vld [vmem:[%s4 + $0x204] sm:$0xf]
      %v7134 = vld [vmem:[%s4 + $0x208] sm:$0xf]
      %v7135 = vld [vmem:[%s4 + $0x20c] sm:$0xf]
      %v7136 = vld [vmem:[%s4 + $0x210] sm:$0xf]
      %v7137 = vld [vmem:[%s4 + $0x214] sm:$0xf]
      %v7138 = vld [vmem:[%s4 + $0x218] sm:$0xf]
      %v7139 = vld [vmem:[%s4 + $0x21c] sm:$0xf]
      %v7140 = vld [vmem:[%s4 + $0x220] sm:$0xf]
      %v7141 = vld [vmem:[%s4 + $0x224] sm:$0xf]
      %v7142 = vld [vmem:[%s4 + $0x228] sm:$0xf]
      %v7143 = vld [vmem:[%s4 + $0x22c] sm:$0xf]
      %v7144 = vld [vmem:[%s4 + $0x230] sm:$0xf]
      %v7145 = vld [vmem:[%s4 + $0x234] sm:$0xf]
      %v7146 = vld [vmem:[%s4 + $0x238] sm:$0xf]
      %v7147 = vld [vmem:[%s4 + $0x23c] sm:$0xf]
      %v7268 = vunpack.c.l.b16 %v6884
      %v7269 = vunpack.c.h.b16 %v6884
      %v7270 = vunpack.c.l.b16 %v6885
      %v7271 = vunpack.c.h.b16 %v6885
      %v7272 = vunpack.c.l.b16 %v6886
      %v7273 = vunpack.c.h.b16 %v6886
      %v7274 = vunpack.c.l.b16 %v6887
      %v7275 = vunpack.c.h.b16 %v6887
      %v7276 = vunpack.c.l.b16 %v6888
      %v7277 = vunpack.c.l.b16 %v6889
      %v7278 = vunpack.c.h.b16 %v6889
      %v7279 = vunpack.c.l.b16 %v6890
      %v7280 = vunpack.c.h.b16 %v6890
      %v7281 = vunpack.c.l.b16 %v6891
      %v7282 = vunpack.c.h.b16 %v6891
      %v7283 = vunpack.c.l.b16 %v6892
      %v7284 = vunpack.c.h.b16 %v6892
      %v7285 = vunpack.c.l.b16 %v6893
      %v7286 = vunpack.c.l.b16 %v6894
      %v7287 = vunpack.c.h.b16 %v6894
      %v7288 = vunpack.c.l.b16 %v6895
      %v7289 = vunpack.c.h.b16 %v6895
      %v7290 = vunpack.c.l.b16 %v6896
      %v7291 = vunpack.c.h.b16 %v6896
      %v7292 = vunpack.c.l.b16 %v6897
      %v7293 = vunpack.c.h.b16 %v6897
      %v7294 = vunpack.c.l.b16 %v6898
      %v7295 = vunpack.c.l.b16 %v6899
      %v7296 = vunpack.c.h.b16 %v6899
      %v7297 = vunpack.c.l.b16 %v6900
      %v7298 = vunpack.c.h.b16 %v6900
      %v7299 = vunpack.c.l.b16 %v6901
      %v7300 = vunpack.c.h.b16 %v6901
      %v7301 = vunpack.c.l.b16 %v6902
      %v7302 = vunpack.c.h.b16 %v6902
      %v7303 = vunpack.c.l.b16 %v6903
      %v7304 = vunpack.c.l.b16 %v6904
      %v7305 = vunpack.c.h.b16 %v6904
      %v7306 = vunpack.c.l.b16 %v6905
      %v7307 = vunpack.c.h.b16 %v6905
      %v7308 = vunpack.c.l.b16 %v6906
      %v7309 = vunpack.c.h.b16 %v6906
      %v7310 = vunpack.c.l.b16 %v6907
      %v7311 = vunpack.c.h.b16 %v6907
      %v7312 = vunpack.c.l.b16 %v6908
      %v7313 = vunpack.c.l.b16 %v6909
      %v7314 = vunpack.c.h.b16 %v6909
      %v7315 = vunpack.c.l.b16 %v6910
      %v7316 = vunpack.c.h.b16 %v6910
      %v7317 = vunpack.c.l.b16 %v6911
      %v7318 = vunpack.c.h.b16 %v6911
      %v7319 = vunpack.c.l.b16 %v6912
      %v7320 = vunpack.c.h.b16 %v6912
      %v7321 = vunpack.c.l.b16 %v6913
      %v7322 = vunpack.c.l.b16 %v6914
      %v7323 = vunpack.c.h.b16 %v6914
      %v7324 = vunpack.c.l.b16 %v6915
      %v7325 = vunpack.c.h.b16 %v6915
      %v7326 = vunpack.c.l.b16 %v6916
      %v7327 = vunpack.c.h.b16 %v6916
      %v7328 = vunpack.c.l.b16 %v6917
      %v7329 = vunpack.c.h.b16 %v6917
      %v7330 = vunpack.c.l.b16 %v6918
      %v7331 = vunpack.c.l.b16 %v6919
      %v7332 = vunpack.c.h.b16 %v6919
      %v7333 = vunpack.c.l.b16 %v6920
      %v7334 = vunpack.c.h.b16 %v6920
      %v7335 = vunpack.c.l.b16 %v6921
      %v7336 = vunpack.c.h.b16 %v6921
      %v7337 = vunpack.c.l.b16 %v6922
      %v7338 = vunpack.c.h.b16 %v6922
      %v7339 = vunpack.c.l.b16 %v6923
      %v7340 = vunpack.c.l.b16 %v6924
      %v7341 = vunpack.c.h.b16 %v6924
      %v7342 = vunpack.c.l.b16 %v6925
      %v7343 = vunpack.c.h.b16 %v6925
      %v7344 = vunpack.c.l.b16 %v6926
      %v7345 = vunpack.c.h.b16 %v6926
      %v7346 = vunpack.c.l.b16 %v6927
      %v7347 = vunpack.c.h.b16 %v6927
      %v7348 = vunpack.c.l.b16 %v6928
      %v7349 = vunpack.c.l.b16 %v6929
      %v7350 = vunpack.c.h.b16 %v6929
      %v7351 = vunpack.c.l.b16 %v6930
      %v7352 = vunpack.c.h.b16 %v6930
      %v7353 = vunpack.c.l.b16 %v6931
      %v7354 = vunpack.c.h.b16 %v6931
      %v7355 = vunpack.c.l.b16 %v6932
      %v7356 = vunpack.c.h.b16 %v6932
      %v7357 = vunpack.c.l.b16 %v6933
      %v7358 = vunpack.c.l.b16 %v6934
      %v7359 = vunpack.c.h.b16 %v6934
      %v7360 = vunpack.c.l.b16 %v6935
      %v7361 = vunpack.c.h.b16 %v6935
      %v7362 = vunpack.c.l.b16 %v6936
      %v7363 = vunpack.c.h.b16 %v6936
      %v7364 = vunpack.c.l.b16 %v6937
      %v7365 = vunpack.c.h.b16 %v6937
      %v7366 = vunpack.c.l.b16 %v6938
      %v7367 = vunpack.c.l.b16 %v6939
      %v7368 = vunpack.c.h.b16 %v6939
      %v7369 = vunpack.c.l.b16 %v6940
      %v7370 = vunpack.c.h.b16 %v6940
      %v7371 = vunpack.c.l.b16 %v6941
      %v7372 = vunpack.c.h.b16 %v6941
      %v7373 = vunpack.c.l.b16 %v6942
      %v7374 = vunpack.c.h.b16 %v6942
      %v7375 = vunpack.c.l.b16 %v6943
      %v7376 = vunpack.c.l.b16 %v6944
      %v7377 = vunpack.c.h.b16 %v6944
      %v7378 = vunpack.c.l.b16 %v6945
      %v7379 = vunpack.c.h.b16 %v6945
      %v7380 = vunpack.c.l.b16 %v6946
      %v7381 = vunpack.c.h.b16 %v6946
      %v7382 = vunpack.c.l.b16 %v6947
      %v7383 = vunpack.c.h.b16 %v6947
      %v7384 = vunpack.c.l.b16 %v6948
      %v7385 = vunpack.c.l.b16 %v6949
      %v7386 = vunpack.c.h.b16 %v6949
      %v7387 = vunpack.c.l.b16 %v6950
      %v7388 = vunpack.c.h.b16 %v6950
      %v7389 = vunpack.c.l.b16 %v6951
      %v7390 = vunpack.c.h.b16 %v6951
      %v7391 = vunpack.c.l.b16 %v6952
      %v7392 = vunpack.c.h.b16 %v6952
      %v7393 = vunpack.c.l.b16 %v6953
      %v7394 = vunpack.c.l.b16 %v6954
      %v7395 = vunpack.c.h.b16 %v6954
      %v7396 = vunpack.c.l.b16 %v6955
      %v7397 = vunpack.c.h.b16 %v6955
      %v7398 = vunpack.c.l.b16 %v6956
      %v7399 = vunpack.c.h.b16 %v6956
      %v7400 = vunpack.c.l.b16 %v6957
      %v7401 = vunpack.c.h.b16 %v6957
      %v7402 = vunpack.c.l.b16 %v6958
      %v7403 = vunpack.c.l.b16 %v6959
      %v7404 = vunpack.c.h.b16 %v6959
      %v7405 = vunpack.c.l.b16 %v6960
      %v7406 = vunpack.c.h.b16 %v6960
      %v7407 = vunpack.c.l.b16 %v6961
      %v7408 = vunpack.c.h.b16 %v6961
      %v7409 = vunpack.c.l.b16 %v6962
      %v7410 = vunpack.c.h.b16 %v6962
      %v7411 = vunpack.c.l.b16 %v6963
      %v7412 = vunpack.c.l.b16 %v6964
      %v7413 = vunpack.c.h.b16 %v6964
      %v7414 = vunpack.c.l.b16 %v6965
      %v7415 = vunpack.c.h.b16 %v6965
      %v7416 = vunpack.c.l.b16 %v6966
      %v7417 = vunpack.c.h.b16 %v6966
      %v7418 = vunpack.c.l.b16 %v6967
      %v7419 = vunpack.c.h.b16 %v6967
      %v7420 = vunpack.c.l.b16 %v6968
      %v7421 = vunpack.c.l.b16 %v6969
      %v7422 = vunpack.c.h.b16 %v6969
      %v7423 = vunpack.c.l.b16 %v6970
      %v7424 = vunpack.c.h.b16 %v6970
      %v7425 = vunpack.c.l.b16 %v6971
      %v7426 = vunpack.c.h.b16 %v6971
      %v7427 = vunpack.c.l.b16 %v6972
      %v7428 = vunpack.c.h.b16 %v6972
      %v7429 = vunpack.c.l.b16 %v6973
      %v7430 = vunpack.c.l.b16 %v6974
      %v7431 = vunpack.c.h.b16 %v6974
      %v7432 = vunpack.c.l.b16 %v6975
      %v7433 = vunpack.c.h.b16 %v6975
      %v7434 = vunpack.c.l.b16 %v6976
      %v7435 = vunpack.c.h.b16 %v6976
      %v7436 = vunpack.c.l.b16 %v6977
      %v7437 = vunpack.c.h.b16 %v6977
      %v7438 = vunpack.c.l.b16 %v6978
      %v7439 = vunpack.c.l.b16 %v6979
      %v7440 = vunpack.c.h.b16 %v6979
      %v7441 = vunpack.c.l.b16 %v6980
      %v7442 = vunpack.c.h.b16 %v6980
      %v7443 = vunpack.c.l.b16 %v6981
      %v7444 = vunpack.c.h.b16 %v6981
      %v7445 = vunpack.c.l.b16 %v6982
      %v7446 = vunpack.c.h.b16 %v6982
      %v7447 = vunpack.c.l.b16 %v6983
      %v7448 = vunpack.c.l.b16 %v6984
      %v7449 = vunpack.c.h.b16 %v6984
      %v7450 = vunpack.c.l.b16 %v6985
      %v7451 = vunpack.c.h.b16 %v6985
      %v7452 = vunpack.c.l.b16 %v6986
      %v7453 = vunpack.c.h.b16 %v6986
      %v7454 = vunpack.c.l.b16 %v6987
      %v7455 = vunpack.c.h.b16 %v6987
      %v7456 = vunpack.c.l.b16 %v6988
      %v7457 = vunpack.c.l.b16 %v6989
      %v7458 = vunpack.c.h.b16 %v6989
      %v7459 = vunpack.c.l.b16 %v6990
      %v7460 = vunpack.c.h.b16 %v6990
      %v7461 = vunpack.c.l.b16 %v6991
      %v7462 = vunpack.c.h.b16 %v6991
      %v7463 = vunpack.c.l.b16 %v6992
      %v7464 = vunpack.c.h.b16 %v6992
      %v7465 = vunpack.c.l.b16 %v6993
      %v7466 = vunpack.c.l.b16 %v6994
      %v7467 = vunpack.c.h.b16 %v6994
      %v7468 = vunpack.c.l.b16 %v6995
      %v7469 = vunpack.c.h.b16 %v6995
      %v7470 = vunpack.c.l.b16 %v6996
      %v7471 = vunpack.c.h.b16 %v6996
      %v7472 = vunpack.c.l.b16 %v6997
      %v7473 = vunpack.c.h.b16 %v6997
      %v7474 = vunpack.c.l.b16 %v6998
      %v7475 = vunpack.c.l.b16 %v6999
      %v7476 = vunpack.c.h.b16 %v6999
      %v7477 = vunpack.c.l.b16 %v7000
      %v7478 = vunpack.c.h.b16 %v7000
      %v7479 = vunpack.c.l.b16 %v7001
      %v7480 = vunpack.c.h.b16 %v7001
      %v7481 = vunpack.c.l.b16 %v7002
      %v7482 = vunpack.c.h.b16 %v7002
      %v7483 = vunpack.c.l.b16 %v7003
      %v7484 = vpack.c.b16 %v7277, %v7268
      %v7485 = vpack.c.b16 %v7278, %v7269
      %v7486 = vpack.c.b16 %v7279, %v7270
      %v7487 = vpack.c.b16 %v7280, %v7271
      %v7488 = vpack.c.b16 %v7281, %v7272
      %v7489 = vpack.c.b16 %v7282, %v7273
      %v7490 = vpack.c.b16 %v7283, %v7274
      %v7491 = vpack.c.b16 %v7284, %v7275
      %v7492 = vpack.c.b16 %v7285, %v7276
      %v7493 = vpack.c.b16 %v7295, %v7286
      %v7494 = vpack.c.b16 %v7296, %v7287
      %v7495 = vpack.c.b16 %v7297, %v7288
      %v7496 = vpack.c.b16 %v7298, %v7289
      %v7497 = vpack.c.b16 %v7299, %v7290
      %v7498 = vpack.c.b16 %v7300, %v7291
      %v7499 = vpack.c.b16 %v7301, %v7292
      %v7500 = vpack.c.b16 %v7302, %v7293
      %v7501 = vpack.c.b16 %v7303, %v7294
      %v7502 = vpack.c.b16 %v7313, %v7304
      %v7503 = vpack.c.b16 %v7314, %v7305
      %v7504 = vpack.c.b16 %v7315, %v7306
      %v7505 = vpack.c.b16 %v7316, %v7307
      %v7506 = vpack.c.b16 %v7317, %v7308
      %v7507 = vpack.c.b16 %v7318, %v7309
      %v7508 = vpack.c.b16 %v7319, %v7310
      %v7509 = vpack.c.b16 %v7320, %v7311
      %v7510 = vpack.c.b16 %v7321, %v7312
      %v7511 = vpack.c.b16 %v7331, %v7322
      %v7512 = vpack.c.b16 %v7332, %v7323
      %v7513 = vpack.c.b16 %v7333, %v7324
      %v7514 = vpack.c.b16 %v7334, %v7325
      %v7515 = vpack.c.b16 %v7335, %v7326
      %v7516 = vpack.c.b16 %v7336, %v7327
      %v7517 = vpack.c.b16 %v7337, %v7328
      %v7518 = vpack.c.b16 %v7338, %v7329
      %v7519 = vpack.c.b16 %v7339, %v7330
      %v7520 = vpack.c.b16 %v7349, %v7340
      %v7521 = vpack.c.b16 %v7350, %v7341
      %v7522 = vpack.c.b16 %v7351, %v7342
      %v7523 = vpack.c.b16 %v7352, %v7343
      %v7524 = vpack.c.b16 %v7353, %v7344
      %v7525 = vpack.c.b16 %v7354, %v7345
      %v7526 = vpack.c.b16 %v7355, %v7346
      %v7527 = vpack.c.b16 %v7356, %v7347
      %v7528 = vpack.c.b16 %v7357, %v7348
      %v7529 = vpack.c.b16 %v7367, %v7358
      %v7530 = vpack.c.b16 %v7368, %v7359
      %v7531 = vpack.c.b16 %v7369, %v7360
      %v7532 = vpack.c.b16 %v7370, %v7361
      %v7533 = vpack.c.b16 %v7371, %v7362
      %v7534 = vpack.c.b16 %v7372, %v7363
      %v7535 = vpack.c.b16 %v7373, %v7364
      %v7536 = vpack.c.b16 %v7374, %v7365
      %v7537 = vpack.c.b16 %v7375, %v7366
      %v7538 = vpack.c.b16 %v7385, %v7376
      %v7539 = vpack.c.b16 %v7386, %v7377
      %v7540 = vpack.c.b16 %v7387, %v7378
      %v7541 = vpack.c.b16 %v7388, %v7379
      %v7542 = vpack.c.b16 %v7389, %v7380
      %v7543 = vpack.c.b16 %v7390, %v7381
      %v7544 = vpack.c.b16 %v7391, %v7382
      %v7545 = vpack.c.b16 %v7392, %v7383
      %v7546 = vpack.c.b16 %v7393, %v7384
      %v7547 = vpack.c.b16 %v7403, %v7394
      %v7548 = vpack.c.b16 %v7404, %v7395
      %v7549 = vpack.c.b16 %v7405, %v7396
      %v7550 = vpack.c.b16 %v7406, %v7397
      %v7551 = vpack.c.b16 %v7407, %v7398
      %v7552 = vpack.c.b16 %v7408, %v7399
      %v7553 = vpack.c.b16 %v7409, %v7400
      %v7554 = vpack.c.b16 %v7410, %v7401
      %v7555 = vpack.c.b16 %v7411, %v7402
      %v7556 = vpack.c.b16 %v7421, %v7412
      %v7557 = vpack.c.b16 %v7422, %v7413
      %v7558 = vpack.c.b16 %v7423, %v7414
      %v7559 = vpack.c.b16 %v7424, %v7415
      %v7560 = vpack.c.b16 %v7425, %v7416
      %v7561 = vpack.c.b16 %v7426, %v7417
      %v7562 = vpack.c.b16 %v7427, %v7418
      %v7563 = vpack.c.b16 %v7428, %v7419
      %v7564 = vpack.c.b16 %v7429, %v7420
      %v7565 = vpack.c.b16 %v7439, %v7430
      %v7566 = vpack.c.b16 %v7440, %v7431
      %v7567 = vpack.c.b16 %v7441, %v7432
      %v7568 = vpack.c.b16 %v7442, %v7433
      %v7569 = vpack.c.b16 %v7443, %v7434
      %v7570 = vpack.c.b16 %v7444, %v7435
      %v7571 = vpack.c.b16 %v7445, %v7436
      %v7572 = vpack.c.b16 %v7446, %v7437
      %v7573 = vpack.c.b16 %v7447, %v7438
      %v7574 = vpack.c.b16 %v7457, %v7448
      %v7575 = vpack.c.b16 %v7458, %v7449
      %v7576 = vpack.c.b16 %v7459, %v7450
      %v7577 = vpack.c.b16 %v7460, %v7451
      %v7578 = vpack.c.b16 %v7461, %v7452
      %v7579 = vpack.c.b16 %v7462, %v7453
      %v7580 = vpack.c.b16 %v7463, %v7454
      %v7581 = vpack.c.b16 %v7464, %v7455
      %v7582 = vpack.c.b16 %v7465, %v7456
      %v7583 = vpack.c.b16 %v7475, %v7466
      %v7584 = vpack.c.b16 %v7476, %v7467
      %v7585 = vpack.c.b16 %v7477, %v7468
      %v7586 = vpack.c.b16 %v7478, %v7469
      %v7587 = vpack.c.b16 %v7479, %v7470
      %v7588 = vpack.c.b16 %v7480, %v7471
      %v7589 = vpack.c.b16 %v7481, %v7472
      %v7590 = vpack.c.b16 %v7482, %v7473
      %v7591 = vpack.c.b16 %v7483, %v7474
      %v7844 = vunpack.c.l.b16 %v7004
      %v7845 = vunpack.c.l.b16 %v7005
      %v7846 = vunpack.c.l.b16 %v7006
      %v7847 = vunpack.c.l.b16 %v7007
      %v7848 = vunpack.c.l.b16 %v7008
      %v7849 = vunpack.c.l.b16 %v7009
      %v7850 = vunpack.c.l.b16 %v7010
      %v7851 = vunpack.c.l.b16 %v7011
      %v7852 = vunpack.c.l.b16 %v7012
      %v7853 = vunpack.c.l.b16 %v7013
      %v7854 = vunpack.c.l.b16 %v7014
      %v7855 = vunpack.c.l.b16 %v7015
      %v7856 = vunpack.c.l.b16 %v7016
      %v7857 = vunpack.c.l.b16 %v7017
      %v7858 = vunpack.c.l.b16 %v7018
      %v7859 = vunpack.c.l.b16 %v7019
      %v7860 = vunpack.c.l.b16 %v7020
      %v7861 = vunpack.c.l.b16 %v7021
      %v7862 = vunpack.c.l.b16 %v7022
      %v7863 = vunpack.c.l.b16 %v7023
      %v7864 = vunpack.c.l.b16 %v7024
      %v7865 = vunpack.c.l.b16 %v7025
      %v7866 = vunpack.c.l.b16 %v7026
      %v7867 = vunpack.c.l.b16 %v7027
      %v7868 = vunpack.c.l.b16 %v7028
      %v7869 = vunpack.c.l.b16 %v7029
      %v7870 = vunpack.c.l.b16 %v7030
      %v7871 = vunpack.c.l.b16 %v7031
      %v7872 = vunpack.c.l.b16 %v7032
      %v7873 = vunpack.c.l.b16 %v7033
      %v7874 = vunpack.c.l.b16 %v7034
      %v7875 = vunpack.c.l.b16 %v7035
      %v7876 = vunpack.c.l.b16 %v7036
      %v7877 = vunpack.c.l.b16 %v7037
      %v7878 = vunpack.c.l.b16 %v7038
      %v7879 = vunpack.c.l.b16 %v7039
      %v7880 = vunpack.c.l.b16 %v7040
      %v7881 = vunpack.c.l.b16 %v7041
      %v7882 = vunpack.c.l.b16 %v7042
      %v7883 = vunpack.c.l.b16 %v7043
      %v7884 = vunpack.c.l.b16 %v7044
      %v7885 = vunpack.c.l.b16 %v7045
      %v7886 = vunpack.c.l.b16 %v7046
      %v7887 = vunpack.c.l.b16 %v7047
      %v7888 = vunpack.c.l.b16 %v7048
      %v7889 = vunpack.c.l.b16 %v7049
      %v7890 = vunpack.c.l.b16 %v7050
      %v7891 = vunpack.c.l.b16 %v7051
      %v7892 = vunpack.c.l.b16 %v7052
      %v7893 = vunpack.c.l.b16 %v7053
      %v7894 = vunpack.c.l.b16 %v7054
      %v7895 = vunpack.c.l.b16 %v7055
      %v7896 = vunpack.c.l.b16 %v7056
      %v7897 = vunpack.c.l.b16 %v7057
      %v7898 = vunpack.c.l.b16 %v7058
      %v7899 = vunpack.c.l.b16 %v7059
      %v7900 = vunpack.c.l.b16 %v7060
      %v7901 = vunpack.c.l.b16 %v7061
      %v7902 = vunpack.c.l.b16 %v7062
      %v7903 = vunpack.c.l.b16 %v7063
      %v7904 = vunpack.c.l.b16 %v7064
      %v7905 = vunpack.c.l.b16 %v7065
      %v7906 = vunpack.c.l.b16 %v7066
      %v7907 = vunpack.c.l.b16 %v7067
      %v7908 = vunpack.c.l.b16 %v7068
      %v7909 = vunpack.c.l.b16 %v7069
      %v7910 = vunpack.c.l.b16 %v7070
      %v7911 = vunpack.c.l.b16 %v7071
      %v7912 = vunpack.c.l.b16 %v7072
      %v7913 = vunpack.c.l.b16 %v7073
      %v7914 = vunpack.c.l.b16 %v7074
      %v7915 = vunpack.c.l.b16 %v7075
      %v7916 = vunpack.c.l.b16 %v7076
      %v7917 = vunpack.c.l.b16 %v7077
      %v7918 = vunpack.c.l.b16 %v7078
      %v7919 = vunpack.c.l.b16 %v7079
      %v7920 = vunpack.c.l.b16 %v7080
      %v7921 = vunpack.c.l.b16 %v7081
      %v7922 = vunpack.c.l.b16 %v7082
      %v7923 = vunpack.c.l.b16 %v7083
      %v7924 = vunpack.c.l.b16 %v7084
      %v7925 = vunpack.c.l.b16 %v7085
      %v7926 = vunpack.c.l.b16 %v7086
      %v7927 = vunpack.c.l.b16 %v7087
      %v7928 = vunpack.c.l.b16 %v7088
      %v7929 = vunpack.c.l.b16 %v7089
      %v7930 = vunpack.c.l.b16 %v7090
      %v7931 = vunpack.c.l.b16 %v7091
      %v7932 = vunpack.c.l.b16 %v7092
      %v7933 = vunpack.c.l.b16 %v7093
      %v7934 = vunpack.c.l.b16 %v7094
      %v7935 = vunpack.c.l.b16 %v7095
      %v7936 = vunpack.c.l.b16 %v7096
      %v7937 = vunpack.c.l.b16 %v7097
      %v7938 = vunpack.c.l.b16 %v7098
      %v7939 = vunpack.c.l.b16 %v7099
      %v7940 = vunpack.c.l.b16 %v7100
      %v7941 = vunpack.c.l.b16 %v7101
      %v7942 = vunpack.c.l.b16 %v7102
      %v7943 = vunpack.c.l.b16 %v7103
      %v7944 = vunpack.c.l.b16 %v7104
      %v7945 = vunpack.c.l.b16 %v7105
      %v7946 = vunpack.c.l.b16 %v7106
      %v7947 = vunpack.c.l.b16 %v7107
      %v7948 = vunpack.c.l.b16 %v7108
      %v7949 = vunpack.c.l.b16 %v7109
      %v7950 = vunpack.c.l.b16 %v7110
      %v7951 = vunpack.c.l.b16 %v7111
      %v7952 = vunpack.c.l.b16 %v7112
      %v7953 = vunpack.c.l.b16 %v7113
      %v7954 = vunpack.c.l.b16 %v7114
      %v7955 = vunpack.c.l.b16 %v7115
      %v7956 = vunpack.c.l.b16 %v7116
      %v7957 = vunpack.c.l.b16 %v7117
      %v7958 = vunpack.c.l.b16 %v7118
      %v7959 = vunpack.c.l.b16 %v7119
      %v7960 = vunpack.c.l.b16 %v7120
      %v7961 = vunpack.c.l.b16 %v7121
      %v7962 = vunpack.c.l.b16 %v7122
      %v7963 = vunpack.c.l.b16 %v7123
      %v7964 = vunpack.c.l.b16 %v7124
      %v7965 = vunpack.c.l.b16 %v7125
      %v7966 = vunpack.c.l.b16 %v7126
      %v7967 = vunpack.c.l.b16 %v7127
      %v7968 = vunpack.c.l.b16 %v7128
      %v7969 = vunpack.c.l.b16 %v7129
      %v7970 = vunpack.c.l.b16 %v7130
      %v7971 = vunpack.c.l.b16 %v7131
      %v7972 = vunpack.c.l.b16 %v7132
      %v7973 = vunpack.c.l.b16 %v7133
      %v7974 = vunpack.c.l.b16 %v7134
      %v7975 = vunpack.c.l.b16 %v7135
      %v7976 = vunpack.c.l.b16 %v7136
      %v7977 = vunpack.c.l.b16 %v7137
      %v7978 = vunpack.c.l.b16 %v7138
      %v7979 = vunpack.c.l.b16 %v7139
      %v7980 = vunpack.c.l.b16 %v7140
      %v7981 = vunpack.c.l.b16 %v7141
      %v7982 = vunpack.c.l.b16 %v7142
      %v7983 = vunpack.c.l.b16 %v7143
      %v7984 = vunpack.c.l.b16 %v7144
      %v7985 = vunpack.c.l.b16 %v7145
      %v7986 = vunpack.c.l.b16 %v7146
      %v7987 = vunpack.c.l.b16 %v7147
      %v7988 = vpack.c.b16 %v7845, %v7844
      %v7989 = vpack.c.b16 %v7847, %v7846
      %v7990 = vpack.c.b16 %v7849, %v7848
      %v7991 = vpack.c.b16 %v7851, %v7850
      %v7992 = vpack.c.b16 %v7853, %v7852
      %v7993 = vpack.c.b16 %v7855, %v7854
      %v7994 = vpack.c.b16 %v7857, %v7856
      %v7995 = vpack.c.b16 %v7859, %v7858
      %v7996 = vpack.c.b16 %v7861, %v7860
      %v7997 = vpack.c.b16 %v7863, %v7862
      %v7998 = vpack.c.b16 %v7865, %v7864
      %v7999 = vpack.c.b16 %v7867, %v7866
      %v8000 = vpack.c.b16 %v7869, %v7868
      %v8001 = vpack.c.b16 %v7871, %v7870
      %v8002 = vpack.c.b16 %v7873, %v7872
      %v8003 = vpack.c.b16 %v7875, %v7874
      %v8004 = vpack.c.b16 %v7877, %v7876
      %v8005 = vpack.c.b16 %v7879, %v7878
      %v8006 = vpack.c.b16 %v7881, %v7880
      %v8007 = vpack.c.b16 %v7883, %v7882
      %v8008 = vpack.c.b16 %v7885, %v7884
      %v8009 = vpack.c.b16 %v7887, %v7886
      %v8010 = vpack.c.b16 %v7889, %v7888
      %v8011 = vpack.c.b16 %v7891, %v7890
      %v8012 = vpack.c.b16 %v7893, %v7892
      %v8013 = vpack.c.b16 %v7895, %v7894
      %v8014 = vpack.c.b16 %v7897, %v7896
      %v8015 = vpack.c.b16 %v7899, %v7898
      %v8016 = vpack.c.b16 %v7901, %v7900
      %v8017 = vpack.c.b16 %v7903, %v7902
      %v8018 = vpack.c.b16 %v7905, %v7904
      %v8019 = vpack.c.b16 %v7907, %v7906
      %v8020 = vpack.c.b16 %v7909, %v7908
      %v8021 = vpack.c.b16 %v7911, %v7910
      %v8022 = vpack.c.b16 %v7913, %v7912
      %v8023 = vpack.c.b16 %v7915, %v7914
      %v8024 = vpack.c.b16 %v7917, %v7916
      %v8025 = vpack.c.b16 %v7919, %v7918
      %v8026 = vpack.c.b16 %v7921, %v7920
      %v8027 = vpack.c.b16 %v7923, %v7922
      %v8028 = vpack.c.b16 %v7925, %v7924
      %v8029 = vpack.c.b16 %v7927, %v7926
      %v8030 = vpack.c.b16 %v7929, %v7928
      %v8031 = vpack.c.b16 %v7931, %v7930
      %v8032 = vpack.c.b16 %v7933, %v7932
      %v8033 = vpack.c.b16 %v7935, %v7934
      %v8034 = vpack.c.b16 %v7937, %v7936
      %v8035 = vpack.c.b16 %v7939, %v7938
      %v8036 = vpack.c.b16 %v7941, %v7940
      %v8037 = vpack.c.b16 %v7943, %v7942
      %v8038 = vpack.c.b16 %v7945, %v7944
      %v8039 = vpack.c.b16 %v7947, %v7946
      %v8040 = vpack.c.b16 %v7949, %v7948
      %v8041 = vpack.c.b16 %v7951, %v7950
      %v8042 = vpack.c.b16 %v7953, %v7952
      %v8043 = vpack.c.b16 %v7955, %v7954
      %v8044 = vpack.c.b16 %v7957, %v7956
      %v8045 = vpack.c.b16 %v7959, %v7958
      %v8046 = vpack.c.b16 %v7961, %v7960
      %v8047 = vpack.c.b16 %v7963, %v7962
      %v8048 = vpack.c.b16 %v7965, %v7964
      %v8049 = vpack.c.b16 %v7967, %v7966
      %v8050 = vpack.c.b16 %v7969, %v7968
      %v8051 = vpack.c.b16 %v7971, %v7970
      %v8052 = vpack.c.b16 %v7973, %v7972
      %v8053 = vpack.c.b16 %v7975, %v7974
      %v8054 = vpack.c.b16 %v7977, %v7976
      %v8055 = vpack.c.b16 %v7979, %v7978
      %v8056 = vpack.c.b16 %v7981, %v7980
      %v8057 = vpack.c.b16 %v7983, %v7982
      %v8058 = vpack.c.b16 %v7985, %v7984
      %v8059 = vpack.c.b16 %v7987, %v7986
      %8132 = vmatpush.bf16.msra.mxu0 %v7995
      %8133 = vmatpush.bf16.msra.mxu0 %v7994
      %8134 = vmatpush.bf16.msra.mxu0 %v7993
      %8135 = vmatpush.bf16.msra.mxu0 %v7992
      %8136 = vmatpush.bf16.msra.mxu0 %v7991
      %8137 = vmatpush.bf16.msra.mxu0 %v7990
      %8138 = vmatpush.bf16.msra.mxu0 %v7989
      %8139 = vmatpush.bf16.msra.mxu0 %v7988
      %8140 = vmatmul.bf16.gmra.mxu0 %v7484
      %v8141 = vpop.f32.mrf.mxu0
      %v8142 = vadd.f32 0.0, %v8141
      %v8143 = vpop.f32.mrf.mxu0
      %v8144 = vadd.f32 0.0, %v8143
      %8145 = vmatmul.bf16.gmra.mxu0 %v7493
      %v8146 = vpop.f32.mrf.mxu0
      %v8147 = vpop.f32.mrf.mxu0
      %v8148 = vadd.f32 0.0, %v8147
      %8149 = vmatmul.bf16.gmra.mxu0 %v7502
      %v8150 = vpop.f32.mrf.mxu0
      %v8151 = vadd.f32 0.0, %v8150
      %v8152 = vpop.f32.mrf.mxu0
      %8153 = vmatmul.bf16.gmra.mxu0 %v7511
      %v8154 = vpop.f32.mrf.mxu0
      %v8155 = vadd.f32 0.0, %v8154
      %v8156 = vpop.f32.mrf.mxu0
      %v8157 = vadd.f32 0.0, %v8156
      %8158 = vmatmul.bf16.gmra.mxu0 %v7520
      %v8159 = vpop.f32.mrf.mxu0
      %v8160 = vpop.f32.mrf.mxu0
      %v8161 = vadd.f32 0.0, %v8160
      %8162 = vmatmul.bf16.gmra.mxu0 %v7529
      %v8163 = vpop.f32.mrf.mxu0
      %v8164 = vadd.f32 0.0, %v8163
      %v8165 = vpop.f32.mrf.mxu0
      %8166 = vmatmul.bf16.gmra.mxu0 %v7538
      %v8167 = vpop.f32.mrf.mxu0
      %v8168 = vadd.f32 0.0, %v8167
      %v8169 = vpop.f32.mrf.mxu0
      %v8170 = vadd.f32 0.0, %v8169
      %8171 = vmatmul.bf16.gmra.mxu0 %v7547
      %v8172 = vpop.f32.mrf.mxu0
      %v8173 = vpop.f32.mrf.mxu0
      %v8174 = vadd.f32 0.0, %v8173
      %8175 = vmatmul.bf16.gmra.mxu0 %v7556
      %v8176 = vpop.f32.mrf.mxu0
      %v8177 = vadd.f32 0.0, %v8176
      %v8178 = vpop.f32.mrf.mxu0
      %8179 = vmatmul.bf16.gmra.mxu0 %v7565
      %v8180 = vpop.f32.mrf.mxu0
      %v8181 = vadd.f32 0.0, %v8180
      %v8182 = vpop.f32.mrf.mxu0
      %v8183 = vadd.f32 0.0, %v8182
      %8184 = vmatmul.bf16.gmra.mxu0 %v7574
      %v8185 = vpop.f32.mrf.mxu0
      %v8186 = vpop.f32.mrf.mxu0
      %v8187 = vadd.f32 0.0, %v8186
      %8188 = vmatmul.bf16.gmra.mxu0 %v7583
      %v8189 = vpop.f32.mrf.mxu0
      %v8190 = vadd.f32 0.0, %v8189
      %v8191 = vpop.f32.mrf.mxu0
      %8192 = vdwg.mxu0
      %8193 = vmatpush.bf16.msra.mxu0 %v8003
      %8194 = vmatpush.bf16.msra.mxu0 %v8002
      %8195 = vmatpush.bf16.msra.mxu0 %v8001
      %8196 = vmatpush.bf16.msra.mxu0 %v8000
      %8197 = vmatpush.bf16.msra.mxu0 %v7999
      %8198 = vmatpush.bf16.msra.mxu0 %v7998
      %8199 = vmatpush.bf16.msra.mxu0 %v7997
      %8200 = vmatpush.bf16.msra.mxu0 %v7996
      %8201 = vmatmul.bf16.gmra.mxu0 %v7485
      %v8202 = vpop.f32.mrf.mxu0
      %v8203 = vadd.f32 %v8142, %v8202
      %v8204 = vpop.f32.mrf.mxu0
      %v8205 = vadd.f32 %v8144, %v8204
      %8206 = vmatmul.bf16.gmra.mxu0 %v7494
      %v8207 = vpop.f32.mrf.mxu0
      %v8208 = vpop.f32.mrf.mxu0
      %v8209 = vadd.f32 %v8148, %v8208
      %8210 = vmatmul.bf16.gmra.mxu0 %v7503
      %v8211 = vpop.f32.mrf.mxu0
      %v8212 = vadd.f32 %v8151, %v8211
      %v8213 = vpop.f32.mrf.mxu0
      %8214 = vmatmul.bf16.gmra.mxu0 %v7512
      %v8215 = vpop.f32.mrf.mxu0
      %v8216 = vadd.f32 %v8155, %v8215
      %v8217 = vpop.f32.mrf.mxu0
      %v8218 = vadd.f32 %v8157, %v8217
      %8219 = vmatmul.bf16.gmra.mxu0 %v7521
      %v8220 = vpop.f32.mrf.mxu0
      %v8221 = vpop.f32.mrf.mxu0
      %v8222 = vadd.f32 %v8161, %v8221
      %8223 = vmatmul.bf16.gmra.mxu0 %v7530
      %v8224 = vpop.f32.mrf.mxu0
      %v8225 = vadd.f32 %v8164, %v8224
      %v8226 = vpop.f32.mrf.mxu0
      %8227 = vmatmul.bf16.gmra.mxu0 %v7539
      %v8228 = vpop.f32.mrf.mxu0
      %v8229 = vadd.f32 %v8168, %v8228
      %v8230 = vpop.f32.mrf.mxu0
      %v8231 = vadd.f32 %v8170, %v8230
      %8232 = vmatmul.bf16.gmra.mxu0 %v7548
      %v8233 = vpop.f32.mrf.mxu0
      %v8234 = vpop.f32.mrf.mxu0
      %v8235 = vadd.f32 %v8174, %v8234
      %8236 = vmatmul.bf16.gmra.mxu0 %v7557
      %v8237 = vpop.f32.mrf.mxu0
      %v8238 = vadd.f32 %v8177, %v8237
      %v8239 = vpop.f32.mrf.mxu0
      %8240 = vmatmul.bf16.gmra.mxu0 %v7566
      %v8241 = vpop.f32.mrf.mxu0
      %v8242 = vadd.f32 %v8181, %v8241
      %v8243 = vpop.f32.mrf.mxu0
      %v8244 = vadd.f32 %v8183, %v8243
      %8245 = vmatmul.bf16.gmra.mxu0 %v7575
      %v8246 = vpop.f32.mrf.mxu0
      %v8247 = vpop.f32.mrf.mxu0
      %v8248 = vadd.f32 %v8187, %v8247
      %8249 = vmatmul.bf16.gmra.mxu0 %v7584
      %v8250 = vpop.f32.mrf.mxu0
      %v8251 = vadd.f32 %v8190, %v8250
      %v8252 = vpop.f32.mrf.mxu0
      %8253 = vdwg.mxu0
      %8254 = vmatpush.bf16.msra.mxu0 %v8011
      %8255 = vmatpush.bf16.msra.mxu0 %v8010
      %8256 = vmatpush.bf16.msra.mxu0 %v8009
      %8257 = vmatpush.bf16.msra.mxu0 %v8008
      %8258 = vmatpush.bf16.msra.mxu0 %v8007
      %8259 = vmatpush.bf16.msra.mxu0 %v8006
      %8260 = vmatpush.bf16.msra.mxu0 %v8005
      %8261 = vmatpush.bf16.msra.mxu0 %v8004
      %8262 = vmatmul.bf16.gmra.mxu0 %v7486
      %v8263 = vpop.f32.mrf.mxu0
      %v8264 = vadd.f32 %v8203, %v8263
      %v8265 = vpop.f32.mrf.mxu0
      %v8266 = vadd.f32 %v8205, %v8265
      %8267 = vmatmul.bf16.gmra.mxu0 %v7495
      %v8268 = vpop.f32.mrf.mxu0
      %v8269 = vpop.f32.mrf.mxu0
      %v8270 = vadd.f32 %v8209, %v8269
      %8271 = vmatmul.bf16.gmra.mxu0 %v7504
      %v8272 = vpop.f32.mrf.mxu0
      %v8273 = vadd.f32 %v8212, %v8272
      %v8274 = vpop.f32.mrf.mxu0
      %8275 = vmatmul.bf16.gmra.mxu0 %v7513
      %v8276 = vpop.f32.mrf.mxu0
      %v8277 = vadd.f32 %v8216, %v8276
      %v8278 = vpop.f32.mrf.mxu0
      %v8279 = vadd.f32 %v8218, %v8278
      %8280 = vmatmul.bf16.gmra.mxu0 %v7522
      %v8281 = vpop.f32.mrf.mxu0
      %v8282 = vpop.f32.mrf.mxu0
      %v8283 = vadd.f32 %v8222, %v8282
      %8284 = vmatmul.bf16.gmra.mxu0 %v7531
      %v8285 = vpop.f32.mrf.mxu0
      %v8286 = vadd.f32 %v8225, %v8285
      %v8287 = vpop.f32.mrf.mxu0
      %8288 = vmatmul.bf16.gmra.mxu0 %v7540
      %v8289 = vpop.f32.mrf.mxu0
      %v8290 = vadd.f32 %v8229, %v8289
      %v8291 = vpop.f32.mrf.mxu0
      %v8292 = vadd.f32 %v8231, %v8291
      %8293 = vmatmul.bf16.gmra.mxu0 %v7549
      %v8294 = vpop.f32.mrf.mxu0
      %v8295 = vpop.f32.mrf.mxu0
      %v8296 = vadd.f32 %v8235, %v8295
      %8297 = vmatmul.bf16.gmra.mxu0 %v7558
      %v8298 = vpop.f32.mrf.mxu0
      %v8299 = vadd.f32 %v8238, %v8298
      %v8300 = vpop.f32.mrf.mxu0
      %8301 = vmatmul.bf16.gmra.mxu0 %v7567
      %v8302 = vpop.f32.mrf.mxu0
      %v8303 = vadd.f32 %v8242, %v8302
      %v8304 = vpop.f32.mrf.mxu0
      %v8305 = vadd.f32 %v8244, %v8304
      %8306 = vmatmul.bf16.gmra.mxu0 %v7576
      %v8307 = vpop.f32.mrf.mxu0
      %v8308 = vpop.f32.mrf.mxu0
      %v8309 = vadd.f32 %v8248, %v8308
      %8310 = vmatmul.bf16.gmra.mxu0 %v7585
      %v8311 = vpop.f32.mrf.mxu0
      %v8312 = vadd.f32 %v8251, %v8311
      %v8313 = vpop.f32.mrf.mxu0
      %8314 = vdwg.mxu0
      %8315 = vmatpush.bf16.msra.mxu0 %v8019
      %8316 = vmatpush.bf16.msra.mxu0 %v8018
      %8317 = vmatpush.bf16.msra.mxu0 %v8017
      %8318 = vmatpush.bf16.msra.mxu0 %v8016
      %8319 = vmatpush.bf16.msra.mxu0 %v8015
      %8320 = vmatpush.bf16.msra.mxu0 %v8014
      %8321 = vmatpush.bf16.msra.mxu0 %v8013
      %8322 = vmatpush.bf16.msra.mxu0 %v8012
      %8323 = vmatmul.bf16.gmra.mxu0 %v7487
      %v8324 = vpop.f32.mrf.mxu0
      %v8325 = vadd.f32 %v8264, %v8324
      %v8326 = vpop.f32.mrf.mxu0
      %v8327 = vadd.f32 %v8266, %v8326
      %8328 = vmatmul.bf16.gmra.mxu0 %v7496
      %v8329 = vpop.f32.mrf.mxu0
      %v8330 = vpop.f32.mrf.mxu0
      %v8331 = vadd.f32 %v8270, %v8330
      %8332 = vmatmul.bf16.gmra.mxu0 %v7505
      %v8333 = vpop.f32.mrf.mxu0
      %v8334 = vadd.f32 %v8273, %v8333
      %v8335 = vpop.f32.mrf.mxu0
      %8336 = vmatmul.bf16.gmra.mxu0 %v7514
      %v8337 = vpop.f32.mrf.mxu0
      %v8338 = vadd.f32 %v8277, %v8337
      %v8339 = vpop.f32.mrf.mxu0
      %v8340 = vadd.f32 %v8279, %v8339
      %8341 = vmatmul.bf16.gmra.mxu0 %v7523
      %v8342 = vpop.f32.mrf.mxu0
      %v8343 = vpop.f32.mrf.mxu0
      %v8344 = vadd.f32 %v8283, %v8343
      %8345 = vmatmul.bf16.gmra.mxu0 %v7532
      %v8346 = vpop.f32.mrf.mxu0
      %v8347 = vadd.f32 %v8286, %v8346
      %v8348 = vpop.f32.mrf.mxu0
      %8349 = vmatmul.bf16.gmra.mxu0 %v7541
      %v8350 = vpop.f32.mrf.mxu0
      %v8351 = vadd.f32 %v8290, %v8350
      %v8352 = vpop.f32.mrf.mxu0
      %v8353 = vadd.f32 %v8292, %v8352
      %8354 = vmatmul.bf16.gmra.mxu0 %v7550
      %v8355 = vpop.f32.mrf.mxu0
      %v8356 = vpop.f32.mrf.mxu0
      %v8357 = vadd.f32 %v8296, %v8356
      %8358 = vmatmul.bf16.gmra.mxu0 %v7559
      %v8359 = vpop.f32.mrf.mxu0
      %v8360 = vadd.f32 %v8299, %v8359
      %v8361 = vpop.f32.mrf.mxu0
      %8362 = vmatmul.bf16.gmra.mxu0 %v7568
      %v8363 = vpop.f32.mrf.mxu0
      %v8364 = vadd.f32 %v8303, %v8363
      %v8365 = vpop.f32.mrf.mxu0
      %v8366 = vadd.f32 %v8305, %v8365
      %8367 = vmatmul.bf16.gmra.mxu0 %v7577
      %v8368 = vpop.f32.mrf.mxu0
      %v8369 = vpop.f32.mrf.mxu0
      %v8370 = vadd.f32 %v8309, %v8369
      %8371 = vmatmul.bf16.gmra.mxu0 %v7586
      %v8372 = vpop.f32.mrf.mxu0
      %v8373 = vadd.f32 %v8312, %v8372
      %v8374 = vpop.f32.mrf.mxu0
      %8375 = vdwg.mxu0
      %8376 = vmatpush.bf16.msra.mxu0 %v8027
      %8377 = vmatpush.bf16.msra.mxu0 %v8026
      %8378 = vmatpush.bf16.msra.mxu0 %v8025
      %8379 = vmatpush.bf16.msra.mxu0 %v8024
      %8380 = vmatpush.bf16.msra.mxu0 %v8023
      %8381 = vmatpush.bf16.msra.mxu0 %v8022
      %8382 = vmatpush.bf16.msra.mxu0 %v8021
      %8383 = vmatpush.bf16.msra.mxu0 %v8020
      %8384 = vmatmul.bf16.gmra.mxu0 %v7488
      %v8385 = vpop.f32.mrf.mxu0
      %v8386 = vadd.f32 %v8325, %v8385
      %v8387 = vpop.f32.mrf.mxu0
      %v8388 = vadd.f32 %v8327, %v8387
      %8389 = vmatmul.bf16.gmra.mxu0 %v7497
      %v8390 = vpop.f32.mrf.mxu0
      %v8391 = vpop.f32.mrf.mxu0
      %v8392 = vadd.f32 %v8331, %v8391
      %8393 = vmatmul.bf16.gmra.mxu0 %v7506
      %v8394 = vpop.f32.mrf.mxu0
      %v8395 = vadd.f32 %v8334, %v8394
      %v8396 = vpop.f32.mrf.mxu0
      %8397 = vmatmul.bf16.gmra.mxu0 %v7515
      %v8398 = vpop.f32.mrf.mxu0
      %v8399 = vadd.f32 %v8338, %v8398
      %v8400 = vpop.f32.mrf.mxu0
      %v8401 = vadd.f32 %v8340, %v8400
      %8402 = vmatmul.bf16.gmra.mxu0 %v7524
      %v8403 = vpop.f32.mrf.mxu0
      %v8404 = vpop.f32.mrf.mxu0
      %v8405 = vadd.f32 %v8344, %v8404
      %8406 = vmatmul.bf16.gmra.mxu0 %v7533
      %v8407 = vpop.f32.mrf.mxu0
      %v8408 = vadd.f32 %v8347, %v8407
      %v8409 = vpop.f32.mrf.mxu0
      %8410 = vmatmul.bf16.gmra.mxu0 %v7542
      %v8411 = vpop.f32.mrf.mxu0
      %v8412 = vadd.f32 %v8351, %v8411
      %v8413 = vpop.f32.mrf.mxu0
      %v8414 = vadd.f32 %v8353, %v8413
      %8415 = vmatmul.bf16.gmra.mxu0 %v7551
      %v8416 = vpop.f32.mrf.mxu0
      %v8417 = vpop.f32.mrf.mxu0
      %v8418 = vadd.f32 %v8357, %v8417
      %8419 = vmatmul.bf16.gmra.mxu0 %v7560
      %v8420 = vpop.f32.mrf.mxu0
      %v8421 = vadd.f32 %v8360, %v8420
      %v8422 = vpop.f32.mrf.mxu0
      %8423 = vmatmul.bf16.gmra.mxu0 %v7569
      %v8424 = vpop.f32.mrf.mxu0
      %v8425 = vadd.f32 %v8364, %v8424
      %v8426 = vpop.f32.mrf.mxu0
      %v8427 = vadd.f32 %v8366, %v8426
      %8428 = vmatmul.bf16.gmra.mxu0 %v7578
      %v8429 = vpop.f32.mrf.mxu0
      %v8430 = vpop.f32.mrf.mxu0
      %v8431 = vadd.f32 %v8370, %v8430
      %8432 = vmatmul.bf16.gmra.mxu0 %v7587
      %v8433 = vpop.f32.mrf.mxu0
      %v8434 = vadd.f32 %v8373, %v8433
      %v8435 = vpop.f32.mrf.mxu0
      %8436 = vdwg.mxu0
      %8437 = vmatpush.bf16.msra.mxu0 %v8035
      %8438 = vmatpush.bf16.msra.mxu0 %v8034
      %8439 = vmatpush.bf16.msra.mxu0 %v8033
      %8440 = vmatpush.bf16.msra.mxu0 %v8032
      %8441 = vmatpush.bf16.msra.mxu0 %v8031
      %8442 = vmatpush.bf16.msra.mxu0 %v8030
      %8443 = vmatpush.bf16.msra.mxu0 %v8029
      %8444 = vmatpush.bf16.msra.mxu0 %v8028
      %8445 = vmatmul.bf16.gmra.mxu0 %v7489
      %v8446 = vpop.f32.mrf.mxu0
      %v8447 = vadd.f32 %v8386, %v8446
      %v8448 = vpop.f32.mrf.mxu0
      %v8449 = vadd.f32 %v8388, %v8448
      %8450 = vmatmul.bf16.gmra.mxu0 %v7498
      %v8451 = vpop.f32.mrf.mxu0
      %v8452 = vpop.f32.mrf.mxu0
      %v8453 = vadd.f32 %v8392, %v8452
      %8454 = vmatmul.bf16.gmra.mxu0 %v7507
      %v8455 = vpop.f32.mrf.mxu0
      %v8456 = vadd.f32 %v8395, %v8455
      %v8457 = vpop.f32.mrf.mxu0
      %8458 = vmatmul.bf16.gmra.mxu0 %v7516
      %v8459 = vpop.f32.mrf.mxu0
      %v8460 = vadd.f32 %v8399, %v8459
      %v8461 = vpop.f32.mrf.mxu0
      %v8462 = vadd.f32 %v8401, %v8461
      %8463 = vmatmul.bf16.gmra.mxu0 %v7525
      %v8464 = vpop.f32.mrf.mxu0
      %v8465 = vpop.f32.mrf.mxu0
      %v8466 = vadd.f32 %v8405, %v8465
      %8467 = vmatmul.bf16.gmra.mxu0 %v7534
      %v8468 = vpop.f32.mrf.mxu0
      %v8469 = vadd.f32 %v8408, %v8468
      %v8470 = vpop.f32.mrf.mxu0
      %8471 = vmatmul.bf16.gmra.mxu0 %v7543
      %v8472 = vpop.f32.mrf.mxu0
      %v8473 = vadd.f32 %v8412, %v8472
      %v8474 = vpop.f32.mrf.mxu0
      %v8475 = vadd.f32 %v8414, %v8474
      %8476 = vmatmul.bf16.gmra.mxu0 %v7552
      %v8477 = vpop.f32.mrf.mxu0
      %v8478 = vpop.f32.mrf.mxu0
      %v8479 = vadd.f32 %v8418, %v8478
      %8480 = vmatmul.bf16.gmra.mxu0 %v7561
      %v8481 = vpop.f32.mrf.mxu0
      %v8482 = vadd.f32 %v8421, %v8481
      %v8483 = vpop.f32.mrf.mxu0
      %8484 = vmatmul.bf16.gmra.mxu0 %v7570
      %v8485 = vpop.f32.mrf.mxu0
      %v8486 = vadd.f32 %v8425, %v8485
      %v8487 = vpop.f32.mrf.mxu0
      %v8488 = vadd.f32 %v8427, %v8487
      %8489 = vmatmul.bf16.gmra.mxu0 %v7579
      %v8490 = vpop.f32.mrf.mxu0
      %v8491 = vpop.f32.mrf.mxu0
      %v8492 = vadd.f32 %v8431, %v8491
      %8493 = vmatmul.bf16.gmra.mxu0 %v7588
      %v8494 = vpop.f32.mrf.mxu0
      %v8495 = vadd.f32 %v8434, %v8494
      %v8496 = vpop.f32.mrf.mxu0
      %8497 = vdwg.mxu0
      %8498 = vmatpush.bf16.msra.mxu0 %v8043
      %8499 = vmatpush.bf16.msra.mxu0 %v8042
      %8500 = vmatpush.bf16.msra.mxu0 %v8041
      %8501 = vmatpush.bf16.msra.mxu0 %v8040
      %8502 = vmatpush.bf16.msra.mxu0 %v8039
      %8503 = vmatpush.bf16.msra.mxu0 %v8038
      %8504 = vmatpush.bf16.msra.mxu0 %v8037
      %8505 = vmatpush.bf16.msra.mxu0 %v8036
      %8506 = vmatmul.bf16.gmra.mxu0 %v7490
      %v8507 = vpop.f32.mrf.mxu0
      %v8508 = vadd.f32 %v8447, %v8507
      %v8509 = vpop.f32.mrf.mxu0
      %v8510 = vadd.f32 %v8449, %v8509
      %8511 = vmatmul.bf16.gmra.mxu0 %v7499
      %v8512 = vpop.f32.mrf.mxu0
      %v8513 = vpop.f32.mrf.mxu0
      %v8514 = vadd.f32 %v8453, %v8513
      %8515 = vmatmul.bf16.gmra.mxu0 %v7508
      %v8516 = vpop.f32.mrf.mxu0
      %v8517 = vadd.f32 %v8456, %v8516
      %v8518 = vpop.f32.mrf.mxu0
      %8519 = vmatmul.bf16.gmra.mxu0 %v7517
      %v8520 = vpop.f32.mrf.mxu0
      %v8521 = vadd.f32 %v8460, %v8520
      %v8522 = vpop.f32.mrf.mxu0
      %v8523 = vadd.f32 %v8462, %v8522
      %8524 = vmatmul.bf16.gmra.mxu0 %v7526
      %v8525 = vpop.f32.mrf.mxu0
      %v8526 = vpop.f32.mrf.mxu0
      %v8527 = vadd.f32 %v8466, %v8526
      %8528 = vmatmul.bf16.gmra.mxu0 %v7535
      %v8529 = vpop.f32.mrf.mxu0
      %v8530 = vadd.f32 %v8469, %v8529
      %v8531 = vpop.f32.mrf.mxu0
      %8532 = vmatmul.bf16.gmra.mxu0 %v7544
      %v8533 = vpop.f32.mrf.mxu0
      %v8534 = vadd.f32 %v8473, %v8533
      %v8535 = vpop.f32.mrf.mxu0
      %v8536 = vadd.f32 %v8475, %v8535
      %8537 = vmatmul.bf16.gmra.mxu0 %v7553
      %v8538 = vpop.f32.mrf.mxu0
      %v8539 = vpop.f32.mrf.mxu0
      %v8540 = vadd.f32 %v8479, %v8539
      %8541 = vmatmul.bf16.gmra.mxu0 %v7562
      %v8542 = vpop.f32.mrf.mxu0
      %v8543 = vadd.f32 %v8482, %v8542
      %v8544 = vpop.f32.mrf.mxu0
      %8545 = vmatmul.bf16.gmra.mxu0 %v7571
      %v8546 = vpop.f32.mrf.mxu0
      %v8547 = vadd.f32 %v8486, %v8546
      %v8548 = vpop.f32.mrf.mxu0
      %v8549 = vadd.f32 %v8488, %v8548
      %8550 = vmatmul.bf16.gmra.mxu0 %v7580
      %v8551 = vpop.f32.mrf.mxu0
      %v8552 = vpop.f32.mrf.mxu0
      %v8553 = vadd.f32 %v8492, %v8552
      %8554 = vmatmul.bf16.gmra.mxu0 %v7589
      %v8555 = vpop.f32.mrf.mxu0
      %v8556 = vadd.f32 %v8495, %v8555
      %v8557 = vpop.f32.mrf.mxu0
      %8558 = vdwg.mxu0
      %8559 = vmatpush.bf16.msra.mxu0 %v8051
      %8560 = vmatpush.bf16.msra.mxu0 %v8050
      %8561 = vmatpush.bf16.msra.mxu0 %v8049
      %8562 = vmatpush.bf16.msra.mxu0 %v8048
      %8563 = vmatpush.bf16.msra.mxu0 %v8047
      %8564 = vmatpush.bf16.msra.mxu0 %v8046
      %8565 = vmatpush.bf16.msra.mxu0 %v8045
      %8566 = vmatpush.bf16.msra.mxu0 %v8044
      %8567 = vmatmul.bf16.gmra.mxu0 %v7491
      %v8568 = vpop.f32.mrf.mxu0
      %v8569 = vadd.f32 %v8508, %v8568
      %v8570 = vpop.f32.mrf.mxu0
      %v8571 = vadd.f32 %v8510, %v8570
      %8572 = vmatmul.bf16.gmra.mxu0 %v7500
      %v8573 = vpop.f32.mrf.mxu0
      %v8574 = vpop.f32.mrf.mxu0
      %v8575 = vadd.f32 %v8514, %v8574
      %8576 = vmatmul.bf16.gmra.mxu0 %v7509
      %v8577 = vpop.f32.mrf.mxu0
      %v8578 = vadd.f32 %v8517, %v8577
      %v8579 = vpop.f32.mrf.mxu0
      %8580 = vmatmul.bf16.gmra.mxu0 %v7518
      %v8581 = vpop.f32.mrf.mxu0
      %v8582 = vadd.f32 %v8521, %v8581
      %v8583 = vpop.f32.mrf.mxu0
      %v8584 = vadd.f32 %v8523, %v8583
      %8585 = vmatmul.bf16.gmra.mxu0 %v7527
      %v8586 = vpop.f32.mrf.mxu0
      %v8587 = vpop.f32.mrf.mxu0
      %v8588 = vadd.f32 %v8527, %v8587
      %8589 = vmatmul.bf16.gmra.mxu0 %v7536
      %v8590 = vpop.f32.mrf.mxu0
      %v8591 = vadd.f32 %v8530, %v8590
      %v8592 = vpop.f32.mrf.mxu0
      %8593 = vmatmul.bf16.gmra.mxu0 %v7545
      %v8594 = vpop.f32.mrf.mxu0
      %v8595 = vadd.f32 %v8534, %v8594
      %v8596 = vpop.f32.mrf.mxu0
      %v8597 = vadd.f32 %v8536, %v8596
      %8598 = vmatmul.bf16.gmra.mxu0 %v7554
      %v8599 = vpop.f32.mrf.mxu0
      %v8600 = vpop.f32.mrf.mxu0
      %v8601 = vadd.f32 %v8540, %v8600
      %8602 = vmatmul.bf16.gmra.mxu0 %v7563
      %v8603 = vpop.f32.mrf.mxu0
      %v8604 = vadd.f32 %v8543, %v8603
      %v8605 = vpop.f32.mrf.mxu0
      %8606 = vmatmul.bf16.gmra.mxu0 %v7572
      %v8607 = vpop.f32.mrf.mxu0
      %v8608 = vadd.f32 %v8547, %v8607
      %v8609 = vpop.f32.mrf.mxu0
      %v8610 = vadd.f32 %v8549, %v8609
      %8611 = vmatmul.bf16.gmra.mxu0 %v7581
      %v8612 = vpop.f32.mrf.mxu0
      %v8613 = vpop.f32.mrf.mxu0
      %v8614 = vadd.f32 %v8553, %v8613
      %8615 = vmatmul.bf16.gmra.mxu0 %v7590
      %v8616 = vpop.f32.mrf.mxu0
      %v8617 = vadd.f32 %v8556, %v8616
      %v8618 = vpop.f32.mrf.mxu0
      %8619 = vdwg.mxu0
      %8620 = vmatpush.bf16.msra.mxu0 %v8059
      %8621 = vmatpush.bf16.msra.mxu0 %v8058
      %8622 = vmatpush.bf16.msra.mxu0 %v8057
      %8623 = vmatpush.bf16.msra.mxu0 %v8056
      %8624 = vmatpush.bf16.msra.mxu0 %v8055
      %8625 = vmatpush.bf16.msra.mxu0 %v8054
      %8626 = vmatpush.bf16.msra.mxu0 %v8053
      %8627 = vmatpush.bf16.msra.mxu0 %v8052
      %8628 = vmatmul.bf16.gmra.mxu0 %v7492
      %v8629 = vpop.f32.mrf.mxu0
      %v8630 = vadd.f32 %v8569, %v8629
      %v8631 = vpop.f32.mrf.mxu0
      %v8632 = vadd.f32 %v8571, %v8631
      %8633 = vmatmul.bf16.gmra.mxu0 %v7501
      %v8634 = vpop.f32.mrf.mxu0
      %v8635 = vpop.f32.mrf.mxu0
      %v8636 = vadd.f32 %v8575, %v8635
      %8637 = vmatmul.bf16.gmra.mxu0 %v7510
      %v8638 = vpop.f32.mrf.mxu0
      %v8639 = vadd.f32 %v8578, %v8638
      %v8640 = vpop.f32.mrf.mxu0
      %8641 = vmatmul.bf16.gmra.mxu0 %v7519
      %v8642 = vpop.f32.mrf.mxu0
      %v8643 = vadd.f32 %v8582, %v8642
      %v8644 = vpop.f32.mrf.mxu0
      %v8645 = vadd.f32 %v8584, %v8644
      %8646 = vmatmul.bf16.gmra.mxu0 %v7528
      %v8647 = vpop.f32.mrf.mxu0
      %v8648 = vpop.f32.mrf.mxu0
      %v8649 = vadd.f32 %v8588, %v8648
      %8650 = vmatmul.bf16.gmra.mxu0 %v7537
      %v8651 = vpop.f32.mrf.mxu0
      %v8652 = vadd.f32 %v8591, %v8651
      %v8653 = vpop.f32.mrf.mxu0
      %8654 = vmatmul.bf16.gmra.mxu0 %v7546
      %v8655 = vpop.f32.mrf.mxu0
      %v8656 = vadd.f32 %v8595, %v8655
      %v8657 = vpop.f32.mrf.mxu0
      %v8658 = vadd.f32 %v8597, %v8657
      %8659 = vmatmul.bf16.gmra.mxu0 %v7555
      %v8660 = vpop.f32.mrf.mxu0
      %v8661 = vpop.f32.mrf.mxu0
      %v8662 = vadd.f32 %v8601, %v8661
      %8663 = vmatmul.bf16.gmra.mxu0 %v7564
      %v8664 = vpop.f32.mrf.mxu0
      %v8665 = vadd.f32 %v8604, %v8664
      %v8666 = vpop.f32.mrf.mxu0
      %8667 = vmatmul.bf16.gmra.mxu0 %v7573
      %v8668 = vpop.f32.mrf.mxu0
      %v8669 = vadd.f32 %v8608, %v8668
      %v8670 = vpop.f32.mrf.mxu0
      %v8671 = vadd.f32 %v8610, %v8670
      %8672 = vmatmul.bf16.gmra.mxu0 %v7582
      %v8673 = vpop.f32.mrf.mxu0
      %v8674 = vpop.f32.mrf.mxu0
      %v8675 = vadd.f32 %v8614, %v8674
      %8676 = vmatmul.bf16.gmra.mxu0 %v7591
      %v8677 = vpop.f32.mrf.mxu0
      %v8678 = vadd.f32 %v8617, %v8677
      %v8679 = vpop.f32.mrf.mxu0
      %8680 = vdwg.mxu0
      %v8681 = vmul.f32 %v8630, %v4546
      %v8682 = vmul.f32 %v8632, %v4546
      %v8683 = vmul.f32 %v8636, %v4546
      %v8684 = vmul.f32 %v8639, %v4546
      %v8685 = vmul.f32 %v8643, %v4546
      %v8686 = vmul.f32 %v8645, %v4546
      %v8687 = vmul.f32 %v8649, %v4546
      %v8688 = vmul.f32 %v8652, %v4546
      %v8689 = vmul.f32 %v8656, %v4546
      %v8690 = vmul.f32 %v8658, %v4546
      %v8691 = vmul.f32 %v8662, %v4546
      %v8692 = vmul.f32 %v8665, %v4546
      %v8693 = vmul.f32 %v8669, %v4546
      %v8694 = vmul.f32 %v8671, %v4546
      %v8695 = vmul.f32 %v8675, %v4546
      %v8696 = vmul.f32 %v8678, %v4546
      %v8697 = vadd.f32 %v8681, %v4565
      %v8698 = vadd.f32 %v8682, %v4565
      %v8699 = vadd.f32 %v8683, %v4565
      %v8700 = vadd.f32 %v8684, %v4565
      %v8701 = vadd.f32 %v8685, %v4565
      %v8702 = vadd.f32 %v8686, %v4565
      %v8703 = vadd.f32 %v8687, %v4565
      %v8704 = vadd.f32 %v8688, %v4565
      %v8705 = vadd.f32 %v8689, %v4565
      %v8706 = vadd.f32 %v8690, %v4565
      %v8707 = vadd.f32 %v8691, %v4565
      %v8708 = vadd.f32 %v8692, %v4565
      %v8709 = vadd.f32 %v8693, %v4565
      %v8710 = vadd.f32 %v8694, %v4565
      %v8711 = vadd.f32 %v8695, %v4565
      %v8712 = vadd.f32 %v8696, %v4565
      %v8713 = vmax.f32 %v8697, 0.0
      %v8714 = vmax.f32 %v8698, 0.0
      %v8715 = vmax.f32 %v8699, 0.0
      %v8716 = vmax.f32 %v8700, 0.0
      %v8717 = vmax.f32 %v8701, 0.0
      %v8718 = vmax.f32 %v8702, 0.0
      %v8719 = vmax.f32 %v8703, 0.0
      %v8720 = vmax.f32 %v8704, 0.0
      %v8721 = vmax.f32 %v8705, 0.0
      %v8722 = vmax.f32 %v8706, 0.0
      %v8723 = vmax.f32 %v8707, 0.0
      %v8724 = vmax.f32 %v8708, 0.0
      %v8725 = vmax.f32 %v8709, 0.0
      %v8726 = vmax.f32 %v8710, 0.0
      %v8727 = vmax.f32 %v8711, 0.0
      %v8728 = vmax.f32 %v8712, 0.0
      %v8729 = vpack.c.bf16 %v8713, %v8713
      %v8730 = vpack.c.bf16 %v8714, %v8714
      %v8731 = vpack.c.bf16 %v8715, %v8715
      %v8732 = vpack.c.bf16 %v8716, %v8716
      %v8733 = vpack.c.bf16 %v8717, %v8717
      %v8734 = vpack.c.bf16 %v8718, %v8718
      %v8735 = vpack.c.bf16 %v8719, %v8719
      %v8736 = vpack.c.bf16 %v8720, %v8720
      %v8737 = vpack.c.bf16 %v8721, %v8721
      %v8738 = vpack.c.bf16 %v8722, %v8722
      %v8739 = vpack.c.bf16 %v8723, %v8723
      %v8740 = vpack.c.bf16 %v8724, %v8724
      %v8741 = vpack.c.bf16 %v8725, %v8725
      %v8742 = vpack.c.bf16 %v8726, %v8726
      %v8743 = vpack.c.bf16 %v8727, %v8727
      %v8744 = vpack.c.bf16 %v8728, %v8728
      %8745 = vst [vmem:[#allocation4] sm:$0xf] %v8729
      %8746 = vst [vmem:[#allocation4 + $0x4] sm:$0xf] %v8730
      %8747 = vst [vmem:[#allocation4 + $0x8] sm:$0xf] %v8731
      %8748 = vst [vmem:[#allocation4 + $0xc] sm:$0xf] %v8732
      %8749 = vst [vmem:[#allocation4 + $0x10] sm:$0xf] %v8733
      %8750 = vst [vmem:[#allocation4 + $0x14] sm:$0xf] %v8734
      %8751 = vst [vmem:[#allocation4 + $0x18] sm:$0xf] %v8735
      %8752 = vst [vmem:[#allocation4 + $0x1c] sm:$0xf] %v8736
      %8753 = vst [vmem:[#allocation4 + $0x20] sm:$0xf] %v8737
      %8754 = vst [vmem:[#allocation4 + $0x24] sm:$0xf] %v8738
      %8755 = vst [vmem:[#allocation4 + $0x28] sm:$0xf] %v8739
      %8756 = vst [vmem:[#allocation4 + $0x2c] sm:$0xf] %v8740
      %8757 = vst [vmem:[#allocation4 + $0x30] sm:$0xf] %v8741
      %8758 = vst [vmem:[#allocation4 + $0x34] sm:$0xf] %v8742
      %8759 = vst [vmem:[#allocation4 + $0x38] sm:$0xf] %v8743
      %8760 = vst [vmem:[#allocation4 + $0x3c] sm:$0xf] %v8744
      %v8761 = vld [vmem:[#allocation4] sm:$0xf]
      %v8762 = vld [vmem:[#allocation4 + $0x4] sm:$0xf]
      %v8763 = vld [vmem:[#allocation4 + $0x8] sm:$0xf]
      %v8764 = vld [vmem:[#allocation4 + $0xc] sm:$0xf]
      %v8765 = vld [vmem:[#allocation4 + $0x10] sm:$0xf]
      %v8766 = vld [vmem:[#allocation4 + $0x14] sm:$0xf]
      %v8767 = vld [vmem:[#allocation4 + $0x18] sm:$0xf]
      %v8768 = vld [vmem:[#allocation4 + $0x1c] sm:$0xf]
      %v8769 = vld [vmem:[#allocation4 + $0x20] sm:$0xf]
      %v8770 = vld [vmem:[#allocation4 + $0x24] sm:$0xf]
      %v8771 = vld [vmem:[#allocation4 + $0x28] sm:$0xf]
      %v8772 = vld [vmem:[#allocation4 + $0x2c] sm:$0xf]
      %v8773 = vld [vmem:[#allocation4 + $0x30] sm:$0xf]
      %v8774 = vld [vmem:[#allocation4 + $0x34] sm:$0xf]
      %v8775 = vld [vmem:[#allocation4 + $0x38] sm:$0xf]
      %v8776 = vld [vmem:[#allocation4 + $0x3c] sm:$0xf]
      %v8777 = vld [vmem:[%s7] sm:$0xf]
      %v8778 = vld [vmem:[%s7 + $0x4] sm:$0xf]
      %v8779 = vld [vmem:[%s7 + $0x8] sm:$0xf]
      %v8780 = vld [vmem:[%s7 + $0xc] sm:$0xf]
      %v8781 = vld [vmem:[%s7 + $0x10] sm:$0xf]
      %v8782 = vld [vmem:[%s7 + $0x14] sm:$0xf]
      %v8783 = vld [vmem:[%s7 + $0x18] sm:$0xf]
      %v8784 = vld [vmem:[%s7 + $0x1c] sm:$0xf]
      %v8785 = vld [vmem:[%s7 + $0x20] sm:$0xf]
      %v8786 = vld [vmem:[%s7 + $0x24] sm:$0xf]
      %v8787 = vld [vmem:[%s7 + $0x28] sm:$0xf]
      %v8788 = vld [vmem:[%s7 + $0x2c] sm:$0xf]
      %v8789 = vld [vmem:[%s7 + $0x30] sm:$0xf]
      %v8790 = vld [vmem:[%s7 + $0x34] sm:$0xf]
      %v8791 = vld [vmem:[%s7 + $0x38] sm:$0xf]
      %v8792 = vld [vmem:[%s7 + $0x3c] sm:$0xf]
      %v8809 = vunpack.c.l.b16 %v8761
      %v8810 = vunpack.c.l.b16 %v8762
      %v8811 = vunpack.c.l.b16 %v8763
      %v8812 = vunpack.c.l.b16 %v8764
      %v8813 = vunpack.c.l.b16 %v8765
      %v8814 = vunpack.c.l.b16 %v8766
      %v8815 = vunpack.c.l.b16 %v8767
      %v8816 = vunpack.c.l.b16 %v8768
      %v8817 = vunpack.c.l.b16 %v8769
      %v8818 = vunpack.c.l.b16 %v8770
      %v8819 = vunpack.c.l.b16 %v8771
      %v8820 = vunpack.c.l.b16 %v8772
      %v8821 = vunpack.c.l.b16 %v8773
      %v8822 = vunpack.c.l.b16 %v8774
      %v8823 = vunpack.c.l.b16 %v8775
      %v8824 = vunpack.c.l.b16 %v8776
      %v8825 = vpack.c.b16 %v8810, %v8809
      %v8826 = vpack.c.b16 %v8812, %v8811
      %v8827 = vpack.c.b16 %v8814, %v8813
      %v8828 = vpack.c.b16 %v8816, %v8815
      %v8829 = vpack.c.b16 %v8818, %v8817
      %v8830 = vpack.c.b16 %v8820, %v8819
      %v8831 = vpack.c.b16 %v8822, %v8821
      %v8832 = vpack.c.b16 %v8824, %v8823
      %v8857 = vunpack.c.l.b16 %v8777
      %v8858 = vunpack.c.l.b16 %v8778
      %v8859 = vunpack.c.l.b16 %v8779
      %v8860 = vunpack.c.l.b16 %v8780
      %v8861 = vunpack.c.l.b16 %v8781
      %v8862 = vunpack.c.l.b16 %v8782
      %v8863 = vunpack.c.l.b16 %v8783
      %v8864 = vunpack.c.l.b16 %v8784
      %v8865 = vunpack.c.l.b16 %v8785
      %v8866 = vunpack.c.l.b16 %v8786
      %v8867 = vunpack.c.l.b16 %v8787
      %v8868 = vunpack.c.l.b16 %v8788
      %v8869 = vunpack.c.l.b16 %v8789
      %v8870 = vunpack.c.l.b16 %v8790
      %v8871 = vunpack.c.l.b16 %v8791
      %v8872 = vunpack.c.l.b16 %v8792
      %v8873 = vpack.c.b16 %v8858, %v8857
      %v8874 = vpack.c.b16 %v8860, %v8859
      %v8875 = vpack.c.b16 %v8862, %v8861
      %v8876 = vpack.c.b16 %v8864, %v8863
      %v8877 = vpack.c.b16 %v8866, %v8865
      %v8878 = vpack.c.b16 %v8868, %v8867
      %v8879 = vpack.c.b16 %v8870, %v8869
      %v8880 = vpack.c.b16 %v8872, %v8871
      %8889 = vmatpush.bf16.msra.mxu0 %v8880
      %8890 = vmatpush.bf16.msra.mxu0 %v8879
      %8891 = vmatpush.bf16.msra.mxu0 %v8878
      %8892 = vmatpush.bf16.msra.mxu0 %v8877
      %8893 = vmatpush.bf16.msra.mxu0 %v8876
      %8894 = vmatpush.bf16.msra.mxu0 %v8875
      %8895 = vmatpush.bf16.msra.mxu0 %v8874
      %8896 = vmatpush.bf16.msra.mxu0 %v8873
      %8897 = vmatmul.bf16.gmra.mxu0 %v8825
      %v8898 = vpop.f32.mrf.mxu0
      %v8899 = vadd.f32 0.0, %v8898
      %v8900 = vpop.f32.mrf.mxu0
      %v8901 = vadd.f32 0.0, %v8900
      %8902 = vmatmul.bf16.gmra.mxu0 %v8826
      %v8903 = vpop.f32.mrf.mxu0
      %v8904 = vadd.f32 0.0, %v8903
      %v8905 = vpop.f32.mrf.mxu0
      %v8906 = vadd.f32 0.0, %v8905
      %8907 = vmatmul.bf16.gmra.mxu0 %v8827
      %v8908 = vpop.f32.mrf.mxu0
      %v8909 = vadd.f32 0.0, %v8908
      %v8910 = vpop.f32.mrf.mxu0
      %v8911 = vadd.f32 0.0, %v8910
      %8912 = vmatmul.bf16.gmra.mxu0 %v8828
      %v8913 = vpop.f32.mrf.mxu0
      %v8914 = vadd.f32 0.0, %v8913
      %v8915 = vpop.f32.mrf.mxu0
      %v8916 = vadd.f32 0.0, %v8915
      %8917 = vmatmul.bf16.gmra.mxu0 %v8829
      %v8918 = vpop.f32.mrf.mxu0
      %v8919 = vadd.f32 0.0, %v8918
      %v8920 = vpop.f32.mrf.mxu0
      %v8921 = vadd.f32 0.0, %v8920
      %8922 = vmatmul.bf16.gmra.mxu0 %v8830
      %v8923 = vpop.f32.mrf.mxu0
      %v8924 = vadd.f32 0.0, %v8923
      %v8925 = vpop.f32.mrf.mxu0
      %v8926 = vadd.f32 0.0, %v8925
      %8927 = vmatmul.bf16.gmra.mxu0 %v8831
      %v8928 = vpop.f32.mrf.mxu0
      %v8929 = vadd.f32 0.0, %v8928
      %v8930 = vpop.f32.mrf.mxu0
      %v8931 = vadd.f32 0.0, %v8930
      %8932 = vmatmul.bf16.gmra.mxu0 %v8832
      %v8933 = vpop.f32.mrf.mxu0
      %v8934 = vadd.f32 0.0, %v8933
      %v8935 = vpop.f32.mrf.mxu0
      %v8936 = vadd.f32 0.0, %v8935
      %8937 = vdwg.mxu0
      %v8938 = vmul.f32 %v8899, %v4809
      %v8939 = vmul.f32 %v8901, %v4809
      %v8940 = vmul.f32 %v8904, %v4809
      %v8941 = vmul.f32 %v8906, %v4809
      %v8942 = vmul.f32 %v8909, %v4809
      %v8943 = vmul.f32 %v8911, %v4809
      %v8944 = vmul.f32 %v8914, %v4809
      %v8945 = vmul.f32 %v8916, %v4809
      %v8946 = vmul.f32 %v8919, %v4809
      %v8947 = vmul.f32 %v8921, %v4809
      %v8948 = vmul.f32 %v8924, %v4809
      %v8949 = vmul.f32 %v8926, %v4809
      %v8950 = vmul.f32 %v8929, %v4809
      %v8951 = vmul.f32 %v8931, %v4809
      %v8952 = vmul.f32 %v8934, %v4809
      %v8953 = vmul.f32 %v8936, %v4809
      %v8954 = vadd.f32 %v8938, %v4828
      %v8955 = vadd.f32 %v8939, %v4828
      %v8956 = vadd.f32 %v8940, %v4828
      %v8957 = vadd.f32 %v8941, %v4828
      %v8958 = vadd.f32 %v8942, %v4828
      %v8959 = vadd.f32 %v8943, %v4828
      %v8960 = vadd.f32 %v8944, %v4828
      %v8961 = vadd.f32 %v8945, %v4828
      %v8962 = vadd.f32 %v8946, %v4828
      %v8963 = vadd.f32 %v8947, %v4828
      %v8964 = vadd.f32 %v8948, %v4828
      %v8965 = vadd.f32 %v8949, %v4828
      %v8966 = vadd.f32 %v8950, %v4828
      %v8967 = vadd.f32 %v8951, %v4828
      %v8968 = vadd.f32 %v8952, %v4828
      %v8969 = vadd.f32 %v8953, %v4828
      %v8970 = vld [vmem:[%s354 + $0x80] sm:$0xff]
      %v8971 = vld [vmem:[%s354 + $0x88] sm:$0xff]
      %v8972 = vld [vmem:[%s354 + $0x90] sm:$0xff]
      %v8973 = vld [vmem:[%s354 + $0x98] sm:$0xff]
      %v8974 = vld [vmem:[%s354 + $0xa0] sm:$0xff]
      %v8975 = vld [vmem:[%s354 + $0xa8] sm:$0xff]
      %v8976 = vld [vmem:[%s354 + $0xb0] sm:$0xff]
      %v8977 = vld [vmem:[%s354 + $0xb8] sm:$0xff]
      %v8978 = vld [vmem:[%s354 + $0xc0] sm:$0xff]
      %v8979 = vld [vmem:[%s354 + $0xc8] sm:$0xff]
      %v8980 = vld [vmem:[%s354 + $0xd0] sm:$0xff]
      %v8981 = vld [vmem:[%s354 + $0xd8] sm:$0xff]
      %v8982 = vld [vmem:[%s354 + $0xe0] sm:$0xff]
      %v8983 = vld [vmem:[%s354 + $0xe8] sm:$0xff]
      %v8984 = vld [vmem:[%s354 + $0xf0] sm:$0xff]
      %v8985 = vld [vmem:[%s354 + $0xf8] sm:$0xff]
      %v8986 = vadd.f32 %v8954, %v8970
      %v8987 = vadd.f32 %v8955, %v8971
      %v8988 = vadd.f32 %v8956, %v8972
      %v8989 = vadd.f32 %v8957, %v8973
      %v8990 = vadd.f32 %v8958, %v8974
      %v8991 = vadd.f32 %v8959, %v8975
      %v8992 = vadd.f32 %v8960, %v8976
      %v8993 = vadd.f32 %v8961, %v8977
      %v8994 = vadd.f32 %v8962, %v8978
      %v8995 = vadd.f32 %v8963, %v8979
      %v8996 = vadd.f32 %v8964, %v8980
      %v8997 = vadd.f32 %v8965, %v8981
      %v8998 = vadd.f32 %v8966, %v8982
      %v8999 = vadd.f32 %v8967, %v8983
      %v9000 = vadd.f32 %v8968, %v8984
      %v9001 = vadd.f32 %v8969, %v8985
      %v9002 = vmax.f32 %v8986, 0.0
      %v9003 = vmax.f32 %v8987, 0.0
      %v9004 = vmax.f32 %v8988, 0.0
      %v9005 = vmax.f32 %v8989, 0.0
      %v9006 = vmax.f32 %v8990, 0.0
      %v9007 = vmax.f32 %v8991, 0.0
      %v9008 = vmax.f32 %v8992, 0.0
      %v9009 = vmax.f32 %v8993, 0.0
      %v9010 = vmax.f32 %v8994, 0.0
      %v9011 = vmax.f32 %v8995, 0.0
      %v9012 = vmax.f32 %v8996, 0.0
      %v9013 = vmax.f32 %v8997, 0.0
      %v9014 = vmax.f32 %v8998, 0.0
      %v9015 = vmax.f32 %v8999, 0.0
      %v9016 = vmax.f32 %v9000, 0.0
      %v9017 = vmax.f32 %v9001, 0.0
      %9018 = vst.msk [vmem:[%s359 + $0x80] sm:$0xff] %vm407, %v9002
      %9019 = vst.msk [vmem:[%s359 + $0x88] sm:$0xff] %vm407, %v9003
      %9020 = vst.msk [vmem:[%s359 + $0x90] sm:$0xff] %vm407, %v9004
      %9021 = vst.msk [vmem:[%s359 + $0x98] sm:$0xff] %vm407, %v9005
      %9022 = vst.msk [vmem:[%s359 + $0xa0] sm:$0xff] %vm407, %v9006
      %9023 = vst.msk [vmem:[%s359 + $0xa8] sm:$0xff] %vm407, %v9007
      %9024 = vst.msk [vmem:[%s359 + $0xb0] sm:$0xff] %vm407, %v9008
      %9025 = vst.msk [vmem:[%s359 + $0xb8] sm:$0xff] %vm407, %v9009
      %9026 = vst.msk [vmem:[%s359 + $0xc0] sm:$0xff] %vm407, %v9010
      %9027 = vst.msk [vmem:[%s359 + $0xc8] sm:$0xff] %vm407, %v9011
      %9028 = vst.msk [vmem:[%s359 + $0xd0] sm:$0xff] %vm407, %v9012
      %9029 = vst.msk [vmem:[%s359 + $0xd8] sm:$0xff] %vm407, %v9013
      %9030 = vst.msk [vmem:[%s359 + $0xe0] sm:$0xff] %vm407, %v9014
      %9031 = vst.msk [vmem:[%s359 + $0xe8] sm:$0xff] %vm407, %v9015
      %9032 = vst.msk [vmem:[%s359 + $0xf0] sm:$0xff] %vm407, %v9016
      %9033 = vst.msk [vmem:[%s359 + $0xf8] sm:$0xff] %vm407, %v9017
      %p9034 = scmp.lt.s32.totalorder %s21, 1
      %s9035 = scalar_select %p9034, %s21, 1
      %s9036 = smul.addr %s9035, 32
      %s9037 = smul.addr %s9036, 8
      %s9038 = scalar_lea.vmem %s10, %s9037
      // Predicated region
      $region61: #{bottleneck_forward.1} parent=59 // pred_check
        %p9039 = pneg %p254
      $region62: #{bottleneck_forward.1} parent=59 // pred_check_branch
        %9041 = sbr.rel (%p9039) target = $region64
      $region63: #{bottleneck_forward.1} parent=59 // pred_region
        _
      $region64: #{bottleneck_forward.1} parent=59 // pred_fallthru
        _
    $region60: #{bottleneck_forward.1} parent=5 // pred_fallthru
      _
    %p9042 = scmp.le.s32.totalorder 2, %s16
    // Predicated region
    $region65: #{bottleneck_forward.1} parent=5 // pred_check
      %p9043 = pneg %p9042
    $region66: #{bottleneck_forward.1} parent=5 // pred_check_branch
      %9045 = sbr.rel (%p9043) target = $region68
    $region67: #{bottleneck_forward.1} parent=5 // pred_region
      %s9046 = ssub.s32 %s16, 2
      // Predicated region
      $region69: #{bottleneck_forward.1} parent=67 // pred_check
        %p9047 = pneg %p260
      $region70: #{bottleneck_forward.1} parent=67 // pred_check_branch
        %9049 = sbr.rel (%p9047) target = $region72
      $region71: #{bottleneck_forward.1} parent=67 // pred_region
        %p9050 = scmp.lt.s32.totalorder %s22, 1
        %s9051 = scalar_select %p9050, %s22, 1
        %s9052 = smul.addr %s9051, 32
        %s9053 = smul.addr %s9052, 8
        %s9054 = scalar_lea.vmem %s10, %s9053
      $region72: #{bottleneck_forward.1} parent=67 // pred_fallthru
        _
    $region68: #{bottleneck_forward.1} parent=5 // pred_fallthru
      _
  $region6: #{bottleneck_forward.1} parent=0 // loop_footer
    %s20 = sadd.s32 1, %s16
  $region7: #{bottleneck_forward.1} parent=0 // loop_footer_branch
    %15 = sbr.rel target = $region3
  $region8: #{bottleneck_forward.1} parent=0 // loop_exit
    _

</llo_original>
